<compile_context>
chip_gen: v6e
topology: v6e:2x2x1
jax: 0.10.0
libtpu: 0.0.40
codegen_flags: <defaults>
</compile_context>

<pallas_src>
import functools

import jax
import jax.numpy as jnp
from jax.experimental import pallas as pl
from jax.experimental.pallas import tpu as pltpu


def round_up(x, m):
    return ((x + m - 1) // m) * m


def _pad2d(x, rows, cols, value=0.0):
    r, c = x.shape
    if (r, c) == (rows, cols):
        return x
    return jnp.pad(x, ((0, rows - r), (0, cols - c)), constant_values=value)


# ----------------------------- Pallas kernels -----------------------------

def _matmul_kernel(a_ref, b_ref, o_ref, acc_ref):
    @pl.when(pl.program_id(2) == 0)
    def _():
        acc_ref[...] = jnp.zeros_like(acc_ref)

    acc_ref[...] += jnp.dot(a_ref[...], b_ref[...],
                            preferred_element_type=jnp.float32)

    @pl.when(pl.program_id(2) == pl.num_programs(2) - 1)
    def _():
        o_ref[...] = acc_ref[...].astype(o_ref.dtype)


def pallas_matmul(a, b):
    """a: [M, K], b: [K, N] -> [M, N] f32.

    bf16 MXU inputs with f32 accumulation. Grid tiled over (M, N, K); K is the
    innermost 'arbitrary' reduction axis, M/N are 'parallel'.
    """
    M, K = a.shape
    _, N = b.shape
    tm = min(256, round_up(M, 8))
    tn = min(256, round_up(N, 128))   # don't inflate narrow (64-ch) outputs past 128
    tk = min(256, round_up(K, 128))
    Mp, Np, Kp = round_up(M, tm), round_up(N, tn), round_up(K, tk)

    a_p = _pad2d(a.astype(jnp.bfloat16), Mp, Kp)
    b_p = _pad2d(b.astype(jnp.bfloat16), Kp, Np)

    out = pl.pallas_call(
        _matmul_kernel,
        out_shape=jax.ShapeDtypeStruct((Mp, Np), jnp.float32),
        grid_spec=pltpu.PrefetchScalarGridSpec(
            num_scalar_prefetch=0,
            grid=(Mp // tm, Np // tn, Kp // tk),
            in_specs=[pl.BlockSpec((tm, tk), lambda i, j, k: (i, k)),
                      pl.BlockSpec((tk, tn), lambda i, j, k: (k, j))],
            out_specs=pl.BlockSpec((tm, tn), lambda i, j, k: (i, j)),
            scratch_shapes=[pltpu.VMEM((tm, tn), jnp.float32)]),
        compiler_params=pltpu.CompilerParams(
            dimension_semantics=("parallel", "parallel", "arbitrary")),
        cost_estimate=pl.CostEstimate(
            flops=2 * Mp * Np * Kp,
            transcendentals=0,
            bytes_accessed=2 * (Mp * Kp + Kp * Np) + 4 * Mp * Np),
    )(a_p, b_p)
    if (Mp, Np) != (M, N):
        out = out[:M, :N]
    return out


def _bn_stats_kernel(x_ref, s_ref):
    # Accumulate per-channel sum (row 0) and sum of squares (row 1) across M tiles.
    @pl.when(pl.program_id(0) == 0)
    def _():
        s_ref[...] = jnp.zeros_like(s_ref)

    x = x_ref[...]
    s_ref[0:1, :] += jnp.sum(x, axis=0, keepdims=True)
    s_ref[1:2, :] += jnp.sum(x * x, axis=0, keepdims=True)


def _bn_norm_kernel(*refs, m_true, eps, relu, has_res):
    if has_res:
        x_ref, s_ref, g_ref, b_ref, r_ref, o_ref = refs
    else:
        x_ref, s_ref, g_ref, b_ref, o_ref = refs
        r_ref = None
    inv_m = 1.0 / m_true
    mean = s_ref[0:1, :] * inv_m
    # Guard against tiny negative variance from the single-pass E[x^2] - mean^2 form.
    var = jnp.maximum(s_ref[1:2, :] * inv_m - mean * mean, 0.0)
    scale = g_ref[...] * jax.lax.rsqrt(var + eps)
    shift = b_ref[...] - mean * scale
    y = x_ref[...] * scale + shift
    if has_res:
        y = y + r_ref[...]
    if relu:
        y = jnp.maximum(y, 0.0)
    o_ref[...] = y


def pallas_bn_act(x2d, gamma, beta, residual2d, relu, eps=1e-5):
    """Train-mode BatchNorm (batch statistics) + optional residual + optional ReLU.

    Two tiled Pallas passes:
      pass 1: per-channel sum / sum-of-squares accumulated over M tiles ('arbitrary')
      pass 2: normalize (+residual) (+ReLU) over independent M tiles ('parallel')
    """
    M, C = x2d.shape
    Cp = round_up(C, 128)
    tm = min(512, round_up(M, 8))
    Mp = round_up(M, tm)

    x_p = _pad2d(x2d, Mp, Cp)                # zero pad rows keep channel sums exact
    g_p = _pad2d(gamma.reshape(1, C), 1, Cp)
    b_p = _pad2d(beta.reshape(1, C), 1, Cp)

    stats = pl.pallas_call(
        _bn_stats_kernel,
        out_shape=jax.ShapeDtypeStruct((8, Cp), jnp.float32),
        grid_spec=pltpu.PrefetchScalarGridSpec(
            num_scalar_prefetch=0,
            grid=(Mp // tm,),
            in_specs=[pl.BlockSpec((tm, Cp), lambda i: (i, 0))],
            out_specs=pl.BlockSpec((8, Cp), lambda i: (0, 0))),
        compiler_params=pltpu.CompilerParams(
            dimension_semantics=("arbitrary",)),
    )(x_p)

    has_res = residual2d is not None
    inputs = [x_p, stats, g_p, b_p]
    in_specs = [pl.BlockSpec((tm, Cp), lambda i: (i, 0)),
                pl.BlockSpec((8, Cp), lambda i: (0, 0)),
                pl.BlockSpec((1, Cp), lambda i: (0, 0)),
                pl.BlockSpec((1, Cp), lambda i: (0, 0))]
    if has_res:
        inputs.append(_pad2d(residual2d, Mp, Cp))
        in_specs.append(pl.BlockSpec((tm, Cp), lambda i: (i, 0)))

    kern = functools.partial(_bn_norm_kernel, m_true=float(M), eps=eps,
                             relu=relu, has_res=has_res)
    out = pl.pallas_call(
        kern,
        out_shape=jax.ShapeDtypeStruct((Mp, Cp), jnp.float32),
        grid_spec=pltpu.PrefetchScalarGridSpec(
            num_scalar_prefetch=0,
            grid=(Mp // tm,),
            in_specs=in_specs,
            out_specs=pl.BlockSpec((tm, Cp), lambda i: (i, 0))),
        compiler_params=pltpu.CompilerParams(
            dimension_semantics=("parallel",)),
    )(*inputs)
    if (Mp, Cp) != (M, C):
        out = out[:M, :C]
    return out


def _maxpool9_kernel(*refs):
    o_ref = refs[-1]
    m = refs[0][...]
    for r in refs[1:-1]:
        m = jnp.maximum(m, r[...])
    o_ref[...] = m


def maxpool_3x3_s2_p1(x):
    N, H, W, C = x.shape
    xp = jnp.pad(x, ((0, 0), (1, 1), (1, 1), (0, 0)), constant_values=-jnp.inf)
    OH = (H - 1) // 2 + 1
    OW = (W - 1) // 2 + 1
    M = N * OH * OW
    Cp = round_up(C, 128)
    tm = min(512, round_up(M, 8))
    Mp = round_up(M, tm)
    views = []
    for ky in range(3):
        for kx in range(3):
            v = xp[:, ky:ky + 2 * (OH - 1) + 1:2,
                      kx:kx + 2 * (OW - 1) + 1:2, :].reshape(M, C)
            views.append(_pad2d(v, Mp, Cp, value=-jnp.inf))
    out = pl.pallas_call(
        _maxpool9_kernel,
        out_shape=jax.ShapeDtypeStruct((Mp, Cp), jnp.float32),
        grid_spec=pltpu.PrefetchScalarGridSpec(
            num_scalar_prefetch=0,
            grid=(Mp // tm,),
            in_specs=[pl.BlockSpec((tm, Cp), lambda i: (i, 0))
                      for _ in range(9)],
            out_specs=pl.BlockSpec((tm, Cp), lambda i: (i, 0))),
        compiler_params=pltpu.CompilerParams(
            dimension_semantics=("parallel",)),
    )(*views)
    if (Mp, Cp) != (M, C):
        out = out[:M, :C]
    return out.reshape(N, OH, OW, C)


# ----------------------------- network glue (JAX) -----------------------------

def conv2d(x, w, stride, padding):
    """x: NHWC f32, w: OIHW (PyTorch layout), no bias. Returns NHWC f32."""
    N, H, W, Cin = x.shape
    Cout, _, KH, KW = w.shape
    OH = (H + 2 * padding - KH) // stride + 1
    OW = (W + 2 * padding - KW) // stride + 1
    xb = x.astype(jnp.bfloat16)
    wb = jnp.transpose(w, (2, 3, 1, 0)).reshape(KH * KW * Cin, Cout).astype(jnp.bfloat16)
    if KH == 1 and KW == 1 and padding == 0:
        # 1x1 conv: no im2col at all -- (strided) view + reshape IS the A matrix.
        if stride != 1:
            xb = xb[:, ::stride, ::stride, :]
        A = xb.reshape(N * OH * OW, Cin)
    else:
        # TODO(synk): implicit im2col (slicing the padded NHWC input from the matmul
        # grid's index_map) would avoid materializing this KH*KW-expanded patch
        # tensor; kept as bf16 host-side im2col glue here.
        xpad = jnp.pad(xb, ((0, 0), (padding, padding), (padding, padding), (0, 0)))
        patches = [xpad[:, ky:ky + stride * (OH - 1) + 1:stride,
                           kx:kx + stride * (OW - 1) + 1:stride, :]
                   for ky in range(KH) for kx in range(KW)]
        A = jnp.concatenate(patches, axis=-1).reshape(N * OH * OW, KH * KW * Cin)
    out = pallas_matmul(A, wb)
    return out.reshape(N, OH, OW, Cout)


def bn_act(x, gamma, beta, relu=True, residual=None):
    N, H, W, C = x.shape
    x2 = x.reshape(N * H * W, C)
    r2 = residual.reshape(N * H * W, C) if residual is not None else None
    out = pallas_bn_act(x2, gamma, beta, r2, relu)
    return out.reshape(N, H, W, C)


# resnet50 children[0:6] => conv1, bn1, relu, maxpool, layer1 (3 blocks), layer2 (4 blocks)
LAYER_CFG = [
    (64, 3, 1),    # layer1: planes=64,  blocks=3, stride=1  -> 256 channels
    (128, 4, 2),   # layer2: planes=128, blocks=4, stride=2  -> 512 channels
]


def bottleneck_forward(x, p, stride):
    identity = x
    out = conv2d(x, p['w1'], 1, 0)
    out = bn_act(out, p['g1'], p['b1'], relu=True)
    out = conv2d(out, p['w2'], stride, 1)
    out = bn_act(out, p['g2'], p['b2'], relu=True)
    out = conv2d(out, p['w3'], 1, 0)
    if 'wd' in p:
        identity = conv2d(x, p['wd'], stride, 0)
        identity = bn_act(identity, p['gd'], p['bd'], relu=False)
    return bn_act(out, p['g3'], p['b3'], relu=True, residual=identity)


def resnet50_features_forward(x_nchw, params):
    # layout: NCHW in/out (PyTorch), NHWC internally.
    x = jnp.transpose(x_nchw, (0, 2, 3, 1)).astype(jnp.float32)
    x = conv2d(x, params['conv1_w'], stride=2, padding=3)
    x = bn_act(x, params['bn1_g'], params['bn1_b'], relu=True)
    x = maxpool_3x3_s2_p1(x)
    for layer_params, (_planes, _blocks, stride) in zip(params['layers'], LAYER_CFG):
        for i, p in enumerate(layer_params):
            x = bottleneck_forward(x, p, stride if i == 0 else 1)
    return jnp.transpose(x, (0, 3, 1, 2))


# ----------------------------- parameter init -----------------------------

def _conv_w(key, cout, cin, k):
    fan_in = cin * k * k
    return jax.random.normal(key, (cout, cin, k, k), jnp.float32) * (2.0 / fan_in) ** 0.5


def _bn_p(key, c):
    k1, k2 = jax.random.split(key)
    g = 1.0 + 0.1 * jax.random.normal(k1, (c,), jnp.float32)
    b = 0.1 * jax.random.normal(k2, (c,), jnp.float32)
    return g, b


def build_params(key):
    keys = iter(jax.random.split(key, 256))
    params = {'conv1_w': _conv_w(next(keys), 64, 3, 7)}
    params['bn1_g'], params['bn1_b'] = _bn_p(next(keys), 64)
    layers = []
    inplanes = 64
    for planes, blocks, _stride in LAYER_CFG:
        layer = []
        for i in range(blocks):
            p = {}
            p['w1'] = _conv_w(next(keys), planes, inplanes, 1)
            p['g1'], p['b1'] = _bn_p(next(keys), planes)
            p['w2'] = _conv_w(next(keys), planes, planes, 3)
            p['g2'], p['b2'] = _bn_p(next(keys), planes)
            p['w3'] = _conv_w(next(keys), planes * 4, planes, 1)
            p['g3'], p['b3'] = _bn_p(next(keys), planes * 4)
            if i == 0:
                p['wd'] = _conv_w(next(keys), planes * 4, inplanes, 1)
                p['gd'], p['bd'] = _bn_p(next(keys), planes * 4)
            layer.append(p)
            inplanes = planes * 4
        layers.append(layer)
    params['layers'] = layers
    return params


if __name__ == "__main__":
    key = jax.random.PRNGKey(0)
    kx, kp = jax.random.split(key)
    # Small input consistent with the module: NCHW, 3-channel image.
    x = jax.random.normal(kx, (2, 3, 32, 32), jnp.float32)
    params = build_params(kp)

    fwd = jax.jit(resnet50_features_forward)
    out = jax.block_until_ready(fwd(x, params))

    # children[0:6] of resnet50 downsample by 8x and end at 512 channels.
    assert out.shape == (2, 512, 4, 4), out.shape
    assert bool(jnp.all(jnp.isfinite(out)))
    print("KERNEL_OK")
</pallas_src>

<mosaic_0001>
module attributes {stable_mosaic.version = 11 : i64} {
  func.func @_matmul_kernel(%arg0: i32, %arg1: i32, %arg2: i32, %arg3: memref<256x256xbf16, #tpu.memory_space<vmem>>, %arg4: memref<256x128xbf16, #tpu.memory_space<vmem>>, %arg5: memref<256x128xf32, #tpu.memory_space<vmem>>, %arg6: memref<256x128xf32, #tpu.memory_space<vmem>>) attributes {dimension_semantics = [#tpu.dimension_semantics<parallel>, #tpu.dimension_semantics<parallel>, #tpu.dimension_semantics<arbitrary>], iteration_bounds = array<i64: 2, 1, 1>, scalar_prefetch = 0 : i64, scratch_operands = 1 : i64, tpu.core_type = #tpu.core_type<tc>, window_params = [{transform_indices = @transform_0, window_bounds = array<i64: 256, 256>}, {transform_indices = @transform_1, window_bounds = array<i64: 256, 128>}, {transform_indices = @transform_2, window_bounds = array<i64: 256, 128>}]} {
    %c0_i32 = arith.constant 0 : i32
    %0 = arith.cmpi eq, %arg2, %c0_i32 : i32
    %1 = arith.extui %0 : i1 to i32
    %c0_i32_0 = arith.constant 0 : i32
    %2 = arith.cmpi ne, %1, %c0_i32_0 : i32
    scf.if %2 {
      %cst_10 = arith.constant 0.000000e+00 : f32
      %12 = vector.broadcast %cst_10 : f32 to vector<256x128xf32>
      %c0_11 = arith.constant 0 : index
      %c0_12 = arith.constant 0 : index
      %13 = vector.load %arg6[%c0_11, %c0_12] : memref<256x128xf32, #tpu.memory_space<vmem>>, vector<256x128xf32>
      tpu.vector_store %arg6[%c0_11, %c0_12], %12 {strides = array<i32>} : memref<256x128xf32, #tpu.memory_space<vmem>>, vector<256x128xf32>,
    } else {
    }
    %c0 = arith.constant 0 : index
    %c0_1 = arith.constant 0 : index
    %3 = vector.load %arg6[%c0, %c0_1] : memref<256x128xf32, #tpu.memory_space<vmem>>, vector<256x128xf32>
    %c0_2 = arith.constant 0 : index
    %c0_3 = arith.constant 0 : index
    %4 = vector.load %arg3[%c0_2, %c0_3] : memref<256x256xbf16, #tpu.memory_space<vmem>>, vector<256x256xbf16>
    %c0_4 = arith.constant 0 : index
    %c0_5 = arith.constant 0 : index
    %5 = vector.load %arg4[%c0_4, %c0_5] : memref<256x128xbf16, #tpu.memory_space<vmem>>, vector<256x128xbf16>
    %cst = arith.constant dense<0.000000e+00> : vector<256x128xf32>
    %6 = tpu.matmul %4, %5, %cst {dimension_numbers = #tpu.dot_dimension_numbers<[1], [0], [0], [1], [0, 0, 1, 1], [], []>} : vector<256x256xbf16>, vector<256x128xbf16>, vector<256x128xf32> -> vector<256x128xf32>
    %7 = arith.addf %3, %6 : vector<256x128xf32>
    %c0_6 = arith.constant 0 : index
    %c0_7 = arith.constant 0 : index
    %8 = vector.load %arg6[%c0_6, %c0_7] : memref<256x128xf32, #tpu.memory_space<vmem>>, vector<256x128xf32>
    tpu.vector_store %arg6[%c0_6, %c0_7], %7 {strides = array<i32>} : memref<256x128xf32, #tpu.memory_space<vmem>>, vector<256x128xf32>,
    %c0_i32_8 = arith.constant 0 : i32
    %9 = arith.cmpi eq, %arg2, %c0_i32_8 : i32
    %10 = arith.extui %9 : i1 to i32
    %c0_i32_9 = arith.constant 0 : i32
    %11 = arith.cmpi ne, %10, %c0_i32_9 : i32
    scf.if %11 {
      %c0_10 = arith.constant 0 : index
      %c0_11 = arith.constant 0 : index
      %12 = vector.load %arg6[%c0_10, %c0_11] : memref<256x128xf32, #tpu.memory_space<vmem>>, vector<256x128xf32>
      %c0_12 = arith.constant 0 : index
      %c0_13 = arith.constant 0 : index
      %13 = vector.load %arg5[%c0_12, %c0_13] : memref<256x128xf32, #tpu.memory_space<vmem>>, vector<256x128xf32>
      tpu.vector_store %arg5[%c0_12, %c0_13], %12 {strides = array<i32>} : memref<256x128xf32, #tpu.memory_space<vmem>>, vector<256x128xf32>,
    } else {
    }
    return
  }
  func.func @transform_0(%arg0: i32, %arg1: i32, %arg2: i32) -> (i32, i32) {
    %c0_i32 = arith.constant 0 : i32
    return %arg0, %arg2 : i32, i32
  }
  func.func @transform_1(%arg0: i32, %arg1: i32, %arg2: i32) -> (i32, i32) {
    %c0_i32 = arith.constant 0 : i32
    return %arg2, %arg1 : i32, i32
  }
  func.func @transform_2(%arg0: i32, %arg1: i32, %arg2: i32) -> (i32, i32) {
    %c0_i32 = arith.constant 0 : i32
    return %arg0, %arg1 : i32, i32
  }
}

module attributes {stable_mosaic.version = 11 : i64} {
  func.func @_bn_norm_kernel(%arg0: i32, %arg1: memref<512x128xf32, #tpu.memory_space<vmem>>, %arg2: memref<8x128xf32, #tpu.memory_space<vmem>>, %arg3: memref<1x128xf32, #tpu.memory_space<vmem>>, %arg4: memref<1x128xf32, #tpu.memory_space<vmem>>, %arg5: memref<512x128xf32, #tpu.memory_space<vmem>>) attributes {dimension_semantics = [#tpu.dimension_semantics<parallel>], iteration_bounds = array<i64: 1>, scalar_prefetch = 0 : i64, scratch_operands = 0 : i64, tpu.core_type = #tpu.core_type<tc>, window_params = [{transform_indices = @transform_0, window_bounds = array<i64: 512, 128>}, {pipeline_mode = #tpu.pipeline_mode<synchronous>, transform_indices = @transform_1, window_bounds = array<i64: 8, 128>}, {pipeline_mode = #tpu.pipeline_mode<synchronous>, transform_indices = @transform_2, window_bounds = array<i64: 1, 128>}, {pipeline_mode = #tpu.pipeline_mode<synchronous>, transform_indices = @transform_3, window_bounds = array<i64: 1, 128>}, {transform_indices = @transform_4, window_bounds = array<i64: 512, 128>}]} {
    %c0 = arith.constant 0 : index
    %c0_0 = arith.constant 0 : index
    %0 = vector.load %arg2[%c0, %c0_0] : memref<8x128xf32, #tpu.memory_space<vmem>>, vector<1x128xf32>
    %cst = arith.constant 0.001953125 : f32
    %1 = vector.broadcast %cst : f32 to vector<1x128xf32>
    %2 = arith.mulf %0, %1 : vector<1x128xf32>
    %c1 = arith.constant 1 : index
    %c0_1 = arith.constant 0 : index
    %3 = vector.load %arg2[%c1, %c0_1] : memref<8x128xf32, #tpu.memory_space<vmem>>, vector<1x128xf32>
    %cst_2 = arith.constant 0.001953125 : f32
    %4 = vector.broadcast %cst_2 : f32 to vector<1x128xf32>
    %5 = arith.mulf %3, %4 : vector<1x128xf32>
    %6 = arith.mulf %2, %2 : vector<1x128xf32>
    %7 = arith.subf %5, %6 : vector<1x128xf32>
    %cst_3 = arith.constant 0.000000e+00 : f32
    %8 = vector.broadcast %cst_3 : f32 to vector<1x128xf32>
    %9 = arith.maximumf %7, %8 : vector<1x128xf32>
    %c0_4 = arith.constant 0 : index
    %c0_5 = arith.constant 0 : index
    %10 = vector.load %arg3[%c0_4, %c0_5] : memref<1x128xf32, #tpu.memory_space<vmem>>, vector<1x128xf32>
    %cst_6 = arith.constant 9.99999974E-6 : f32
    %11 = vector.broadcast %cst_6 : f32 to vector<1x128xf32>
    %12 = arith.addf %9, %11 : vector<1x128xf32>
    %13 = math.rsqrt %12 : vector<1x128xf32>
    %14 = arith.mulf %10, %13 : vector<1x128xf32>
    %c0_7 = arith.constant 0 : index
    %c0_8 = arith.constant 0 : index
    %15 = vector.load %arg4[%c0_7, %c0_8] : memref<1x128xf32, #tpu.memory_space<vmem>>, vector<1x128xf32>
    %16 = arith.mulf %2, %14 : vector<1x128xf32>
    %17 = arith.subf %15, %16 : vector<1x128xf32>
    %c0_9 = arith.constant 0 : index
    %c0_10 = arith.constant 0 : index
    %18 = vector.load %arg1[%c0_9, %c0_10] : memref<512x128xf32, #tpu.memory_space<vmem>>, vector<512x128xf32>
    %19 = vector.broadcast %14 : vector<1x128xf32> to vector<512x128xf32>
    %20 = arith.mulf %18, %19 : vector<512x128xf32>
    %21 = vector.broadcast %17 : vector<1x128xf32> to vector<512x128xf32>
    %22 = arith.addf %20, %21 : vector<512x128xf32>
    %cst_11 = arith.constant 0.000000e+00 : f32
    %23 = vector.broadcast %cst_11 : f32 to vector<512x128xf32>
    %24 = arith.maximumf %22, %23 : vector<512x128xf32>
    %c0_12 = arith.constant 0 : index
    %c0_13 = arith.constant 0 : index
    %25 = vector.load %arg5[%c0_12, %c0_13] : memref<512x128xf32, #tpu.memory_space<vmem>>, vector<512x128xf32>
    tpu.vector_store %arg5[%c0_12, %c0_13], %24 {strides = array<i32>} : memref<512x128xf32, #tpu.memory_space<vmem>>, vector<512x128xf32>,
    return
  }
  func.func @transform_0(%arg0: i32) -> (i32, i32) {
    %c0_i32 = arith.constant 0 : i32
    %c0_i32_0 = arith.constant 0 : i32
    return %arg0, %c0_i32 : i32, i32
  }
  func.func @transform_1(%arg0: i32) -> (i32, i32) {
    %c0_i32 = arith.constant 0 : i32
    %c0_i32_0 = arith.constant 0 : i32
    %c0_i32_1 = arith.constant 0 : i32
    return %c0_i32, %c0_i32_0 : i32, i32
  }
  func.func @transform_2(%arg0: i32) -> (i32, i32) {
    %c0_i32 = arith.constant 0 : i32
    %c0_i32_0 = arith.constant 0 : i32
    %c0_i32_1 = arith.constant 0 : i32
    return %c0_i32, %c0_i32_0 : i32, i32
  }
  func.func @transform_3(%arg0: i32) -> (i32, i32) {
    %c0_i32 = arith.constant 0 : i32
    %c0_i32_0 = arith.constant 0 : i32
    %c0_i32_1 = arith.constant 0 : i32
    return %c0_i32, %c0_i32_0 : i32, i32
  }
  func.func @transform_4(%arg0: i32) -> (i32, i32) {
    %c0_i32 = arith.constant 0 : i32
    %c0_i32_0 = arith.constant 0 : i32
    return %arg0, %c0_i32 : i32, i32
  }
}

module attributes {stable_mosaic.version = 11 : i64} {
  func.func @_bn_stats_kernel(%arg0: i32, %arg1: memref<512x128xf32, #tpu.memory_space<vmem>>, %arg2: memref<8x128xf32, #tpu.memory_space<vmem>>) attributes {dimension_semantics = [#tpu.dimension_semantics<arbitrary>], iteration_bounds = array<i64: 1>, scalar_prefetch = 0 : i64, scratch_operands = 0 : i64, tpu.core_type = #tpu.core_type<tc>, window_params = [{transform_indices = @transform_0, window_bounds = array<i64: 512, 128>}, {pipeline_mode = #tpu.pipeline_mode<synchronous>, transform_indices = @transform_1, window_bounds = array<i64: 8, 128>}]} {
    %c0_i32 = arith.constant 0 : i32
    %0 = arith.cmpi eq, %arg0, %c0_i32 : i32
    %1 = arith.extui %0 : i1 to i32
    %c0_i32_0 = arith.constant 0 : i32
    %2 = arith.cmpi ne, %1, %c0_i32_0 : i32
    scf.if %2 {
      %cst_10 = arith.constant 0.000000e+00 : f32
      %15 = vector.broadcast %cst_10 : f32 to vector<8x128xf32>
      %c0_11 = arith.constant 0 : index
      %c0_12 = arith.constant 0 : index
      %16 = vector.load %arg2[%c0_11, %c0_12] : memref<8x128xf32, #tpu.memory_space<vmem>>, vector<8x128xf32>
      tpu.vector_store %arg2[%c0_11, %c0_12], %15 {strides = array<i32>} : memref<8x128xf32, #tpu.memory_space<vmem>>, vector<8x128xf32>,
    } else {
    }
    %c0 = arith.constant 0 : index
    %c0_1 = arith.constant 0 : index
    %3 = vector.load %arg1[%c0, %c0_1] : memref<512x128xf32, #tpu.memory_space<vmem>>, vector<512x128xf32>
    %c0_2 = arith.constant 0 : index
    %c0_3 = arith.constant 0 : index
    %4 = vector.load %arg2[%c0_2, %c0_3] : memref<8x128xf32, #tpu.memory_space<vmem>>, vector<1x128xf32>
    %cst = arith.constant dense<0.000000e+00> : vector<128xf32>
    %5 = vector.multi_reduction <add>, %3, %cst [0] : vector<512x128xf32> to vector<128xf32>
    %6 = vector.shape_cast %5 : vector<128xf32> to vector<1x128xf32>
    %7 = arith.addf %4, %6 : vector<1x128xf32>
    %c0_4 = arith.constant 0 : index
    %c0_5 = arith.constant 0 : index
    %8 = vector.load %arg2[%c0_4, %c0_5] : memref<8x128xf32, #tpu.memory_space<vmem>>, vector<1x128xf32>
    tpu.vector_store %arg2[%c0_4, %c0_5], %7 {strides = array<i32>} : memref<8x128xf32, #tpu.memory_space<vmem>>, vector<1x128xf32>,
    %c1 = arith.constant 1 : index
    %c0_6 = arith.constant 0 : index
    %9 = vector.load %arg2[%c1, %c0_6] : memref<8x128xf32, #tpu.memory_space<vmem>>, vector<1x128xf32>
    %10 = arith.mulf %3, %3 : vector<512x128xf32>
    %cst_7 = arith.constant dense<0.000000e+00> : vector<128xf32>
    %11 = vector.multi_reduction <add>, %10, %cst_7 [0] : vector<512x128xf32> to vector<128xf32>
    %12 = vector.shape_cast %11 : vector<128xf32> to vector<1x128xf32>
    %13 = arith.addf %9, %12 : vector<1x128xf32>
    %c1_8 = arith.constant 1 : index
    %c0_9 = arith.constant 0 : index
    %14 = vector.load %arg2[%c1_8, %c0_9] : memref<8x128xf32, #tpu.memory_space<vmem>>, vector<1x128xf32>
    tpu.vector_store %arg2[%c1_8, %c0_9], %13 {strides = array<i32>} : memref<8x128xf32, #tpu.memory_space<vmem>>, vector<1x128xf32>,
    return
  }
  func.func @transform_0(%arg0: i32) -> (i32, i32) {
    %c0_i32 = arith.constant 0 : i32
    %c0_i32_0 = arith.constant 0 : i32
    return %arg0, %c0_i32 : i32, i32
  }
  func.func @transform_1(%arg0: i32) -> (i32, i32) {
    %c0_i32 = arith.constant 0 : i32
    %c0_i32_0 = arith.constant 0 : i32
    %c0_i32_1 = arith.constant 0 : i32
    return %c0_i32, %c0_i32_0 : i32, i32
  }
}

module attributes {stable_mosaic.version = 11 : i64} {
  func.func @_bn_stats_kernel(%arg0: i32, %arg1: memref<128x256xf32, #tpu.memory_space<vmem>>, %arg2: memref<8x256xf32, #tpu.memory_space<vmem>>) attributes {dimension_semantics = [#tpu.dimension_semantics<arbitrary>], iteration_bounds = array<i64: 1>, scalar_prefetch = 0 : i64, scratch_operands = 0 : i64, tpu.core_type = #tpu.core_type<tc>, window_params = [{transform_indices = @transform_0, window_bounds = array<i64: 128, 256>}, {pipeline_mode = #tpu.pipeline_mode<synchronous>, transform_indices = @transform_1, window_bounds = array<i64: 8, 256>}]} {
    %c0_i32 = arith.constant 0 : i32
    %0 = arith.cmpi eq, %arg0, %c0_i32 : i32
    %1 = arith.extui %0 : i1 to i32
    %c0_i32_0 = arith.constant 0 : i32
    %2 = arith.cmpi ne, %1, %c0_i32_0 : i32
    scf.if %2 {
      %cst_10 = arith.constant 0.000000e+00 : f32
      %15 = vector.broadcast %cst_10 : f32 to vector<8x256xf32>
      %c0_11 = arith.constant 0 : index
      %c0_12 = arith.constant 0 : index
      %16 = vector.load %arg2[%c0_11, %c0_12] : memref<8x256xf32, #tpu.memory_space<vmem>>, vector<8x256xf32>
      tpu.vector_store %arg2[%c0_11, %c0_12], %15 {strides = array<i32>} : memref<8x256xf32, #tpu.memory_space<vmem>>, vector<8x256xf32>,
    } else {
    }
    %c0 = arith.constant 0 : index
    %c0_1 = arith.constant 0 : index
    %3 = vector.load %arg1[%c0, %c0_1] : memref<128x256xf32, #tpu.memory_space<vmem>>, vector<128x256xf32>
    %c0_2 = arith.constant 0 : index
    %c0_3 = arith.constant 0 : index
    %4 = vector.load %arg2[%c0_2, %c0_3] : memref<8x256xf32, #tpu.memory_space<vmem>>, vector<1x256xf32>
    %cst = arith.constant dense<0.000000e+00> : vector<256xf32>
    %5 = vector.multi_reduction <add>, %3, %cst [0] : vector<128x256xf32> to vector<256xf32>
    %6 = vector.shape_cast %5 : vector<256xf32> to vector<1x256xf32>
    %7 = arith.addf %4, %6 : vector<1x256xf32>
    %c0_4 = arith.constant 0 : index
    %c0_5 = arith.constant 0 : index
    %8 = vector.load %arg2[%c0_4, %c0_5] : memref<8x256xf32, #tpu.memory_space<vmem>>, vector<1x256xf32>
    tpu.vector_store %arg2[%c0_4, %c0_5], %7 {strides = array<i32>} : memref<8x256xf32, #tpu.memory_space<vmem>>, vector<1x256xf32>,
    %c1 = arith.constant 1 : index
    %c0_6 = arith.constant 0 : index
    %9 = vector.load %arg2[%c1, %c0_6] : memref<8x256xf32, #tpu.memory_space<vmem>>, vector<1x256xf32>
    %10 = arith.mulf %3, %3 : vector<128x256xf32>
    %cst_7 = arith.constant dense<0.000000e+00> : vector<256xf32>
    %11 = vector.multi_reduction <add>, %10, %cst_7 [0] : vector<128x256xf32> to vector<256xf32>
    %12 = vector.shape_cast %11 : vector<256xf32> to vector<1x256xf32>
    %13 = arith.addf %9, %12 : vector<1x256xf32>
    %c1_8 = arith.constant 1 : index
    %c0_9 = arith.constant 0 : index
    %14 = vector.load %arg2[%c1_8, %c0_9] : memref<8x256xf32, #tpu.memory_space<vmem>>, vector<1x256xf32>
    tpu.vector_store %arg2[%c1_8, %c0_9], %13 {strides = array<i32>} : memref<8x256xf32, #tpu.memory_space<vmem>>, vector<1x256xf32>,
    return
  }
  func.func @transform_0(%arg0: i32) -> (i32, i32) {
    %c0_i32 = arith.constant 0 : i32
    %c0_i32_0 = arith.constant 0 : i32
    return %arg0, %c0_i32 : i32, i32
  }
  func.func @transform_1(%arg0: i32) -> (i32, i32) {
    %c0_i32 = arith.constant 0 : i32
    %c0_i32_0 = arith.constant 0 : i32
    %c0_i32_1 = arith.constant 0 : i32
    return %c0_i32, %c0_i32_0 : i32, i32
  }
}

module attributes {stable_mosaic.version = 11 : i64} {
  func.func @_maxpool9_kernel(%arg0: i32, %arg1: memref<128x128xf32, #tpu.memory_space<vmem>>, %arg2: memref<128x128xf32, #tpu.memory_space<vmem>>, %arg3: memref<128x128xf32, #tpu.memory_space<vmem>>, %arg4: memref<128x128xf32, #tpu.memory_space<vmem>>, %arg5: memref<128x128xf32, #tpu.memory_space<vmem>>, %arg6: memref<128x128xf32, #tpu.memory_space<vmem>>, %arg7: memref<128x128xf32, #tpu.memory_space<vmem>>, %arg8: memref<128x128xf32, #tpu.memory_space<vmem>>, %arg9: memref<128x128xf32, #tpu.memory_space<vmem>>, %arg10: memref<128x128xf32, #tpu.memory_space<vmem>>) attributes {dimension_semantics = [#tpu.dimension_semantics<parallel>], iteration_bounds = array<i64: 1>, scalar_prefetch = 0 : i64, scratch_operands = 0 : i64, tpu.core_type = #tpu.core_type<tc>, window_params = [{transform_indices = @transform_0, window_bounds = array<i64: 128, 128>}, {transform_indices = @transform_1, window_bounds = array<i64: 128, 128>}, {transform_indices = @transform_2, window_bounds = array<i64: 128, 128>}, {transform_indices = @transform_3, window_bounds = array<i64: 128, 128>}, {transform_indices = @transform_4, window_bounds = array<i64: 128, 128>}, {transform_indices = @transform_5, window_bounds = array<i64: 128, 128>}, {transform_indices = @transform_6, window_bounds = array<i64: 128, 128>}, {transform_indices = @transform_7, window_bounds = array<i64: 128, 128>}, {transform_indices = @transform_8, window_bounds = array<i64: 128, 128>}, {transform_indices = @transform_9, window_bounds = array<i64: 128, 128>}]} {
    %c0 = arith.constant 0 : index
    %c0_0 = arith.constant 0 : index
    %0 = vector.load %arg1[%c0, %c0_0] : memref<128x128xf32, #tpu.memory_space<vmem>>, vector<128x128xf32>
    %c0_1 = arith.constant 0 : index
    %c0_2 = arith.constant 0 : index
    %1 = vector.load %arg2[%c0_1, %c0_2] : memref<128x128xf32, #tpu.memory_space<vmem>>, vector<128x128xf32>
    %2 = arith.maximumf %0, %1 : vector<128x128xf32>
    %c0_3 = arith.constant 0 : index
    %c0_4 = arith.constant 0 : index
    %3 = vector.load %arg3[%c0_3, %c0_4] : memref<128x128xf32, #tpu.memory_space<vmem>>, vector<128x128xf32>
    %4 = arith.maximumf %2, %3 : vector<128x128xf32>
    %c0_5 = arith.constant 0 : index
    %c0_6 = arith.constant 0 : index
    %5 = vector.load %arg4[%c0_5, %c0_6] : memref<128x128xf32, #tpu.memory_space<vmem>>, vector<128x128xf32>
    %6 = arith.maximumf %4, %5 : vector<128x128xf32>
    %c0_7 = arith.constant 0 : index
    %c0_8 = arith.constant 0 : index
    %7 = vector.load %arg5[%c0_7, %c0_8] : memref<128x128xf32, #tpu.memory_space<vmem>>, vector<128x128xf32>
    %8 = arith.maximumf %6, %7 : vector<128x128xf32>
    %c0_9 = arith.constant 0 : index
    %c0_10 = arith.constant 0 : index
    %9 = vector.load %arg6[%c0_9, %c0_10] : memref<128x128xf32, #tpu.memory_space<vmem>>, vector<128x128xf32>
    %10 = arith.maximumf %8, %9 : vector<128x128xf32>
    %c0_11 = arith.constant 0 : index
    %c0_12 = arith.constant 0 : index
    %11 = vector.load %arg7[%c0_11, %c0_12] : memref<128x128xf32, #tpu.memory_space<vmem>>, vector<128x128xf32>
    %12 = arith.maximumf %10, %11 : vector<128x128xf32>
    %c0_13 = arith.constant 0 : index
    %c0_14 = arith.constant 0 : index
    %13 = vector.load %arg8[%c0_13, %c0_14] : memref<128x128xf32, #tpu.memory_space<vmem>>, vector<128x128xf32>
    %14 = arith.maximumf %12, %13 : vector<128x128xf32>
    %c0_15 = arith.constant 0 : index
    %c0_16 = arith.constant 0 : index
    %15 = vector.load %arg9[%c0_15, %c0_16] : memref<128x128xf32, #tpu.memory_space<vmem>>, vector<128x128xf32>
    %16 = arith.maximumf %14, %15 : vector<128x128xf32>
    %c0_17 = arith.constant 0 : index
    %c0_18 = arith.constant 0 : index
    %17 = vector.load %arg10[%c0_17, %c0_18] : memref<128x128xf32, #tpu.memory_space<vmem>>, vector<128x128xf32>
    tpu.vector_store %arg10[%c0_17, %c0_18], %16 {strides = array<i32>} : memref<128x128xf32, #tpu.memory_space<vmem>>, vector<128x128xf32>,
    return
  }
  func.func @transform_0(%arg0: i32) -> (i32, i32) {
    %c0_i32 = arith.constant 0 : i32
    %c0_i32_0 = arith.constant 0 : i32
    return %arg0, %c0_i32 : i32, i32
  }
  func.func @transform_1(%arg0: i32) -> (i32, i32) {
    %c0_i32 = arith.constant 0 : i32
    %c0_i32_0 = arith.constant 0 : i32
    return %arg0, %c0_i32 : i32, i32
  }
  func.func @transform_2(%arg0: i32) -> (i32, i32) {
    %c0_i32 = arith.constant 0 : i32
    %c0_i32_0 = arith.constant 0 : i32
    return %arg0, %c0_i32 : i32, i32
  }
  func.func @transform_3(%arg0: i32) -> (i32, i32) {
    %c0_i32 = arith.constant 0 : i32
    %c0_i32_0 = arith.constant 0 : i32
    return %arg0, %c0_i32 : i32, i32
  }
  func.func @transform_4(%arg0: i32) -> (i32, i32) {
    %c0_i32 = arith.constant 0 : i32
    %c0_i32_0 = arith.constant 0 : i32
    return %arg0, %c0_i32 : i32, i32
  }
  func.func @transform_5(%arg0: i32) -> (i32, i32) {
    %c0_i32 = arith.constant 0 : i32
    %c0_i32_0 = arith.constant 0 : i32
    return %arg0, %c0_i32 : i32, i32
  }
  func.func @transform_6(%arg0: i32) -> (i32, i32) {
    %c0_i32 = arith.constant 0 : i32
    %c0_i32_0 = arith.constant 0 : i32
    return %arg0, %c0_i32 : i32, i32
  }
  func.func @transform_7(%arg0: i32) -> (i32, i32) {
    %c0_i32 = arith.constant 0 : i32
    %c0_i32_0 = arith.constant 0 : i32
    return %arg0, %c0_i32 : i32, i32
  }
  func.func @transform_8(%arg0: i32) -> (i32, i32) {
    %c0_i32 = arith.constant 0 : i32
    %c0_i32_0 = arith.constant 0 : i32
    return %arg0, %c0_i32 : i32, i32
  }
  func.func @transform_9(%arg0: i32) -> (i32, i32) {
    %c0_i32 = arith.constant 0 : i32
    %c0_i32_0 = arith.constant 0 : i32
    return %arg0, %c0_i32 : i32, i32
  }
}

module attributes {stable_mosaic.version = 11 : i64} {
  func.func @_matmul_kernel(%arg0: i32, %arg1: i32, %arg2: i32, %arg3: memref<128x128xbf16, #tpu.memory_space<vmem>>, %arg4: memref<128x256xbf16, #tpu.memory_space<vmem>>, %arg5: memref<128x256xf32, #tpu.memory_space<vmem>>, %arg6: memref<128x256xf32, #tpu.memory_space<vmem>>) attributes {dimension_semantics = [#tpu.dimension_semantics<parallel>, #tpu.dimension_semantics<parallel>, #tpu.dimension_semantics<arbitrary>], iteration_bounds = array<i64: 1, 1, 1>, scalar_prefetch = 0 : i64, scratch_operands = 1 : i64, tpu.core_type = #tpu.core_type<tc>, window_params = [{transform_indices = @transform_0, window_bounds = array<i64: 128, 128>}, {transform_indices = @transform_1, window_bounds = array<i64: 128, 256>}, {transform_indices = @transform_2, window_bounds = array<i64: 128, 256>}]} {
    %c0_i32 = arith.constant 0 : i32
    %0 = arith.cmpi eq, %arg2, %c0_i32 : i32
    %1 = arith.extui %0 : i1 to i32
    %c0_i32_0 = arith.constant 0 : i32
    %2 = arith.cmpi ne, %1, %c0_i32_0 : i32
    scf.if %2 {
      %cst_10 = arith.constant 0.000000e+00 : f32
      %12 = vector.broadcast %cst_10 : f32 to vector<128x256xf32>
      %c0_11 = arith.constant 0 : index
      %c0_12 = arith.constant 0 : index
      %13 = vector.load %arg6[%c0_11, %c0_12] : memref<128x256xf32, #tpu.memory_space<vmem>>, vector<128x256xf32>
      tpu.vector_store %arg6[%c0_11, %c0_12], %12 {strides = array<i32>} : memref<128x256xf32, #tpu.memory_space<vmem>>, vector<128x256xf32>,
    } else {
    }
    %c0 = arith.constant 0 : index
    %c0_1 = arith.constant 0 : index
    %3 = vector.load %arg6[%c0, %c0_1] : memref<128x256xf32, #tpu.memory_space<vmem>>, vector<128x256xf32>
    %c0_2 = arith.constant 0 : index
    %c0_3 = arith.constant 0 : index
    %4 = vector.load %arg3[%c0_2, %c0_3] : memref<128x128xbf16, #tpu.memory_space<vmem>>, vector<128x128xbf16>
    %c0_4 = arith.constant 0 : index
    %c0_5 = arith.constant 0 : index
    %5 = vector.load %arg4[%c0_4, %c0_5] : memref<128x256xbf16, #tpu.memory_space<vmem>>, vector<128x256xbf16>
    %cst = arith.constant dense<0.000000e+00> : vector<128x256xf32>
    %6 = tpu.matmul %4, %5, %cst {dimension_numbers = #tpu.dot_dimension_numbers<[1], [0], [0], [1], [0, 0, 1, 1], [], []>} : vector<128x128xbf16>, vector<128x256xbf16>, vector<128x256xf32> -> vector<128x256xf32>
    %7 = arith.addf %3, %6 : vector<128x256xf32>
    %c0_6 = arith.constant 0 : index
    %c0_7 = arith.constant 0 : index
    %8 = vector.load %arg6[%c0_6, %c0_7] : memref<128x256xf32, #tpu.memory_space<vmem>>, vector<128x256xf32>
    tpu.vector_store %arg6[%c0_6, %c0_7], %7 {strides = array<i32>} : memref<128x256xf32, #tpu.memory_space<vmem>>, vector<128x256xf32>,
    %c0_i32_8 = arith.constant 0 : i32
    %9 = arith.cmpi eq, %arg2, %c0_i32_8 : i32
    %10 = arith.extui %9 : i1 to i32
    %c0_i32_9 = arith.constant 0 : i32
    %11 = arith.cmpi ne, %10, %c0_i32_9 : i32
    scf.if %11 {
      %c0_10 = arith.constant 0 : index
      %c0_11 = arith.constant 0 : index
      %12 = vector.load %arg6[%c0_10, %c0_11] : memref<128x256xf32, #tpu.memory_space<vmem>>, vector<128x256xf32>
      %c0_12 = arith.constant 0 : index
      %c0_13 = arith.constant 0 : index
      %13 = vector.load %arg5[%c0_12, %c0_13] : memref<128x256xf32, #tpu.memory_space<vmem>>, vector<128x256xf32>
      tpu.vector_store %arg5[%c0_12, %c0_13], %12 {strides = array<i32>} : memref<128x256xf32, #tpu.memory_space<vmem>>, vector<128x256xf32>,
    } else {
    }
    return
  }
  func.func @transform_0(%arg0: i32, %arg1: i32, %arg2: i32) -> (i32, i32) {
    %c0_i32 = arith.constant 0 : i32
    return %arg0, %arg2 : i32, i32
  }
  func.func @transform_1(%arg0: i32, %arg1: i32, %arg2: i32) -> (i32, i32) {
    %c0_i32 = arith.constant 0 : i32
    return %arg2, %arg1 : i32, i32
  }
  func.func @transform_2(%arg0: i32, %arg1: i32, %arg2: i32) -> (i32, i32) {
    %c0_i32 = arith.constant 0 : i32
    return %arg0, %arg1 : i32, i32
  }
}

module attributes {stable_mosaic.version = 11 : i64} {
  func.func @_bn_norm_kernel(%arg0: i32, %arg1: memref<128x256xf32, #tpu.memory_space<vmem>>, %arg2: memref<8x256xf32, #tpu.memory_space<vmem>>, %arg3: memref<1x256xf32, #tpu.memory_space<vmem>>, %arg4: memref<1x256xf32, #tpu.memory_space<vmem>>, %arg5: memref<128x256xf32, #tpu.memory_space<vmem>>) attributes {dimension_semantics = [#tpu.dimension_semantics<parallel>], iteration_bounds = array<i64: 1>, scalar_prefetch = 0 : i64, scratch_operands = 0 : i64, tpu.core_type = #tpu.core_type<tc>, window_params = [{transform_indices = @transform_0, window_bounds = array<i64: 128, 256>}, {pipeline_mode = #tpu.pipeline_mode<synchronous>, transform_indices = @transform_1, window_bounds = array<i64: 8, 256>}, {pipeline_mode = #tpu.pipeline_mode<synchronous>, transform_indices = @transform_2, window_bounds = array<i64: 1, 256>}, {pipeline_mode = #tpu.pipeline_mode<synchronous>, transform_indices = @transform_3, window_bounds = array<i64: 1, 256>}, {transform_indices = @transform_4, window_bounds = array<i64: 128, 256>}]} {
    %c0 = arith.constant 0 : index
    %c0_0 = arith.constant 0 : index
    %0 = vector.load %arg2[%c0, %c0_0] : memref<8x256xf32, #tpu.memory_space<vmem>>, vector<1x256xf32>
    %cst = arith.constant 7.812500e-03 : f32
    %1 = vector.broadcast %cst : f32 to vector<1x256xf32>
    %2 = arith.mulf %0, %1 : vector<1x256xf32>
    %c1 = arith.constant 1 : index
    %c0_1 = arith.constant 0 : index
    %3 = vector.load %arg2[%c1, %c0_1] : memref<8x256xf32, #tpu.memory_space<vmem>>, vector<1x256xf32>
    %cst_2 = arith.constant 7.812500e-03 : f32
    %4 = vector.broadcast %cst_2 : f32 to vector<1x256xf32>
    %5 = arith.mulf %3, %4 : vector<1x256xf32>
    %6 = arith.mulf %2, %2 : vector<1x256xf32>
    %7 = arith.subf %5, %6 : vector<1x256xf32>
    %cst_3 = arith.constant 0.000000e+00 : f32
    %8 = vector.broadcast %cst_3 : f32 to vector<1x256xf32>
    %9 = arith.maximumf %7, %8 : vector<1x256xf32>
    %c0_4 = arith.constant 0 : index
    %c0_5 = arith.constant 0 : index
    %10 = vector.load %arg3[%c0_4, %c0_5] : memref<1x256xf32, #tpu.memory_space<vmem>>, vector<1x256xf32>
    %cst_6 = arith.constant 9.99999974E-6 : f32
    %11 = vector.broadcast %cst_6 : f32 to vector<1x256xf32>
    %12 = arith.addf %9, %11 : vector<1x256xf32>
    %13 = math.rsqrt %12 : vector<1x256xf32>
    %14 = arith.mulf %10, %13 : vector<1x256xf32>
    %c0_7 = arith.constant 0 : index
    %c0_8 = arith.constant 0 : index
    %15 = vector.load %arg4[%c0_7, %c0_8] : memref<1x256xf32, #tpu.memory_space<vmem>>, vector<1x256xf32>
    %16 = arith.mulf %2, %14 : vector<1x256xf32>
    %17 = arith.subf %15, %16 : vector<1x256xf32>
    %c0_9 = arith.constant 0 : index
    %c0_10 = arith.constant 0 : index
    %18 = vector.load %arg1[%c0_9, %c0_10] : memref<128x256xf32, #tpu.memory_space<vmem>>, vector<128x256xf32>
    %19 = vector.broadcast %14 : vector<1x256xf32> to vector<128x256xf32>
    %20 = arith.mulf %18, %19 : vector<128x256xf32>
    %21 = vector.broadcast %17 : vector<1x256xf32> to vector<128x256xf32>
    %22 = arith.addf %20, %21 : vector<128x256xf32>
    %c0_11 = arith.constant 0 : index
    %c0_12 = arith.constant 0 : index
    %23 = vector.load %arg5[%c0_11, %c0_12] : memref<128x256xf32, #tpu.memory_space<vmem>>, vector<128x256xf32>
    tpu.vector_store %arg5[%c0_11, %c0_12], %22 {strides = array<i32>} : memref<128x256xf32, #tpu.memory_space<vmem>>, vector<128x256xf32>,
    return
  }
  func.func @transform_0(%arg0: i32) -> (i32, i32) {
    %c0_i32 = arith.constant 0 : i32
    %c0_i32_0 = arith.constant 0 : i32
    return %arg0, %c0_i32 : i32, i32
  }
  func.func @transform_1(%arg0: i32) -> (i32, i32) {
    %c0_i32 = arith.constant 0 : i32
    %c0_i32_0 = arith.constant 0 : i32
    %c0_i32_1 = arith.constant 0 : i32
    return %c0_i32, %c0_i32_0 : i32, i32
  }
  func.func @transform_2(%arg0: i32) -> (i32, i32) {
    %c0_i32 = arith.constant 0 : i32
    %c0_i32_0 = arith.constant 0 : i32
    %c0_i32_1 = arith.constant 0 : i32
    return %c0_i32, %c0_i32_0 : i32, i32
  }
  func.func @transform_3(%arg0: i32) -> (i32, i32) {
    %c0_i32 = arith.constant 0 : i32
    %c0_i32_0 = arith.constant 0 : i32
    %c0_i32_1 = arith.constant 0 : i32
    return %c0_i32, %c0_i32_0 : i32, i32
  }
  func.func @transform_4(%arg0: i32) -> (i32, i32) {
    %c0_i32 = arith.constant 0 : i32
    %c0_i32_0 = arith.constant 0 : i32
    return %arg0, %c0_i32 : i32, i32
  }
}

module attributes {stable_mosaic.version = 11 : i64} {
  func.func @_matmul_kernel(%arg0: i32, %arg1: i32, %arg2: i32, %arg3: memref<128x128xbf16, #tpu.memory_space<vmem>>, %arg4: memref<128x128xbf16, #tpu.memory_space<vmem>>, %arg5: memref<128x128xf32, #tpu.memory_space<vmem>>, %arg6: memref<128x128xf32, #tpu.memory_space<vmem>>) attributes {dimension_semantics = [#tpu.dimension_semantics<parallel>, #tpu.dimension_semantics<parallel>, #tpu.dimension_semantics<arbitrary>], iteration_bounds = array<i64: 1, 1, 1>, scalar_prefetch = 0 : i64, scratch_operands = 1 : i64, tpu.core_type = #tpu.core_type<tc>, window_params = [{transform_indices = @transform_0, window_bounds = array<i64: 128, 128>}, {transform_indices = @transform_1, window_bounds = array<i64: 128, 128>}, {transform_indices = @transform_2, window_bounds = array<i64: 128, 128>}]} {
    %c0_i32 = arith.constant 0 : i32
    %0 = arith.cmpi eq, %arg2, %c0_i32 : i32
    %1 = arith.extui %0 : i1 to i32
    %c0_i32_0 = arith.constant 0 : i32
    %2 = arith.cmpi ne, %1, %c0_i32_0 : i32
    scf.if %2 {
      %cst_10 = arith.constant 0.000000e+00 : f32
      %12 = vector.broadcast %cst_10 : f32 to vector<128x128xf32>
      %c0_11 = arith.constant 0 : index
      %c0_12 = arith.constant 0 : index
      %13 = vector.load %arg6[%c0_11, %c0_12] : memref<128x128xf32, #tpu.memory_space<vmem>>, vector<128x128xf32>
      tpu.vector_store %arg6[%c0_11, %c0_12], %12 {strides = array<i32>} : memref<128x128xf32, #tpu.memory_space<vmem>>, vector<128x128xf32>,
    } else {
    }
    %c0 = arith.constant 0 : index
    %c0_1 = arith.constant 0 : index
    %3 = vector.load %arg6[%c0, %c0_1] : memref<128x128xf32, #tpu.memory_space<vmem>>, vector<128x128xf32>
    %c0_2 = arith.constant 0 : index
    %c0_3 = arith.constant 0 : index
    %4 = vector.load %arg3[%c0_2, %c0_3] : memref<128x128xbf16, #tpu.memory_space<vmem>>, vector<128x128xbf16>
    %c0_4 = arith.constant 0 : index
    %c0_5 = arith.constant 0 : index
    %5 = vector.load %arg4[%c0_4, %c0_5] : memref<128x128xbf16, #tpu.memory_space<vmem>>, vector<128x128xbf16>
    %cst = arith.constant dense<0.000000e+00> : vector<128x128xf32>
    %6 = tpu.matmul %4, %5, %cst {dimension_numbers = #tpu.dot_dimension_numbers<[1], [0], [0], [1], [0, 0, 1, 1], [], []>} : vector<128x128xbf16>, vector<128x128xbf16>, vector<128x128xf32> -> vector<128x128xf32>
    %7 = arith.addf %3, %6 : vector<128x128xf32>
    %c0_6 = arith.constant 0 : index
    %c0_7 = arith.constant 0 : index
    %8 = vector.load %arg6[%c0_6, %c0_7] : memref<128x128xf32, #tpu.memory_space<vmem>>, vector<128x128xf32>
    tpu.vector_store %arg6[%c0_6, %c0_7], %7 {strides = array<i32>} : memref<128x128xf32, #tpu.memory_space<vmem>>, vector<128x128xf32>,
    %c0_i32_8 = arith.constant 0 : i32
    %9 = arith.cmpi eq, %arg2, %c0_i32_8 : i32
    %10 = arith.extui %9 : i1 to i32
    %c0_i32_9 = arith.constant 0 : i32
    %11 = arith.cmpi ne, %10, %c0_i32_9 : i32
    scf.if %11 {
      %c0_10 = arith.constant 0 : index
      %c0_11 = arith.constant 0 : index
      %12 = vector.load %arg6[%c0_10, %c0_11] : memref<128x128xf32, #tpu.memory_space<vmem>>, vector<128x128xf32>
      %c0_12 = arith.constant 0 : index
      %c0_13 = arith.constant 0 : index
      %13 = vector.load %arg5[%c0_12, %c0_13] : memref<128x128xf32, #tpu.memory_space<vmem>>, vector<128x128xf32>
      tpu.vector_store %arg5[%c0_12, %c0_13], %12 {strides = array<i32>} : memref<128x128xf32, #tpu.memory_space<vmem>>, vector<128x128xf32>,
    } else {
    }
    return
  }
  func.func @transform_0(%arg0: i32, %arg1: i32, %arg2: i32) -> (i32, i32) {
    %c0_i32 = arith.constant 0 : i32
    return %arg0, %arg2 : i32, i32
  }
  func.func @transform_1(%arg0: i32, %arg1: i32, %arg2: i32) -> (i32, i32) {
    %c0_i32 = arith.constant 0 : i32
    return %arg2, %arg1 : i32, i32
  }
  func.func @transform_2(%arg0: i32, %arg1: i32, %arg2: i32) -> (i32, i32) {
    %c0_i32 = arith.constant 0 : i32
    return %arg0, %arg1 : i32, i32
  }
}

module attributes {stable_mosaic.version = 11 : i64} {
  func.func @_bn_stats_kernel(%arg0: i32, %arg1: memref<128x128xf32, #tpu.memory_space<vmem>>, %arg2: memref<8x128xf32, #tpu.memory_space<vmem>>) attributes {dimension_semantics = [#tpu.dimension_semantics<arbitrary>], iteration_bounds = array<i64: 1>, scalar_prefetch = 0 : i64, scratch_operands = 0 : i64, tpu.core_type = #tpu.core_type<tc>, window_params = [{transform_indices = @transform_0, window_bounds = array<i64: 128, 128>}, {pipeline_mode = #tpu.pipeline_mode<synchronous>, transform_indices = @transform_1, window_bounds = array<i64: 8, 128>}]} {
    %c0_i32 = arith.constant 0 : i32
    %0 = arith.cmpi eq, %arg0, %c0_i32 : i32
    %1 = arith.extui %0 : i1 to i32
    %c0_i32_0 = arith.constant 0 : i32
    %2 = arith.cmpi ne, %1, %c0_i32_0 : i32
    scf.if %2 {
      %cst_10 = arith.constant 0.000000e+00 : f32
      %15 = vector.broadcast %cst_10 : f32 to vector<8x128xf32>
      %c0_11 = arith.constant 0 : index
      %c0_12 = arith.constant 0 : index
      %16 = vector.load %arg2[%c0_11, %c0_12] : memref<8x128xf32, #tpu.memory_space<vmem>>, vector<8x128xf32>
      tpu.vector_store %arg2[%c0_11, %c0_12], %15 {strides = array<i32>} : memref<8x128xf32, #tpu.memory_space<vmem>>, vector<8x128xf32>,
    } else {
    }
    %c0 = arith.constant 0 : index
    %c0_1 = arith.constant 0 : index
    %3 = vector.load %arg1[%c0, %c0_1] : memref<128x128xf32, #tpu.memory_space<vmem>>, vector<128x128xf32>
    %c0_2 = arith.constant 0 : index
    %c0_3 = arith.constant 0 : index
    %4 = vector.load %arg2[%c0_2, %c0_3] : memref<8x128xf32, #tpu.memory_space<vmem>>, vector<1x128xf32>
    %cst = arith.constant dense<0.000000e+00> : vector<128xf32>
    %5 = vector.multi_reduction <add>, %3, %cst [0] : vector<128x128xf32> to vector<128xf32>
    %6 = vector.shape_cast %5 : vector<128xf32> to vector<1x128xf32>
    %7 = arith.addf %4, %6 : vector<1x128xf32>
    %c0_4 = arith.constant 0 : index
    %c0_5 = arith.constant 0 : index
    %8 = vector.load %arg2[%c0_4, %c0_5] : memref<8x128xf32, #tpu.memory_space<vmem>>, vector<1x128xf32>
    tpu.vector_store %arg2[%c0_4, %c0_5], %7 {strides = array<i32>} : memref<8x128xf32, #tpu.memory_space<vmem>>, vector<1x128xf32>,
    %c1 = arith.constant 1 : index
    %c0_6 = arith.constant 0 : index
    %9 = vector.load %arg2[%c1, %c0_6] : memref<8x128xf32, #tpu.memory_space<vmem>>, vector<1x128xf32>
    %10 = arith.mulf %3, %3 : vector<128x128xf32>
    %cst_7 = arith.constant dense<0.000000e+00> : vector<128xf32>
    %11 = vector.multi_reduction <add>, %10, %cst_7 [0] : vector<128x128xf32> to vector<128xf32>
    %12 = vector.shape_cast %11 : vector<128xf32> to vector<1x128xf32>
    %13 = arith.addf %9, %12 : vector<1x128xf32>
    %c1_8 = arith.constant 1 : index
    %c0_9 = arith.constant 0 : index
    %14 = vector.load %arg2[%c1_8, %c0_9] : memref<8x128xf32, #tpu.memory_space<vmem>>, vector<1x128xf32>
    tpu.vector_store %arg2[%c1_8, %c0_9], %13 {strides = array<i32>} : memref<8x128xf32, #tpu.memory_space<vmem>>, vector<1x128xf32>,
    return
  }
  func.func @transform_0(%arg0: i32) -> (i32, i32) {
    %c0_i32 = arith.constant 0 : i32
    %c0_i32_0 = arith.constant 0 : i32
    return %arg0, %c0_i32 : i32, i32
  }
  func.func @transform_1(%arg0: i32) -> (i32, i32) {
    %c0_i32 = arith.constant 0 : i32
    %c0_i32_0 = arith.constant 0 : i32
    %c0_i32_1 = arith.constant 0 : i32
    return %c0_i32, %c0_i32_0 : i32, i32
  }
}

module attributes {stable_mosaic.version = 11 : i64} {
  func.func @_bn_norm_kernel(%arg0: i32, %arg1: memref<128x128xf32, #tpu.memory_space<vmem>>, %arg2: memref<8x128xf32, #tpu.memory_space<vmem>>, %arg3: memref<1x128xf32, #tpu.memory_space<vmem>>, %arg4: memref<1x128xf32, #tpu.memory_space<vmem>>, %arg5: memref<128x128xf32, #tpu.memory_space<vmem>>) attributes {dimension_semantics = [#tpu.dimension_semantics<parallel>], iteration_bounds = array<i64: 1>, scalar_prefetch = 0 : i64, scratch_operands = 0 : i64, tpu.core_type = #tpu.core_type<tc>, window_params = [{transform_indices = @transform_0, window_bounds = array<i64: 128, 128>}, {pipeline_mode = #tpu.pipeline_mode<synchronous>, transform_indices = @transform_1, window_bounds = array<i64: 8, 128>}, {pipeline_mode = #tpu.pipeline_mode<synchronous>, transform_indices = @transform_2, window_bounds = array<i64: 1, 128>}, {pipeline_mode = #tpu.pipeline_mode<synchronous>, transform_indices = @transform_3, window_bounds = array<i64: 1, 128>}, {transform_indices = @transform_4, window_bounds = array<i64: 128, 128>}]} {
    %c0 = arith.constant 0 : index
    %c0_0 = arith.constant 0 : index
    %0 = vector.load %arg2[%c0, %c0_0] : memref<8x128xf32, #tpu.memory_space<vmem>>, vector<1x128xf32>
    %cst = arith.constant 7.812500e-03 : f32
    %1 = vector.broadcast %cst : f32 to vector<1x128xf32>
    %2 = arith.mulf %0, %1 : vector<1x128xf32>
    %c1 = arith.constant 1 : index
    %c0_1 = arith.constant 0 : index
    %3 = vector.load %arg2[%c1, %c0_1] : memref<8x128xf32, #tpu.memory_space<vmem>>, vector<1x128xf32>
    %cst_2 = arith.constant 7.812500e-03 : f32
    %4 = vector.broadcast %cst_2 : f32 to vector<1x128xf32>
    %5 = arith.mulf %3, %4 : vector<1x128xf32>
    %6 = arith.mulf %2, %2 : vector<1x128xf32>
    %7 = arith.subf %5, %6 : vector<1x128xf32>
    %cst_3 = arith.constant 0.000000e+00 : f32
    %8 = vector.broadcast %cst_3 : f32 to vector<1x128xf32>
    %9 = arith.maximumf %7, %8 : vector<1x128xf32>
    %c0_4 = arith.constant 0 : index
    %c0_5 = arith.constant 0 : index
    %10 = vector.load %arg3[%c0_4, %c0_5] : memref<1x128xf32, #tpu.memory_space<vmem>>, vector<1x128xf32>
    %cst_6 = arith.constant 9.99999974E-6 : f32
    %11 = vector.broadcast %cst_6 : f32 to vector<1x128xf32>
    %12 = arith.addf %9, %11 : vector<1x128xf32>
    %13 = math.rsqrt %12 : vector<1x128xf32>
    %14 = arith.mulf %10, %13 : vector<1x128xf32>
    %c0_7 = arith.constant 0 : index
    %c0_8 = arith.constant 0 : index
    %15 = vector.load %arg4[%c0_7, %c0_8] : memref<1x128xf32, #tpu.memory_space<vmem>>, vector<1x128xf32>
    %16 = arith.mulf %2, %14 : vector<1x128xf32>
    %17 = arith.subf %15, %16 : vector<1x128xf32>
    %c0_9 = arith.constant 0 : index
    %c0_10 = arith.constant 0 : index
    %18 = vector.load %arg1[%c0_9, %c0_10] : memref<128x128xf32, #tpu.memory_space<vmem>>, vector<128x128xf32>
    %19 = vector.broadcast %14 : vector<1x128xf32> to vector<128x128xf32>
    %20 = arith.mulf %18, %19 : vector<128x128xf32>
    %21 = vector.broadcast %17 : vector<1x128xf32> to vector<128x128xf32>
    %22 = arith.addf %20, %21 : vector<128x128xf32>
    %cst_11 = arith.constant 0.000000e+00 : f32
    %23 = vector.broadcast %cst_11 : f32 to vector<128x128xf32>
    %24 = arith.maximumf %22, %23 : vector<128x128xf32>
    %c0_12 = arith.constant 0 : index
    %c0_13 = arith.constant 0 : index
    %25 = vector.load %arg5[%c0_12, %c0_13] : memref<128x128xf32, #tpu.memory_space<vmem>>, vector<128x128xf32>
    tpu.vector_store %arg5[%c0_12, %c0_13], %24 {strides = array<i32>} : memref<128x128xf32, #tpu.memory_space<vmem>>, vector<128x128xf32>,
    return
  }
  func.func @transform_0(%arg0: i32) -> (i32, i32) {
    %c0_i32 = arith.constant 0 : i32
    %c0_i32_0 = arith.constant 0 : i32
    return %arg0, %c0_i32 : i32, i32
  }
  func.func @transform_1(%arg0: i32) -> (i32, i32) {
    %c0_i32 = arith.constant 0 : i32
    %c0_i32_0 = arith.constant 0 : i32
    %c0_i32_1 = arith.constant 0 : i32
    return %c0_i32, %c0_i32_0 : i32, i32
  }
  func.func @transform_2(%arg0: i32) -> (i32, i32) {
    %c0_i32 = arith.constant 0 : i32
    %c0_i32_0 = arith.constant 0 : i32
    %c0_i32_1 = arith.constant 0 : i32
    return %c0_i32, %c0_i32_0 : i32, i32
  }
  func.func @transform_3(%arg0: i32) -> (i32, i32) {
    %c0_i32 = arith.constant 0 : i32
    %c0_i32_0 = arith.constant 0 : i32
    %c0_i32_1 = arith.constant 0 : i32
    return %c0_i32, %c0_i32_0 : i32, i32
  }
  func.func @transform_4(%arg0: i32) -> (i32, i32) {
    %c0_i32 = arith.constant 0 : i32
    %c0_i32_0 = arith.constant 0 : i32
    return %arg0, %c0_i32 : i32, i32
  }
}

module attributes {stable_mosaic.version = 11 : i64} {
  func.func @_matmul_kernel(%arg0: i32, %arg1: i32, %arg2: i32, %arg3: memref<128x256xbf16, #tpu.memory_space<vmem>>, %arg4: memref<256x128xbf16, #tpu.memory_space<vmem>>, %arg5: memref<128x128xf32, #tpu.memory_space<vmem>>, %arg6: memref<128x128xf32, #tpu.memory_space<vmem>>) attributes {dimension_semantics = [#tpu.dimension_semantics<parallel>, #tpu.dimension_semantics<parallel>, #tpu.dimension_semantics<arbitrary>], iteration_bounds = array<i64: 1, 1, 3>, scalar_prefetch = 0 : i64, scratch_operands = 1 : i64, tpu.core_type = #tpu.core_type<tc>, window_params = [{transform_indices = @transform_0, window_bounds = array<i64: 128, 256>}, {transform_indices = @transform_1, window_bounds = array<i64: 256, 128>}, {transform_indices = @transform_2, window_bounds = array<i64: 128, 128>}]} {
    %c0_i32 = arith.constant 0 : i32
    %0 = arith.cmpi eq, %arg2, %c0_i32 : i32
    %1 = arith.extui %0 : i1 to i32
    %c0_i32_0 = arith.constant 0 : i32
    %2 = arith.cmpi ne, %1, %c0_i32_0 : i32
    scf.if %2 {
      %cst_9 = arith.constant 0.000000e+00 : f32
      %12 = vector.broadcast %cst_9 : f32 to vector<128x128xf32>
      %c0_10 = arith.constant 0 : index
      %c0_11 = arith.constant 0 : index
      %13 = vector.load %arg6[%c0_10, %c0_11] : memref<128x128xf32, #tpu.memory_space<vmem>>, vector<128x128xf32>
      tpu.vector_store %arg6[%c0_10, %c0_11], %12 {strides = array<i32>} : memref<128x128xf32, #tpu.memory_space<vmem>>, vector<128x128xf32>,
    } else {
    }
    %c0 = arith.constant 0 : index
    %c0_1 = arith.constant 0 : index
    %3 = vector.load %arg6[%c0, %c0_1] : memref<128x128xf32, #tpu.memory_space<vmem>>, vector<128x128xf32>
    %c0_2 = arith.constant 0 : index
    %c0_3 = arith.constant 0 : index
    %4 = vector.load %arg3[%c0_2, %c0_3] : memref<128x256xbf16, #tpu.memory_space<vmem>>, vector<128x256xbf16>
    %c0_4 = arith.constant 0 : index
    %c0_5 = arith.constant 0 : index
    %5 = vector.load %arg4[%c0_4, %c0_5] : memref<256x128xbf16, #tpu.memory_space<vmem>>, vector<256x128xbf16>
    %cst = arith.constant dense<0.000000e+00> : vector<128x128xf32>
    %6 = tpu.matmul %4, %5, %cst {dimension_numbers = #tpu.dot_dimension_numbers<[1], [0], [0], [1], [0, 0, 1, 1], [], []>} : vector<128x256xbf16>, vector<256x128xbf16>, vector<128x128xf32> -> vector<128x128xf32>
    %7 = arith.addf %3, %6 : vector<128x128xf32>
    %c0_6 = arith.constant 0 : index
    %c0_7 = arith.constant 0 : index
    %8 = vector.load %arg6[%c0_6, %c0_7] : memref<128x128xf32, #tpu.memory_space<vmem>>, vector<128x128xf32>
    tpu.vector_store %arg6[%c0_6, %c0_7], %7 {strides = array<i32>} : memref<128x128xf32, #tpu.memory_space<vmem>>, vector<128x128xf32>,
    %c2_i32 = arith.constant 2 : i32
    %9 = arith.cmpi eq, %arg2, %c2_i32 : i32
    %10 = arith.extui %9 : i1 to i32
    %c0_i32_8 = arith.constant 0 : i32
    %11 = arith.cmpi ne, %10, %c0_i32_8 : i32
    scf.if %11 {
      %c0_9 = arith.constant 0 : index
      %c0_10 = arith.constant 0 : index
      %12 = vector.load %arg6[%c0_9, %c0_10] : memref<128x128xf32, #tpu.memory_space<vmem>>, vector<128x128xf32>
      %c0_11 = arith.constant 0 : index
      %c0_12 = arith.constant 0 : index
      %13 = vector.load %arg5[%c0_11, %c0_12] : memref<128x128xf32, #tpu.memory_space<vmem>>, vector<128x128xf32>
      tpu.vector_store %arg5[%c0_11, %c0_12], %12 {strides = array<i32>} : memref<128x128xf32, #tpu.memory_space<vmem>>, vector<128x128xf32>,
    } else {
    }
    return
  }
  func.func @transform_0(%arg0: i32, %arg1: i32, %arg2: i32) -> (i32, i32) {
    %c0_i32 = arith.constant 0 : i32
    return %arg0, %arg2 : i32, i32
  }
  func.func @transform_1(%arg0: i32, %arg1: i32, %arg2: i32) -> (i32, i32) {
    %c0_i32 = arith.constant 0 : i32
    return %arg2, %arg1 : i32, i32
  }
  func.func @transform_2(%arg0: i32, %arg1: i32, %arg2: i32) -> (i32, i32) {
    %c0_i32 = arith.constant 0 : i32
    return %arg0, %arg1 : i32, i32
  }
}

module attributes {stable_mosaic.version = 11 : i64} {
  func.func @_bn_norm_kernel(%arg0: i32, %arg1: memref<128x256xf32, #tpu.memory_space<vmem>>, %arg2: memref<8x256xf32, #tpu.memory_space<vmem>>, %arg3: memref<1x256xf32, #tpu.memory_space<vmem>>, %arg4: memref<1x256xf32, #tpu.memory_space<vmem>>, %arg5: memref<128x256xf32, #tpu.memory_space<vmem>>, %arg6: memref<128x256xf32, #tpu.memory_space<vmem>>) attributes {dimension_semantics = [#tpu.dimension_semantics<parallel>], iteration_bounds = array<i64: 1>, scalar_prefetch = 0 : i64, scratch_operands = 0 : i64, tpu.core_type = #tpu.core_type<tc>, window_params = [{transform_indices = @transform_0, window_bounds = array<i64: 128, 256>}, {pipeline_mode = #tpu.pipeline_mode<synchronous>, transform_indices = @transform_1, window_bounds = array<i64: 8, 256>}, {pipeline_mode = #tpu.pipeline_mode<synchronous>, transform_indices = @transform_2, window_bounds = array<i64: 1, 256>}, {pipeline_mode = #tpu.pipeline_mode<synchronous>, transform_indices = @transform_3, window_bounds = array<i64: 1, 256>}, {transform_indices = @transform_4, window_bounds = array<i64: 128, 256>}, {transform_indices = @transform_5, window_bounds = array<i64: 128, 256>}]} {
    %c0 = arith.constant 0 : index
    %c0_0 = arith.constant 0 : index
    %0 = vector.load %arg2[%c0, %c0_0] : memref<8x256xf32, #tpu.memory_space<vmem>>, vector<1x256xf32>
    %cst = arith.constant 7.812500e-03 : f32
    %1 = vector.broadcast %cst : f32 to vector<1x256xf32>
    %2 = arith.mulf %0, %1 : vector<1x256xf32>
    %c1 = arith.constant 1 : index
    %c0_1 = arith.constant 0 : index
    %3 = vector.load %arg2[%c1, %c0_1] : memref<8x256xf32, #tpu.memory_space<vmem>>, vector<1x256xf32>
    %cst_2 = arith.constant 7.812500e-03 : f32
    %4 = vector.broadcast %cst_2 : f32 to vector<1x256xf32>
    %5 = arith.mulf %3, %4 : vector<1x256xf32>
    %6 = arith.mulf %2, %2 : vector<1x256xf32>
    %7 = arith.subf %5, %6 : vector<1x256xf32>
    %cst_3 = arith.constant 0.000000e+00 : f32
    %8 = vector.broadcast %cst_3 : f32 to vector<1x256xf32>
    %9 = arith.maximumf %7, %8 : vector<1x256xf32>
    %c0_4 = arith.constant 0 : index
    %c0_5 = arith.constant 0 : index
    %10 = vector.load %arg3[%c0_4, %c0_5] : memref<1x256xf32, #tpu.memory_space<vmem>>, vector<1x256xf32>
    %cst_6 = arith.constant 9.99999974E-6 : f32
    %11 = vector.broadcast %cst_6 : f32 to vector<1x256xf32>
    %12 = arith.addf %9, %11 : vector<1x256xf32>
    %13 = math.rsqrt %12 : vector<1x256xf32>
    %14 = arith.mulf %10, %13 : vector<1x256xf32>
    %c0_7 = arith.constant 0 : index
    %c0_8 = arith.constant 0 : index
    %15 = vector.load %arg4[%c0_7, %c0_8] : memref<1x256xf32, #tpu.memory_space<vmem>>, vector<1x256xf32>
    %16 = arith.mulf %2, %14 : vector<1x256xf32>
    %17 = arith.subf %15, %16 : vector<1x256xf32>
    %c0_9 = arith.constant 0 : index
    %c0_10 = arith.constant 0 : index
    %18 = vector.load %arg1[%c0_9, %c0_10] : memref<128x256xf32, #tpu.memory_space<vmem>>, vector<128x256xf32>
    %19 = vector.broadcast %14 : vector<1x256xf32> to vector<128x256xf32>
    %20 = arith.mulf %18, %19 : vector<128x256xf32>
    %21 = vector.broadcast %17 : vector<1x256xf32> to vector<128x256xf32>
    %22 = arith.addf %20, %21 : vector<128x256xf32>
    %c0_11 = arith.constant 0 : index
    %c0_12 = arith.constant 0 : index
    %23 = vector.load %arg5[%c0_11, %c0_12] : memref<128x256xf32, #tpu.memory_space<vmem>>, vector<128x256xf32>
    %24 = arith.addf %22, %23 : vector<128x256xf32>
    %cst_13 = arith.constant 0.000000e+00 : f32
    %25 = vector.broadcast %cst_13 : f32 to vector<128x256xf32>
    %26 = arith.maximumf %24, %25 : vector<128x256xf32>
    %c0_14 = arith.constant 0 : index
    %c0_15 = arith.constant 0 : index
    %27 = vector.load %arg6[%c0_14, %c0_15] : memref<128x256xf32, #tpu.memory_space<vmem>>, vector<128x256xf32>
    tpu.vector_store %arg6[%c0_14, %c0_15], %26 {strides = array<i32>} : memref<128x256xf32, #tpu.memory_space<vmem>>, vector<128x256xf32>,
    return
  }
  func.func @transform_0(%arg0: i32) -> (i32, i32) {
    %c0_i32 = arith.constant 0 : i32
    %c0_i32_0 = arith.constant 0 : i32
    return %arg0, %c0_i32 : i32, i32
  }
  func.func @transform_1(%arg0: i32) -> (i32, i32) {
    %c0_i32 = arith.constant 0 : i32
    %c0_i32_0 = arith.constant 0 : i32
    %c0_i32_1 = arith.constant 0 : i32
    return %c0_i32, %c0_i32_0 : i32, i32
  }
  func.func @transform_2(%arg0: i32) -> (i32, i32) {
    %c0_i32 = arith.constant 0 : i32
    %c0_i32_0 = arith.constant 0 : i32
    %c0_i32_1 = arith.constant 0 : i32
    return %c0_i32, %c0_i32_0 : i32, i32
  }
  func.func @transform_3(%arg0: i32) -> (i32, i32) {
    %c0_i32 = arith.constant 0 : i32
    %c0_i32_0 = arith.constant 0 : i32
    %c0_i32_1 = arith.constant 0 : i32
    return %c0_i32, %c0_i32_0 : i32, i32
  }
  func.func @transform_4(%arg0: i32) -> (i32, i32) {
    %c0_i32 = arith.constant 0 : i32
    %c0_i32_0 = arith.constant 0 : i32
    return %arg0, %c0_i32 : i32, i32
  }
  func.func @transform_5(%arg0: i32) -> (i32, i32) {
    %c0_i32 = arith.constant 0 : i32
    %c0_i32_0 = arith.constant 0 : i32
    return %arg0, %c0_i32 : i32, i32
  }
}

module attributes {stable_mosaic.version = 11 : i64} {
  func.func @_matmul_kernel(%arg0: i32, %arg1: i32, %arg2: i32, %arg3: memref<128x256xbf16, #tpu.memory_space<vmem>>, %arg4: memref<256x128xbf16, #tpu.memory_space<vmem>>, %arg5: memref<128x128xf32, #tpu.memory_space<vmem>>, %arg6: memref<128x128xf32, #tpu.memory_space<vmem>>) attributes {dimension_semantics = [#tpu.dimension_semantics<parallel>, #tpu.dimension_semantics<parallel>, #tpu.dimension_semantics<arbitrary>], iteration_bounds = array<i64: 1, 1, 1>, scalar_prefetch = 0 : i64, scratch_operands = 1 : i64, tpu.core_type = #tpu.core_type<tc>, window_params = [{transform_indices = @transform_0, window_bounds = array<i64: 128, 256>}, {transform_indices = @transform_1, window_bounds = array<i64: 256, 128>}, {transform_indices = @transform_2, window_bounds = array<i64: 128, 128>}]} {
    %c0_i32 = arith.constant 0 : i32
    %0 = arith.cmpi eq, %arg2, %c0_i32 : i32
    %1 = arith.extui %0 : i1 to i32
    %c0_i32_0 = arith.constant 0 : i32
    %2 = arith.cmpi ne, %1, %c0_i32_0 : i32
    scf.if %2 {
      %cst_10 = arith.constant 0.000000e+00 : f32
      %12 = vector.broadcast %cst_10 : f32 to vector<128x128xf32>
      %c0_11 = arith.constant 0 : index
      %c0_12 = arith.constant 0 : index
      %13 = vector.load %arg6[%c0_11, %c0_12] : memref<128x128xf32, #tpu.memory_space<vmem>>, vector<128x128xf32>
      tpu.vector_store %arg6[%c0_11, %c0_12], %12 {strides = array<i32>} : memref<128x128xf32, #tpu.memory_space<vmem>>, vector<128x128xf32>,
    } else {
    }
    %c0 = arith.constant 0 : index
    %c0_1 = arith.constant 0 : index
    %3 = vector.load %arg6[%c0, %c0_1] : memref<128x128xf32, #tpu.memory_space<vmem>>, vector<128x128xf32>
    %c0_2 = arith.constant 0 : index
    %c0_3 = arith.constant 0 : index
    %4 = vector.load %arg3[%c0_2, %c0_3] : memref<128x256xbf16, #tpu.memory_space<vmem>>, vector<128x256xbf16>
    %c0_4 = arith.constant 0 : index
    %c0_5 = arith.constant 0 : index
    %5 = vector.load %arg4[%c0_4, %c0_5] : memref<256x128xbf16, #tpu.memory_space<vmem>>, vector<256x128xbf16>
    %cst = arith.constant dense<0.000000e+00> : vector<128x128xf32>
    %6 = tpu.matmul %4, %5, %cst {dimension_numbers = #tpu.dot_dimension_numbers<[1], [0], [0], [1], [0, 0, 1, 1], [], []>} : vector<128x256xbf16>, vector<256x128xbf16>, vector<128x128xf32> -> vector<128x128xf32>
    %7 = arith.addf %3, %6 : vector<128x128xf32>
    %c0_6 = arith.constant 0 : index
    %c0_7 = arith.constant 0 : index
    %8 = vector.load %arg6[%c0_6, %c0_7] : memref<128x128xf32, #tpu.memory_space<vmem>>, vector<128x128xf32>
    tpu.vector_store %arg6[%c0_6, %c0_7], %7 {strides = array<i32>} : memref<128x128xf32, #tpu.memory_space<vmem>>, vector<128x128xf32>,
    %c0_i32_8 = arith.constant 0 : i32
    %9 = arith.cmpi eq, %arg2, %c0_i32_8 : i32
    %10 = arith.extui %9 : i1 to i32
    %c0_i32_9 = arith.constant 0 : i32
    %11 = arith.cmpi ne, %10, %c0_i32_9 : i32
    scf.if %11 {
      %c0_10 = arith.constant 0 : index
      %c0_11 = arith.constant 0 : index
      %12 = vector.load %arg6[%c0_10, %c0_11] : memref<128x128xf32, #tpu.memory_space<vmem>>, vector<128x128xf32>
      %c0_12 = arith.constant 0 : index
      %c0_13 = arith.constant 0 : index
      %13 = vector.load %arg5[%c0_12, %c0_13] : memref<128x128xf32, #tpu.memory_space<vmem>>, vector<128x128xf32>
      tpu.vector_store %arg5[%c0_12, %c0_13], %12 {strides = array<i32>} : memref<128x128xf32, #tpu.memory_space<vmem>>, vector<128x128xf32>,
    } else {
    }
    return
  }
  func.func @transform_0(%arg0: i32, %arg1: i32, %arg2: i32) -> (i32, i32) {
    %c0_i32 = arith.constant 0 : i32
    return %arg0, %arg2 : i32, i32
  }
  func.func @transform_1(%arg0: i32, %arg1: i32, %arg2: i32) -> (i32, i32) {
    %c0_i32 = arith.constant 0 : i32
    return %arg2, %arg1 : i32, i32
  }
  func.func @transform_2(%arg0: i32, %arg1: i32, %arg2: i32) -> (i32, i32) {
    %c0_i32 = arith.constant 0 : i32
    return %arg0, %arg1 : i32, i32
  }
}

module attributes {stable_mosaic.version = 11 : i64} {
  func.func @_matmul_kernel(%arg0: i32, %arg1: i32, %arg2: i32, %arg3: memref<32x256xbf16, #tpu.memory_space<vmem>>, %arg4: memref<256x256xbf16, #tpu.memory_space<vmem>>, %arg5: memref<32x256xf32, #tpu.memory_space<vmem>>, %arg6: memref<32x256xf32, #tpu.memory_space<vmem>>) attributes {dimension_semantics = [#tpu.dimension_semantics<parallel>, #tpu.dimension_semantics<parallel>, #tpu.dimension_semantics<arbitrary>], iteration_bounds = array<i64: 1, 2, 1>, scalar_prefetch = 0 : i64, scratch_operands = 1 : i64, tpu.core_type = #tpu.core_type<tc>, window_params = [{transform_indices = @transform_0, window_bounds = array<i64: 32, 256>}, {transform_indices = @transform_1, window_bounds = array<i64: 256, 256>}, {transform_indices = @transform_2, window_bounds = array<i64: 32, 256>}]} {
    %c0_i32 = arith.constant 0 : i32
    %0 = arith.cmpi eq, %arg2, %c0_i32 : i32
    %1 = arith.extui %0 : i1 to i32
    %c0_i32_0 = arith.constant 0 : i32
    %2 = arith.cmpi ne, %1, %c0_i32_0 : i32
    scf.if %2 {
      %cst_10 = arith.constant 0.000000e+00 : f32
      %12 = vector.broadcast %cst_10 : f32 to vector<32x256xf32>
      %c0_11 = arith.constant 0 : index
      %c0_12 = arith.constant 0 : index
      %13 = vector.load %arg6[%c0_11, %c0_12] : memref<32x256xf32, #tpu.memory_space<vmem>>, vector<32x256xf32>
      tpu.vector_store %arg6[%c0_11, %c0_12], %12 {strides = array<i32>} : memref<32x256xf32, #tpu.memory_space<vmem>>, vector<32x256xf32>,
    } else {
    }
    %c0 = arith.constant 0 : index
    %c0_1 = arith.constant 0 : index
    %3 = vector.load %arg6[%c0, %c0_1] : memref<32x256xf32, #tpu.memory_space<vmem>>, vector<32x256xf32>
    %c0_2 = arith.constant 0 : index
    %c0_3 = arith.constant 0 : index
    %4 = vector.load %arg3[%c0_2, %c0_3] : memref<32x256xbf16, #tpu.memory_space<vmem>>, vector<32x256xbf16>
    %c0_4 = arith.constant 0 : index
    %c0_5 = arith.constant 0 : index
    %5 = vector.load %arg4[%c0_4, %c0_5] : memref<256x256xbf16, #tpu.memory_space<vmem>>, vector<256x256xbf16>
    %cst = arith.constant dense<0.000000e+00> : vector<32x256xf32>
    %6 = tpu.matmul %4, %5, %cst {dimension_numbers = #tpu.dot_dimension_numbers<[1], [0], [0], [1], [0, 0, 1, 1], [], []>} : vector<32x256xbf16>, vector<256x256xbf16>, vector<32x256xf32> -> vector<32x256xf32>
    %7 = arith.addf %3, %6 : vector<32x256xf32>
    %c0_6 = arith.constant 0 : index
    %c0_7 = arith.constant 0 : index
    %8 = vector.load %arg6[%c0_6, %c0_7] : memref<32x256xf32, #tpu.memory_space<vmem>>, vector<32x256xf32>
    tpu.vector_store %arg6[%c0_6, %c0_7], %7 {strides = array<i32>} : memref<32x256xf32, #tpu.memory_space<vmem>>, vector<32x256xf32>,
    %c0_i32_8 = arith.constant 0 : i32
    %9 = arith.cmpi eq, %arg2, %c0_i32_8 : i32
    %10 = arith.extui %9 : i1 to i32
    %c0_i32_9 = arith.constant 0 : i32
    %11 = arith.cmpi ne, %10, %c0_i32_9 : i32
    scf.if %11 {
      %c0_10 = arith.constant 0 : index
      %c0_11 = arith.constant 0 : index
      %12 = vector.load %arg6[%c0_10, %c0_11] : memref<32x256xf32, #tpu.memory_space<vmem>>, vector<32x256xf32>
      %c0_12 = arith.constant 0 : index
      %c0_13 = arith.constant 0 : index
      %13 = vector.load %arg5[%c0_12, %c0_13] : memref<32x256xf32, #tpu.memory_space<vmem>>, vector<32x256xf32>
      tpu.vector_store %arg5[%c0_12, %c0_13], %12 {strides = array<i32>} : memref<32x256xf32, #tpu.memory_space<vmem>>, vector<32x256xf32>,
    } else {
    }
    return
  }
  func.func @transform_0(%arg0: i32, %arg1: i32, %arg2: i32) -> (i32, i32) {
    %c0_i32 = arith.constant 0 : i32
    return %arg0, %arg2 : i32, i32
  }
  func.func @transform_1(%arg0: i32, %arg1: i32, %arg2: i32) -> (i32, i32) {
    %c0_i32 = arith.constant 0 : i32
    return %arg2, %arg1 : i32, i32
  }
  func.func @transform_2(%arg0: i32, %arg1: i32, %arg2: i32) -> (i32, i32) {
    %c0_i32 = arith.constant 0 : i32
    return %arg0, %arg1 : i32, i32
  }
}

module attributes {stable_mosaic.version = 11 : i64} {
  func.func @_bn_stats_kernel(%arg0: i32, %arg1: memref<32x512xf32, #tpu.memory_space<vmem>>, %arg2: memref<8x512xf32, #tpu.memory_space<vmem>>) attributes {dimension_semantics = [#tpu.dimension_semantics<arbitrary>], iteration_bounds = array<i64: 1>, scalar_prefetch = 0 : i64, scratch_operands = 0 : i64, tpu.core_type = #tpu.core_type<tc>, window_params = [{transform_indices = @transform_0, window_bounds = array<i64: 32, 512>}, {pipeline_mode = #tpu.pipeline_mode<synchronous>, transform_indices = @transform_1, window_bounds = array<i64: 8, 512>}]} {
    %c0_i32 = arith.constant 0 : i32
    %0 = arith.cmpi eq, %arg0, %c0_i32 : i32
    %1 = arith.extui %0 : i1 to i32
    %c0_i32_0 = arith.constant 0 : i32
    %2 = arith.cmpi ne, %1, %c0_i32_0 : i32
    scf.if %2 {
      %cst_10 = arith.constant 0.000000e+00 : f32
      %15 = vector.broadcast %cst_10 : f32 to vector<8x512xf32>
      %c0_11 = arith.constant 0 : index
      %c0_12 = arith.constant 0 : index
      %16 = vector.load %arg2[%c0_11, %c0_12] : memref<8x512xf32, #tpu.memory_space<vmem>>, vector<8x512xf32>
      tpu.vector_store %arg2[%c0_11, %c0_12], %15 {strides = array<i32>} : memref<8x512xf32, #tpu.memory_space<vmem>>, vector<8x512xf32>,
    } else {
    }
    %c0 = arith.constant 0 : index
    %c0_1 = arith.constant 0 : index
    %3 = vector.load %arg1[%c0, %c0_1] : memref<32x512xf32, #tpu.memory_space<vmem>>, vector<32x512xf32>
    %c0_2 = arith.constant 0 : index
    %c0_3 = arith.constant 0 : index
    %4 = vector.load %arg2[%c0_2, %c0_3] : memref<8x512xf32, #tpu.memory_space<vmem>>, vector<1x512xf32>
    %cst = arith.constant dense<0.000000e+00> : vector<512xf32>
    %5 = vector.multi_reduction <add>, %3, %cst [0] : vector<32x512xf32> to vector<512xf32>
    %6 = vector.shape_cast %5 : vector<512xf32> to vector<1x512xf32>
    %7 = arith.addf %4, %6 : vector<1x512xf32>
    %c0_4 = arith.constant 0 : index
    %c0_5 = arith.constant 0 : index
    %8 = vector.load %arg2[%c0_4, %c0_5] : memref<8x512xf32, #tpu.memory_space<vmem>>, vector<1x512xf32>
    tpu.vector_store %arg2[%c0_4, %c0_5], %7 {strides = array<i32>} : memref<8x512xf32, #tpu.memory_space<vmem>>, vector<1x512xf32>,
    %c1 = arith.constant 1 : index
    %c0_6 = arith.constant 0 : index
    %9 = vector.load %arg2[%c1, %c0_6] : memref<8x512xf32, #tpu.memory_space<vmem>>, vector<1x512xf32>
    %10 = arith.mulf %3, %3 : vector<32x512xf32>
    %cst_7 = arith.constant dense<0.000000e+00> : vector<512xf32>
    %11 = vector.multi_reduction <add>, %10, %cst_7 [0] : vector<32x512xf32> to vector<512xf32>
    %12 = vector.shape_cast %11 : vector<512xf32> to vector<1x512xf32>
    %13 = arith.addf %9, %12 : vector<1x512xf32>
    %c1_8 = arith.constant 1 : index
    %c0_9 = arith.constant 0 : index
    %14 = vector.load %arg2[%c1_8, %c0_9] : memref<8x512xf32, #tpu.memory_space<vmem>>, vector<1x512xf32>
    tpu.vector_store %arg2[%c1_8, %c0_9], %13 {strides = array<i32>} : memref<8x512xf32, #tpu.memory_space<vmem>>, vector<1x512xf32>,
    return
  }
  func.func @transform_0(%arg0: i32) -> (i32, i32) {
    %c0_i32 = arith.constant 0 : i32
    %c0_i32_0 = arith.constant 0 : i32
    return %arg0, %c0_i32 : i32, i32
  }
  func.func @transform_1(%arg0: i32) -> (i32, i32) {
    %c0_i32 = arith.constant 0 : i32
    %c0_i32_0 = arith.constant 0 : i32
    %c0_i32_1 = arith.constant 0 : i32
    return %c0_i32, %c0_i32_0 : i32, i32
  }
}

module attributes {stable_mosaic.version = 11 : i64} {
  func.func @_bn_norm_kernel(%arg0: i32, %arg1: memref<32x512xf32, #tpu.memory_space<vmem>>, %arg2: memref<8x512xf32, #tpu.memory_space<vmem>>, %arg3: memref<1x512xf32, #tpu.memory_space<vmem>>, %arg4: memref<1x512xf32, #tpu.memory_space<vmem>>, %arg5: memref<32x512xf32, #tpu.memory_space<vmem>>) attributes {dimension_semantics = [#tpu.dimension_semantics<parallel>], iteration_bounds = array<i64: 1>, scalar_prefetch = 0 : i64, scratch_operands = 0 : i64, tpu.core_type = #tpu.core_type<tc>, window_params = [{transform_indices = @transform_0, window_bounds = array<i64: 32, 512>}, {pipeline_mode = #tpu.pipeline_mode<synchronous>, transform_indices = @transform_1, window_bounds = array<i64: 8, 512>}, {pipeline_mode = #tpu.pipeline_mode<synchronous>, transform_indices = @transform_2, window_bounds = array<i64: 1, 512>}, {pipeline_mode = #tpu.pipeline_mode<synchronous>, transform_indices = @transform_3, window_bounds = array<i64: 1, 512>}, {transform_indices = @transform_4, window_bounds = array<i64: 32, 512>}]} {
    %c0 = arith.constant 0 : index
    %c0_0 = arith.constant 0 : index
    %0 = vector.load %arg2[%c0, %c0_0] : memref<8x512xf32, #tpu.memory_space<vmem>>, vector<1x512xf32>
    %cst = arith.constant 3.125000e-02 : f32
    %1 = vector.broadcast %cst : f32 to vector<1x512xf32>
    %2 = arith.mulf %0, %1 : vector<1x512xf32>
    %c1 = arith.constant 1 : index
    %c0_1 = arith.constant 0 : index
    %3 = vector.load %arg2[%c1, %c0_1] : memref<8x512xf32, #tpu.memory_space<vmem>>, vector<1x512xf32>
    %cst_2 = arith.constant 3.125000e-02 : f32
    %4 = vector.broadcast %cst_2 : f32 to vector<1x512xf32>
    %5 = arith.mulf %3, %4 : vector<1x512xf32>
    %6 = arith.mulf %2, %2 : vector<1x512xf32>
    %7 = arith.subf %5, %6 : vector<1x512xf32>
    %cst_3 = arith.constant 0.000000e+00 : f32
    %8 = vector.broadcast %cst_3 : f32 to vector<1x512xf32>
    %9 = arith.maximumf %7, %8 : vector<1x512xf32>
    %c0_4 = arith.constant 0 : index
    %c0_5 = arith.constant 0 : index
    %10 = vector.load %arg3[%c0_4, %c0_5] : memref<1x512xf32, #tpu.memory_space<vmem>>, vector<1x512xf32>
    %cst_6 = arith.constant 9.99999974E-6 : f32
    %11 = vector.broadcast %cst_6 : f32 to vector<1x512xf32>
    %12 = arith.addf %9, %11 : vector<1x512xf32>
    %13 = math.rsqrt %12 : vector<1x512xf32>
    %14 = arith.mulf %10, %13 : vector<1x512xf32>
    %c0_7 = arith.constant 0 : index
    %c0_8 = arith.constant 0 : index
    %15 = vector.load %arg4[%c0_7, %c0_8] : memref<1x512xf32, #tpu.memory_space<vmem>>, vector<1x512xf32>
    %16 = arith.mulf %2, %14 : vector<1x512xf32>
    %17 = arith.subf %15, %16 : vector<1x512xf32>
    %c0_9 = arith.constant 0 : index
    %c0_10 = arith.constant 0 : index
    %18 = vector.load %arg1[%c0_9, %c0_10] : memref<32x512xf32, #tpu.memory_space<vmem>>, vector<32x512xf32>
    %19 = vector.broadcast %14 : vector<1x512xf32> to vector<32x512xf32>
    %20 = arith.mulf %18, %19 : vector<32x512xf32>
    %21 = vector.broadcast %17 : vector<1x512xf32> to vector<32x512xf32>
    %22 = arith.addf %20, %21 : vector<32x512xf32>
    %c0_11 = arith.constant 0 : index
    %c0_12 = arith.constant 0 : index
    %23 = vector.load %arg5[%c0_11, %c0_12] : memref<32x512xf32, #tpu.memory_space<vmem>>, vector<32x512xf32>
    tpu.vector_store %arg5[%c0_11, %c0_12], %22 {strides = array<i32>} : memref<32x512xf32, #tpu.memory_space<vmem>>, vector<32x512xf32>,
    return
  }
  func.func @transform_0(%arg0: i32) -> (i32, i32) {
    %c0_i32 = arith.constant 0 : i32
    %c0_i32_0 = arith.constant 0 : i32
    return %arg0, %c0_i32 : i32, i32
  }
  func.func @transform_1(%arg0: i32) -> (i32, i32) {
    %c0_i32 = arith.constant 0 : i32
    %c0_i32_0 = arith.constant 0 : i32
    %c0_i32_1 = arith.constant 0 : i32
    return %c0_i32, %c0_i32_0 : i32, i32
  }
  func.func @transform_2(%arg0: i32) -> (i32, i32) {
    %c0_i32 = arith.constant 0 : i32
    %c0_i32_0 = arith.constant 0 : i32
    %c0_i32_1 = arith.constant 0 : i32
    return %c0_i32, %c0_i32_0 : i32, i32
  }
  func.func @transform_3(%arg0: i32) -> (i32, i32) {
    %c0_i32 = arith.constant 0 : i32
    %c0_i32_0 = arith.constant 0 : i32
    %c0_i32_1 = arith.constant 0 : i32
    return %c0_i32, %c0_i32_0 : i32, i32
  }
  func.func @transform_4(%arg0: i32) -> (i32, i32) {
    %c0_i32 = arith.constant 0 : i32
    %c0_i32_0 = arith.constant 0 : i32
    return %arg0, %c0_i32 : i32, i32
  }
}

module attributes {stable_mosaic.version = 11 : i64} {
  func.func @_matmul_kernel(%arg0: i32, %arg1: i32, %arg2: i32, %arg3: memref<32x256xbf16, #tpu.memory_space<vmem>>, %arg4: memref<256x128xbf16, #tpu.memory_space<vmem>>, %arg5: memref<32x128xf32, #tpu.memory_space<vmem>>, %arg6: memref<32x128xf32, #tpu.memory_space<vmem>>) attributes {dimension_semantics = [#tpu.dimension_semantics<parallel>, #tpu.dimension_semantics<parallel>, #tpu.dimension_semantics<arbitrary>], iteration_bounds = array<i64: 1, 1, 5>, scalar_prefetch = 0 : i64, scratch_operands = 1 : i64, tpu.core_type = #tpu.core_type<tc>, window_params = [{transform_indices = @transform_0, window_bounds = array<i64: 32, 256>}, {transform_indices = @transform_1, window_bounds = array<i64: 256, 128>}, {transform_indices = @transform_2, window_bounds = array<i64: 32, 128>}]} {
    %c0_i32 = arith.constant 0 : i32
    %0 = arith.cmpi eq, %arg2, %c0_i32 : i32
    %1 = arith.extui %0 : i1 to i32
    %c0_i32_0 = arith.constant 0 : i32
    %2 = arith.cmpi ne, %1, %c0_i32_0 : i32
    scf.if %2 {
      %cst_9 = arith.constant 0.000000e+00 : f32
      %12 = vector.broadcast %cst_9 : f32 to vector<32x128xf32>
      %c0_10 = arith.constant 0 : index
      %c0_11 = arith.constant 0 : index
      %13 = vector.load %arg6[%c0_10, %c0_11] : memref<32x128xf32, #tpu.memory_space<vmem>>, vector<32x128xf32>
      tpu.vector_store %arg6[%c0_10, %c0_11], %12 {strides = array<i32>} : memref<32x128xf32, #tpu.memory_space<vmem>>, vector<32x128xf32>,
    } else {
    }
    %c0 = arith.constant 0 : index
    %c0_1 = arith.constant 0 : index
    %3 = vector.load %arg6[%c0, %c0_1] : memref<32x128xf32, #tpu.memory_space<vmem>>, vector<32x128xf32>
    %c0_2 = arith.constant 0 : index
    %c0_3 = arith.constant 0 : index
    %4 = vector.load %arg3[%c0_2, %c0_3] : memref<32x256xbf16, #tpu.memory_space<vmem>>, vector<32x256xbf16>
    %c0_4 = arith.constant 0 : index
    %c0_5 = arith.constant 0 : index
    %5 = vector.load %arg4[%c0_4, %c0_5] : memref<256x128xbf16, #tpu.memory_space<vmem>>, vector<256x128xbf16>
    %cst = arith.constant dense<0.000000e+00> : vector<32x128xf32>
    %6 = tpu.matmul %4, %5, %cst {dimension_numbers = #tpu.dot_dimension_numbers<[1], [0], [0], [1], [0, 0, 1, 1], [], []>} : vector<32x256xbf16>, vector<256x128xbf16>, vector<32x128xf32> -> vector<32x128xf32>
    %7 = arith.addf %3, %6 : vector<32x128xf32>
    %c0_6 = arith.constant 0 : index
    %c0_7 = arith.constant 0 : index
    %8 = vector.load %arg6[%c0_6, %c0_7] : memref<32x128xf32, #tpu.memory_space<vmem>>, vector<32x128xf32>
    tpu.vector_store %arg6[%c0_6, %c0_7], %7 {strides = array<i32>} : memref<32x128xf32, #tpu.memory_space<vmem>>, vector<32x128xf32>,
    %c4_i32 = arith.constant 4 : i32
    %9 = arith.cmpi eq, %arg2, %c4_i32 : i32
    %10 = arith.extui %9 : i1 to i32
    %c0_i32_8 = arith.constant 0 : i32
    %11 = arith.cmpi ne, %10, %c0_i32_8 : i32
    scf.if %11 {
      %c0_9 = arith.constant 0 : index
      %c0_10 = arith.constant 0 : index
      %12 = vector.load %arg6[%c0_9, %c0_10] : memref<32x128xf32, #tpu.memory_space<vmem>>, vector<32x128xf32>
      %c0_11 = arith.constant 0 : index
      %c0_12 = arith.constant 0 : index
      %13 = vector.load %arg5[%c0_11, %c0_12] : memref<32x128xf32, #tpu.memory_space<vmem>>, vector<32x128xf32>
      tpu.vector_store %arg5[%c0_11, %c0_12], %12 {strides = array<i32>} : memref<32x128xf32, #tpu.memory_space<vmem>>, vector<32x128xf32>,
    } else {
    }
    return
  }
  func.func @transform_0(%arg0: i32, %arg1: i32, %arg2: i32) -> (i32, i32) {
    %c0_i32 = arith.constant 0 : i32
    return %arg0, %arg2 : i32, i32
  }
  func.func @transform_1(%arg0: i32, %arg1: i32, %arg2: i32) -> (i32, i32) {
    %c0_i32 = arith.constant 0 : i32
    return %arg2, %arg1 : i32, i32
  }
  func.func @transform_2(%arg0: i32, %arg1: i32, %arg2: i32) -> (i32, i32) {
    %c0_i32 = arith.constant 0 : i32
    return %arg0, %arg1 : i32, i32
  }
}

module attributes {stable_mosaic.version = 11 : i64} {
  func.func @_bn_stats_kernel(%arg0: i32, %arg1: memref<32x128xf32, #tpu.memory_space<vmem>>, %arg2: memref<8x128xf32, #tpu.memory_space<vmem>>) attributes {dimension_semantics = [#tpu.dimension_semantics<arbitrary>], iteration_bounds = array<i64: 1>, scalar_prefetch = 0 : i64, scratch_operands = 0 : i64, tpu.core_type = #tpu.core_type<tc>, window_params = [{transform_indices = @transform_0, window_bounds = array<i64: 32, 128>}, {pipeline_mode = #tpu.pipeline_mode<synchronous>, transform_indices = @transform_1, window_bounds = array<i64: 8, 128>}]} {
    %c0_i32 = arith.constant 0 : i32
    %0 = arith.cmpi eq, %arg0, %c0_i32 : i32
    %1 = arith.extui %0 : i1 to i32
    %c0_i32_0 = arith.constant 0 : i32
    %2 = arith.cmpi ne, %1, %c0_i32_0 : i32
    scf.if %2 {
      %cst_10 = arith.constant 0.000000e+00 : f32
      %15 = vector.broadcast %cst_10 : f32 to vector<8x128xf32>
      %c0_11 = arith.constant 0 : index
      %c0_12 = arith.constant 0 : index
      %16 = vector.load %arg2[%c0_11, %c0_12] : memref<8x128xf32, #tpu.memory_space<vmem>>, vector<8x128xf32>
      tpu.vector_store %arg2[%c0_11, %c0_12], %15 {strides = array<i32>} : memref<8x128xf32, #tpu.memory_space<vmem>>, vector<8x128xf32>,
    } else {
    }
    %c0 = arith.constant 0 : index
    %c0_1 = arith.constant 0 : index
    %3 = vector.load %arg1[%c0, %c0_1] : memref<32x128xf32, #tpu.memory_space<vmem>>, vector<32x128xf32>
    %c0_2 = arith.constant 0 : index
    %c0_3 = arith.constant 0 : index
    %4 = vector.load %arg2[%c0_2, %c0_3] : memref<8x128xf32, #tpu.memory_space<vmem>>, vector<1x128xf32>
    %cst = arith.constant dense<0.000000e+00> : vector<128xf32>
    %5 = vector.multi_reduction <add>, %3, %cst [0] : vector<32x128xf32> to vector<128xf32>
    %6 = vector.shape_cast %5 : vector<128xf32> to vector<1x128xf32>
    %7 = arith.addf %4, %6 : vector<1x128xf32>
    %c0_4 = arith.constant 0 : index
    %c0_5 = arith.constant 0 : index
    %8 = vector.load %arg2[%c0_4, %c0_5] : memref<8x128xf32, #tpu.memory_space<vmem>>, vector<1x128xf32>
    tpu.vector_store %arg2[%c0_4, %c0_5], %7 {strides = array<i32>} : memref<8x128xf32, #tpu.memory_space<vmem>>, vector<1x128xf32>,
    %c1 = arith.constant 1 : index
    %c0_6 = arith.constant 0 : index
    %9 = vector.load %arg2[%c1, %c0_6] : memref<8x128xf32, #tpu.memory_space<vmem>>, vector<1x128xf32>
    %10 = arith.mulf %3, %3 : vector<32x128xf32>
    %cst_7 = arith.constant dense<0.000000e+00> : vector<128xf32>
    %11 = vector.multi_reduction <add>, %10, %cst_7 [0] : vector<32x128xf32> to vector<128xf32>
    %12 = vector.shape_cast %11 : vector<128xf32> to vector<1x128xf32>
    %13 = arith.addf %9, %12 : vector<1x128xf32>
    %c1_8 = arith.constant 1 : index
    %c0_9 = arith.constant 0 : index
    %14 = vector.load %arg2[%c1_8, %c0_9] : memref<8x128xf32, #tpu.memory_space<vmem>>, vector<1x128xf32>
    tpu.vector_store %arg2[%c1_8, %c0_9], %13 {strides = array<i32>} : memref<8x128xf32, #tpu.memory_space<vmem>>, vector<1x128xf32>,
    return
  }
  func.func @transform_0(%arg0: i32) -> (i32, i32) {
    %c0_i32 = arith.constant 0 : i32
    %c0_i32_0 = arith.constant 0 : i32
    return %arg0, %c0_i32 : i32, i32
  }
  func.func @transform_1(%arg0: i32) -> (i32, i32) {
    %c0_i32 = arith.constant 0 : i32
    %c0_i32_0 = arith.constant 0 : i32
    %c0_i32_1 = arith.constant 0 : i32
    return %c0_i32, %c0_i32_0 : i32, i32
  }
}

module attributes {stable_mosaic.version = 11 : i64} {
  func.func @_bn_norm_kernel(%arg0: i32, %arg1: memref<32x128xf32, #tpu.memory_space<vmem>>, %arg2: memref<8x128xf32, #tpu.memory_space<vmem>>, %arg3: memref<1x128xf32, #tpu.memory_space<vmem>>, %arg4: memref<1x128xf32, #tpu.memory_space<vmem>>, %arg5: memref<32x128xf32, #tpu.memory_space<vmem>>) attributes {dimension_semantics = [#tpu.dimension_semantics<parallel>], iteration_bounds = array<i64: 1>, scalar_prefetch = 0 : i64, scratch_operands = 0 : i64, tpu.core_type = #tpu.core_type<tc>, window_params = [{transform_indices = @transform_0, window_bounds = array<i64: 32, 128>}, {pipeline_mode = #tpu.pipeline_mode<synchronous>, transform_indices = @transform_1, window_bounds = array<i64: 8, 128>}, {pipeline_mode = #tpu.pipeline_mode<synchronous>, transform_indices = @transform_2, window_bounds = array<i64: 1, 128>}, {pipeline_mode = #tpu.pipeline_mode<synchronous>, transform_indices = @transform_3, window_bounds = array<i64: 1, 128>}, {transform_indices = @transform_4, window_bounds = array<i64: 32, 128>}]} {
    %c0 = arith.constant 0 : index
    %c0_0 = arith.constant 0 : index
    %0 = vector.load %arg2[%c0, %c0_0] : memref<8x128xf32, #tpu.memory_space<vmem>>, vector<1x128xf32>
    %cst = arith.constant 3.125000e-02 : f32
    %1 = vector.broadcast %cst : f32 to vector<1x128xf32>
    %2 = arith.mulf %0, %1 : vector<1x128xf32>
    %c1 = arith.constant 1 : index
    %c0_1 = arith.constant 0 : index
    %3 = vector.load %arg2[%c1, %c0_1] : memref<8x128xf32, #tpu.memory_space<vmem>>, vector<1x128xf32>
    %cst_2 = arith.constant 3.125000e-02 : f32
    %4 = vector.broadcast %cst_2 : f32 to vector<1x128xf32>
    %5 = arith.mulf %3, %4 : vector<1x128xf32>
    %6 = arith.mulf %2, %2 : vector<1x128xf32>
    %7 = arith.subf %5, %6 : vector<1x128xf32>
    %cst_3 = arith.constant 0.000000e+00 : f32
    %8 = vector.broadcast %cst_3 : f32 to vector<1x128xf32>
    %9 = arith.maximumf %7, %8 : vector<1x128xf32>
    %c0_4 = arith.constant 0 : index
    %c0_5 = arith.constant 0 : index
    %10 = vector.load %arg3[%c0_4, %c0_5] : memref<1x128xf32, #tpu.memory_space<vmem>>, vector<1x128xf32>
    %cst_6 = arith.constant 9.99999974E-6 : f32
    %11 = vector.broadcast %cst_6 : f32 to vector<1x128xf32>
    %12 = arith.addf %9, %11 : vector<1x128xf32>
    %13 = math.rsqrt %12 : vector<1x128xf32>
    %14 = arith.mulf %10, %13 : vector<1x128xf32>
    %c0_7 = arith.constant 0 : index
    %c0_8 = arith.constant 0 : index
    %15 = vector.load %arg4[%c0_7, %c0_8] : memref<1x128xf32, #tpu.memory_space<vmem>>, vector<1x128xf32>
    %16 = arith.mulf %2, %14 : vector<1x128xf32>
    %17 = arith.subf %15, %16 : vector<1x128xf32>
    %c0_9 = arith.constant 0 : index
    %c0_10 = arith.constant 0 : index
    %18 = vector.load %arg1[%c0_9, %c0_10] : memref<32x128xf32, #tpu.memory_space<vmem>>, vector<32x128xf32>
    %19 = vector.broadcast %14 : vector<1x128xf32> to vector<32x128xf32>
    %20 = arith.mulf %18, %19 : vector<32x128xf32>
    %21 = vector.broadcast %17 : vector<1x128xf32> to vector<32x128xf32>
    %22 = arith.addf %20, %21 : vector<32x128xf32>
    %cst_11 = arith.constant 0.000000e+00 : f32
    %23 = vector.broadcast %cst_11 : f32 to vector<32x128xf32>
    %24 = arith.maximumf %22, %23 : vector<32x128xf32>
    %c0_12 = arith.constant 0 : index
    %c0_13 = arith.constant 0 : index
    %25 = vector.load %arg5[%c0_12, %c0_13] : memref<32x128xf32, #tpu.memory_space<vmem>>, vector<32x128xf32>
    tpu.vector_store %arg5[%c0_12, %c0_13], %24 {strides = array<i32>} : memref<32x128xf32, #tpu.memory_space<vmem>>, vector<32x128xf32>,
    return
  }
  func.func @transform_0(%arg0: i32) -> (i32, i32) {
    %c0_i32 = arith.constant 0 : i32
    %c0_i32_0 = arith.constant 0 : i32
    return %arg0, %c0_i32 : i32, i32
  }
  func.func @transform_1(%arg0: i32) -> (i32, i32) {
    %c0_i32 = arith.constant 0 : i32
    %c0_i32_0 = arith.constant 0 : i32
    %c0_i32_1 = arith.constant 0 : i32
    return %c0_i32, %c0_i32_0 : i32, i32
  }
  func.func @transform_2(%arg0: i32) -> (i32, i32) {
    %c0_i32 = arith.constant 0 : i32
    %c0_i32_0 = arith.constant 0 : i32
    %c0_i32_1 = arith.constant 0 : i32
    return %c0_i32, %c0_i32_0 : i32, i32
  }
  func.func @transform_3(%arg0: i32) -> (i32, i32) {
    %c0_i32 = arith.constant 0 : i32
    %c0_i32_0 = arith.constant 0 : i32
    %c0_i32_1 = arith.constant 0 : i32
    return %c0_i32, %c0_i32_0 : i32, i32
  }
  func.func @transform_4(%arg0: i32) -> (i32, i32) {
    %c0_i32 = arith.constant 0 : i32
    %c0_i32_0 = arith.constant 0 : i32
    return %arg0, %c0_i32 : i32, i32
  }
}

module attributes {stable_mosaic.version = 11 : i64} {
  func.func @_matmul_kernel(%arg0: i32, %arg1: i32, %arg2: i32, %arg3: memref<32x128xbf16, #tpu.memory_space<vmem>>, %arg4: memref<128x256xbf16, #tpu.memory_space<vmem>>, %arg5: memref<32x256xf32, #tpu.memory_space<vmem>>, %arg6: memref<32x256xf32, #tpu.memory_space<vmem>>) attributes {dimension_semantics = [#tpu.dimension_semantics<parallel>, #tpu.dimension_semantics<parallel>, #tpu.dimension_semantics<arbitrary>], iteration_bounds = array<i64: 1, 2, 1>, scalar_prefetch = 0 : i64, scratch_operands = 1 : i64, tpu.core_type = #tpu.core_type<tc>, window_params = [{transform_indices = @transform_0, window_bounds = array<i64: 32, 128>}, {transform_indices = @transform_1, window_bounds = array<i64: 128, 256>}, {transform_indices = @transform_2, window_bounds = array<i64: 32, 256>}]} {
    %c0_i32 = arith.constant 0 : i32
    %0 = arith.cmpi eq, %arg2, %c0_i32 : i32
    %1 = arith.extui %0 : i1 to i32
    %c0_i32_0 = arith.constant 0 : i32
    %2 = arith.cmpi ne, %1, %c0_i32_0 : i32
    scf.if %2 {
      %cst_10 = arith.constant 0.000000e+00 : f32
      %12 = vector.broadcast %cst_10 : f32 to vector<32x256xf32>
      %c0_11 = arith.constant 0 : index
      %c0_12 = arith.constant 0 : index
      %13 = vector.load %arg6[%c0_11, %c0_12] : memref<32x256xf32, #tpu.memory_space<vmem>>, vector<32x256xf32>
      tpu.vector_store %arg6[%c0_11, %c0_12], %12 {strides = array<i32>} : memref<32x256xf32, #tpu.memory_space<vmem>>, vector<32x256xf32>,
    } else {
    }
    %c0 = arith.constant 0 : index
    %c0_1 = arith.constant 0 : index
    %3 = vector.load %arg6[%c0, %c0_1] : memref<32x256xf32, #tpu.memory_space<vmem>>, vector<32x256xf32>
    %c0_2 = arith.constant 0 : index
    %c0_3 = arith.constant 0 : index
    %4 = vector.load %arg3[%c0_2, %c0_3] : memref<32x128xbf16, #tpu.memory_space<vmem>>, vector<32x128xbf16>
    %c0_4 = arith.constant 0 : index
    %c0_5 = arith.constant 0 : index
    %5 = vector.load %arg4[%c0_4, %c0_5] : memref<128x256xbf16, #tpu.memory_space<vmem>>, vector<128x256xbf16>
    %cst = arith.constant dense<0.000000e+00> : vector<32x256xf32>
    %6 = tpu.matmul %4, %5, %cst {dimension_numbers = #tpu.dot_dimension_numbers<[1], [0], [0], [1], [0, 0, 1, 1], [], []>} : vector<32x128xbf16>, vector<128x256xbf16>, vector<32x256xf32> -> vector<32x256xf32>
    %7 = arith.addf %3, %6 : vector<32x256xf32>
    %c0_6 = arith.constant 0 : index
    %c0_7 = arith.constant 0 : index
    %8 = vector.load %arg6[%c0_6, %c0_7] : memref<32x256xf32, #tpu.memory_space<vmem>>, vector<32x256xf32>
    tpu.vector_store %arg6[%c0_6, %c0_7], %7 {strides = array<i32>} : memref<32x256xf32, #tpu.memory_space<vmem>>, vector<32x256xf32>,
    %c0_i32_8 = arith.constant 0 : i32
    %9 = arith.cmpi eq, %arg2, %c0_i32_8 : i32
    %10 = arith.extui %9 : i1 to i32
    %c0_i32_9 = arith.constant 0 : i32
    %11 = arith.cmpi ne, %10, %c0_i32_9 : i32
    scf.if %11 {
      %c0_10 = arith.constant 0 : index
      %c0_11 = arith.constant 0 : index
      %12 = vector.load %arg6[%c0_10, %c0_11] : memref<32x256xf32, #tpu.memory_space<vmem>>, vector<32x256xf32>
      %c0_12 = arith.constant 0 : index
      %c0_13 = arith.constant 0 : index
      %13 = vector.load %arg5[%c0_12, %c0_13] : memref<32x256xf32, #tpu.memory_space<vmem>>, vector<32x256xf32>
      tpu.vector_store %arg5[%c0_12, %c0_13], %12 {strides = array<i32>} : memref<32x256xf32, #tpu.memory_space<vmem>>, vector<32x256xf32>,
    } else {
    }
    return
  }
  func.func @transform_0(%arg0: i32, %arg1: i32, %arg2: i32) -> (i32, i32) {
    %c0_i32 = arith.constant 0 : i32
    return %arg0, %arg2 : i32, i32
  }
  func.func @transform_1(%arg0: i32, %arg1: i32, %arg2: i32) -> (i32, i32) {
    %c0_i32 = arith.constant 0 : i32
    return %arg2, %arg1 : i32, i32
  }
  func.func @transform_2(%arg0: i32, %arg1: i32, %arg2: i32) -> (i32, i32) {
    %c0_i32 = arith.constant 0 : i32
    return %arg0, %arg1 : i32, i32
  }
}

module attributes {stable_mosaic.version = 11 : i64} {
  func.func @_bn_norm_kernel(%arg0: i32, %arg1: memref<32x512xf32, #tpu.memory_space<vmem>>, %arg2: memref<8x512xf32, #tpu.memory_space<vmem>>, %arg3: memref<1x512xf32, #tpu.memory_space<vmem>>, %arg4: memref<1x512xf32, #tpu.memory_space<vmem>>, %arg5: memref<32x512xf32, #tpu.memory_space<vmem>>, %arg6: memref<32x512xf32, #tpu.memory_space<vmem>>) attributes {dimension_semantics = [#tpu.dimension_semantics<parallel>], iteration_bounds = array<i64: 1>, scalar_prefetch = 0 : i64, scratch_operands = 0 : i64, tpu.core_type = #tpu.core_type<tc>, window_params = [{transform_indices = @transform_0, window_bounds = array<i64: 32, 512>}, {pipeline_mode = #tpu.pipeline_mode<synchronous>, transform_indices = @transform_1, window_bounds = array<i64: 8, 512>}, {pipeline_mode = #tpu.pipeline_mode<synchronous>, transform_indices = @transform_2, window_bounds = array<i64: 1, 512>}, {pipeline_mode = #tpu.pipeline_mode<synchronous>, transform_indices = @transform_3, window_bounds = array<i64: 1, 512>}, {transform_indices = @transform_4, window_bounds = array<i64: 32, 512>}, {transform_indices = @transform_5, window_bounds = array<i64: 32, 512>}]} {
    %c0 = arith.constant 0 : index
    %c0_0 = arith.constant 0 : index
    %0 = vector.load %arg2[%c0, %c0_0] : memref<8x512xf32, #tpu.memory_space<vmem>>, vector<1x512xf32>
    %cst = arith.constant 3.125000e-02 : f32
    %1 = vector.broadcast %cst : f32 to vector<1x512xf32>
    %2 = arith.mulf %0, %1 : vector<1x512xf32>
    %c1 = arith.constant 1 : index
    %c0_1 = arith.constant 0 : index
    %3 = vector.load %arg2[%c1, %c0_1] : memref<8x512xf32, #tpu.memory_space<vmem>>, vector<1x512xf32>
    %cst_2 = arith.constant 3.125000e-02 : f32
    %4 = vector.broadcast %cst_2 : f32 to vector<1x512xf32>
    %5 = arith.mulf %3, %4 : vector<1x512xf32>
    %6 = arith.mulf %2, %2 : vector<1x512xf32>
    %7 = arith.subf %5, %6 : vector<1x512xf32>
    %cst_3 = arith.constant 0.000000e+00 : f32
    %8 = vector.broadcast %cst_3 : f32 to vector<1x512xf32>
    %9 = arith.maximumf %7, %8 : vector<1x512xf32>
    %c0_4 = arith.constant 0 : index
    %c0_5 = arith.constant 0 : index
    %10 = vector.load %arg3[%c0_4, %c0_5] : memref<1x512xf32, #tpu.memory_space<vmem>>, vector<1x512xf32>
    %cst_6 = arith.constant 9.99999974E-6 : f32
    %11 = vector.broadcast %cst_6 : f32 to vector<1x512xf32>
    %12 = arith.addf %9, %11 : vector<1x512xf32>
    %13 = math.rsqrt %12 : vector<1x512xf32>
    %14 = arith.mulf %10, %13 : vector<1x512xf32>
    %c0_7 = arith.constant 0 : index
    %c0_8 = arith.constant 0 : index
    %15 = vector.load %arg4[%c0_7, %c0_8] : memref<1x512xf32, #tpu.memory_space<vmem>>, vector<1x512xf32>
    %16 = arith.mulf %2, %14 : vector<1x512xf32>
    %17 = arith.subf %15, %16 : vector<1x512xf32>
    %c0_9 = arith.constant 0 : index
    %c0_10 = arith.constant 0 : index
    %18 = vector.load %arg1[%c0_9, %c0_10] : memref<32x512xf32, #tpu.memory_space<vmem>>, vector<32x512xf32>
    %19 = vector.broadcast %14 : vector<1x512xf32> to vector<32x512xf32>
    %20 = arith.mulf %18, %19 : vector<32x512xf32>
    %21 = vector.broadcast %17 : vector<1x512xf32> to vector<32x512xf32>
    %22 = arith.addf %20, %21 : vector<32x512xf32>
    %c0_11 = arith.constant 0 : index
    %c0_12 = arith.constant 0 : index
    %23 = vector.load %arg5[%c0_11, %c0_12] : memref<32x512xf32, #tpu.memory_space<vmem>>, vector<32x512xf32>
    %24 = arith.addf %22, %23 : vector<32x512xf32>
    %cst_13 = arith.constant 0.000000e+00 : f32
    %25 = vector.broadcast %cst_13 : f32 to vector<32x512xf32>
    %26 = arith.maximumf %24, %25 : vector<32x512xf32>
    %c0_14 = arith.constant 0 : index
    %c0_15 = arith.constant 0 : index
    %27 = vector.load %arg6[%c0_14, %c0_15] : memref<32x512xf32, #tpu.memory_space<vmem>>, vector<32x512xf32>
    tpu.vector_store %arg6[%c0_14, %c0_15], %26 {strides = array<i32>} : memref<32x512xf32, #tpu.memory_space<vmem>>, vector<32x512xf32>,
    return
  }
  func.func @transform_0(%arg0: i32) -> (i32, i32) {
    %c0_i32 = arith.constant 0 : i32
    %c0_i32_0 = arith.constant 0 : i32
    return %arg0, %c0_i32 : i32, i32
  }
  func.func @transform_1(%arg0: i32) -> (i32, i32) {
    %c0_i32 = arith.constant 0 : i32
    %c0_i32_0 = arith.constant 0 : i32
    %c0_i32_1 = arith.constant 0 : i32
    return %c0_i32, %c0_i32_0 : i32, i32
  }
  func.func @transform_2(%arg0: i32) -> (i32, i32) {
    %c0_i32 = arith.constant 0 : i32
    %c0_i32_0 = arith.constant 0 : i32
    %c0_i32_1 = arith.constant 0 : i32
    return %c0_i32, %c0_i32_0 : i32, i32
  }
  func.func @transform_3(%arg0: i32) -> (i32, i32) {
    %c0_i32 = arith.constant 0 : i32
    %c0_i32_0 = arith.constant 0 : i32
    %c0_i32_1 = arith.constant 0 : i32
    return %c0_i32, %c0_i32_0 : i32, i32
  }
  func.func @transform_4(%arg0: i32) -> (i32, i32) {
    %c0_i32 = arith.constant 0 : i32
    %c0_i32_0 = arith.constant 0 : i32
    return %arg0, %c0_i32 : i32, i32
  }
  func.func @transform_5(%arg0: i32) -> (i32, i32) {
    %c0_i32 = arith.constant 0 : i32
    %c0_i32_0 = arith.constant 0 : i32
    return %arg0, %c0_i32 : i32, i32
  }
}

module attributes {stable_mosaic.version = 11 : i64} {
  func.func @_matmul_kernel(%arg0: i32, %arg1: i32, %arg2: i32, %arg3: memref<32x256xbf16, #tpu.memory_space<vmem>>, %arg4: memref<256x128xbf16, #tpu.memory_space<vmem>>, %arg5: memref<32x128xf32, #tpu.memory_space<vmem>>, %arg6: memref<32x128xf32, #tpu.memory_space<vmem>>) attributes {dimension_semantics = [#tpu.dimension_semantics<parallel>, #tpu.dimension_semantics<parallel>, #tpu.dimension_semantics<arbitrary>], iteration_bounds = array<i64: 1, 1, 2>, scalar_prefetch = 0 : i64, scratch_operands = 1 : i64, tpu.core_type = #tpu.core_type<tc>, window_params = [{transform_indices = @transform_0, window_bounds = array<i64: 32, 256>}, {transform_indices = @transform_1, window_bounds = array<i64: 256, 128>}, {transform_indices = @transform_2, window_bounds = array<i64: 32, 128>}]} {
    %c0_i32 = arith.constant 0 : i32
    %0 = arith.cmpi eq, %arg2, %c0_i32 : i32
    %1 = arith.extui %0 : i1 to i32
    %c0_i32_0 = arith.constant 0 : i32
    %2 = arith.cmpi ne, %1, %c0_i32_0 : i32
    scf.if %2 {
      %cst_9 = arith.constant 0.000000e+00 : f32
      %12 = vector.broadcast %cst_9 : f32 to vector<32x128xf32>
      %c0_10 = arith.constant 0 : index
      %c0_11 = arith.constant 0 : index
      %13 = vector.load %arg6[%c0_10, %c0_11] : memref<32x128xf32, #tpu.memory_space<vmem>>, vector<32x128xf32>
      tpu.vector_store %arg6[%c0_10, %c0_11], %12 {strides = array<i32>} : memref<32x128xf32, #tpu.memory_space<vmem>>, vector<32x128xf32>,
    } else {
    }
    %c0 = arith.constant 0 : index
    %c0_1 = arith.constant 0 : index
    %3 = vector.load %arg6[%c0, %c0_1] : memref<32x128xf32, #tpu.memory_space<vmem>>, vector<32x128xf32>
    %c0_2 = arith.constant 0 : index
    %c0_3 = arith.constant 0 : index
    %4 = vector.load %arg3[%c0_2, %c0_3] : memref<32x256xbf16, #tpu.memory_space<vmem>>, vector<32x256xbf16>
    %c0_4 = arith.constant 0 : index
    %c0_5 = arith.constant 0 : index
    %5 = vector.load %arg4[%c0_4, %c0_5] : memref<256x128xbf16, #tpu.memory_space<vmem>>, vector<256x128xbf16>
    %cst = arith.constant dense<0.000000e+00> : vector<32x128xf32>
    %6 = tpu.matmul %4, %5, %cst {dimension_numbers = #tpu.dot_dimension_numbers<[1], [0], [0], [1], [0, 0, 1, 1], [], []>} : vector<32x256xbf16>, vector<256x128xbf16>, vector<32x128xf32> -> vector<32x128xf32>
    %7 = arith.addf %3, %6 : vector<32x128xf32>
    %c0_6 = arith.constant 0 : index
    %c0_7 = arith.constant 0 : index
    %8 = vector.load %arg6[%c0_6, %c0_7] : memref<32x128xf32, #tpu.memory_space<vmem>>, vector<32x128xf32>
    tpu.vector_store %arg6[%c0_6, %c0_7], %7 {strides = array<i32>} : memref<32x128xf32, #tpu.memory_space<vmem>>, vector<32x128xf32>,
    %c1_i32 = arith.constant 1 : i32
    %9 = arith.cmpi eq, %arg2, %c1_i32 : i32
    %10 = arith.extui %9 : i1 to i32
    %c0_i32_8 = arith.constant 0 : i32
    %11 = arith.cmpi ne, %10, %c0_i32_8 : i32
    scf.if %11 {
      %c0_9 = arith.constant 0 : index
      %c0_10 = arith.constant 0 : index
      %12 = vector.load %arg6[%c0_9, %c0_10] : memref<32x128xf32, #tpu.memory_space<vmem>>, vector<32x128xf32>
      %c0_11 = arith.constant 0 : index
      %c0_12 = arith.constant 0 : index
      %13 = vector.load %arg5[%c0_11, %c0_12] : memref<32x128xf32, #tpu.memory_space<vmem>>, vector<32x128xf32>
      tpu.vector_store %arg5[%c0_11, %c0_12], %12 {strides = array<i32>} : memref<32x128xf32, #tpu.memory_space<vmem>>, vector<32x128xf32>,
    } else {
    }
    return
  }
  func.func @transform_0(%arg0: i32, %arg1: i32, %arg2: i32) -> (i32, i32) {
    %c0_i32 = arith.constant 0 : i32
    return %arg0, %arg2 : i32, i32
  }
  func.func @transform_1(%arg0: i32, %arg1: i32, %arg2: i32) -> (i32, i32) {
    %c0_i32 = arith.constant 0 : i32
    return %arg2, %arg1 : i32, i32
  }
  func.func @transform_2(%arg0: i32, %arg1: i32, %arg2: i32) -> (i32, i32) {
    %c0_i32 = arith.constant 0 : i32
    return %arg0, %arg1 : i32, i32
  }
}

</mosaic_0001>

<llo_original>
// kernel: resnet50_features_forward.74
$region0: #{resnet50_features_forward.74}
  #allocation0 [shape = 'u32[]', space=smem, size = 0x4, offset = 0x4, fixed_abs, tag = 'smem constant byte address 0x4 - core index']
  #allocation1 [shape = 'u32[144,128]{1,0:T(1,128)}', space=vmem, size = 0x12000, scoped, tag = 'internal scratch']
  %s0 = inlined_call_operand.vmem [shape: f32[512,128], index: 0, kind: input, shape index: {}]
  %s1 = inlined_call_operand.vmem [shape: f32[8,128], index: 1, kind: output, shape index: {}]
  %s2 = sld [smem:[#allocation0]]
  $region18: #{resnet50_features_forward.74} parent=0
    _
  %s4 = ssub.s32 1, %s2
  %s5 = scalar_select 0, %s4, %s2
  // Predicated region
  $region2: #{resnet50_features_forward.74} parent=0 // pred_check
    _
  $region3: #{resnet50_features_forward.74} parent=0 // pred_check_branch
    %7 = sbr.rel (0) target = $region5
  $region4: #{resnet50_features_forward.74} parent=0 // pred_region
    _
  $region5: #{resnet50_features_forward.74} parent=0 // pred_fallthru
    _
  %p8 = scmp.eq.s32.totalorder 0, 0
  // Predicated region
  $region6: #{resnet50_features_forward.74} parent=0 // pred_check
    %p9 = pneg %p8
  $region7: #{resnet50_features_forward.74} parent=0 // pred_check_branch
    %11 = sbr.rel (%p9) target = $region9
  $region8: #{resnet50_features_forward.74} parent=0 // pred_region
    %12 = vst [vmem:[%s1] sm:$0xff] 0.0
  $region9: #{resnet50_features_forward.74} parent=0 // pred_fallthru
    _
  %v13 = vld [vmem:[%s0] sm:$0xff]
  %v14 = vld [vmem:[%s0 + $0x8] sm:$0xff]
  %v15 = vld [vmem:[%s0 + $0x10] sm:$0xff]
  %v16 = vld [vmem:[%s0 + $0x18] sm:$0xff]
  %v17 = vld [vmem:[%s0 + $0x20] sm:$0xff]
  %v18 = vld [vmem:[%s0 + $0x28] sm:$0xff]
  %v19 = vld [vmem:[%s0 + $0x30] sm:$0xff]
  %v20 = vld [vmem:[%s0 + $0x38] sm:$0xff]
  %v21 = vld [vmem:[%s0 + $0x40] sm:$0xff]
  %v22 = vld [vmem:[%s0 + $0x48] sm:$0xff]
  %v23 = vld [vmem:[%s0 + $0x50] sm:$0xff]
  %v24 = vld [vmem:[%s0 + $0x58] sm:$0xff]
  %v25 = vld [vmem:[%s0 + $0x60] sm:$0xff]
  %v26 = vld [vmem:[%s0 + $0x68] sm:$0xff]
  %v27 = vld [vmem:[%s0 + $0x70] sm:$0xff]
  %v28 = vld [vmem:[%s0 + $0x78] sm:$0xff]
  %v29 = vld [vmem:[%s0 + $0x80] sm:$0xff]
  %v30 = vld [vmem:[%s0 + $0x88] sm:$0xff]
  %v31 = vld [vmem:[%s0 + $0x90] sm:$0xff]
  %v32 = vld [vmem:[%s0 + $0x98] sm:$0xff]
  %v33 = vld [vmem:[%s0 + $0xa0] sm:$0xff]
  %v34 = vld [vmem:[%s0 + $0xa8] sm:$0xff]
  %v35 = vld [vmem:[%s0 + $0xb0] sm:$0xff]
  %v36 = vld [vmem:[%s0 + $0xb8] sm:$0xff]
  %v37 = vld [vmem:[%s0 + $0xc0] sm:$0xff]
  %v38 = vld [vmem:[%s0 + $0xc8] sm:$0xff]
  %v39 = vld [vmem:[%s0 + $0xd0] sm:$0xff]
  %v40 = vld [vmem:[%s0 + $0xd8] sm:$0xff]
  %v41 = vld [vmem:[%s0 + $0xe0] sm:$0xff]
  %v42 = vld [vmem:[%s0 + $0xe8] sm:$0xff]
  %v43 = vld [vmem:[%s0 + $0xf0] sm:$0xff]
  %v44 = vld [vmem:[%s0 + $0xf8] sm:$0xff]
  %v45 = vld [vmem:[%s0 + $0x100] sm:$0xff]
  %v46 = vld [vmem:[%s0 + $0x108] sm:$0xff]
  %v47 = vld [vmem:[%s0 + $0x110] sm:$0xff]
  %v48 = vld [vmem:[%s0 + $0x118] sm:$0xff]
  %v49 = vld [vmem:[%s0 + $0x120] sm:$0xff]
  %v50 = vld [vmem:[%s0 + $0x128] sm:$0xff]
  %v51 = vld [vmem:[%s0 + $0x130] sm:$0xff]
  %v52 = vld [vmem:[%s0 + $0x138] sm:$0xff]
  %v53 = vld [vmem:[%s0 + $0x140] sm:$0xff]
  %v54 = vld [vmem:[%s0 + $0x148] sm:$0xff]
  %v55 = vld [vmem:[%s0 + $0x150] sm:$0xff]
  %v56 = vld [vmem:[%s0 + $0x158] sm:$0xff]
  %v57 = vld [vmem:[%s0 + $0x160] sm:$0xff]
  %v58 = vld [vmem:[%s0 + $0x168] sm:$0xff]
  %v59 = vld [vmem:[%s0 + $0x170] sm:$0xff]
  %v60 = vld [vmem:[%s0 + $0x178] sm:$0xff]
  %v61 = vld [vmem:[%s0 + $0x180] sm:$0xff]
  %v62 = vld [vmem:[%s0 + $0x188] sm:$0xff]
  %v63 = vld [vmem:[%s0 + $0x190] sm:$0xff]
  %v64 = vld [vmem:[%s0 + $0x198] sm:$0xff]
  %v65 = vld [vmem:[%s0 + $0x1a0] sm:$0xff]
  %v66 = vld [vmem:[%s0 + $0x1a8] sm:$0xff]
  %v67 = vld [vmem:[%s0 + $0x1b0] sm:$0xff]
  %v68 = vld [vmem:[%s0 + $0x1b8] sm:$0xff]
  %v69 = vld [vmem:[%s0 + $0x1c0] sm:$0xff]
  %v70 = vld [vmem:[%s0 + $0x1c8] sm:$0xff]
  %v71 = vld [vmem:[%s0 + $0x1d0] sm:$0xff]
  %v72 = vld [vmem:[%s0 + $0x1d8] sm:$0xff]
  %v73 = vld [vmem:[%s0 + $0x1e0] sm:$0xff]
  %v74 = vld [vmem:[%s0 + $0x1e8] sm:$0xff]
  %v75 = vld [vmem:[%s0 + $0x1f0] sm:$0xff]
  %v76 = vld [vmem:[%s0 + $0x1f8] sm:$0xff]
  %v77 = vld [vmem:[%s1] sm:$0x1]
  %v78 = vadd.f32 %v13, %v14
  %v79 = vadd.f32 %v78, %v15
  %v80 = vadd.f32 %v79, %v16
  %v81 = vadd.f32 %v80, %v17
  %v82 = vadd.f32 %v81, %v18
  %v83 = vadd.f32 %v82, %v19
  %v84 = vadd.f32 %v83, %v20
  %v85 = vadd.f32 %v84, %v21
  %v86 = vadd.f32 %v85, %v22
  %v87 = vadd.f32 %v86, %v23
  %v88 = vadd.f32 %v87, %v24
  %v89 = vadd.f32 %v88, %v25
  %v90 = vadd.f32 %v89, %v26
  %v91 = vadd.f32 %v90, %v27
  %v92 = vadd.f32 %v91, %v28
  %v93 = vadd.f32 %v92, %v29
  %v94 = vadd.f32 %v93, %v30
  %v95 = vadd.f32 %v94, %v31
  %v96 = vadd.f32 %v95, %v32
  %v97 = vadd.f32 %v96, %v33
  %v98 = vadd.f32 %v97, %v34
  %v99 = vadd.f32 %v98, %v35
  %v100 = vadd.f32 %v99, %v36
  %v101 = vadd.f32 %v100, %v37
  %v102 = vadd.f32 %v101, %v38
  %v103 = vadd.f32 %v102, %v39
  %v104 = vadd.f32 %v103, %v40
  %v105 = vadd.f32 %v104, %v41
  %v106 = vadd.f32 %v105, %v42
  %v107 = vadd.f32 %v106, %v43
  %v108 = vadd.f32 %v107, %v44
  %v109 = vadd.f32 %v108, %v45
  %v110 = vadd.f32 %v109, %v46
  %v111 = vadd.f32 %v110, %v47
  %v112 = vadd.f32 %v111, %v48
  %v113 = vadd.f32 %v112, %v49
  %v114 = vadd.f32 %v113, %v50
  %v115 = vadd.f32 %v114, %v51
  %v116 = vadd.f32 %v115, %v52
  %v117 = vadd.f32 %v116, %v53
  %v118 = vadd.f32 %v117, %v54
  %v119 = vadd.f32 %v118, %v55
  %v120 = vadd.f32 %v119, %v56
  %v121 = vadd.f32 %v120, %v57
  %v122 = vadd.f32 %v121, %v58
  %v123 = vadd.f32 %v122, %v59
  %v124 = vadd.f32 %v123, %v60
  %v125 = vadd.f32 %v124, %v61
  %v126 = vadd.f32 %v125, %v62
  %v127 = vadd.f32 %v126, %v63
  %v128 = vadd.f32 %v127, %v64
  %v129 = vadd.f32 %v128, %v65
  %v130 = vadd.f32 %v129, %v66
  %v131 = vadd.f32 %v130, %v67
  %v132 = vadd.f32 %v131, %v68
  %v133 = vadd.f32 %v132, %v69
  %v134 = vadd.f32 %v133, %v70
  %v135 = vadd.f32 %v134, %v71
  %v136 = vadd.f32 %v135, %v72
  %v137 = vadd.f32 %v136, %v73
  %v138 = vadd.f32 %v137, %v74
  %v139 = vadd.f32 %v138, %v75
  %v140 = vadd.f32 %v139, %v76
  %v141 = vrot.slane %v140, 4
  %v142 = vadd.f32 %v140, %v141
  %v143 = vrot.slane %v142, 2
  %v144 = vadd.f32 %v142, %v143
  %v145 = vrot.slane %v144, 1
  %v146 = vadd.f32 %v144, %v145
  %v147 = vadd.f32 %v77, %v146
  %148 = vst [vmem:[%s1] sm:$0x1] %v147
  %v149 = vld [vmem:[%s1 + $0x1] sm:$0x1]
  %v150 = vmul.f32 %v13, %v13
  %v151 = vmul.f32 %v14, %v14
  %v152 = vmul.f32 %v15, %v15
  %v153 = vmul.f32 %v16, %v16
  %v154 = vmul.f32 %v17, %v17
  %v155 = vmul.f32 %v18, %v18
  %v156 = vmul.f32 %v19, %v19
  %v157 = vmul.f32 %v20, %v20
  %v158 = vmul.f32 %v21, %v21
  %v159 = vmul.f32 %v22, %v22
  %v160 = vmul.f32 %v23, %v23
  %v161 = vmul.f32 %v24, %v24
  %v162 = vmul.f32 %v25, %v25
  %v163 = vmul.f32 %v26, %v26
  %v164 = vmul.f32 %v27, %v27
  %v165 = vmul.f32 %v28, %v28
  %v166 = vmul.f32 %v29, %v29
  %v167 = vmul.f32 %v30, %v30
  %v168 = vmul.f32 %v31, %v31
  %v169 = vmul.f32 %v32, %v32
  %v170 = vmul.f32 %v33, %v33
  %v171 = vmul.f32 %v34, %v34
  %v172 = vmul.f32 %v35, %v35
  %v173 = vmul.f32 %v36, %v36
  %v174 = vmul.f32 %v37, %v37
  %v175 = vmul.f32 %v38, %v38
  %v176 = vmul.f32 %v39, %v39
  %v177 = vmul.f32 %v40, %v40
  %v178 = vmul.f32 %v41, %v41
  %v179 = vmul.f32 %v42, %v42
  %v180 = vmul.f32 %v43, %v43
  %v181 = vmul.f32 %v44, %v44
  %v182 = vmul.f32 %v45, %v45
  %v183 = vmul.f32 %v46, %v46
  %v184 = vmul.f32 %v47, %v47
  %v185 = vmul.f32 %v48, %v48
  %v186 = vmul.f32 %v49, %v49
  %v187 = vmul.f32 %v50, %v50
  %v188 = vmul.f32 %v51, %v51
  %v189 = vmul.f32 %v52, %v52
  %v190 = vmul.f32 %v53, %v53
  %v191 = vmul.f32 %v54, %v54
  %v192 = vmul.f32 %v55, %v55
  %v193 = vmul.f32 %v56, %v56
  %v194 = vmul.f32 %v57, %v57
  %v195 = vmul.f32 %v58, %v58
  %v196 = vmul.f32 %v59, %v59
  %v197 = vmul.f32 %v60, %v60
  %v198 = vmul.f32 %v61, %v61
  %v199 = vmul.f32 %v62, %v62
  %v200 = vmul.f32 %v63, %v63
  %v201 = vmul.f32 %v64, %v64
  %v202 = vmul.f32 %v65, %v65
  %v203 = vmul.f32 %v66, %v66
  %v204 = vmul.f32 %v67, %v67
  %v205 = vmul.f32 %v68, %v68
  %v206 = vmul.f32 %v69, %v69
  %v207 = vmul.f32 %v70, %v70
  %v208 = vmul.f32 %v71, %v71
  %v209 = vmul.f32 %v72, %v72
  %v210 = vmul.f32 %v73, %v73
  %v211 = vmul.f32 %v74, %v74
  %v212 = vmul.f32 %v75, %v75
  %v213 = vmul.f32 %v76, %v76
  %v214 = vadd.f32 %v150, %v151
  %v215 = vadd.f32 %v214, %v152
  %v216 = vadd.f32 %v215, %v153
  %v217 = vadd.f32 %v216, %v154
  %v218 = vadd.f32 %v217, %v155
  %v219 = vadd.f32 %v218, %v156
  %v220 = vadd.f32 %v219, %v157
  %v221 = vadd.f32 %v220, %v158
  %v222 = vadd.f32 %v221, %v159
  %v223 = vadd.f32 %v222, %v160
  %v224 = vadd.f32 %v223, %v161
  %v225 = vadd.f32 %v224, %v162
  %v226 = vadd.f32 %v225, %v163
  %v227 = vadd.f32 %v226, %v164
  %v228 = vadd.f32 %v227, %v165
  %v229 = vadd.f32 %v228, %v166
  %v230 = vadd.f32 %v229, %v167
  %v231 = vadd.f32 %v230, %v168
  %v232 = vadd.f32 %v231, %v169
  %v233 = vadd.f32 %v232, %v170
  %v234 = vadd.f32 %v233, %v171
  %v235 = vadd.f32 %v234, %v172
  %v236 = vadd.f32 %v235, %v173
  %v237 = vadd.f32 %v236, %v174
  %v238 = vadd.f32 %v237, %v175
  %v239 = vadd.f32 %v238, %v176
  %v240 = vadd.f32 %v239, %v177
  %v241 = vadd.f32 %v240, %v178
  %v242 = vadd.f32 %v241, %v179
  %v243 = vadd.f32 %v242, %v180
  %v244 = vadd.f32 %v243, %v181
  %v245 = vadd.f32 %v244, %v182
  %v246 = vadd.f32 %v245, %v183
  %v247 = vadd.f32 %v246, %v184
  %v248 = vadd.f32 %v247, %v185
  %v249 = vadd.f32 %v248, %v186
  %v250 = vadd.f32 %v249, %v187
  %v251 = vadd.f32 %v250, %v188
  %v252 = vadd.f32 %v251, %v189
  %v253 = vadd.f32 %v252, %v190
  %v254 = vadd.f32 %v253, %v191
  %v255 = vadd.f32 %v254, %v192
  %v256 = vadd.f32 %v255, %v193
  %v257 = vadd.f32 %v256, %v194
  %v258 = vadd.f32 %v257, %v195
  %v259 = vadd.f32 %v258, %v196
  %v260 = vadd.f32 %v259, %v197
  %v261 = vadd.f32 %v260, %v198
  %v262 = vadd.f32 %v261, %v199
  %v263 = vadd.f32 %v262, %v200
  %v264 = vadd.f32 %v263, %v201
  %v265 = vadd.f32 %v264, %v202
  %v266 = vadd.f32 %v265, %v203
  %v267 = vadd.f32 %v266, %v204
  %v268 = vadd.f32 %v267, %v205
  %v269 = vadd.f32 %v268, %v206
  %v270 = vadd.f32 %v269, %v207
  %v271 = vadd.f32 %v270, %v208
  %v272 = vadd.f32 %v271, %v209
  %v273 = vadd.f32 %v272, %v210
  %v274 = vadd.f32 %v273, %v211
  %v275 = vadd.f32 %v274, %v212
  %v276 = vadd.f32 %v275, %v213
  %v277 = vrot.slane %v276, 4
  %v278 = vadd.f32 %v276, %v277
  %v279 = vrot.slane %v278, 2
  %v280 = vadd.f32 %v278, %v279
  %v281 = vrot.slane %v280, 1
  %v282 = vadd.f32 %v280, %v281
  %v283 = vadd.f32 %v149, %v282
  %284 = vst [vmem:[%s1 + $0x1] sm:$0x1] %v283
  // Predicated region
  $region10: #{resnet50_features_forward.74} parent=0 // pred_check
    _
  $region11: #{resnet50_features_forward.74} parent=0 // pred_check_branch
    %286 = sbr.rel (0) target = $region13
  $region12: #{resnet50_features_forward.74} parent=0 // pred_region
    _
  $region13: #{resnet50_features_forward.74} parent=0 // pred_fallthru
    _
  // Predicated region
  $region14: #{resnet50_features_forward.74} parent=0 // pred_check
    _
  $region15: #{resnet50_features_forward.74} parent=0 // pred_check_branch
    %288 = sbr.rel (0) target = $region17
  $region16: #{resnet50_features_forward.74} parent=0 // pred_region
    _
  $region17: #{resnet50_features_forward.74} parent=0 // pred_fallthru
    _

// kernel: resnet50_features_forward.75
$region0: #{resnet50_features_forward.75}
  #allocation0 [shape = 'u32[]', space=smem, size = 0x4, offset = 0x4, fixed_abs, tag = 'smem constant byte address 0x4 - core index']
  #allocation1 [shape = 'u32[144,128]{1,0:T(1,128)}', space=vmem, size = 0x12000, scoped, tag = 'internal scratch']
  %s0 = inlined_call_operand.vmem [shape: f32[512,128], index: 0, kind: input, shape index: {}]
  %s1 = inlined_call_operand.vmem [shape: f32[8,128], index: 1, kind: input, shape index: {}]
  %s2 = inlined_call_operand.vmem [shape: f32[1,128], index: 2, kind: input, shape index: {}]
  %s3 = inlined_call_operand.vmem [shape: f32[1,128], index: 3, kind: input, shape index: {}]
  %s4 = inlined_call_operand.vmem [shape: f32[512,128], index: 4, kind: output, shape index: {}]
  %s5 = sld [smem:[#allocation0]]
  $region26: #{resnet50_features_forward.75} parent=0
    _
  %s7 = ssub.s32 1, %s5
  %s8 = scalar_select 0, %s7, %s5
  // Predicated region
  $region2: #{resnet50_features_forward.75} parent=0 // pred_check
    _
  $region3: #{resnet50_features_forward.75} parent=0 // pred_check_branch
    %10 = sbr.rel (0) target = $region5
  $region4: #{resnet50_features_forward.75} parent=0 // pred_region
    _
  $region5: #{resnet50_features_forward.75} parent=0 // pred_fallthru
    _
  // Predicated region
  $region6: #{resnet50_features_forward.75} parent=0 // pred_check
    _
  $region7: #{resnet50_features_forward.75} parent=0 // pred_check_branch
    %12 = sbr.rel (0) target = $region9
  $region8: #{resnet50_features_forward.75} parent=0 // pred_region
    _
  $region9: #{resnet50_features_forward.75} parent=0 // pred_fallthru
    _
  // Predicated region
  $region10: #{resnet50_features_forward.75} parent=0 // pred_check
    _
  $region11: #{resnet50_features_forward.75} parent=0 // pred_check_branch
    %14 = sbr.rel (0) target = $region13
  $region12: #{resnet50_features_forward.75} parent=0 // pred_region
    _
  $region13: #{resnet50_features_forward.75} parent=0 // pred_fallthru
    _
  // Predicated region
  $region14: #{resnet50_features_forward.75} parent=0 // pred_check
    _
  $region15: #{resnet50_features_forward.75} parent=0 // pred_check_branch
    %16 = sbr.rel (0) target = $region17
  $region16: #{resnet50_features_forward.75} parent=0 // pred_region
    _
  $region17: #{resnet50_features_forward.75} parent=0 // pred_fallthru
    _
  %v17 = vld [vmem:[%s1] sm:$0x1]
  %v18 = vmul.f32 %v17, 0.001953125
  %v19 = vld [vmem:[%s1 + $0x1] sm:$0x1]
  %v20 = vmul.f32 %v19, 0.001953125
  %v21 = vmul.f32 %v18, %v18
  %v22 = vsub.f32 %v20, %v21
  %v23 = vmax.f32 %v22, 0.0
  %v24 = vld [vmem:[%s2] sm:$0x1]
  %v25 = vadd.f32 %v23, 1e-05
  %v26 = vrsqrt.pop %v25
  %v27 = vmul.f32 %v24, %v26
  %v28 = vld [vmem:[%s3] sm:$0x1]
  %v29 = vmul.f32 %v18, %v27
  %v30 = vsub.f32 %v28, %v29
  %v31 = vld [vmem:[%s0] sm:$0xff]
  %v32 = vld [vmem:[%s0 + $0x8] sm:$0xff]
  %v33 = vld [vmem:[%s0 + $0x10] sm:$0xff]
  %v34 = vld [vmem:[%s0 + $0x18] sm:$0xff]
  %v35 = vld [vmem:[%s0 + $0x20] sm:$0xff]
  %v36 = vld [vmem:[%s0 + $0x28] sm:$0xff]
  %v37 = vld [vmem:[%s0 + $0x30] sm:$0xff]
  %v38 = vld [vmem:[%s0 + $0x38] sm:$0xff]
  %v39 = vld [vmem:[%s0 + $0x40] sm:$0xff]
  %v40 = vld [vmem:[%s0 + $0x48] sm:$0xff]
  %v41 = vld [vmem:[%s0 + $0x50] sm:$0xff]
  %v42 = vld [vmem:[%s0 + $0x58] sm:$0xff]
  %v43 = vld [vmem:[%s0 + $0x60] sm:$0xff]
  %v44 = vld [vmem:[%s0 + $0x68] sm:$0xff]
  %v45 = vld [vmem:[%s0 + $0x70] sm:$0xff]
  %v46 = vld [vmem:[%s0 + $0x78] sm:$0xff]
  %v47 = vld [vmem:[%s0 + $0x80] sm:$0xff]
  %v48 = vld [vmem:[%s0 + $0x88] sm:$0xff]
  %v49 = vld [vmem:[%s0 + $0x90] sm:$0xff]
  %v50 = vld [vmem:[%s0 + $0x98] sm:$0xff]
  %v51 = vld [vmem:[%s0 + $0xa0] sm:$0xff]
  %v52 = vld [vmem:[%s0 + $0xa8] sm:$0xff]
  %v53 = vld [vmem:[%s0 + $0xb0] sm:$0xff]
  %v54 = vld [vmem:[%s0 + $0xb8] sm:$0xff]
  %v55 = vld [vmem:[%s0 + $0xc0] sm:$0xff]
  %v56 = vld [vmem:[%s0 + $0xc8] sm:$0xff]
  %v57 = vld [vmem:[%s0 + $0xd0] sm:$0xff]
  %v58 = vld [vmem:[%s0 + $0xd8] sm:$0xff]
  %v59 = vld [vmem:[%s0 + $0xe0] sm:$0xff]
  %v60 = vld [vmem:[%s0 + $0xe8] sm:$0xff]
  %v61 = vld [vmem:[%s0 + $0xf0] sm:$0xff]
  %v62 = vld [vmem:[%s0 + $0xf8] sm:$0xff]
  %v63 = vld [vmem:[%s0 + $0x100] sm:$0xff]
  %v64 = vld [vmem:[%s0 + $0x108] sm:$0xff]
  %v65 = vld [vmem:[%s0 + $0x110] sm:$0xff]
  %v66 = vld [vmem:[%s0 + $0x118] sm:$0xff]
  %v67 = vld [vmem:[%s0 + $0x120] sm:$0xff]
  %v68 = vld [vmem:[%s0 + $0x128] sm:$0xff]
  %v69 = vld [vmem:[%s0 + $0x130] sm:$0xff]
  %v70 = vld [vmem:[%s0 + $0x138] sm:$0xff]
  %v71 = vld [vmem:[%s0 + $0x140] sm:$0xff]
  %v72 = vld [vmem:[%s0 + $0x148] sm:$0xff]
  %v73 = vld [vmem:[%s0 + $0x150] sm:$0xff]
  %v74 = vld [vmem:[%s0 + $0x158] sm:$0xff]
  %v75 = vld [vmem:[%s0 + $0x160] sm:$0xff]
  %v76 = vld [vmem:[%s0 + $0x168] sm:$0xff]
  %v77 = vld [vmem:[%s0 + $0x170] sm:$0xff]
  %v78 = vld [vmem:[%s0 + $0x178] sm:$0xff]
  %v79 = vld [vmem:[%s0 + $0x180] sm:$0xff]
  %v80 = vld [vmem:[%s0 + $0x188] sm:$0xff]
  %v81 = vld [vmem:[%s0 + $0x190] sm:$0xff]
  %v82 = vld [vmem:[%s0 + $0x198] sm:$0xff]
  %v83 = vld [vmem:[%s0 + $0x1a0] sm:$0xff]
  %v84 = vld [vmem:[%s0 + $0x1a8] sm:$0xff]
  %v85 = vld [vmem:[%s0 + $0x1b0] sm:$0xff]
  %v86 = vld [vmem:[%s0 + $0x1b8] sm:$0xff]
  %v87 = vld [vmem:[%s0 + $0x1c0] sm:$0xff]
  %v88 = vld [vmem:[%s0 + $0x1c8] sm:$0xff]
  %v89 = vld [vmem:[%s0 + $0x1d0] sm:$0xff]
  %v90 = vld [vmem:[%s0 + $0x1d8] sm:$0xff]
  %v91 = vld [vmem:[%s0 + $0x1e0] sm:$0xff]
  %v92 = vld [vmem:[%s0 + $0x1e8] sm:$0xff]
  %v93 = vld [vmem:[%s0 + $0x1f0] sm:$0xff]
  %v94 = vld [vmem:[%s0 + $0x1f8] sm:$0xff]
  %v96 = vlaneseq
  %v97 = vshrl.u32 %v96, 7
  %v98 = vsub.s32 0, %v97
  %v99 = vrot.slane %v27, %v98
  %v101 = vmul.f32 %v31, %v99
  %v102 = vmul.f32 %v32, %v99
  %v103 = vmul.f32 %v33, %v99
  %v104 = vmul.f32 %v34, %v99
  %v105 = vmul.f32 %v35, %v99
  %v106 = vmul.f32 %v36, %v99
  %v107 = vmul.f32 %v37, %v99
  %v108 = vmul.f32 %v38, %v99
  %v109 = vmul.f32 %v39, %v99
  %v110 = vmul.f32 %v40, %v99
  %v111 = vmul.f32 %v41, %v99
  %v112 = vmul.f32 %v42, %v99
  %v113 = vmul.f32 %v43, %v99
  %v114 = vmul.f32 %v44, %v99
  %v115 = vmul.f32 %v45, %v99
  %v116 = vmul.f32 %v46, %v99
  %v117 = vmul.f32 %v47, %v99
  %v118 = vmul.f32 %v48, %v99
  %v119 = vmul.f32 %v49, %v99
  %v120 = vmul.f32 %v50, %v99
  %v121 = vmul.f32 %v51, %v99
  %v122 = vmul.f32 %v52, %v99
  %v123 = vmul.f32 %v53, %v99
  %v124 = vmul.f32 %v54, %v99
  %v125 = vmul.f32 %v55, %v99
  %v126 = vmul.f32 %v56, %v99
  %v127 = vmul.f32 %v57, %v99
  %v128 = vmul.f32 %v58, %v99
  %v129 = vmul.f32 %v59, %v99
  %v130 = vmul.f32 %v60, %v99
  %v131 = vmul.f32 %v61, %v99
  %v132 = vmul.f32 %v62, %v99
  %v133 = vmul.f32 %v63, %v99
  %v134 = vmul.f32 %v64, %v99
  %v135 = vmul.f32 %v65, %v99
  %v136 = vmul.f32 %v66, %v99
  %v137 = vmul.f32 %v67, %v99
  %v138 = vmul.f32 %v68, %v99
  %v139 = vmul.f32 %v69, %v99
  %v140 = vmul.f32 %v70, %v99
  %v141 = vmul.f32 %v71, %v99
  %v142 = vmul.f32 %v72, %v99
  %v143 = vmul.f32 %v73, %v99
  %v144 = vmul.f32 %v74, %v99
  %v145 = vmul.f32 %v75, %v99
  %v146 = vmul.f32 %v76, %v99
  %v147 = vmul.f32 %v77, %v99
  %v148 = vmul.f32 %v78, %v99
  %v149 = vmul.f32 %v79, %v99
  %v150 = vmul.f32 %v80, %v99
  %v151 = vmul.f32 %v81, %v99
  %v152 = vmul.f32 %v82, %v99
  %v153 = vmul.f32 %v83, %v99
  %v154 = vmul.f32 %v84, %v99
  %v155 = vmul.f32 %v85, %v99
  %v156 = vmul.f32 %v86, %v99
  %v157 = vmul.f32 %v87, %v99
  %v158 = vmul.f32 %v88, %v99
  %v159 = vmul.f32 %v89, %v99
  %v160 = vmul.f32 %v90, %v99
  %v161 = vmul.f32 %v91, %v99
  %v162 = vmul.f32 %v92, %v99
  %v163 = vmul.f32 %v93, %v99
  %v164 = vmul.f32 %v94, %v99
  %v166 = vlaneseq
  %v167 = vshrl.u32 %v166, 7
  %v168 = vsub.s32 0, %v167
  %v169 = vrot.slane %v30, %v168
  %v171 = vadd.f32 %v101, %v169
  %v172 = vadd.f32 %v102, %v169
  %v173 = vadd.f32 %v103, %v169
  %v174 = vadd.f32 %v104, %v169
  %v175 = vadd.f32 %v105, %v169
  %v176 = vadd.f32 %v106, %v169
  %v177 = vadd.f32 %v107, %v169
  %v178 = vadd.f32 %v108, %v169
  %v179 = vadd.f32 %v109, %v169
  %v180 = vadd.f32 %v110, %v169
  %v181 = vadd.f32 %v111, %v169
  %v182 = vadd.f32 %v112, %v169
  %v183 = vadd.f32 %v113, %v169
  %v184 = vadd.f32 %v114, %v169
  %v185 = vadd.f32 %v115, %v169
  %v186 = vadd.f32 %v116, %v169
  %v187 = vadd.f32 %v117, %v169
  %v188 = vadd.f32 %v118, %v169
  %v189 = vadd.f32 %v119, %v169
  %v190 = vadd.f32 %v120, %v169
  %v191 = vadd.f32 %v121, %v169
  %v192 = vadd.f32 %v122, %v169
  %v193 = vadd.f32 %v123, %v169
  %v194 = vadd.f32 %v124, %v169
  %v195 = vadd.f32 %v125, %v169
  %v196 = vadd.f32 %v126, %v169
  %v197 = vadd.f32 %v127, %v169
  %v198 = vadd.f32 %v128, %v169
  %v199 = vadd.f32 %v129, %v169
  %v200 = vadd.f32 %v130, %v169
  %v201 = vadd.f32 %v131, %v169
  %v202 = vadd.f32 %v132, %v169
  %v203 = vadd.f32 %v133, %v169
  %v204 = vadd.f32 %v134, %v169
  %v205 = vadd.f32 %v135, %v169
  %v206 = vadd.f32 %v136, %v169
  %v207 = vadd.f32 %v137, %v169
  %v208 = vadd.f32 %v138, %v169
  %v209 = vadd.f32 %v139, %v169
  %v210 = vadd.f32 %v140, %v169
  %v211 = vadd.f32 %v141, %v169
  %v212 = vadd.f32 %v142, %v169
  %v213 = vadd.f32 %v143, %v169
  %v214 = vadd.f32 %v144, %v169
  %v215 = vadd.f32 %v145, %v169
  %v216 = vadd.f32 %v146, %v169
  %v217 = vadd.f32 %v147, %v169
  %v218 = vadd.f32 %v148, %v169
  %v219 = vadd.f32 %v149, %v169
  %v220 = vadd.f32 %v150, %v169
  %v221 = vadd.f32 %v151, %v169
  %v222 = vadd.f32 %v152, %v169
  %v223 = vadd.f32 %v153, %v169
  %v224 = vadd.f32 %v154, %v169
  %v225 = vadd.f32 %v155, %v169
  %v226 = vadd.f32 %v156, %v169
  %v227 = vadd.f32 %v157, %v169
  %v228 = vadd.f32 %v158, %v169
  %v229 = vadd.f32 %v159, %v169
  %v230 = vadd.f32 %v160, %v169
  %v231 = vadd.f32 %v161, %v169
  %v232 = vadd.f32 %v162, %v169
  %v233 = vadd.f32 %v163, %v169
  %v234 = vadd.f32 %v164, %v169
  %v235 = vmax.f32 %v171, 0.0
  %v236 = vmax.f32 %v172, 0.0
  %v237 = vmax.f32 %v173, 0.0
  %v238 = vmax.f32 %v174, 0.0
  %v239 = vmax.f32 %v175, 0.0
  %v240 = vmax.f32 %v176, 0.0
  %v241 = vmax.f32 %v177, 0.0
  %v242 = vmax.f32 %v178, 0.0
  %v243 = vmax.f32 %v179, 0.0
  %v244 = vmax.f32 %v180, 0.0
  %v245 = vmax.f32 %v181, 0.0
  %v246 = vmax.f32 %v182, 0.0
  %v247 = vmax.f32 %v183, 0.0
  %v248 = vmax.f32 %v184, 0.0
  %v249 = vmax.f32 %v185, 0.0
  %v250 = vmax.f32 %v186, 0.0
  %v251 = vmax.f32 %v187, 0.0
  %v252 = vmax.f32 %v188, 0.0
  %v253 = vmax.f32 %v189, 0.0
  %v254 = vmax.f32 %v190, 0.0
  %v255 = vmax.f32 %v191, 0.0
  %v256 = vmax.f32 %v192, 0.0
  %v257 = vmax.f32 %v193, 0.0
  %v258 = vmax.f32 %v194, 0.0
  %v259 = vmax.f32 %v195, 0.0
  %v260 = vmax.f32 %v196, 0.0
  %v261 = vmax.f32 %v197, 0.0
  %v262 = vmax.f32 %v198, 0.0
  %v263 = vmax.f32 %v199, 0.0
  %v264 = vmax.f32 %v200, 0.0
  %v265 = vmax.f32 %v201, 0.0
  %v266 = vmax.f32 %v202, 0.0
  %v267 = vmax.f32 %v203, 0.0
  %v268 = vmax.f32 %v204, 0.0
  %v269 = vmax.f32 %v205, 0.0
  %v270 = vmax.f32 %v206, 0.0
  %v271 = vmax.f32 %v207, 0.0
  %v272 = vmax.f32 %v208, 0.0
  %v273 = vmax.f32 %v209, 0.0
  %v274 = vmax.f32 %v210, 0.0
  %v275 = vmax.f32 %v211, 0.0
  %v276 = vmax.f32 %v212, 0.0
  %v277 = vmax.f32 %v213, 0.0
  %v278 = vmax.f32 %v214, 0.0
  %v279 = vmax.f32 %v215, 0.0
  %v280 = vmax.f32 %v216, 0.0
  %v281 = vmax.f32 %v217, 0.0
  %v282 = vmax.f32 %v218, 0.0
  %v283 = vmax.f32 %v219, 0.0
  %v284 = vmax.f32 %v220, 0.0
  %v285 = vmax.f32 %v221, 0.0
  %v286 = vmax.f32 %v222, 0.0
  %v287 = vmax.f32 %v223, 0.0
  %v288 = vmax.f32 %v224, 0.0
  %v289 = vmax.f32 %v225, 0.0
  %v290 = vmax.f32 %v226, 0.0
  %v291 = vmax.f32 %v227, 0.0
  %v292 = vmax.f32 %v228, 0.0
  %v293 = vmax.f32 %v229, 0.0
  %v294 = vmax.f32 %v230, 0.0
  %v295 = vmax.f32 %v231, 0.0
  %v296 = vmax.f32 %v232, 0.0
  %v297 = vmax.f32 %v233, 0.0
  %v298 = vmax.f32 %v234, 0.0
  %299 = vst [vmem:[%s4] sm:$0xff] %v235
  %300 = vst [vmem:[%s4 + $0x8] sm:$0xff] %v236
  %301 = vst [vmem:[%s4 + $0x10] sm:$0xff] %v237
  %302 = vst [vmem:[%s4 + $0x18] sm:$0xff] %v238
  %303 = vst [vmem:[%s4 + $0x20] sm:$0xff] %v239
  %304 = vst [vmem:[%s4 + $0x28] sm:$0xff] %v240
  %305 = vst [vmem:[%s4 + $0x30] sm:$0xff] %v241
  %306 = vst [vmem:[%s4 + $0x38] sm:$0xff] %v242
  %307 = vst [vmem:[%s4 + $0x40] sm:$0xff] %v243
  %308 = vst [vmem:[%s4 + $0x48] sm:$0xff] %v244
  %309 = vst [vmem:[%s4 + $0x50] sm:$0xff] %v245
  %310 = vst [vmem:[%s4 + $0x58] sm:$0xff] %v246
  %311 = vst [vmem:[%s4 + $0x60] sm:$0xff] %v247
  %312 = vst [vmem:[%s4 + $0x68] sm:$0xff] %v248
  %313 = vst [vmem:[%s4 + $0x70] sm:$0xff] %v249
  %314 = vst [vmem:[%s4 + $0x78] sm:$0xff] %v250
  %315 = vst [vmem:[%s4 + $0x80] sm:$0xff] %v251
  %316 = vst [vmem:[%s4 + $0x88] sm:$0xff] %v252
  %317 = vst [vmem:[%s4 + $0x90] sm:$0xff] %v253
  %318 = vst [vmem:[%s4 + $0x98] sm:$0xff] %v254
  %319 = vst [vmem:[%s4 + $0xa0] sm:$0xff] %v255
  %320 = vst [vmem:[%s4 + $0xa8] sm:$0xff] %v256
  %321 = vst [vmem:[%s4 + $0xb0] sm:$0xff] %v257
  %322 = vst [vmem:[%s4 + $0xb8] sm:$0xff] %v258
  %323 = vst [vmem:[%s4 + $0xc0] sm:$0xff] %v259
  %324 = vst [vmem:[%s4 + $0xc8] sm:$0xff] %v260
  %325 = vst [vmem:[%s4 + $0xd0] sm:$0xff] %v261
  %326 = vst [vmem:[%s4 + $0xd8] sm:$0xff] %v262
  %327 = vst [vmem:[%s4 + $0xe0] sm:$0xff] %v263
  %328 = vst [vmem:[%s4 + $0xe8] sm:$0xff] %v264
  %329 = vst [vmem:[%s4 + $0xf0] sm:$0xff] %v265
  %330 = vst [vmem:[%s4 + $0xf8] sm:$0xff] %v266
  %331 = vst [vmem:[%s4 + $0x100] sm:$0xff] %v267
  %332 = vst [vmem:[%s4 + $0x108] sm:$0xff] %v268
  %333 = vst [vmem:[%s4 + $0x110] sm:$0xff] %v269
  %334 = vst [vmem:[%s4 + $0x118] sm:$0xff] %v270
  %335 = vst [vmem:[%s4 + $0x120] sm:$0xff] %v271
  %336 = vst [vmem:[%s4 + $0x128] sm:$0xff] %v272
  %337 = vst [vmem:[%s4 + $0x130] sm:$0xff] %v273
  %338 = vst [vmem:[%s4 + $0x138] sm:$0xff] %v274
  %339 = vst [vmem:[%s4 + $0x140] sm:$0xff] %v275
  %340 = vst [vmem:[%s4 + $0x148] sm:$0xff] %v276
  %341 = vst [vmem:[%s4 + $0x150] sm:$0xff] %v277
  %342 = vst [vmem:[%s4 + $0x158] sm:$0xff] %v278
  %343 = vst [vmem:[%s4 + $0x160] sm:$0xff] %v279
  %344 = vst [vmem:[%s4 + $0x168] sm:$0xff] %v280
  %345 = vst [vmem:[%s4 + $0x170] sm:$0xff] %v281
  %346 = vst [vmem:[%s4 + $0x178] sm:$0xff] %v282
  %347 = vst [vmem:[%s4 + $0x180] sm:$0xff] %v283
  %348 = vst [vmem:[%s4 + $0x188] sm:$0xff] %v284
  %349 = vst [vmem:[%s4 + $0x190] sm:$0xff] %v285
  %350 = vst [vmem:[%s4 + $0x198] sm:$0xff] %v286
  %351 = vst [vmem:[%s4 + $0x1a0] sm:$0xff] %v287
  %352 = vst [vmem:[%s4 + $0x1a8] sm:$0xff] %v288
  %353 = vst [vmem:[%s4 + $0x1b0] sm:$0xff] %v289
  %354 = vst [vmem:[%s4 + $0x1b8] sm:$0xff] %v290
  %355 = vst [vmem:[%s4 + $0x1c0] sm:$0xff] %v291
  %356 = vst [vmem:[%s4 + $0x1c8] sm:$0xff] %v292
  %357 = vst [vmem:[%s4 + $0x1d0] sm:$0xff] %v293
  %358 = vst [vmem:[%s4 + $0x1d8] sm:$0xff] %v294
  %359 = vst [vmem:[%s4 + $0x1e0] sm:$0xff] %v295
  %360 = vst [vmem:[%s4 + $0x1e8] sm:$0xff] %v296
  %361 = vst [vmem:[%s4 + $0x1f0] sm:$0xff] %v297
  %362 = vst [vmem:[%s4 + $0x1f8] sm:$0xff] %v298
  // Predicated region
  $region18: #{resnet50_features_forward.75} parent=0 // pred_check
    _
  $region19: #{resnet50_features_forward.75} parent=0 // pred_check_branch
    %364 = sbr.rel (0) target = $region21
  $region20: #{resnet50_features_forward.75} parent=0 // pred_region
    _
  $region21: #{resnet50_features_forward.75} parent=0 // pred_fallthru
    _
  // Predicated region
  $region22: #{resnet50_features_forward.75} parent=0 // pred_check
    _
  $region23: #{resnet50_features_forward.75} parent=0 // pred_check_branch
    %366 = sbr.rel (0) target = $region25
  $region24: #{resnet50_features_forward.75} parent=0 // pred_region
    _
  $region25: #{resnet50_features_forward.75} parent=0 // pred_fallthru
    _

// kernel: resnet50_features_forward.73
$region0: #{resnet50_features_forward.73}
  #allocation0 [shape = 'u32[]', space=smem, size = 0x4, offset = 0x4, fixed_abs, tag = 'smem constant byte address 0x4 - core index']
  #allocation1 [shape = 'u32[144,128]{1,0:T(1,128)}', space=vmem, size = 0x12000, scoped, tag = 'internal scratch']
  #allocation2 [shape = 'f32[256,128]{1,0:T(8,128)}', space=vmem, size = 0x20000, scoped, tag = 'scratch operand']
  %s0 = inlined_call_operand.vmem [shape: bf16[512,256], index: 0, kind: input, shape index: {}]
  %s1 = inlined_call_operand.vmem [shape: bf16[256,128], index: 1, kind: input, shape index: {}]
  %s2 = inlined_call_operand.vmem [shape: f32[512,128], index: 2, kind: output, shape index: {}]
  %s3 = sld [smem:[#allocation0]]
  $region49: #{resnet50_features_forward.73} parent=0
    _
  %s5 = ssub.s32 1, %s3
  %s6 = scalar_select 0, %s5, %s3
  loop: start=0, step=1, limit=4
  $region2: #{resnet50_features_forward.73} parent=0 // loop_pre_header
    _
  $region3: #{resnet50_features_forward.73} parent=0 // loop_header
    %s8 = sphi 0, %s12
    %p9 = scmp.ge.s32.totalorder %s8, 4
    %s15 = sphi 0, %s34
    %s16 = sphi 0, %s30
    %s17 = sphi 0, %s26
    %s18 = sphi 0, %s15
    %s19 = sphi 0, %s16
    %s20 = sphi 0, %s17
    %s21 = sphi 0, %s18
    %s22 = sphi 0, %s19
    %s23 = sphi 0, %s20
    %s39 = sphi 0, %s41
    %s42 = sphi 0, %s39
    %s43 = sphi 0, %s42
    %s59 = sphi 0, %s43
    %s67 = sphi 0, %s69
    %s70 = sphi 0, %s67
    %s71 = sphi 0, %s70
    %s87 = sphi 0, %s71
    %s95 = sphi 0, %s97
    %s98 = sphi 0, %s95
    %s99 = sphi 0, %s98
    %s115 = sphi 0, %s99
  $region4: #{resnet50_features_forward.73} parent=0 // loop_header_branch
    %11 = sbr.rel (%p9) target = $region8
  $region5: #{resnet50_features_forward.73} parent=0 // loop_body
    %s13 = ssub.s32 %s8, 1
    %s14 = ssub.s32 %s8, 2
    %s24 = sadd.s32 1, %s17
    %p25 = scmp.ge.s32.totalorder %s24, 1
    %s26 = scalar_select %p25, 0, %s24
    %s27 = sadd.s32 1, %s16
    %s28 = scalar_select %p25, %s27, %s16
    %p29 = scmp.ge.s32.totalorder %s28, 1
    %s30 = scalar_select %p29, 0, %s28
    %s31 = sadd.s32 1, %s15
    %s32 = scalar_select %p29, %s31, %s15
    %p33 = scmp.ge.s32.totalorder %s32, 2
    %s34 = scalar_select %p33, 0, %s32
    %s35 = ssub.s32 %s15, %s34
    %s36 = ssub.s32 %s17, %s26
    %s37 = sor.u32 %s35, %s36
    %p38 = scmp.eq.s32.totalorder %s37, 0
    %s40 = sadd.s32 %s39, 1
    %s41 = scalar_select %p38, %s39, %s40
    %p44 = pneg %p38
    %p45 = scmp.eq.s32.totalorder %s8, 1
    %p46 = por %p44, %p45
    %p47 = scmp.ne.s32.totalorder %s39, %s42
    %p48 = scmp.eq.s32.totalorder %s8, 0
    %p49 = por %p47, %p48
    %p50 = scmp.ne.s32.totalorder %s39, %s42
    %p51 = scmp.eq.s32.totalorder %s13, 1
    %p52 = por %p50, %p51
    %p53 = scmp.ne.s32.totalorder %s42, %s43
    %p54 = scmp.eq.s32.totalorder %s13, 0
    %p55 = por %p53, %p54
    %p56 = scmp.ne.s32.totalorder %s42, %s43
    %p57 = scmp.eq.s32.totalorder %s14, 1
    %p58 = por %p56, %p57
    %p60 = scmp.ne.s32.totalorder %s43, %s59
    %p61 = scmp.eq.s32.totalorder %s14, 0
    %p62 = por %p60, %p61
    %s63 = ssub.s32 %s17, %s26
    %s64 = ssub.s32 %s16, %s30
    %s65 = sor.u32 %s63, %s64
    %p66 = scmp.eq.s32.totalorder %s65, 0
    %s68 = sadd.s32 %s67, 1
    %s69 = scalar_select %p66, %s67, %s68
    %p72 = pneg %p66
    %p73 = scmp.eq.s32.totalorder %s8, 1
    %p74 = por %p72, %p73
    %p75 = scmp.ne.s32.totalorder %s67, %s70
    %p76 = scmp.eq.s32.totalorder %s8, 0
    %p77 = por %p75, %p76
    %p78 = scmp.ne.s32.totalorder %s67, %s70
    %p79 = scmp.eq.s32.totalorder %s13, 1
    %p80 = por %p78, %p79
    %p81 = scmp.ne.s32.totalorder %s70, %s71
    %p82 = scmp.eq.s32.totalorder %s13, 0
    %p83 = por %p81, %p82
    %p84 = scmp.ne.s32.totalorder %s70, %s71
    %p85 = scmp.eq.s32.totalorder %s14, 1
    %p86 = por %p84, %p85
    %p88 = scmp.ne.s32.totalorder %s71, %s87
    %p89 = scmp.eq.s32.totalorder %s14, 0
    %p90 = por %p88, %p89
    %s91 = ssub.s32 %s15, %s34
    %s92 = ssub.s32 %s16, %s30
    %s93 = sor.u32 %s91, %s92
    %p94 = scmp.eq.s32.totalorder %s93, 0
    %s96 = sadd.s32 %s95, 1
    %s97 = scalar_select %p94, %s95, %s96
    %p100 = pneg %p94
    %p101 = scmp.eq.s32.totalorder %s8, 1
    %p102 = por %p100, %p101
    %p103 = scmp.ne.s32.totalorder %s95, %s98
    %p104 = scmp.eq.s32.totalorder %s8, 0
    %p105 = por %p103, %p104
    %p106 = scmp.ne.s32.totalorder %s95, %s98
    %p107 = scmp.eq.s32.totalorder %s13, 1
    %p108 = por %p106, %p107
    %p109 = scmp.ne.s32.totalorder %s98, %s99
    %p110 = scmp.eq.s32.totalorder %s13, 0
    %p111 = por %p109, %p110
    %p112 = scmp.ne.s32.totalorder %s98, %s99
    %p113 = scmp.eq.s32.totalorder %s14, 1
    %p114 = por %p112, %p113
    %p116 = scmp.ne.s32.totalorder %s99, %s115
    %p117 = scmp.eq.s32.totalorder %s14, 0
    %p118 = por %p116, %p117
    %p119 = scmp.le.s32.totalorder 1, %s8
    %p120 = scmp.lt.s32.totalorder %s8, 3
    %p121 = pnand %p119, %p120
    %p122 = pneg %p121
    // Predicated region
    $region9: #{resnet50_features_forward.73} parent=5 // pred_check
      _
    $region10: #{resnet50_features_forward.73} parent=5 // pred_check_branch
      %124 = sbr.rel (%p121) target = $region12
    $region11: #{resnet50_features_forward.73} parent=5 // pred_region
      %s125 = ssub.s32 %s8, 1
      // Predicated region
      $region13: #{resnet50_features_forward.73} parent=11 // pred_check
        %p126 = pneg %p83
      $region14: #{resnet50_features_forward.73} parent=11 // pred_check_branch
        %128 = sbr.rel (%p126) target = $region16
      $region15: #{resnet50_features_forward.73} parent=11 // pred_region
        %s129 = smul.u32 32, %s20
        %p130 = scmp.lt.s32.totalorder %s129, 31
        %s131 = scalar_select %p130, %s129, 31
        %p132 = scmp.lt.s32.totalorder %s19, 0
        %s133 = scalar_select %p132, %s19, 0
        %s134 = sadd.s32 %s133, %s131
        %s135 = smul.addr %s134, 4
        %s136 = scalar_lea.vmem %s1, %s135
        %s137 = smul.u32 32, %s20
      $region16: #{resnet50_features_forward.73} parent=11 // pred_fallthru
        _
    $region12: #{resnet50_features_forward.73} parent=5 // pred_fallthru
      _
    %p138 = scmp.lt.s32.totalorder %s8, 2
    // Predicated region
    $region17: #{resnet50_features_forward.73} parent=5 // pred_check
      %p139 = pneg %p138
    $region18: #{resnet50_features_forward.73} parent=5 // pred_check_branch
      %141 = sbr.rel (%p139) target = $region20
    $region19: #{resnet50_features_forward.73} parent=5 // pred_region
      // Predicated region
      $region21: #{resnet50_features_forward.73} parent=19 // pred_check
        %p142 = pneg %p49
      $region22: #{resnet50_features_forward.73} parent=19 // pred_check_branch
        %144 = sbr.rel (%p142) target = $region24
      $region23: #{resnet50_features_forward.73} parent=19 // pred_region
        %s145 = smul.u32 32, %s15
        %s146 = smul.u32 2, %s17
        %p147 = scmp.lt.s32.totalorder %s145, 63
        %s148 = scalar_select %p147, %s145, 63
        %p149 = scmp.lt.s32.totalorder %s146, 1
        %s150 = scalar_select %p149, %s146, 1
        %s151 = smul.addr %s148, 2
        %s152 = sadd.s32 %s150, %s151
        %s153 = smul.addr %s152, 4
        %s154 = scalar_lea.vmem %s0, %s153
        %s155 = smul.u32 32, %s15
        %s156 = smul.u32 2, %s17
      $region24: #{resnet50_features_forward.73} parent=19 // pred_fallthru
        _
    $region20: #{resnet50_features_forward.73} parent=5 // pred_fallthru
      _
    %p157 = scmp.le.s32.totalorder 1, %s8
    %p158 = scmp.lt.s32.totalorder %s8, 3
    %p159 = pnand %p157, %p158
    %p160 = pneg %p159
    // Predicated region
    $region25: #{resnet50_features_forward.73} parent=5 // pred_check
      _
    $region26: #{resnet50_features_forward.73} parent=5 // pred_check_branch
      %162 = sbr.rel (%p159) target = $region28
    $region27: #{resnet50_features_forward.73} parent=5 // pred_region
      %s163 = ssub.s32 %s8, 1
      %s164 = smul.u32 32, %s18
      %s165 = smul.u32 2, %s20
      %p166 = scmp.lt.s32.totalorder %s164, 63
      %s167 = scalar_select %p166, %s164, 63
      %p168 = scmp.lt.s32.totalorder %s165, 1
      %s169 = scalar_select %p168, %s165, 1
      %s170 = smul.addr %s167, 2
      %s171 = sadd.s32 %s169, %s170
      %s172 = smul.addr %s171, 4
      %s173 = scalar_lea.vmem %s0, %s172
      %p174 = pneg %p55
      %p175 = pneg %p52
      %s176 = smul.u32 32, %s20
      %p177 = scmp.lt.s32.totalorder %s176, 31
      %s178 = scalar_select %p177, %s176, 31
      %p179 = scmp.lt.s32.totalorder %s19, 0
      %s180 = scalar_select %p179, %s19, 0
      %s181 = sadd.s32 %s180, %s178
      %s182 = smul.addr %s181, 4
      %s183 = scalar_lea.vmem %s1, %s182
      %p184 = pneg %p83
      %p185 = pneg %p80
      %p186 = pneg %p111
      %p187 = pneg %p108
      %s188 = smul.u32 32, %s18
      %p189 = scmp.lt.s32.totalorder %s188, 63
      %s190 = scalar_select %p189, %s188, 63
      %p191 = scmp.lt.s32.totalorder %s19, 0
      %s192 = scalar_select %p191, %s19, 0
      %s193 = sadd.s32 %s192, %s190
      %s194 = smul.addr %s193, 8
      %s195 = scalar_lea.vmem %s2, %s194
      %s196 = smul.u32 32, %s18
      %s197 = smul.u32 2, %s20
      %p198 = scmp.lt.s32.totalorder %s196, 63
      %s199 = scalar_select %p198, %s196, 63
      %p200 = scmp.lt.s32.totalorder %s197, 1
      %s201 = scalar_select %p200, %s197, 1
      %s202 = smul.addr %s199, 2
      %s203 = sadd.s32 %s201, %s202
      %s204 = smul.addr %s203, 4
      %s205 = scalar_lea.vmem %s0, %s204
      %s206 = smul.u32 32, %s18
      %s207 = smul.u32 2, %s20
      %s208 = smul.u32 32, %s20
      %p209 = scmp.lt.s32.totalorder %s208, 31
      %s210 = scalar_select %p209, %s208, 31
      %p211 = scmp.lt.s32.totalorder %s19, 0
      %s212 = scalar_select %p211, %s19, 0
      %s213 = sadd.s32 %s212, %s210
      %s214 = smul.addr %s213, 4
      %s215 = scalar_lea.vmem %s1, %s214
      %s216 = smul.u32 32, %s20
      %s217 = smul.u32 32, %s18
      %p218 = scmp.lt.s32.totalorder %s217, 63
      %s219 = scalar_select %p218, %s217, 63
      %p220 = scmp.lt.s32.totalorder %s19, 0
      %s221 = scalar_select %p220, %s19, 0
      %s222 = sadd.s32 %s221, %s219
      %s223 = smul.addr %s222, 8
      %s224 = scalar_lea.vmem %s2, %s223
      %s225 = smul.u32 32, %s18
      %p227 = scmp.eq.s32.totalorder %s20, 0
      // Predicated region
      $region29: #{resnet50_features_forward.73} parent=27 // pred_check
        %p228 = pneg %p227
      $region30: #{resnet50_features_forward.73} parent=27 // pred_check_branch
        %230 = sbr.rel (%p228) target = $region32
      $region31: #{resnet50_features_forward.73} parent=27 // pred_region
        %231 = vst [vmem:[#allocation2] sm:$0xff] 0.0
        %232 = vst [vmem:[#allocation2 + $0x8] sm:$0xff] 0.0
        %233 = vst [vmem:[#allocation2 + $0x10] sm:$0xff] 0.0
        %234 = vst [vmem:[#allocation2 + $0x18] sm:$0xff] 0.0
        %235 = vst [vmem:[#allocation2 + $0x20] sm:$0xff] 0.0
        %236 = vst [vmem:[#allocation2 + $0x28] sm:$0xff] 0.0
        %237 = vst [vmem:[#allocation2 + $0x30] sm:$0xff] 0.0
        %238 = vst [vmem:[#allocation2 + $0x38] sm:$0xff] 0.0
        %239 = vst [vmem:[#allocation2 + $0x40] sm:$0xff] 0.0
        %240 = vst [vmem:[#allocation2 + $0x48] sm:$0xff] 0.0
        %241 = vst [vmem:[#allocation2 + $0x50] sm:$0xff] 0.0
        %242 = vst [vmem:[#allocation2 + $0x58] sm:$0xff] 0.0
        %243 = vst [vmem:[#allocation2 + $0x60] sm:$0xff] 0.0
        %244 = vst [vmem:[#allocation2 + $0x68] sm:$0xff] 0.0
        %245 = vst [vmem:[#allocation2 + $0x70] sm:$0xff] 0.0
        %246 = vst [vmem:[#allocation2 + $0x78] sm:$0xff] 0.0
        %247 = vst [vmem:[#allocation2 + $0x80] sm:$0xff] 0.0
        %248 = vst [vmem:[#allocation2 + $0x88] sm:$0xff] 0.0
        %249 = vst [vmem:[#allocation2 + $0x90] sm:$0xff] 0.0
        %250 = vst [vmem:[#allocation2 + $0x98] sm:$0xff] 0.0
        %251 = vst [vmem:[#allocation2 + $0xa0] sm:$0xff] 0.0
        %252 = vst [vmem:[#allocation2 + $0xa8] sm:$0xff] 0.0
        %253 = vst [vmem:[#allocation2 + $0xb0] sm:$0xff] 0.0
        %254 = vst [vmem:[#allocation2 + $0xb8] sm:$0xff] 0.0
        %255 = vst [vmem:[#allocation2 + $0xc0] sm:$0xff] 0.0
        %256 = vst [vmem:[#allocation2 + $0xc8] sm:$0xff] 0.0
        %257 = vst [vmem:[#allocation2 + $0xd0] sm:$0xff] 0.0
        %258 = vst [vmem:[#allocation2 + $0xd8] sm:$0xff] 0.0
        %259 = vst [vmem:[#allocation2 + $0xe0] sm:$0xff] 0.0
        %260 = vst [vmem:[#allocation2 + $0xe8] sm:$0xff] 0.0
        %261 = vst [vmem:[#allocation2 + $0xf0] sm:$0xff] 0.0
        %262 = vst [vmem:[#allocation2 + $0xf8] sm:$0xff] 0.0
      $region32: #{resnet50_features_forward.73} parent=27 // pred_fallthru
        _
      %v263 = vld [vmem:[#allocation2] sm:$0xff]
      %v264 = vld [vmem:[#allocation2 + $0x8] sm:$0xff]
      %v265 = vld [vmem:[#allocation2 + $0x10] sm:$0xff]
      %v266 = vld [vmem:[#allocation2 + $0x18] sm:$0xff]
      %v267 = vld [vmem:[#allocation2 + $0x20] sm:$0xff]
      %v268 = vld [vmem:[#allocation2 + $0x28] sm:$0xff]
      %v269 = vld [vmem:[#allocation2 + $0x30] sm:$0xff]
      %v270 = vld [vmem:[#allocation2 + $0x38] sm:$0xff]
      %v271 = vld [vmem:[#allocation2 + $0x40] sm:$0xff]
      %v272 = vld [vmem:[#allocation2 + $0x48] sm:$0xff]
      %v273 = vld [vmem:[#allocation2 + $0x50] sm:$0xff]
      %v274 = vld [vmem:[#allocation2 + $0x58] sm:$0xff]
      %v275 = vld [vmem:[#allocation2 + $0x60] sm:$0xff]
      %v276 = vld [vmem:[#allocation2 + $0x68] sm:$0xff]
      %v277 = vld [vmem:[#allocation2 + $0x70] sm:$0xff]
      %v278 = vld [vmem:[#allocation2 + $0x78] sm:$0xff]
      %v279 = vld [vmem:[#allocation2 + $0x80] sm:$0xff]
      %v280 = vld [vmem:[#allocation2 + $0x88] sm:$0xff]
      %v281 = vld [vmem:[#allocation2 + $0x90] sm:$0xff]
      %v282 = vld [vmem:[#allocation2 + $0x98] sm:$0xff]
      %v283 = vld [vmem:[#allocation2 + $0xa0] sm:$0xff]
      %v284 = vld [vmem:[#allocation2 + $0xa8] sm:$0xff]
      %v285 = vld [vmem:[#allocation2 + $0xb0] sm:$0xff]
      %v286 = vld [vmem:[#allocation2 + $0xb8] sm:$0xff]
      %v287 = vld [vmem:[#allocation2 + $0xc0] sm:$0xff]
      %v288 = vld [vmem:[#allocation2 + $0xc8] sm:$0xff]
      %v289 = vld [vmem:[#allocation2 + $0xd0] sm:$0xff]
      %v290 = vld [vmem:[#allocation2 + $0xd8] sm:$0xff]
      %v291 = vld [vmem:[#allocation2 + $0xe0] sm:$0xff]
      %v292 = vld [vmem:[#allocation2 + $0xe8] sm:$0xff]
      %v293 = vld [vmem:[#allocation2 + $0xf0] sm:$0xff]
      %v294 = vld [vmem:[#allocation2 + $0xf8] sm:$0xff]
      %v295 = vld [vmem:[%s205] sm:$0xff]
      %v296 = vld [vmem:[%s205 + $0x8] sm:$0xff]
      %v297 = vld [vmem:[%s205 + $0x10] sm:$0xff]
      %v298 = vld [vmem:[%s205 + $0x18] sm:$0xff]
      %v299 = vld [vmem:[%s205 + $0x20] sm:$0xff]
      %v300 = vld [vmem:[%s205 + $0x28] sm:$0xff]
      %v301 = vld [vmem:[%s205 + $0x30] sm:$0xff]
      %v302 = vld [vmem:[%s205 + $0x38] sm:$0xff]
      %v303 = vld [vmem:[%s205 + $0x40] sm:$0xff]
      %v304 = vld [vmem:[%s205 + $0x48] sm:$0xff]
      %v305 = vld [vmem:[%s205 + $0x50] sm:$0xff]
      %v306 = vld [vmem:[%s205 + $0x58] sm:$0xff]
      %v307 = vld [vmem:[%s205 + $0x60] sm:$0xff]
      %v308 = vld [vmem:[%s205 + $0x68] sm:$0xff]
      %v309 = vld [vmem:[%s205 + $0x70] sm:$0xff]
      %v310 = vld [vmem:[%s205 + $0x78] sm:$0xff]
      %v311 = vld [vmem:[%s205 + $0x80] sm:$0xff]
      %v312 = vld [vmem:[%s205 + $0x88] sm:$0xff]
      %v313 = vld [vmem:[%s205 + $0x90] sm:$0xff]
      %v314 = vld [vmem:[%s205 + $0x98] sm:$0xff]
      %v315 = vld [vmem:[%s205 + $0xa0] sm:$0xff]
      %v316 = vld [vmem:[%s205 + $0xa8] sm:$0xff]
      %v317 = vld [vmem:[%s205 + $0xb0] sm:$0xff]
      %v318 = vld [vmem:[%s205 + $0xb8] sm:$0xff]
      %v319 = vld [vmem:[%s205 + $0xc0] sm:$0xff]
      %v320 = vld [vmem:[%s205 + $0xc8] sm:$0xff]
      %v321 = vld [vmem:[%s205 + $0xd0] sm:$0xff]
      %v322 = vld [vmem:[%s205 + $0xd8] sm:$0xff]
      %v323 = vld [vmem:[%s205 + $0xe0] sm:$0xff]
      %v324 = vld [vmem:[%s205 + $0xe8] sm:$0xff]
      %v325 = vld [vmem:[%s205 + $0xf0] sm:$0xff]
      %v326 = vld [vmem:[%s205 + $0xf8] sm:$0xff]
      %v327 = vld [vmem:[%s215] sm:$0xf]
      %v328 = vld [vmem:[%s215 + $0x4] sm:$0xf]
      %v329 = vld [vmem:[%s215 + $0x8] sm:$0xf]
      %v330 = vld [vmem:[%s215 + $0xc] sm:$0xf]
      %v331 = vld [vmem:[%s215 + $0x10] sm:$0xf]
      %v332 = vld [vmem:[%s215 + $0x14] sm:$0xf]
      %v333 = vld [vmem:[%s215 + $0x18] sm:$0xf]
      %v334 = vld [vmem:[%s215 + $0x1c] sm:$0xf]
      %v335 = vld [vmem:[%s215 + $0x20] sm:$0xf]
      %v336 = vld [vmem:[%s215 + $0x24] sm:$0xf]
      %v337 = vld [vmem:[%s215 + $0x28] sm:$0xf]
      %v338 = vld [vmem:[%s215 + $0x2c] sm:$0xf]
      %v339 = vld [vmem:[%s215 + $0x30] sm:$0xf]
      %v340 = vld [vmem:[%s215 + $0x34] sm:$0xf]
      %v341 = vld [vmem:[%s215 + $0x38] sm:$0xf]
      %v342 = vld [vmem:[%s215 + $0x3c] sm:$0xf]
      %v343 = vld [vmem:[%s215 + $0x40] sm:$0xf]
      %v344 = vld [vmem:[%s215 + $0x44] sm:$0xf]
      %v345 = vld [vmem:[%s215 + $0x48] sm:$0xf]
      %v346 = vld [vmem:[%s215 + $0x4c] sm:$0xf]
      %v347 = vld [vmem:[%s215 + $0x50] sm:$0xf]
      %v348 = vld [vmem:[%s215 + $0x54] sm:$0xf]
      %v349 = vld [vmem:[%s215 + $0x58] sm:$0xf]
      %v350 = vld [vmem:[%s215 + $0x5c] sm:$0xf]
      %v351 = vld [vmem:[%s215 + $0x60] sm:$0xf]
      %v352 = vld [vmem:[%s215 + $0x64] sm:$0xf]
      %v353 = vld [vmem:[%s215 + $0x68] sm:$0xf]
      %v354 = vld [vmem:[%s215 + $0x6c] sm:$0xf]
      %v355 = vld [vmem:[%s215 + $0x70] sm:$0xf]
      %v356 = vld [vmem:[%s215 + $0x74] sm:$0xf]
      %v357 = vld [vmem:[%s215 + $0x78] sm:$0xf]
      %v358 = vld [vmem:[%s215 + $0x7c] sm:$0xf]
      %v391 = vunpack.c.l.b16 %v295
      %v392 = vunpack.c.h.b16 %v295
      %v393 = vunpack.c.l.b16 %v296
      %v394 = vunpack.c.h.b16 %v296
      %v395 = vunpack.c.l.b16 %v297
      %v396 = vunpack.c.h.b16 %v297
      %v397 = vunpack.c.l.b16 %v298
      %v398 = vunpack.c.h.b16 %v298
      %v399 = vunpack.c.l.b16 %v299
      %v400 = vunpack.c.h.b16 %v299
      %v401 = vunpack.c.l.b16 %v300
      %v402 = vunpack.c.h.b16 %v300
      %v403 = vunpack.c.l.b16 %v301
      %v404 = vunpack.c.h.b16 %v301
      %v405 = vunpack.c.l.b16 %v302
      %v406 = vunpack.c.h.b16 %v302
      %v407 = vunpack.c.l.b16 %v303
      %v408 = vunpack.c.h.b16 %v303
      %v409 = vunpack.c.l.b16 %v304
      %v410 = vunpack.c.h.b16 %v304
      %v411 = vunpack.c.l.b16 %v305
      %v412 = vunpack.c.h.b16 %v305
      %v413 = vunpack.c.l.b16 %v306
      %v414 = vunpack.c.h.b16 %v306
      %v415 = vunpack.c.l.b16 %v307
      %v416 = vunpack.c.h.b16 %v307
      %v417 = vunpack.c.l.b16 %v308
      %v418 = vunpack.c.h.b16 %v308
      %v419 = vunpack.c.l.b16 %v309
      %v420 = vunpack.c.h.b16 %v309
      %v421 = vunpack.c.l.b16 %v310
      %v422 = vunpack.c.h.b16 %v310
      %v423 = vunpack.c.l.b16 %v311
      %v424 = vunpack.c.h.b16 %v311
      %v425 = vunpack.c.l.b16 %v312
      %v426 = vunpack.c.h.b16 %v312
      %v427 = vunpack.c.l.b16 %v313
      %v428 = vunpack.c.h.b16 %v313
      %v429 = vunpack.c.l.b16 %v314
      %v430 = vunpack.c.h.b16 %v314
      %v431 = vunpack.c.l.b16 %v315
      %v432 = vunpack.c.h.b16 %v315
      %v433 = vunpack.c.l.b16 %v316
      %v434 = vunpack.c.h.b16 %v316
      %v435 = vunpack.c.l.b16 %v317
      %v436 = vunpack.c.h.b16 %v317
      %v437 = vunpack.c.l.b16 %v318
      %v438 = vunpack.c.h.b16 %v318
      %v439 = vunpack.c.l.b16 %v319
      %v440 = vunpack.c.h.b16 %v319
      %v441 = vunpack.c.l.b16 %v320
      %v442 = vunpack.c.h.b16 %v320
      %v443 = vunpack.c.l.b16 %v321
      %v444 = vunpack.c.h.b16 %v321
      %v445 = vunpack.c.l.b16 %v322
      %v446 = vunpack.c.h.b16 %v322
      %v447 = vunpack.c.l.b16 %v323
      %v448 = vunpack.c.h.b16 %v323
      %v449 = vunpack.c.l.b16 %v324
      %v450 = vunpack.c.h.b16 %v324
      %v451 = vunpack.c.l.b16 %v325
      %v452 = vunpack.c.h.b16 %v325
      %v453 = vunpack.c.l.b16 %v326
      %v454 = vunpack.c.h.b16 %v326
      %v455 = vpack.c.b16 %v393, %v391
      %v456 = vpack.c.b16 %v394, %v392
      %v457 = vpack.c.b16 %v397, %v395
      %v458 = vpack.c.b16 %v398, %v396
      %v459 = vpack.c.b16 %v401, %v399
      %v460 = vpack.c.b16 %v402, %v400
      %v461 = vpack.c.b16 %v405, %v403
      %v462 = vpack.c.b16 %v406, %v404
      %v463 = vpack.c.b16 %v409, %v407
      %v464 = vpack.c.b16 %v410, %v408
      %v465 = vpack.c.b16 %v413, %v411
      %v466 = vpack.c.b16 %v414, %v412
      %v467 = vpack.c.b16 %v417, %v415
      %v468 = vpack.c.b16 %v418, %v416
      %v469 = vpack.c.b16 %v421, %v419
      %v470 = vpack.c.b16 %v422, %v420
      %v471 = vpack.c.b16 %v425, %v423
      %v472 = vpack.c.b16 %v426, %v424
      %v473 = vpack.c.b16 %v429, %v427
      %v474 = vpack.c.b16 %v430, %v428
      %v475 = vpack.c.b16 %v433, %v431
      %v476 = vpack.c.b16 %v434, %v432
      %v477 = vpack.c.b16 %v437, %v435
      %v478 = vpack.c.b16 %v438, %v436
      %v479 = vpack.c.b16 %v441, %v439
      %v480 = vpack.c.b16 %v442, %v440
      %v481 = vpack.c.b16 %v445, %v443
      %v482 = vpack.c.b16 %v446, %v444
      %v483 = vpack.c.b16 %v449, %v447
      %v484 = vpack.c.b16 %v450, %v448
      %v485 = vpack.c.b16 %v453, %v451
      %v486 = vpack.c.b16 %v454, %v452
      %v551 = vunpack.c.l.b16 %v327
      %v552 = vunpack.c.l.b16 %v328
      %v553 = vunpack.c.l.b16 %v329
      %v554 = vunpack.c.l.b16 %v330
      %v555 = vunpack.c.l.b16 %v331
      %v556 = vunpack.c.l.b16 %v332
      %v557 = vunpack.c.l.b16 %v333
      %v558 = vunpack.c.l.b16 %v334
      %v559 = vunpack.c.l.b16 %v335
      %v560 = vunpack.c.l.b16 %v336
      %v561 = vunpack.c.l.b16 %v337
      %v562 = vunpack.c.l.b16 %v338
      %v563 = vunpack.c.l.b16 %v339
      %v564 = vunpack.c.l.b16 %v340
      %v565 = vunpack.c.l.b16 %v341
      %v566 = vunpack.c.l.b16 %v342
      %v567 = vunpack.c.l.b16 %v343
      %v568 = vunpack.c.l.b16 %v344
      %v569 = vunpack.c.l.b16 %v345
      %v570 = vunpack.c.l.b16 %v346
      %v571 = vunpack.c.l.b16 %v347
      %v572 = vunpack.c.l.b16 %v348
      %v573 = vunpack.c.l.b16 %v349
      %v574 = vunpack.c.l.b16 %v350
      %v575 = vunpack.c.l.b16 %v351
      %v576 = vunpack.c.l.b16 %v352
      %v577 = vunpack.c.l.b16 %v353
      %v578 = vunpack.c.l.b16 %v354
      %v579 = vunpack.c.l.b16 %v355
      %v580 = vunpack.c.l.b16 %v356
      %v581 = vunpack.c.l.b16 %v357
      %v582 = vunpack.c.l.b16 %v358
      %v583 = vpack.c.b16 %v552, %v551
      %v584 = vpack.c.b16 %v554, %v553
      %v585 = vpack.c.b16 %v556, %v555
      %v586 = vpack.c.b16 %v558, %v557
      %v587 = vpack.c.b16 %v560, %v559
      %v588 = vpack.c.b16 %v562, %v561
      %v589 = vpack.c.b16 %v564, %v563
      %v590 = vpack.c.b16 %v566, %v565
      %v591 = vpack.c.b16 %v568, %v567
      %v592 = vpack.c.b16 %v570, %v569
      %v593 = vpack.c.b16 %v572, %v571
      %v594 = vpack.c.b16 %v574, %v573
      %v595 = vpack.c.b16 %v576, %v575
      %v596 = vpack.c.b16 %v578, %v577
      %v597 = vpack.c.b16 %v580, %v579
      %v598 = vpack.c.b16 %v582, %v581
      %615 = vmatprep.subr.bf16.mxu0 0
      %616 = vmatpush1.bf16.msra.mxu0 %v590
      %617 = vmatprep.subr.bf16.mxu0 0
      %618 = vmatpush1.bf16.msra.mxu0 %v589
      %619 = vmatprep.subr.bf16.mxu0 0
      %620 = vmatpush1.bf16.msra.mxu0 %v588
      %621 = vmatprep.subr.bf16.mxu0 0
      %622 = vmatpush1.bf16.msra.mxu0 %v587
      %623 = vmatprep.subr.bf16.mxu0 0
      %624 = vmatpush1.bf16.msra.mxu0 %v586
      %625 = vmatprep.subr.bf16.mxu0 0
      %626 = vmatpush1.bf16.msra.mxu0 %v585
      %627 = vmatprep.subr.bf16.mxu0 0
      %628 = vmatpush1.bf16.msra.mxu0 %v584
      %629 = vmatprep.subr.bf16.mxu0 0
      %630 = vmatpush1.bf16.msra.mxu0 %v583
      %631 = vmatprep.subr.bf16.mxu0 0
      %632 = vmatpush2.bf16.msra.mxu0 %v598
      %633 = vmatprep.subr.bf16.mxu0 0
      %634 = vmatpush2.bf16.msra.mxu0 %v597
      %635 = vmatprep.subr.bf16.mxu0 0
      %636 = vmatpush2.bf16.msra.mxu0 %v596
      %637 = vmatprep.subr.bf16.mxu0 0
      %638 = vmatpush2.bf16.msra.mxu0 %v595
      %639 = vmatprep.subr.bf16.mxu0 0
      %640 = vmatpush2.bf16.msra.mxu0 %v594
      %641 = vmatprep.subr.bf16.mxu0 0
      %642 = vmatpush2.bf16.msra.mxu0 %v593
      %643 = vmatprep.subr.bf16.mxu0 0
      %644 = vmatpush2.bf16.msra.mxu0 %v592
      %645 = vmatprep.subr.bf16.mxu0 0
      %646 = vmatpush2.bf16.msra.mxu0 %v591
      %647 = vmatprep.mubr.bf16.mxu0 %v456
      %648 = vmatmul.mubr.bf16.gmra.mxu0 %v455
      %v649 = vpop.f32.mrf.mxu0
      %v650 = vadd.f32 0.0, %v649
      %v651 = vpop.f32.mrf.mxu0
      %v652 = vpop.f32.mrf.mxu0
      %v653 = vadd.f32 0.0, %v652
      %v654 = vpop.f32.mrf.mxu0
      %655 = vmatprep.mubr.bf16.mxu0 %v458
      %656 = vmatmul.mubr.bf16.gmra.mxu0 %v457
      %v657 = vpop.f32.mrf.mxu0
      %v658 = vadd.f32 0.0, %v657
      %v659 = vpop.f32.mrf.mxu0
      %v660 = vpop.f32.mrf.mxu0
      %v661 = vadd.f32 0.0, %v660
      %v662 = vpop.f32.mrf.mxu0
      %663 = vmatprep.mubr.bf16.mxu0 %v460
      %664 = vmatmul.mubr.bf16.gmra.mxu0 %v459
      %v665 = vpop.f32.mrf.mxu0
      %v666 = vadd.f32 0.0, %v665
      %v667 = vpop.f32.mrf.mxu0
      %v668 = vpop.f32.mrf.mxu0
      %v669 = vadd.f32 0.0, %v668
      %v670 = vpop.f32.mrf.mxu0
      %671 = vmatprep.mubr.bf16.mxu0 %v462
      %672 = vmatmul.mubr.bf16.gmra.mxu0 %v461
      %v673 = vpop.f32.mrf.mxu0
      %v674 = vadd.f32 0.0, %v673
      %v675 = vpop.f32.mrf.mxu0
      %v676 = vpop.f32.mrf.mxu0
      %v677 = vadd.f32 0.0, %v676
      %v678 = vpop.f32.mrf.mxu0
      %679 = vmatprep.mubr.bf16.mxu0 %v464
      %680 = vmatmul.mubr.bf16.gmra.mxu0 %v463
      %v681 = vpop.f32.mrf.mxu0
      %v682 = vadd.f32 0.0, %v681
      %v683 = vpop.f32.mrf.mxu0
      %v684 = vpop.f32.mrf.mxu0
      %v685 = vadd.f32 0.0, %v684
      %v686 = vpop.f32.mrf.mxu0
      %687 = vmatprep.mubr.bf16.mxu0 %v466
      %688 = vmatmul.mubr.bf16.gmra.mxu0 %v465
      %v689 = vpop.f32.mrf.mxu0
      %v690 = vadd.f32 0.0, %v689
      %v691 = vpop.f32.mrf.mxu0
      %v692 = vpop.f32.mrf.mxu0
      %v693 = vadd.f32 0.0, %v692
      %v694 = vpop.f32.mrf.mxu0
      %695 = vmatprep.mubr.bf16.mxu0 %v468
      %696 = vmatmul.mubr.bf16.gmra.mxu0 %v467
      %v697 = vpop.f32.mrf.mxu0
      %v698 = vadd.f32 0.0, %v697
      %v699 = vpop.f32.mrf.mxu0
      %v700 = vpop.f32.mrf.mxu0
      %v701 = vadd.f32 0.0, %v700
      %v702 = vpop.f32.mrf.mxu0
      %703 = vmatprep.mubr.bf16.mxu0 %v470
      %704 = vmatmul.mubr.bf16.gmra.mxu0 %v469
      %v705 = vpop.f32.mrf.mxu0
      %v706 = vadd.f32 0.0, %v705
      %v707 = vpop.f32.mrf.mxu0
      %v708 = vpop.f32.mrf.mxu0
      %v709 = vadd.f32 0.0, %v708
      %v710 = vpop.f32.mrf.mxu0
      %711 = vmatprep.mubr.bf16.mxu0 %v472
      %712 = vmatmul.mubr.bf16.gmra.mxu0 %v471
      %v713 = vpop.f32.mrf.mxu0
      %v714 = vadd.f32 0.0, %v713
      %v715 = vpop.f32.mrf.mxu0
      %v716 = vpop.f32.mrf.mxu0
      %v717 = vadd.f32 0.0, %v716
      %v718 = vpop.f32.mrf.mxu0
      %719 = vmatprep.mubr.bf16.mxu0 %v474
      %720 = vmatmul.mubr.bf16.gmra.mxu0 %v473
      %v721 = vpop.f32.mrf.mxu0
      %v722 = vadd.f32 0.0, %v721
      %v723 = vpop.f32.mrf.mxu0
      %v724 = vpop.f32.mrf.mxu0
      %v725 = vadd.f32 0.0, %v724
      %v726 = vpop.f32.mrf.mxu0
      %727 = vmatprep.mubr.bf16.mxu0 %v476
      %728 = vmatmul.mubr.bf16.gmra.mxu0 %v475
      %v729 = vpop.f32.mrf.mxu0
      %v730 = vadd.f32 0.0, %v729
      %v731 = vpop.f32.mrf.mxu0
      %v732 = vpop.f32.mrf.mxu0
      %v733 = vadd.f32 0.0, %v732
      %v734 = vpop.f32.mrf.mxu0
      %735 = vmatprep.mubr.bf16.mxu0 %v478
      %736 = vmatmul.mubr.bf16.gmra.mxu0 %v477
      %v737 = vpop.f32.mrf.mxu0
      %v738 = vadd.f32 0.0, %v737
      %v739 = vpop.f32.mrf.mxu0
      %v740 = vpop.f32.mrf.mxu0
      %v741 = vadd.f32 0.0, %v740
      %v742 = vpop.f32.mrf.mxu0
      %743 = vmatprep.mubr.bf16.mxu0 %v480
      %744 = vmatmul.mubr.bf16.gmra.mxu0 %v479
      %v745 = vpop.f32.mrf.mxu0
      %v746 = vadd.f32 0.0, %v745
      %v747 = vpop.f32.mrf.mxu0
      %v748 = vpop.f32.mrf.mxu0
      %v749 = vadd.f32 0.0, %v748
      %v750 = vpop.f32.mrf.mxu0
      %751 = vmatprep.mubr.bf16.mxu0 %v482
      %752 = vmatmul.mubr.bf16.gmra.mxu0 %v481
      %v753 = vpop.f32.mrf.mxu0
      %v754 = vadd.f32 0.0, %v753
      %v755 = vpop.f32.mrf.mxu0
      %v756 = vpop.f32.mrf.mxu0
      %v757 = vadd.f32 0.0, %v756
      %v758 = vpop.f32.mrf.mxu0
      %759 = vmatprep.mubr.bf16.mxu0 %v484
      %760 = vmatmul.mubr.bf16.gmra.mxu0 %v483
      %v761 = vpop.f32.mrf.mxu0
      %v762 = vadd.f32 0.0, %v761
      %v763 = vpop.f32.mrf.mxu0
      %v764 = vpop.f32.mrf.mxu0
      %v765 = vadd.f32 0.0, %v764
      %v766 = vpop.f32.mrf.mxu0
      %767 = vmatprep.mubr.bf16.mxu0 %v486
      %768 = vmatmul.mubr.bf16.gmra.mxu0 %v485
      %v769 = vpop.f32.mrf.mxu0
      %v770 = vadd.f32 0.0, %v769
      %v771 = vpop.f32.mrf.mxu0
      %v772 = vpop.f32.mrf.mxu0
      %v773 = vadd.f32 0.0, %v772
      %v774 = vpop.f32.mrf.mxu0
      %775 = vdwg.mxu0
      %v776 = vadd.f32 %v263, %v650
      %v777 = vadd.f32 %v264, %v653
      %v778 = vadd.f32 %v265, %v658
      %v779 = vadd.f32 %v266, %v661
      %v780 = vadd.f32 %v267, %v666
      %v781 = vadd.f32 %v268, %v669
      %v782 = vadd.f32 %v269, %v674
      %v783 = vadd.f32 %v270, %v677
      %v784 = vadd.f32 %v271, %v682
      %v785 = vadd.f32 %v272, %v685
      %v786 = vadd.f32 %v273, %v690
      %v787 = vadd.f32 %v274, %v693
      %v788 = vadd.f32 %v275, %v698
      %v789 = vadd.f32 %v276, %v701
      %v790 = vadd.f32 %v277, %v706
      %v791 = vadd.f32 %v278, %v709
      %v792 = vadd.f32 %v279, %v714
      %v793 = vadd.f32 %v280, %v717
      %v794 = vadd.f32 %v281, %v722
      %v795 = vadd.f32 %v282, %v725
      %v796 = vadd.f32 %v283, %v730
      %v797 = vadd.f32 %v284, %v733
      %v798 = vadd.f32 %v285, %v738
      %v799 = vadd.f32 %v286, %v741
      %v800 = vadd.f32 %v287, %v746
      %v801 = vadd.f32 %v288, %v749
      %v802 = vadd.f32 %v289, %v754
      %v803 = vadd.f32 %v290, %v757
      %v804 = vadd.f32 %v291, %v762
      %v805 = vadd.f32 %v292, %v765
      %v806 = vadd.f32 %v293, %v770
      %v807 = vadd.f32 %v294, %v773
      %808 = vst [vmem:[#allocation2] sm:$0xff] %v776
      %809 = vst [vmem:[#allocation2 + $0x8] sm:$0xff] %v777
      %810 = vst [vmem:[#allocation2 + $0x10] sm:$0xff] %v778
      %811 = vst [vmem:[#allocation2 + $0x18] sm:$0xff] %v779
      %812 = vst [vmem:[#allocation2 + $0x20] sm:$0xff] %v780
      %813 = vst [vmem:[#allocation2 + $0x28] sm:$0xff] %v781
      %814 = vst [vmem:[#allocation2 + $0x30] sm:$0xff] %v782
      %815 = vst [vmem:[#allocation2 + $0x38] sm:$0xff] %v783
      %816 = vst [vmem:[#allocation2 + $0x40] sm:$0xff] %v784
      %817 = vst [vmem:[#allocation2 + $0x48] sm:$0xff] %v785
      %818 = vst [vmem:[#allocation2 + $0x50] sm:$0xff] %v786
      %819 = vst [vmem:[#allocation2 + $0x58] sm:$0xff] %v787
      %820 = vst [vmem:[#allocation2 + $0x60] sm:$0xff] %v788
      %821 = vst [vmem:[#allocation2 + $0x68] sm:$0xff] %v789
      %822 = vst [vmem:[#allocation2 + $0x70] sm:$0xff] %v790
      %823 = vst [vmem:[#allocation2 + $0x78] sm:$0xff] %v791
      %824 = vst [vmem:[#allocation2 + $0x80] sm:$0xff] %v792
      %825 = vst [vmem:[#allocation2 + $0x88] sm:$0xff] %v793
      %826 = vst [vmem:[#allocation2 + $0x90] sm:$0xff] %v794
      %827 = vst [vmem:[#allocation2 + $0x98] sm:$0xff] %v795
      %828 = vst [vmem:[#allocation2 + $0xa0] sm:$0xff] %v796
      %829 = vst [vmem:[#allocation2 + $0xa8] sm:$0xff] %v797
      %830 = vst [vmem:[#allocation2 + $0xb0] sm:$0xff] %v798
      %831 = vst [vmem:[#allocation2 + $0xb8] sm:$0xff] %v799
      %832 = vst [vmem:[#allocation2 + $0xc0] sm:$0xff] %v800
      %833 = vst [vmem:[#allocation2 + $0xc8] sm:$0xff] %v801
      %834 = vst [vmem:[#allocation2 + $0xd0] sm:$0xff] %v802
      %835 = vst [vmem:[#allocation2 + $0xd8] sm:$0xff] %v803
      %836 = vst [vmem:[#allocation2 + $0xe0] sm:$0xff] %v804
      %837 = vst [vmem:[#allocation2 + $0xe8] sm:$0xff] %v805
      %838 = vst [vmem:[#allocation2 + $0xf0] sm:$0xff] %v806
      %839 = vst [vmem:[#allocation2 + $0xf8] sm:$0xff] %v807
      // Predicated region
      $region33: #{resnet50_features_forward.73} parent=27 // pred_check
        %p840 = pneg %p227
      $region34: #{resnet50_features_forward.73} parent=27 // pred_check_branch
        %842 = sbr.rel (%p840) target = $region36
      $region35: #{resnet50_features_forward.73} parent=27 // pred_region
        %v843 = vld [vmem:[#allocation2] sm:$0xff]
        %v844 = vld [vmem:[#allocation2 + $0x8] sm:$0xff]
        %v845 = vld [vmem:[#allocation2 + $0x10] sm:$0xff]
        %v846 = vld [vmem:[#allocation2 + $0x18] sm:$0xff]
        %v847 = vld [vmem:[#allocation2 + $0x20] sm:$0xff]
        %v848 = vld [vmem:[#allocation2 + $0x28] sm:$0xff]
        %v849 = vld [vmem:[#allocation2 + $0x30] sm:$0xff]
        %v850 = vld [vmem:[#allocation2 + $0x38] sm:$0xff]
        %v851 = vld [vmem:[#allocation2 + $0x40] sm:$0xff]
        %v852 = vld [vmem:[#allocation2 + $0x48] sm:$0xff]
        %v853 = vld [vmem:[#allocation2 + $0x50] sm:$0xff]
        %v854 = vld [vmem:[#allocation2 + $0x58] sm:$0xff]
        %v855 = vld [vmem:[#allocation2 + $0x60] sm:$0xff]
        %v856 = vld [vmem:[#allocation2 + $0x68] sm:$0xff]
        %v857 = vld [vmem:[#allocation2 + $0x70] sm:$0xff]
        %v858 = vld [vmem:[#allocation2 + $0x78] sm:$0xff]
        %v859 = vld [vmem:[#allocation2 + $0x80] sm:$0xff]
        %v860 = vld [vmem:[#allocation2 + $0x88] sm:$0xff]
        %v861 = vld [vmem:[#allocation2 + $0x90] sm:$0xff]
        %v862 = vld [vmem:[#allocation2 + $0x98] sm:$0xff]
        %v863 = vld [vmem:[#allocation2 + $0xa0] sm:$0xff]
        %v864 = vld [vmem:[#allocation2 + $0xa8] sm:$0xff]
        %v865 = vld [vmem:[#allocation2 + $0xb0] sm:$0xff]
        %v866 = vld [vmem:[#allocation2 + $0xb8] sm:$0xff]
        %v867 = vld [vmem:[#allocation2 + $0xc0] sm:$0xff]
        %v868 = vld [vmem:[#allocation2 + $0xc8] sm:$0xff]
        %v869 = vld [vmem:[#allocation2 + $0xd0] sm:$0xff]
        %v870 = vld [vmem:[#allocation2 + $0xd8] sm:$0xff]
        %v871 = vld [vmem:[#allocation2 + $0xe0] sm:$0xff]
        %v872 = vld [vmem:[#allocation2 + $0xe8] sm:$0xff]
        %v873 = vld [vmem:[#allocation2 + $0xf0] sm:$0xff]
        %v874 = vld [vmem:[#allocation2 + $0xf8] sm:$0xff]
        %875 = vst [vmem:[%s224] sm:$0xff] %v843
        %876 = vst [vmem:[%s224 + $0x8] sm:$0xff] %v844
        %877 = vst [vmem:[%s224 + $0x10] sm:$0xff] %v845
        %878 = vst [vmem:[%s224 + $0x18] sm:$0xff] %v846
        %879 = vst [vmem:[%s224 + $0x20] sm:$0xff] %v847
        %880 = vst [vmem:[%s224 + $0x28] sm:$0xff] %v848
        %881 = vst [vmem:[%s224 + $0x30] sm:$0xff] %v849
        %882 = vst [vmem:[%s224 + $0x38] sm:$0xff] %v850
        %883 = vst [vmem:[%s224 + $0x40] sm:$0xff] %v851
        %884 = vst [vmem:[%s224 + $0x48] sm:$0xff] %v852
        %885 = vst [vmem:[%s224 + $0x50] sm:$0xff] %v853
        %886 = vst [vmem:[%s224 + $0x58] sm:$0xff] %v854
        %887 = vst [vmem:[%s224 + $0x60] sm:$0xff] %v855
        %888 = vst [vmem:[%s224 + $0x68] sm:$0xff] %v856
        %889 = vst [vmem:[%s224 + $0x70] sm:$0xff] %v857
        %890 = vst [vmem:[%s224 + $0x78] sm:$0xff] %v858
        %891 = vst [vmem:[%s224 + $0x80] sm:$0xff] %v859
        %892 = vst [vmem:[%s224 + $0x88] sm:$0xff] %v860
        %893 = vst [vmem:[%s224 + $0x90] sm:$0xff] %v861
        %894 = vst [vmem:[%s224 + $0x98] sm:$0xff] %v862
        %895 = vst [vmem:[%s224 + $0xa0] sm:$0xff] %v863
        %896 = vst [vmem:[%s224 + $0xa8] sm:$0xff] %v864
        %897 = vst [vmem:[%s224 + $0xb0] sm:$0xff] %v865
        %898 = vst [vmem:[%s224 + $0xb8] sm:$0xff] %v866
        %899 = vst [vmem:[%s224 + $0xc0] sm:$0xff] %v867
        %900 = vst [vmem:[%s224 + $0xc8] sm:$0xff] %v868
        %901 = vst [vmem:[%s224 + $0xd0] sm:$0xff] %v869
        %902 = vst [vmem:[%s224 + $0xd8] sm:$0xff] %v870
        %903 = vst [vmem:[%s224 + $0xe0] sm:$0xff] %v871
        %904 = vst [vmem:[%s224 + $0xe8] sm:$0xff] %v872
        %905 = vst [vmem:[%s224 + $0xf0] sm:$0xff] %v873
        %906 = vst [vmem:[%s224 + $0xf8] sm:$0xff] %v874
      $region36: #{resnet50_features_forward.73} parent=27 // pred_fallthru
        _
      %s907 = smul.u32 32, %s18
      %p908 = scmp.lt.s32.totalorder %s907, 63
      %s909 = scalar_select %p908, %s907, 63
      %p910 = scmp.lt.s32.totalorder %s19, 0
      %s911 = scalar_select %p910, %s19, 0
      %s912 = sadd.s32 %s911, %s909
      %s913 = smul.addr %s912, 8
      %s914 = scalar_lea.vmem %s2, %s913
      // Predicated region
      $region37: #{resnet50_features_forward.73} parent=27 // pred_check
        %p915 = pneg %p108
      $region38: #{resnet50_features_forward.73} parent=27 // pred_check_branch
        %917 = sbr.rel (%p915) target = $region40
      $region39: #{resnet50_features_forward.73} parent=27 // pred_region
        %s918 = smul.u32 32, %s18
      $region40: #{resnet50_features_forward.73} parent=27 // pred_fallthru
        _
    $region28: #{resnet50_features_forward.73} parent=5 // pred_fallthru
      _
    %p919 = scmp.le.s32.totalorder 2, %s8
    // Predicated region
    $region41: #{resnet50_features_forward.73} parent=5 // pred_check
      %p920 = pneg %p919
    $region42: #{resnet50_features_forward.73} parent=5 // pred_check_branch
      %922 = sbr.rel (%p920) target = $region44
    $region43: #{resnet50_features_forward.73} parent=5 // pred_region
      %s923 = ssub.s32 %s8, 2
      // Predicated region
      $region45: #{resnet50_features_forward.73} parent=43 // pred_check
        %p924 = pneg %p114
      $region46: #{resnet50_features_forward.73} parent=43 // pred_check_branch
        %926 = sbr.rel (%p924) target = $region48
      $region47: #{resnet50_features_forward.73} parent=43 // pred_region
        %s927 = smul.u32 32, %s21
        %p928 = scmp.lt.s32.totalorder %s927, 63
        %s929 = scalar_select %p928, %s927, 63
        %p930 = scmp.lt.s32.totalorder %s22, 0
        %s931 = scalar_select %p930, %s22, 0
        %s932 = sadd.s32 %s931, %s929
        %s933 = smul.addr %s932, 8
        %s934 = scalar_lea.vmem %s2, %s933
      $region48: #{resnet50_features_forward.73} parent=43 // pred_fallthru
        _
    $region44: #{resnet50_features_forward.73} parent=5 // pred_fallthru
      _
  $region6: #{resnet50_features_forward.73} parent=0 // loop_footer
    %s12 = sadd.s32 1, %s8
  $region7: #{resnet50_features_forward.73} parent=0 // loop_footer_branch
    %7 = sbr.rel target = $region3
  $region8: #{resnet50_features_forward.73} parent=0 // loop_exit
    _

// kernel: resnet50_features_forward.85
$region0: #{resnet50_features_forward.85}
  #allocation0 [shape = 'u32[]', space=smem, size = 0x4, offset = 0x4, fixed_abs, tag = 'smem constant byte address 0x4 - core index']
  #allocation1 [shape = 'u32[144,128]{1,0:T(1,128)}', space=vmem, size = 0x12000, scoped, tag = 'internal scratch']
  %s0 = inlined_call_operand.vmem [shape: f32[128,256], index: 0, kind: input, shape index: {}]
  %s1 = inlined_call_operand.vmem [shape: f32[8,256], index: 1, kind: output, shape index: {}]
  %s2 = sld [smem:[#allocation0]]
  $region18: #{resnet50_features_forward.85} parent=0
    _
  %s4 = ssub.s32 1, %s2
  %s5 = scalar_select 0, %s4, %s2
  // Predicated region
  $region2: #{resnet50_features_forward.85} parent=0 // pred_check
    _
  $region3: #{resnet50_features_forward.85} parent=0 // pred_check_branch
    %7 = sbr.rel (0) target = $region5
  $region4: #{resnet50_features_forward.85} parent=0 // pred_region
    _
  $region5: #{resnet50_features_forward.85} parent=0 // pred_fallthru
    _
  %p8 = scmp.eq.s32.totalorder 0, 0
  // Predicated region
  $region6: #{resnet50_features_forward.85} parent=0 // pred_check
    %p9 = pneg %p8
  $region7: #{resnet50_features_forward.85} parent=0 // pred_check_branch
    %11 = sbr.rel (%p9) target = $region9
  $region8: #{resnet50_features_forward.85} parent=0 // pred_region
    %12 = vst [vmem:[%s1] sm:$0xff] 0.0
    %13 = vst [vmem:[%s1 + $0x8] sm:$0xff] 0.0
  $region9: #{resnet50_features_forward.85} parent=0 // pred_fallthru
    _
  %v14 = vld [vmem:[%s0] sm:$0xff]
  %v15 = vld [vmem:[%s0 + $0x8] sm:$0xff]
  %v16 = vld [vmem:[%s0 + $0x10] sm:$0xff]
  %v17 = vld [vmem:[%s0 + $0x18] sm:$0xff]
  %v18 = vld [vmem:[%s0 + $0x20] sm:$0xff]
  %v19 = vld [vmem:[%s0 + $0x28] sm:$0xff]
  %v20 = vld [vmem:[%s0 + $0x30] sm:$0xff]
  %v21 = vld [vmem:[%s0 + $0x38] sm:$0xff]
  %v22 = vld [vmem:[%s0 + $0x40] sm:$0xff]
  %v23 = vld [vmem:[%s0 + $0x48] sm:$0xff]
  %v24 = vld [vmem:[%s0 + $0x50] sm:$0xff]
  %v25 = vld [vmem:[%s0 + $0x58] sm:$0xff]
  %v26 = vld [vmem:[%s0 + $0x60] sm:$0xff]
  %v27 = vld [vmem:[%s0 + $0x68] sm:$0xff]
  %v28 = vld [vmem:[%s0 + $0x70] sm:$0xff]
  %v29 = vld [vmem:[%s0 + $0x78] sm:$0xff]
  %v30 = vld [vmem:[%s0 + $0x80] sm:$0xff]
  %v31 = vld [vmem:[%s0 + $0x88] sm:$0xff]
  %v32 = vld [vmem:[%s0 + $0x90] sm:$0xff]
  %v33 = vld [vmem:[%s0 + $0x98] sm:$0xff]
  %v34 = vld [vmem:[%s0 + $0xa0] sm:$0xff]
  %v35 = vld [vmem:[%s0 + $0xa8] sm:$0xff]
  %v36 = vld [vmem:[%s0 + $0xb0] sm:$0xff]
  %v37 = vld [vmem:[%s0 + $0xb8] sm:$0xff]
  %v38 = vld [vmem:[%s0 + $0xc0] sm:$0xff]
  %v39 = vld [vmem:[%s0 + $0xc8] sm:$0xff]
  %v40 = vld [vmem:[%s0 + $0xd0] sm:$0xff]
  %v41 = vld [vmem:[%s0 + $0xd8] sm:$0xff]
  %v42 = vld [vmem:[%s0 + $0xe0] sm:$0xff]
  %v43 = vld [vmem:[%s0 + $0xe8] sm:$0xff]
  %v44 = vld [vmem:[%s0 + $0xf0] sm:$0xff]
  %v45 = vld [vmem:[%s0 + $0xf8] sm:$0xff]
  %v46 = vld [vmem:[%s1] ss:$8 sm:$0x3]
  %v47 = vadd.f32 %v14, %v16
  %v48 = vadd.f32 %v47, %v18
  %v49 = vadd.f32 %v48, %v20
  %v50 = vadd.f32 %v49, %v22
  %v51 = vadd.f32 %v50, %v24
  %v52 = vadd.f32 %v51, %v26
  %v53 = vadd.f32 %v52, %v28
  %v54 = vadd.f32 %v53, %v30
  %v55 = vadd.f32 %v54, %v32
  %v56 = vadd.f32 %v55, %v34
  %v57 = vadd.f32 %v56, %v36
  %v58 = vadd.f32 %v57, %v38
  %v59 = vadd.f32 %v58, %v40
  %v60 = vadd.f32 %v59, %v42
  %v61 = vadd.f32 %v60, %v44
  %v62 = vrot.slane %v61, 4
  %v63 = vadd.f32 %v61, %v62
  %v64 = vrot.slane %v63, 2
  %v65 = vadd.f32 %v63, %v64
  %v66 = vrot.slane %v65, 1
  %v67 = vadd.f32 %v65, %v66
  %v68 = vadd.f32 %v15, %v17
  %v69 = vadd.f32 %v68, %v19
  %v70 = vadd.f32 %v69, %v21
  %v71 = vadd.f32 %v70, %v23
  %v72 = vadd.f32 %v71, %v25
  %v73 = vadd.f32 %v72, %v27
  %v74 = vadd.f32 %v73, %v29
  %v75 = vadd.f32 %v74, %v31
  %v76 = vadd.f32 %v75, %v33
  %v77 = vadd.f32 %v76, %v35
  %v78 = vadd.f32 %v77, %v37
  %v79 = vadd.f32 %v78, %v39
  %v80 = vadd.f32 %v79, %v41
  %v81 = vadd.f32 %v80, %v43
  %v82 = vadd.f32 %v81, %v45
  %v83 = vrot.slane %v82, 4
  %v84 = vadd.f32 %v82, %v83
  %v85 = vrot.slane %v84, 2
  %v86 = vadd.f32 %v84, %v85
  %v87 = vrot.slane %v86, 1
  %v88 = vadd.f32 %v86, %v87
  %v91 = vcombine.low %v67, %v88
  %v93 = vunpack.c.l.s4 1966171168
  %v94 = vunpack.c.0.s8 %v93
  %v95 = vlaneseq
  %v96 = vshrl.u32 %v95, 7
  %v97 = vsub.s32 %v94, %v96
  %v98 = vrot.slane %v91, %v97
  %v100 = vunpack.c.l.s4 1966171168
  %v101 = vunpack.c.0.s8 %v100
  %v102 = vlaneseq
  %v103 = vshrl.u32 %v102, 7
  %v104 = vsub.s32 %v101, %v103
  %v105 = vrot.slane %v98, %v104
  %v107 = vadd.f32 %v46, %v105
  %v108 = vlaneseq
  %vm109 = vcmp.ge.s32.totalorder %v108, 0
  %vm110 = vcmp.lt.s32.totalorder %v108, 256
  %vm111 = vmand %vm109, %vm110
  %112 = vst.msk [vmem:[%s1] ss:$8 sm:$0x3] %vm111, %v107
  %113 = vst.msk [vmem:[%s1] ss:$8 sm:$0x0] %vm111, %v107
  %s114 = scalar_lea.vmem %s1, 1
  %v115 = vld [vmem:[%s114] ss:$8 sm:$0x3]
  %v116 = vmul.f32 %v14, %v14
  %v117 = vmul.f32 %v15, %v15
  %v118 = vmul.f32 %v16, %v16
  %v119 = vmul.f32 %v17, %v17
  %v120 = vmul.f32 %v18, %v18
  %v121 = vmul.f32 %v19, %v19
  %v122 = vmul.f32 %v20, %v20
  %v123 = vmul.f32 %v21, %v21
  %v124 = vmul.f32 %v22, %v22
  %v125 = vmul.f32 %v23, %v23
  %v126 = vmul.f32 %v24, %v24
  %v127 = vmul.f32 %v25, %v25
  %v128 = vmul.f32 %v26, %v26
  %v129 = vmul.f32 %v27, %v27
  %v130 = vmul.f32 %v28, %v28
  %v131 = vmul.f32 %v29, %v29
  %v132 = vmul.f32 %v30, %v30
  %v133 = vmul.f32 %v31, %v31
  %v134 = vmul.f32 %v32, %v32
  %v135 = vmul.f32 %v33, %v33
  %v136 = vmul.f32 %v34, %v34
  %v137 = vmul.f32 %v35, %v35
  %v138 = vmul.f32 %v36, %v36
  %v139 = vmul.f32 %v37, %v37
  %v140 = vmul.f32 %v38, %v38
  %v141 = vmul.f32 %v39, %v39
  %v142 = vmul.f32 %v40, %v40
  %v143 = vmul.f32 %v41, %v41
  %v144 = vmul.f32 %v42, %v42
  %v145 = vmul.f32 %v43, %v43
  %v146 = vmul.f32 %v44, %v44
  %v147 = vmul.f32 %v45, %v45
  %v148 = vadd.f32 %v116, %v118
  %v149 = vadd.f32 %v148, %v120
  %v150 = vadd.f32 %v149, %v122
  %v151 = vadd.f32 %v150, %v124
  %v152 = vadd.f32 %v151, %v126
  %v153 = vadd.f32 %v152, %v128
  %v154 = vadd.f32 %v153, %v130
  %v155 = vadd.f32 %v154, %v132
  %v156 = vadd.f32 %v155, %v134
  %v157 = vadd.f32 %v156, %v136
  %v158 = vadd.f32 %v157, %v138
  %v159 = vadd.f32 %v158, %v140
  %v160 = vadd.f32 %v159, %v142
  %v161 = vadd.f32 %v160, %v144
  %v162 = vadd.f32 %v161, %v146
  %v163 = vrot.slane %v162, 4
  %v164 = vadd.f32 %v162, %v163
  %v165 = vrot.slane %v164, 2
  %v166 = vadd.f32 %v164, %v165
  %v167 = vrot.slane %v166, 1
  %v168 = vadd.f32 %v166, %v167
  %v169 = vadd.f32 %v117, %v119
  %v170 = vadd.f32 %v169, %v121
  %v171 = vadd.f32 %v170, %v123
  %v172 = vadd.f32 %v171, %v125
  %v173 = vadd.f32 %v172, %v127
  %v174 = vadd.f32 %v173, %v129
  %v175 = vadd.f32 %v174, %v131
  %v176 = vadd.f32 %v175, %v133
  %v177 = vadd.f32 %v176, %v135
  %v178 = vadd.f32 %v177, %v137
  %v179 = vadd.f32 %v178, %v139
  %v180 = vadd.f32 %v179, %v141
  %v181 = vadd.f32 %v180, %v143
  %v182 = vadd.f32 %v181, %v145
  %v183 = vadd.f32 %v182, %v147
  %v184 = vrot.slane %v183, 4
  %v185 = vadd.f32 %v183, %v184
  %v186 = vrot.slane %v185, 2
  %v187 = vadd.f32 %v185, %v186
  %v188 = vrot.slane %v187, 1
  %v189 = vadd.f32 %v187, %v188
  %v192 = vcombine.low %v168, %v189
  %v194 = vunpack.c.l.s4 1966171168
  %v195 = vunpack.c.0.s8 %v194
  %v196 = vlaneseq
  %v197 = vshrl.u32 %v196, 7
  %v198 = vsub.s32 %v195, %v197
  %v199 = vrot.slane %v192, %v198
  %v201 = vunpack.c.l.s4 1966171168
  %v202 = vunpack.c.0.s8 %v201
  %v203 = vlaneseq
  %v204 = vshrl.u32 %v203, 7
  %v205 = vsub.s32 %v202, %v204
  %v206 = vrot.slane %v199, %v205
  %v208 = vadd.f32 %v115, %v206
  %209 = vst.msk [vmem:[%s114] ss:$8 sm:$0x3] %vm111, %v208
  %210 = vst.msk [vmem:[%s114] ss:$8 sm:$0x0] %vm111, %v208
  // Predicated region
  $region10: #{resnet50_features_forward.85} parent=0 // pred_check
    _
  $region11: #{resnet50_features_forward.85} parent=0 // pred_check_branch
    %212 = sbr.rel (0) target = $region13
  $region12: #{resnet50_features_forward.85} parent=0 // pred_region
    _
  $region13: #{resnet50_features_forward.85} parent=0 // pred_fallthru
    _
  // Predicated region
  $region14: #{resnet50_features_forward.85} parent=0 // pred_check
    _
  $region15: #{resnet50_features_forward.85} parent=0 // pred_check_branch
    %214 = sbr.rel (0) target = $region17
  $region16: #{resnet50_features_forward.85} parent=0 // pred_region
    _
  $region17: #{resnet50_features_forward.85} parent=0 // pred_fallthru
    _

// kernel: resnet50_features_forward.86
$region0: #{resnet50_features_forward.86}
  #allocation0 [shape = 'u32[]', space=smem, size = 0x4, offset = 0x4, fixed_abs, tag = 'smem constant byte address 0x4 - core index']
  #allocation1 [shape = 'u32[144,128]{1,0:T(1,128)}', space=vmem, size = 0x12000, scoped, tag = 'internal scratch']
  %s0 = inlined_call_operand.vmem [shape: f32[128,256], index: 0, kind: input, shape index: {}]
  %s1 = inlined_call_operand.vmem [shape: f32[8,256], index: 1, kind: input, shape index: {}]
  %s2 = inlined_call_operand.vmem [shape: f32[1,256], index: 2, kind: input, shape index: {}]
  %s3 = inlined_call_operand.vmem [shape: f32[1,256], index: 3, kind: input, shape index: {}]
  %s4 = inlined_call_operand.vmem [shape: f32[128,256], index: 4, kind: output, shape index: {}]
  %s5 = sld [smem:[#allocation0]]
  $region26: #{resnet50_features_forward.86} parent=0
    _
  %s7 = ssub.s32 1, %s5
  %s8 = scalar_select 0, %s7, %s5
  // Predicated region
  $region2: #{resnet50_features_forward.86} parent=0 // pred_check
    _
  $region3: #{resnet50_features_forward.86} parent=0 // pred_check_branch
    %10 = sbr.rel (0) target = $region5
  $region4: #{resnet50_features_forward.86} parent=0 // pred_region
    _
  $region5: #{resnet50_features_forward.86} parent=0 // pred_fallthru
    _
  // Predicated region
  $region6: #{resnet50_features_forward.86} parent=0 // pred_check
    _
  $region7: #{resnet50_features_forward.86} parent=0 // pred_check_branch
    %12 = sbr.rel (0) target = $region9
  $region8: #{resnet50_features_forward.86} parent=0 // pred_region
    _
  $region9: #{resnet50_features_forward.86} parent=0 // pred_fallthru
    _
  // Predicated region
  $region10: #{resnet50_features_forward.86} parent=0 // pred_check
    _
  $region11: #{resnet50_features_forward.86} parent=0 // pred_check_branch
    %14 = sbr.rel (0) target = $region13
  $region12: #{resnet50_features_forward.86} parent=0 // pred_region
    _
  $region13: #{resnet50_features_forward.86} parent=0 // pred_fallthru
    _
  // Predicated region
  $region14: #{resnet50_features_forward.86} parent=0 // pred_check
    _
  $region15: #{resnet50_features_forward.86} parent=0 // pred_check_branch
    %16 = sbr.rel (0) target = $region17
  $region16: #{resnet50_features_forward.86} parent=0 // pred_region
    _
  $region17: #{resnet50_features_forward.86} parent=0 // pred_fallthru
    _
  %v17 = vld [vmem:[%s1] ss:$8 sm:$0x3]
  %v18 = vmul.f32 %v17, 0.0078125
  %s19 = scalar_lea.vmem %s1, 1
  %v20 = vld [vmem:[%s19] ss:$8 sm:$0x3]
  %v21 = vmul.f32 %v20, 0.0078125
  %v22 = vmul.f32 %v18, %v18
  %v23 = vsub.f32 %v21, %v22
  %v24 = vmax.f32 %v23, 0.0
  %v25 = vld [vmem:[%s2] sm:$0x3]
  %v26 = vadd.f32 %v24, 1e-05
  %v27 = vrsqrt.pop %v26
  %v28 = vmul.f32 %v25, %v27
  %v29 = vld [vmem:[%s3] sm:$0x3]
  %v30 = vmul.f32 %v18, %v28
  %v31 = vsub.f32 %v29, %v30
  %v32 = vld [vmem:[%s0] sm:$0xff]
  %v33 = vld [vmem:[%s0 + $0x8] sm:$0xff]
  %v34 = vld [vmem:[%s0 + $0x10] sm:$0xff]
  %v35 = vld [vmem:[%s0 + $0x18] sm:$0xff]
  %v36 = vld [vmem:[%s0 + $0x20] sm:$0xff]
  %v37 = vld [vmem:[%s0 + $0x28] sm:$0xff]
  %v38 = vld [vmem:[%s0 + $0x30] sm:$0xff]
  %v39 = vld [vmem:[%s0 + $0x38] sm:$0xff]
  %v40 = vld [vmem:[%s0 + $0x40] sm:$0xff]
  %v41 = vld [vmem:[%s0 + $0x48] sm:$0xff]
  %v42 = vld [vmem:[%s0 + $0x50] sm:$0xff]
  %v43 = vld [vmem:[%s0 + $0x58] sm:$0xff]
  %v44 = vld [vmem:[%s0 + $0x60] sm:$0xff]
  %v45 = vld [vmem:[%s0 + $0x68] sm:$0xff]
  %v46 = vld [vmem:[%s0 + $0x70] sm:$0xff]
  %v47 = vld [vmem:[%s0 + $0x78] sm:$0xff]
  %v48 = vld [vmem:[%s0 + $0x80] sm:$0xff]
  %v49 = vld [vmem:[%s0 + $0x88] sm:$0xff]
  %v50 = vld [vmem:[%s0 + $0x90] sm:$0xff]
  %v51 = vld [vmem:[%s0 + $0x98] sm:$0xff]
  %v52 = vld [vmem:[%s0 + $0xa0] sm:$0xff]
  %v53 = vld [vmem:[%s0 + $0xa8] sm:$0xff]
  %v54 = vld [vmem:[%s0 + $0xb0] sm:$0xff]
  %v55 = vld [vmem:[%s0 + $0xb8] sm:$0xff]
  %v56 = vld [vmem:[%s0 + $0xc0] sm:$0xff]
  %v57 = vld [vmem:[%s0 + $0xc8] sm:$0xff]
  %v58 = vld [vmem:[%s0 + $0xd0] sm:$0xff]
  %v59 = vld [vmem:[%s0 + $0xd8] sm:$0xff]
  %v60 = vld [vmem:[%s0 + $0xe0] sm:$0xff]
  %v61 = vld [vmem:[%s0 + $0xe8] sm:$0xff]
  %v62 = vld [vmem:[%s0 + $0xf0] sm:$0xff]
  %v63 = vld [vmem:[%s0 + $0xf8] sm:$0xff]
  %v65 = vlaneseq
  %v66 = vshrl.u32 %v65, 7
  %v67 = vsub.s32 0, %v66
  %v68 = vrot.slane %v28, %v67
  %v69 = vlaneseq
  %v70 = vshrl.u32 %v69, 7
  %v71 = vsub.s32 1, %v70
  %v72 = vrot.slane %v28, %v71
  %v75 = vmul.f32 %v32, %v68
  %v76 = vmul.f32 %v33, %v72
  %v77 = vmul.f32 %v34, %v68
  %v78 = vmul.f32 %v35, %v72
  %v79 = vmul.f32 %v36, %v68
  %v80 = vmul.f32 %v37, %v72
  %v81 = vmul.f32 %v38, %v68
  %v82 = vmul.f32 %v39, %v72
  %v83 = vmul.f32 %v40, %v68
  %v84 = vmul.f32 %v41, %v72
  %v85 = vmul.f32 %v42, %v68
  %v86 = vmul.f32 %v43, %v72
  %v87 = vmul.f32 %v44, %v68
  %v88 = vmul.f32 %v45, %v72
  %v89 = vmul.f32 %v46, %v68
  %v90 = vmul.f32 %v47, %v72
  %v91 = vmul.f32 %v48, %v68
  %v92 = vmul.f32 %v49, %v72
  %v93 = vmul.f32 %v50, %v68
  %v94 = vmul.f32 %v51, %v72
  %v95 = vmul.f32 %v52, %v68
  %v96 = vmul.f32 %v53, %v72
  %v97 = vmul.f32 %v54, %v68
  %v98 = vmul.f32 %v55, %v72
  %v99 = vmul.f32 %v56, %v68
  %v100 = vmul.f32 %v57, %v72
  %v101 = vmul.f32 %v58, %v68
  %v102 = vmul.f32 %v59, %v72
  %v103 = vmul.f32 %v60, %v68
  %v104 = vmul.f32 %v61, %v72
  %v105 = vmul.f32 %v62, %v68
  %v106 = vmul.f32 %v63, %v72
  %v108 = vlaneseq
  %v109 = vshrl.u32 %v108, 7
  %v110 = vsub.s32 0, %v109
  %v111 = vrot.slane %v31, %v110
  %v112 = vlaneseq
  %v113 = vshrl.u32 %v112, 7
  %v114 = vsub.s32 1, %v113
  %v115 = vrot.slane %v31, %v114
  %v118 = vadd.f32 %v75, %v111
  %v119 = vadd.f32 %v76, %v115
  %v120 = vadd.f32 %v77, %v111
  %v121 = vadd.f32 %v78, %v115
  %v122 = vadd.f32 %v79, %v111
  %v123 = vadd.f32 %v80, %v115
  %v124 = vadd.f32 %v81, %v111
  %v125 = vadd.f32 %v82, %v115
  %v126 = vadd.f32 %v83, %v111
  %v127 = vadd.f32 %v84, %v115
  %v128 = vadd.f32 %v85, %v111
  %v129 = vadd.f32 %v86, %v115
  %v130 = vadd.f32 %v87, %v111
  %v131 = vadd.f32 %v88, %v115
  %v132 = vadd.f32 %v89, %v111
  %v133 = vadd.f32 %v90, %v115
  %v134 = vadd.f32 %v91, %v111
  %v135 = vadd.f32 %v92, %v115
  %v136 = vadd.f32 %v93, %v111
  %v137 = vadd.f32 %v94, %v115
  %v138 = vadd.f32 %v95, %v111
  %v139 = vadd.f32 %v96, %v115
  %v140 = vadd.f32 %v97, %v111
  %v141 = vadd.f32 %v98, %v115
  %v142 = vadd.f32 %v99, %v111
  %v143 = vadd.f32 %v100, %v115
  %v144 = vadd.f32 %v101, %v111
  %v145 = vadd.f32 %v102, %v115
  %v146 = vadd.f32 %v103, %v111
  %v147 = vadd.f32 %v104, %v115
  %v148 = vadd.f32 %v105, %v111
  %v149 = vadd.f32 %v106, %v115
  %150 = vst [vmem:[%s4] sm:$0xff] %v118
  %151 = vst [vmem:[%s4 + $0x8] sm:$0xff] %v119
  %152 = vst [vmem:[%s4 + $0x10] sm:$0xff] %v120
  %153 = vst [vmem:[%s4 + $0x18] sm:$0xff] %v121
  %154 = vst [vmem:[%s4 + $0x20] sm:$0xff] %v122
  %155 = vst [vmem:[%s4 + $0x28] sm:$0xff] %v123
  %156 = vst [vmem:[%s4 + $0x30] sm:$0xff] %v124
  %157 = vst [vmem:[%s4 + $0x38] sm:$0xff] %v125
  %158 = vst [vmem:[%s4 + $0x40] sm:$0xff] %v126
  %159 = vst [vmem:[%s4 + $0x48] sm:$0xff] %v127
  %160 = vst [vmem:[%s4 + $0x50] sm:$0xff] %v128
  %161 = vst [vmem:[%s4 + $0x58] sm:$0xff] %v129
  %162 = vst [vmem:[%s4 + $0x60] sm:$0xff] %v130
  %163 = vst [vmem:[%s4 + $0x68] sm:$0xff] %v131
  %164 = vst [vmem:[%s4 + $0x70] sm:$0xff] %v132
  %165 = vst [vmem:[%s4 + $0x78] sm:$0xff] %v133
  %166 = vst [vmem:[%s4 + $0x80] sm:$0xff] %v134
  %167 = vst [vmem:[%s4 + $0x88] sm:$0xff] %v135
  %168 = vst [vmem:[%s4 + $0x90] sm:$0xff] %v136
  %169 = vst [vmem:[%s4 + $0x98] sm:$0xff] %v137
  %170 = vst [vmem:[%s4 + $0xa0] sm:$0xff] %v138
  %171 = vst [vmem:[%s4 + $0xa8] sm:$0xff] %v139
  %172 = vst [vmem:[%s4 + $0xb0] sm:$0xff] %v140
  %173 = vst [vmem:[%s4 + $0xb8] sm:$0xff] %v141
  %174 = vst [vmem:[%s4 + $0xc0] sm:$0xff] %v142
  %175 = vst [vmem:[%s4 + $0xc8] sm:$0xff] %v143
  %176 = vst [vmem:[%s4 + $0xd0] sm:$0xff] %v144
  %177 = vst [vmem:[%s4 + $0xd8] sm:$0xff] %v145
  %178 = vst [vmem:[%s4 + $0xe0] sm:$0xff] %v146
  %179 = vst [vmem:[%s4 + $0xe8] sm:$0xff] %v147
  %180 = vst [vmem:[%s4 + $0xf0] sm:$0xff] %v148
  %181 = vst [vmem:[%s4 + $0xf8] sm:$0xff] %v149
  // Predicated region
  $region18: #{resnet50_features_forward.86} parent=0 // pred_check
    _
  $region19: #{resnet50_features_forward.86} parent=0 // pred_check_branch
    %183 = sbr.rel (0) target = $region21
  $region20: #{resnet50_features_forward.86} parent=0 // pred_region
    _
  $region21: #{resnet50_features_forward.86} parent=0 // pred_fallthru
    _
  // Predicated region
  $region22: #{resnet50_features_forward.86} parent=0 // pred_check
    _
  $region23: #{resnet50_features_forward.86} parent=0 // pred_check_branch
    %185 = sbr.rel (0) target = $region25
  $region24: #{resnet50_features_forward.86} parent=0 // pred_region
    _
  $region25: #{resnet50_features_forward.86} parent=0 // pred_fallthru
    _

// kernel: resnet50_features_forward.76
$region0: #{resnet50_features_forward.76}
  #allocation0 [shape = 'u32[]', space=smem, size = 0x4, offset = 0x4, fixed_abs, tag = 'smem constant byte address 0x4 - core index']
  #allocation1 [shape = 'u32[144,128]{1,0:T(1,128)}', space=vmem, size = 0x12000, scoped, tag = 'internal scratch']
  %s0 = inlined_call_operand.vmem [shape: f32[128,128], index: 0, kind: input, shape index: {}]
  %s1 = inlined_call_operand.vmem [shape: f32[128,128], index: 1, kind: input, shape index: {}]
  %s2 = inlined_call_operand.vmem [shape: f32[128,128], index: 2, kind: input, shape index: {}]
  %s3 = inlined_call_operand.vmem [shape: f32[128,128], index: 3, kind: input, shape index: {}]
  %s4 = inlined_call_operand.vmem [shape: f32[128,128], index: 4, kind: input, shape index: {}]
  %s5 = inlined_call_operand.vmem [shape: f32[128,128], index: 5, kind: input, shape index: {}]
  %s6 = inlined_call_operand.vmem [shape: f32[128,128], index: 6, kind: input, shape index: {}]
  %s7 = inlined_call_operand.vmem [shape: f32[128,128], index: 7, kind: input, shape index: {}]
  %s8 = inlined_call_operand.vmem [shape: f32[128,128], index: 8, kind: input, shape index: {}]
  %s9 = inlined_call_operand.vmem [shape: f32[128,128], index: 9, kind: output, shape index: {}]
  %s10 = sld [smem:[#allocation0]]
  $region46: #{resnet50_features_forward.76} parent=0
    _
  %s12 = ssub.s32 1, %s10
  %s13 = scalar_select 0, %s12, %s10
  // Predicated region
  $region2: #{resnet50_features_forward.76} parent=0 // pred_check
    _
  $region3: #{resnet50_features_forward.76} parent=0 // pred_check_branch
    %15 = sbr.rel (0) target = $region5
  $region4: #{resnet50_features_forward.76} parent=0 // pred_region
    _
  $region5: #{resnet50_features_forward.76} parent=0 // pred_fallthru
    _
  // Predicated region
  $region6: #{resnet50_features_forward.76} parent=0 // pred_check
    _
  $region7: #{resnet50_features_forward.76} parent=0 // pred_check_branch
    %17 = sbr.rel (0) target = $region9
  $region8: #{resnet50_features_forward.76} parent=0 // pred_region
    _
  $region9: #{resnet50_features_forward.76} parent=0 // pred_fallthru
    _
  // Predicated region
  $region10: #{resnet50_features_forward.76} parent=0 // pred_check
    _
  $region11: #{resnet50_features_forward.76} parent=0 // pred_check_branch
    %19 = sbr.rel (0) target = $region13
  $region12: #{resnet50_features_forward.76} parent=0 // pred_region
    _
  $region13: #{resnet50_features_forward.76} parent=0 // pred_fallthru
    _
  // Predicated region
  $region14: #{resnet50_features_forward.76} parent=0 // pred_check
    _
  $region15: #{resnet50_features_forward.76} parent=0 // pred_check_branch
    %21 = sbr.rel (0) target = $region17
  $region16: #{resnet50_features_forward.76} parent=0 // pred_region
    _
  $region17: #{resnet50_features_forward.76} parent=0 // pred_fallthru
    _
  // Predicated region
  $region18: #{resnet50_features_forward.76} parent=0 // pred_check
    _
  $region19: #{resnet50_features_forward.76} parent=0 // pred_check_branch
    %23 = sbr.rel (0) target = $region21
  $region20: #{resnet50_features_forward.76} parent=0 // pred_region
    _
  $region21: #{resnet50_features_forward.76} parent=0 // pred_fallthru
    _
  // Predicated region
  $region22: #{resnet50_features_forward.76} parent=0 // pred_check
    _
  $region23: #{resnet50_features_forward.76} parent=0 // pred_check_branch
    %25 = sbr.rel (0) target = $region25
  $region24: #{resnet50_features_forward.76} parent=0 // pred_region
    _
  $region25: #{resnet50_features_forward.76} parent=0 // pred_fallthru
    _
  // Predicated region
  $region26: #{resnet50_features_forward.76} parent=0 // pred_check
    _
  $region27: #{resnet50_features_forward.76} parent=0 // pred_check_branch
    %27 = sbr.rel (0) target = $region29
  $region28: #{resnet50_features_forward.76} parent=0 // pred_region
    _
  $region29: #{resnet50_features_forward.76} parent=0 // pred_fallthru
    _
  // Predicated region
  $region30: #{resnet50_features_forward.76} parent=0 // pred_check
    _
  $region31: #{resnet50_features_forward.76} parent=0 // pred_check_branch
    %29 = sbr.rel (0) target = $region33
  $region32: #{resnet50_features_forward.76} parent=0 // pred_region
    _
  $region33: #{resnet50_features_forward.76} parent=0 // pred_fallthru
    _
  // Predicated region
  $region34: #{resnet50_features_forward.76} parent=0 // pred_check
    _
  $region35: #{resnet50_features_forward.76} parent=0 // pred_check_branch
    %31 = sbr.rel (0) target = $region37
  $region36: #{resnet50_features_forward.76} parent=0 // pred_region
    _
  $region37: #{resnet50_features_forward.76} parent=0 // pred_fallthru
    _
  %v32 = vld [vmem:[%s0] sm:$0xff]
  %v33 = vld [vmem:[%s0 + $0x8] sm:$0xff]
  %v34 = vld [vmem:[%s0 + $0x10] sm:$0xff]
  %v35 = vld [vmem:[%s0 + $0x18] sm:$0xff]
  %v36 = vld [vmem:[%s0 + $0x20] sm:$0xff]
  %v37 = vld [vmem:[%s0 + $0x28] sm:$0xff]
  %v38 = vld [vmem:[%s0 + $0x30] sm:$0xff]
  %v39 = vld [vmem:[%s0 + $0x38] sm:$0xff]
  %v40 = vld [vmem:[%s0 + $0x40] sm:$0xff]
  %v41 = vld [vmem:[%s0 + $0x48] sm:$0xff]
  %v42 = vld [vmem:[%s0 + $0x50] sm:$0xff]
  %v43 = vld [vmem:[%s0 + $0x58] sm:$0xff]
  %v44 = vld [vmem:[%s0 + $0x60] sm:$0xff]
  %v45 = vld [vmem:[%s0 + $0x68] sm:$0xff]
  %v46 = vld [vmem:[%s0 + $0x70] sm:$0xff]
  %v47 = vld [vmem:[%s0 + $0x78] sm:$0xff]
  %v48 = vld [vmem:[%s1] sm:$0xff]
  %v49 = vld [vmem:[%s1 + $0x8] sm:$0xff]
  %v50 = vld [vmem:[%s1 + $0x10] sm:$0xff]
  %v51 = vld [vmem:[%s1 + $0x18] sm:$0xff]
  %v52 = vld [vmem:[%s1 + $0x20] sm:$0xff]
  %v53 = vld [vmem:[%s1 + $0x28] sm:$0xff]
  %v54 = vld [vmem:[%s1 + $0x30] sm:$0xff]
  %v55 = vld [vmem:[%s1 + $0x38] sm:$0xff]
  %v56 = vld [vmem:[%s1 + $0x40] sm:$0xff]
  %v57 = vld [vmem:[%s1 + $0x48] sm:$0xff]
  %v58 = vld [vmem:[%s1 + $0x50] sm:$0xff]
  %v59 = vld [vmem:[%s1 + $0x58] sm:$0xff]
  %v60 = vld [vmem:[%s1 + $0x60] sm:$0xff]
  %v61 = vld [vmem:[%s1 + $0x68] sm:$0xff]
  %v62 = vld [vmem:[%s1 + $0x70] sm:$0xff]
  %v63 = vld [vmem:[%s1 + $0x78] sm:$0xff]
  %v64 = vmax.f32 %v32, %v48
  %v65 = vmax.f32 %v33, %v49
  %v66 = vmax.f32 %v34, %v50
  %v67 = vmax.f32 %v35, %v51
  %v68 = vmax.f32 %v36, %v52
  %v69 = vmax.f32 %v37, %v53
  %v70 = vmax.f32 %v38, %v54
  %v71 = vmax.f32 %v39, %v55
  %v72 = vmax.f32 %v40, %v56
  %v73 = vmax.f32 %v41, %v57
  %v74 = vmax.f32 %v42, %v58
  %v75 = vmax.f32 %v43, %v59
  %v76 = vmax.f32 %v44, %v60
  %v77 = vmax.f32 %v45, %v61
  %v78 = vmax.f32 %v46, %v62
  %v79 = vmax.f32 %v47, %v63
  %v80 = vld [vmem:[%s2] sm:$0xff]
  %v81 = vld [vmem:[%s2 + $0x8] sm:$0xff]
  %v82 = vld [vmem:[%s2 + $0x10] sm:$0xff]
  %v83 = vld [vmem:[%s2 + $0x18] sm:$0xff]
  %v84 = vld [vmem:[%s2 + $0x20] sm:$0xff]
  %v85 = vld [vmem:[%s2 + $0x28] sm:$0xff]
  %v86 = vld [vmem:[%s2 + $0x30] sm:$0xff]
  %v87 = vld [vmem:[%s2 + $0x38] sm:$0xff]
  %v88 = vld [vmem:[%s2 + $0x40] sm:$0xff]
  %v89 = vld [vmem:[%s2 + $0x48] sm:$0xff]
  %v90 = vld [vmem:[%s2 + $0x50] sm:$0xff]
  %v91 = vld [vmem:[%s2 + $0x58] sm:$0xff]
  %v92 = vld [vmem:[%s2 + $0x60] sm:$0xff]
  %v93 = vld [vmem:[%s2 + $0x68] sm:$0xff]
  %v94 = vld [vmem:[%s2 + $0x70] sm:$0xff]
  %v95 = vld [vmem:[%s2 + $0x78] sm:$0xff]
  %v96 = vmax.f32 %v64, %v80
  %v97 = vmax.f32 %v65, %v81
  %v98 = vmax.f32 %v66, %v82
  %v99 = vmax.f32 %v67, %v83
  %v100 = vmax.f32 %v68, %v84
  %v101 = vmax.f32 %v69, %v85
  %v102 = vmax.f32 %v70, %v86
  %v103 = vmax.f32 %v71, %v87
  %v104 = vmax.f32 %v72, %v88
  %v105 = vmax.f32 %v73, %v89
  %v106 = vmax.f32 %v74, %v90
  %v107 = vmax.f32 %v75, %v91
  %v108 = vmax.f32 %v76, %v92
  %v109 = vmax.f32 %v77, %v93
  %v110 = vmax.f32 %v78, %v94
  %v111 = vmax.f32 %v79, %v95
  %v112 = vld [vmem:[%s3] sm:$0xff]
  %v113 = vld [vmem:[%s3 + $0x8] sm:$0xff]
  %v114 = vld [vmem:[%s3 + $0x10] sm:$0xff]
  %v115 = vld [vmem:[%s3 + $0x18] sm:$0xff]
  %v116 = vld [vmem:[%s3 + $0x20] sm:$0xff]
  %v117 = vld [vmem:[%s3 + $0x28] sm:$0xff]
  %v118 = vld [vmem:[%s3 + $0x30] sm:$0xff]
  %v119 = vld [vmem:[%s3 + $0x38] sm:$0xff]
  %v120 = vld [vmem:[%s3 + $0x40] sm:$0xff]
  %v121 = vld [vmem:[%s3 + $0x48] sm:$0xff]
  %v122 = vld [vmem:[%s3 + $0x50] sm:$0xff]
  %v123 = vld [vmem:[%s3 + $0x58] sm:$0xff]
  %v124 = vld [vmem:[%s3 + $0x60] sm:$0xff]
  %v125 = vld [vmem:[%s3 + $0x68] sm:$0xff]
  %v126 = vld [vmem:[%s3 + $0x70] sm:$0xff]
  %v127 = vld [vmem:[%s3 + $0x78] sm:$0xff]
  %v128 = vmax.f32 %v96, %v112
  %v129 = vmax.f32 %v97, %v113
  %v130 = vmax.f32 %v98, %v114
  %v131 = vmax.f32 %v99, %v115
  %v132 = vmax.f32 %v100, %v116
  %v133 = vmax.f32 %v101, %v117
  %v134 = vmax.f32 %v102, %v118
  %v135 = vmax.f32 %v103, %v119
  %v136 = vmax.f32 %v104, %v120
  %v137 = vmax.f32 %v105, %v121
  %v138 = vmax.f32 %v106, %v122
  %v139 = vmax.f32 %v107, %v123
  %v140 = vmax.f32 %v108, %v124
  %v141 = vmax.f32 %v109, %v125
  %v142 = vmax.f32 %v110, %v126
  %v143 = vmax.f32 %v111, %v127
  %v144 = vld [vmem:[%s4] sm:$0xff]
  %v145 = vld [vmem:[%s4 + $0x8] sm:$0xff]
  %v146 = vld [vmem:[%s4 + $0x10] sm:$0xff]
  %v147 = vld [vmem:[%s4 + $0x18] sm:$0xff]
  %v148 = vld [vmem:[%s4 + $0x20] sm:$0xff]
  %v149 = vld [vmem:[%s4 + $0x28] sm:$0xff]
  %v150 = vld [vmem:[%s4 + $0x30] sm:$0xff]
  %v151 = vld [vmem:[%s4 + $0x38] sm:$0xff]
  %v152 = vld [vmem:[%s4 + $0x40] sm:$0xff]
  %v153 = vld [vmem:[%s4 + $0x48] sm:$0xff]
  %v154 = vld [vmem:[%s4 + $0x50] sm:$0xff]
  %v155 = vld [vmem:[%s4 + $0x58] sm:$0xff]
  %v156 = vld [vmem:[%s4 + $0x60] sm:$0xff]
  %v157 = vld [vmem:[%s4 + $0x68] sm:$0xff]
  %v158 = vld [vmem:[%s4 + $0x70] sm:$0xff]
  %v159 = vld [vmem:[%s4 + $0x78] sm:$0xff]
  %v160 = vmax.f32 %v128, %v144
  %v161 = vmax.f32 %v129, %v145
  %v162 = vmax.f32 %v130, %v146
  %v163 = vmax.f32 %v131, %v147
  %v164 = vmax.f32 %v132, %v148
  %v165 = vmax.f32 %v133, %v149
  %v166 = vmax.f32 %v134, %v150
  %v167 = vmax.f32 %v135, %v151
  %v168 = vmax.f32 %v136, %v152
  %v169 = vmax.f32 %v137, %v153
  %v170 = vmax.f32 %v138, %v154
  %v171 = vmax.f32 %v139, %v155
  %v172 = vmax.f32 %v140, %v156
  %v173 = vmax.f32 %v141, %v157
  %v174 = vmax.f32 %v142, %v158
  %v175 = vmax.f32 %v143, %v159
  %v176 = vld [vmem:[%s5] sm:$0xff]
  %v177 = vld [vmem:[%s5 + $0x8] sm:$0xff]
  %v178 = vld [vmem:[%s5 + $0x10] sm:$0xff]
  %v179 = vld [vmem:[%s5 + $0x18] sm:$0xff]
  %v180 = vld [vmem:[%s5 + $0x20] sm:$0xff]
  %v181 = vld [vmem:[%s5 + $0x28] sm:$0xff]
  %v182 = vld [vmem:[%s5 + $0x30] sm:$0xff]
  %v183 = vld [vmem:[%s5 + $0x38] sm:$0xff]
  %v184 = vld [vmem:[%s5 + $0x40] sm:$0xff]
  %v185 = vld [vmem:[%s5 + $0x48] sm:$0xff]
  %v186 = vld [vmem:[%s5 + $0x50] sm:$0xff]
  %v187 = vld [vmem:[%s5 + $0x58] sm:$0xff]
  %v188 = vld [vmem:[%s5 + $0x60] sm:$0xff]
  %v189 = vld [vmem:[%s5 + $0x68] sm:$0xff]
  %v190 = vld [vmem:[%s5 + $0x70] sm:$0xff]
  %v191 = vld [vmem:[%s5 + $0x78] sm:$0xff]
  %v192 = vmax.f32 %v160, %v176
  %v193 = vmax.f32 %v161, %v177
  %v194 = vmax.f32 %v162, %v178
  %v195 = vmax.f32 %v163, %v179
  %v196 = vmax.f32 %v164, %v180
  %v197 = vmax.f32 %v165, %v181
  %v198 = vmax.f32 %v166, %v182
  %v199 = vmax.f32 %v167, %v183
  %v200 = vmax.f32 %v168, %v184
  %v201 = vmax.f32 %v169, %v185
  %v202 = vmax.f32 %v170, %v186
  %v203 = vmax.f32 %v171, %v187
  %v204 = vmax.f32 %v172, %v188
  %v205 = vmax.f32 %v173, %v189
  %v206 = vmax.f32 %v174, %v190
  %v207 = vmax.f32 %v175, %v191
  %v208 = vld [vmem:[%s6] sm:$0xff]
  %v209 = vld [vmem:[%s6 + $0x8] sm:$0xff]
  %v210 = vld [vmem:[%s6 + $0x10] sm:$0xff]
  %v211 = vld [vmem:[%s6 + $0x18] sm:$0xff]
  %v212 = vld [vmem:[%s6 + $0x20] sm:$0xff]
  %v213 = vld [vmem:[%s6 + $0x28] sm:$0xff]
  %v214 = vld [vmem:[%s6 + $0x30] sm:$0xff]
  %v215 = vld [vmem:[%s6 + $0x38] sm:$0xff]
  %v216 = vld [vmem:[%s6 + $0x40] sm:$0xff]
  %v217 = vld [vmem:[%s6 + $0x48] sm:$0xff]
  %v218 = vld [vmem:[%s6 + $0x50] sm:$0xff]
  %v219 = vld [vmem:[%s6 + $0x58] sm:$0xff]
  %v220 = vld [vmem:[%s6 + $0x60] sm:$0xff]
  %v221 = vld [vmem:[%s6 + $0x68] sm:$0xff]
  %v222 = vld [vmem:[%s6 + $0x70] sm:$0xff]
  %v223 = vld [vmem:[%s6 + $0x78] sm:$0xff]
  %v224 = vmax.f32 %v192, %v208
  %v225 = vmax.f32 %v193, %v209
  %v226 = vmax.f32 %v194, %v210
  %v227 = vmax.f32 %v195, %v211
  %v228 = vmax.f32 %v196, %v212
  %v229 = vmax.f32 %v197, %v213
  %v230 = vmax.f32 %v198, %v214
  %v231 = vmax.f32 %v199, %v215
  %v232 = vmax.f32 %v200, %v216
  %v233 = vmax.f32 %v201, %v217
  %v234 = vmax.f32 %v202, %v218
  %v235 = vmax.f32 %v203, %v219
  %v236 = vmax.f32 %v204, %v220
  %v237 = vmax.f32 %v205, %v221
  %v238 = vmax.f32 %v206, %v222
  %v239 = vmax.f32 %v207, %v223
  %v240 = vld [vmem:[%s7] sm:$0xff]
  %v241 = vld [vmem:[%s7 + $0x8] sm:$0xff]
  %v242 = vld [vmem:[%s7 + $0x10] sm:$0xff]
  %v243 = vld [vmem:[%s7 + $0x18] sm:$0xff]
  %v244 = vld [vmem:[%s7 + $0x20] sm:$0xff]
  %v245 = vld [vmem:[%s7 + $0x28] sm:$0xff]
  %v246 = vld [vmem:[%s7 + $0x30] sm:$0xff]
  %v247 = vld [vmem:[%s7 + $0x38] sm:$0xff]
  %v248 = vld [vmem:[%s7 + $0x40] sm:$0xff]
  %v249 = vld [vmem:[%s7 + $0x48] sm:$0xff]
  %v250 = vld [vmem:[%s7 + $0x50] sm:$0xff]
  %v251 = vld [vmem:[%s7 + $0x58] sm:$0xff]
  %v252 = vld [vmem:[%s7 + $0x60] sm:$0xff]
  %v253 = vld [vmem:[%s7 + $0x68] sm:$0xff]
  %v254 = vld [vmem:[%s7 + $0x70] sm:$0xff]
  %v255 = vld [vmem:[%s7 + $0x78] sm:$0xff]
  %v256 = vmax.f32 %v224, %v240
  %v257 = vmax.f32 %v225, %v241
  %v258 = vmax.f32 %v226, %v242
  %v259 = vmax.f32 %v227, %v243
  %v260 = vmax.f32 %v228, %v244
  %v261 = vmax.f32 %v229, %v245
  %v262 = vmax.f32 %v230, %v246
  %v263 = vmax.f32 %v231, %v247
  %v264 = vmax.f32 %v232, %v248
  %v265 = vmax.f32 %v233, %v249
  %v266 = vmax.f32 %v234, %v250
  %v267 = vmax.f32 %v235, %v251
  %v268 = vmax.f32 %v236, %v252
  %v269 = vmax.f32 %v237, %v253
  %v270 = vmax.f32 %v238, %v254
  %v271 = vmax.f32 %v239, %v255
  %v272 = vld [vmem:[%s8] sm:$0xff]
  %v273 = vld [vmem:[%s8 + $0x8] sm:$0xff]
  %v274 = vld [vmem:[%s8 + $0x10] sm:$0xff]
  %v275 = vld [vmem:[%s8 + $0x18] sm:$0xff]
  %v276 = vld [vmem:[%s8 + $0x20] sm:$0xff]
  %v277 = vld [vmem:[%s8 + $0x28] sm:$0xff]
  %v278 = vld [vmem:[%s8 + $0x30] sm:$0xff]
  %v279 = vld [vmem:[%s8 + $0x38] sm:$0xff]
  %v280 = vld [vmem:[%s8 + $0x40] sm:$0xff]
  %v281 = vld [vmem:[%s8 + $0x48] sm:$0xff]
  %v282 = vld [vmem:[%s8 + $0x50] sm:$0xff]
  %v283 = vld [vmem:[%s8 + $0x58] sm:$0xff]
  %v284 = vld [vmem:[%s8 + $0x60] sm:$0xff]
  %v285 = vld [vmem:[%s8 + $0x68] sm:$0xff]
  %v286 = vld [vmem:[%s8 + $0x70] sm:$0xff]
  %v287 = vld [vmem:[%s8 + $0x78] sm:$0xff]
  %v288 = vmax.f32 %v256, %v272
  %v289 = vmax.f32 %v257, %v273
  %v290 = vmax.f32 %v258, %v274
  %v291 = vmax.f32 %v259, %v275
  %v292 = vmax.f32 %v260, %v276
  %v293 = vmax.f32 %v261, %v277
  %v294 = vmax.f32 %v262, %v278
  %v295 = vmax.f32 %v263, %v279
  %v296 = vmax.f32 %v264, %v280
  %v297 = vmax.f32 %v265, %v281
  %v298 = vmax.f32 %v266, %v282
  %v299 = vmax.f32 %v267, %v283
  %v300 = vmax.f32 %v268, %v284
  %v301 = vmax.f32 %v269, %v285
  %v302 = vmax.f32 %v270, %v286
  %v303 = vmax.f32 %v271, %v287
  %304 = vst [vmem:[%s9] sm:$0xff] %v288
  %305 = vst [vmem:[%s9 + $0x8] sm:$0xff] %v289
  %306 = vst [vmem:[%s9 + $0x10] sm:$0xff] %v290
  %307 = vst [vmem:[%s9 + $0x18] sm:$0xff] %v291
  %308 = vst [vmem:[%s9 + $0x20] sm:$0xff] %v292
  %309 = vst [vmem:[%s9 + $0x28] sm:$0xff] %v293
  %310 = vst [vmem:[%s9 + $0x30] sm:$0xff] %v294
  %311 = vst [vmem:[%s9 + $0x38] sm:$0xff] %v295
  %312 = vst [vmem:[%s9 + $0x40] sm:$0xff] %v296
  %313 = vst [vmem:[%s9 + $0x48] sm:$0xff] %v297
  %314 = vst [vmem:[%s9 + $0x50] sm:$0xff] %v298
  %315 = vst [vmem:[%s9 + $0x58] sm:$0xff] %v299
  %316 = vst [vmem:[%s9 + $0x60] sm:$0xff] %v300
  %317 = vst [vmem:[%s9 + $0x68] sm:$0xff] %v301
  %318 = vst [vmem:[%s9 + $0x70] sm:$0xff] %v302
  %319 = vst [vmem:[%s9 + $0x78] sm:$0xff] %v303
  // Predicated region
  $region38: #{resnet50_features_forward.76} parent=0 // pred_check
    _
  $region39: #{resnet50_features_forward.76} parent=0 // pred_check_branch
    %321 = sbr.rel (0) target = $region41
  $region40: #{resnet50_features_forward.76} parent=0 // pred_region
    _
  $region41: #{resnet50_features_forward.76} parent=0 // pred_fallthru
    _
  // Predicated region
  $region42: #{resnet50_features_forward.76} parent=0 // pred_check
    _
  $region43: #{resnet50_features_forward.76} parent=0 // pred_check_branch
    %323 = sbr.rel (0) target = $region45
  $region44: #{resnet50_features_forward.76} parent=0 // pred_region
    _
  $region45: #{resnet50_features_forward.76} parent=0 // pred_fallthru
    _

// kernel: resnet50_features_forward.84
$region0: #{resnet50_features_forward.84}
  #allocation0 [shape = 'u32[]', space=smem, size = 0x4, offset = 0x4, fixed_abs, tag = 'smem constant byte address 0x4 - core index']
  #allocation1 [shape = 'u32[144,128]{1,0:T(1,128)}', space=vmem, size = 0x12000, scoped, tag = 'internal scratch']
  #allocation2 [shape = 'f32[128,256]{1,0:T(8,128)}', space=vmem, size = 0x20000, scoped, tag = 'scratch operand']
  %s0 = inlined_call_operand.vmem [shape: bf16[128,128], index: 0, kind: input, shape index: {}]
  %s1 = inlined_call_operand.vmem [shape: bf16[128,256], index: 1, kind: input, shape index: {}]
  %s2 = inlined_call_operand.vmem [shape: f32[128,256], index: 2, kind: output, shape index: {}]
  %s3 = sld [smem:[#allocation0]]
  $region26: #{resnet50_features_forward.84} parent=0
    _
  %s5 = ssub.s32 1, %s3
  %s6 = scalar_select 0, %s5, %s3
  // Predicated region
  $region2: #{resnet50_features_forward.84} parent=0 // pred_check
    _
  $region3: #{resnet50_features_forward.84} parent=0 // pred_check_branch
    %8 = sbr.rel (0) target = $region5
  $region4: #{resnet50_features_forward.84} parent=0 // pred_region
    _
  $region5: #{resnet50_features_forward.84} parent=0 // pred_fallthru
    _
  // Predicated region
  $region6: #{resnet50_features_forward.84} parent=0 // pred_check
    _
  $region7: #{resnet50_features_forward.84} parent=0 // pred_check_branch
    %10 = sbr.rel (0) target = $region9
  $region8: #{resnet50_features_forward.84} parent=0 // pred_region
    _
  $region9: #{resnet50_features_forward.84} parent=0 // pred_fallthru
    _
  %p12 = scmp.eq.s32.totalorder 0, 0
  // Predicated region
  $region10: #{resnet50_features_forward.84} parent=0 // pred_check
    %p13 = pneg %p12
  $region11: #{resnet50_features_forward.84} parent=0 // pred_check_branch
    %15 = sbr.rel (%p13) target = $region13
  $region12: #{resnet50_features_forward.84} parent=0 // pred_region
    %16 = vst [vmem:[#allocation2] sm:$0xff] 0.0
    %17 = vst [vmem:[#allocation2 + $0x8] sm:$0xff] 0.0
    %18 = vst [vmem:[#allocation2 + $0x10] sm:$0xff] 0.0
    %19 = vst [vmem:[#allocation2 + $0x18] sm:$0xff] 0.0
    %20 = vst [vmem:[#allocation2 + $0x20] sm:$0xff] 0.0
    %21 = vst [vmem:[#allocation2 + $0x28] sm:$0xff] 0.0
    %22 = vst [vmem:[#allocation2 + $0x30] sm:$0xff] 0.0
    %23 = vst [vmem:[#allocation2 + $0x38] sm:$0xff] 0.0
    %24 = vst [vmem:[#allocation2 + $0x40] sm:$0xff] 0.0
    %25 = vst [vmem:[#allocation2 + $0x48] sm:$0xff] 0.0
    %26 = vst [vmem:[#allocation2 + $0x50] sm:$0xff] 0.0
    %27 = vst [vmem:[#allocation2 + $0x58] sm:$0xff] 0.0
    %28 = vst [vmem:[#allocation2 + $0x60] sm:$0xff] 0.0
    %29 = vst [vmem:[#allocation2 + $0x68] sm:$0xff] 0.0
    %30 = vst [vmem:[#allocation2 + $0x70] sm:$0xff] 0.0
    %31 = vst [vmem:[#allocation2 + $0x78] sm:$0xff] 0.0
    %32 = vst [vmem:[#allocation2 + $0x80] sm:$0xff] 0.0
    %33 = vst [vmem:[#allocation2 + $0x88] sm:$0xff] 0.0
    %34 = vst [vmem:[#allocation2 + $0x90] sm:$0xff] 0.0
    %35 = vst [vmem:[#allocation2 + $0x98] sm:$0xff] 0.0
    %36 = vst [vmem:[#allocation2 + $0xa0] sm:$0xff] 0.0
    %37 = vst [vmem:[#allocation2 + $0xa8] sm:$0xff] 0.0
    %38 = vst [vmem:[#allocation2 + $0xb0] sm:$0xff] 0.0
    %39 = vst [vmem:[#allocation2 + $0xb8] sm:$0xff] 0.0
    %40 = vst [vmem:[#allocation2 + $0xc0] sm:$0xff] 0.0
    %41 = vst [vmem:[#allocation2 + $0xc8] sm:$0xff] 0.0
    %42 = vst [vmem:[#allocation2 + $0xd0] sm:$0xff] 0.0
    %43 = vst [vmem:[#allocation2 + $0xd8] sm:$0xff] 0.0
    %44 = vst [vmem:[#allocation2 + $0xe0] sm:$0xff] 0.0
    %45 = vst [vmem:[#allocation2 + $0xe8] sm:$0xff] 0.0
    %46 = vst [vmem:[#allocation2 + $0xf0] sm:$0xff] 0.0
    %47 = vst [vmem:[#allocation2 + $0xf8] sm:$0xff] 0.0
  $region13: #{resnet50_features_forward.84} parent=0 // pred_fallthru
    _
  %v48 = vld [vmem:[#allocation2] sm:$0xff]
  %v49 = vld [vmem:[#allocation2 + $0x8] sm:$0xff]
  %v50 = vld [vmem:[#allocation2 + $0x10] sm:$0xff]
  %v51 = vld [vmem:[#allocation2 + $0x18] sm:$0xff]
  %v52 = vld [vmem:[#allocation2 + $0x20] sm:$0xff]
  %v53 = vld [vmem:[#allocation2 + $0x28] sm:$0xff]
  %v54 = vld [vmem:[#allocation2 + $0x30] sm:$0xff]
  %v55 = vld [vmem:[#allocation2 + $0x38] sm:$0xff]
  %v56 = vld [vmem:[#allocation2 + $0x40] sm:$0xff]
  %v57 = vld [vmem:[#allocation2 + $0x48] sm:$0xff]
  %v58 = vld [vmem:[#allocation2 + $0x50] sm:$0xff]
  %v59 = vld [vmem:[#allocation2 + $0x58] sm:$0xff]
  %v60 = vld [vmem:[#allocation2 + $0x60] sm:$0xff]
  %v61 = vld [vmem:[#allocation2 + $0x68] sm:$0xff]
  %v62 = vld [vmem:[#allocation2 + $0x70] sm:$0xff]
  %v63 = vld [vmem:[#allocation2 + $0x78] sm:$0xff]
  %v64 = vld [vmem:[#allocation2 + $0x80] sm:$0xff]
  %v65 = vld [vmem:[#allocation2 + $0x88] sm:$0xff]
  %v66 = vld [vmem:[#allocation2 + $0x90] sm:$0xff]
  %v67 = vld [vmem:[#allocation2 + $0x98] sm:$0xff]
  %v68 = vld [vmem:[#allocation2 + $0xa0] sm:$0xff]
  %v69 = vld [vmem:[#allocation2 + $0xa8] sm:$0xff]
  %v70 = vld [vmem:[#allocation2 + $0xb0] sm:$0xff]
  %v71 = vld [vmem:[#allocation2 + $0xb8] sm:$0xff]
  %v72 = vld [vmem:[#allocation2 + $0xc0] sm:$0xff]
  %v73 = vld [vmem:[#allocation2 + $0xc8] sm:$0xff]
  %v74 = vld [vmem:[#allocation2 + $0xd0] sm:$0xff]
  %v75 = vld [vmem:[#allocation2 + $0xd8] sm:$0xff]
  %v76 = vld [vmem:[#allocation2 + $0xe0] sm:$0xff]
  %v77 = vld [vmem:[#allocation2 + $0xe8] sm:$0xff]
  %v78 = vld [vmem:[#allocation2 + $0xf0] sm:$0xff]
  %v79 = vld [vmem:[#allocation2 + $0xf8] sm:$0xff]
  %v80 = vld [vmem:[%s0] sm:$0xf]
  %v81 = vld [vmem:[%s0 + $0x4] sm:$0xf]
  %v82 = vld [vmem:[%s0 + $0x8] sm:$0xf]
  %v83 = vld [vmem:[%s0 + $0xc] sm:$0xf]
  %v84 = vld [vmem:[%s0 + $0x10] sm:$0xf]
  %v85 = vld [vmem:[%s0 + $0x14] sm:$0xf]
  %v86 = vld [vmem:[%s0 + $0x18] sm:$0xf]
  %v87 = vld [vmem:[%s0 + $0x1c] sm:$0xf]
  %v88 = vld [vmem:[%s0 + $0x20] sm:$0xf]
  %v89 = vld [vmem:[%s0 + $0x24] sm:$0xf]
  %v90 = vld [vmem:[%s0 + $0x28] sm:$0xf]
  %v91 = vld [vmem:[%s0 + $0x2c] sm:$0xf]
  %v92 = vld [vmem:[%s0 + $0x30] sm:$0xf]
  %v93 = vld [vmem:[%s0 + $0x34] sm:$0xf]
  %v94 = vld [vmem:[%s0 + $0x38] sm:$0xf]
  %v95 = vld [vmem:[%s0 + $0x3c] sm:$0xf]
  %v96 = vld [vmem:[%s1] sm:$0xff]
  %v97 = vld [vmem:[%s1 + $0x8] sm:$0xff]
  %v98 = vld [vmem:[%s1 + $0x10] sm:$0xff]
  %v99 = vld [vmem:[%s1 + $0x18] sm:$0xff]
  %v100 = vld [vmem:[%s1 + $0x20] sm:$0xff]
  %v101 = vld [vmem:[%s1 + $0x28] sm:$0xff]
  %v102 = vld [vmem:[%s1 + $0x30] sm:$0xff]
  %v103 = vld [vmem:[%s1 + $0x38] sm:$0xff]
  %v104 = vld [vmem:[%s1 + $0x40] sm:$0xff]
  %v105 = vld [vmem:[%s1 + $0x48] sm:$0xff]
  %v106 = vld [vmem:[%s1 + $0x50] sm:$0xff]
  %v107 = vld [vmem:[%s1 + $0x58] sm:$0xff]
  %v108 = vld [vmem:[%s1 + $0x60] sm:$0xff]
  %v109 = vld [vmem:[%s1 + $0x68] sm:$0xff]
  %v110 = vld [vmem:[%s1 + $0x70] sm:$0xff]
  %v111 = vld [vmem:[%s1 + $0x78] sm:$0xff]
  %v128 = vunpack.c.l.b16 %v80
  %v129 = vunpack.c.l.b16 %v81
  %v130 = vunpack.c.l.b16 %v82
  %v131 = vunpack.c.l.b16 %v83
  %v132 = vunpack.c.l.b16 %v84
  %v133 = vunpack.c.l.b16 %v85
  %v134 = vunpack.c.l.b16 %v86
  %v135 = vunpack.c.l.b16 %v87
  %v136 = vunpack.c.l.b16 %v88
  %v137 = vunpack.c.l.b16 %v89
  %v138 = vunpack.c.l.b16 %v90
  %v139 = vunpack.c.l.b16 %v91
  %v140 = vunpack.c.l.b16 %v92
  %v141 = vunpack.c.l.b16 %v93
  %v142 = vunpack.c.l.b16 %v94
  %v143 = vunpack.c.l.b16 %v95
  %v144 = vpack.c.b16 %v129, %v128
  %v145 = vpack.c.b16 %v131, %v130
  %v146 = vpack.c.b16 %v133, %v132
  %v147 = vpack.c.b16 %v135, %v134
  %v148 = vpack.c.b16 %v137, %v136
  %v149 = vpack.c.b16 %v139, %v138
  %v150 = vpack.c.b16 %v141, %v140
  %v151 = vpack.c.b16 %v143, %v142
  %v176 = vunpack.c.l.b16 %v96
  %v177 = vunpack.c.h.b16 %v96
  %v178 = vunpack.c.l.b16 %v97
  %v179 = vunpack.c.h.b16 %v97
  %v180 = vunpack.c.l.b16 %v98
  %v181 = vunpack.c.h.b16 %v98
  %v182 = vunpack.c.l.b16 %v99
  %v183 = vunpack.c.h.b16 %v99
  %v184 = vunpack.c.l.b16 %v100
  %v185 = vunpack.c.h.b16 %v100
  %v186 = vunpack.c.l.b16 %v101
  %v187 = vunpack.c.h.b16 %v101
  %v188 = vunpack.c.l.b16 %v102
  %v189 = vunpack.c.h.b16 %v102
  %v190 = vunpack.c.l.b16 %v103
  %v191 = vunpack.c.h.b16 %v103
  %v192 = vunpack.c.l.b16 %v104
  %v193 = vunpack.c.h.b16 %v104
  %v194 = vunpack.c.l.b16 %v105
  %v195 = vunpack.c.h.b16 %v105
  %v196 = vunpack.c.l.b16 %v106
  %v197 = vunpack.c.h.b16 %v106
  %v198 = vunpack.c.l.b16 %v107
  %v199 = vunpack.c.h.b16 %v107
  %v200 = vunpack.c.l.b16 %v108
  %v201 = vunpack.c.h.b16 %v108
  %v202 = vunpack.c.l.b16 %v109
  %v203 = vunpack.c.h.b16 %v109
  %v204 = vunpack.c.l.b16 %v110
  %v205 = vunpack.c.h.b16 %v110
  %v206 = vunpack.c.l.b16 %v111
  %v207 = vunpack.c.h.b16 %v111
  %v208 = vpack.c.b16 %v178, %v176
  %v209 = vpack.c.b16 %v179, %v177
  %v210 = vpack.c.b16 %v182, %v180
  %v211 = vpack.c.b16 %v183, %v181
  %v212 = vpack.c.b16 %v186, %v184
  %v213 = vpack.c.b16 %v187, %v185
  %v214 = vpack.c.b16 %v190, %v188
  %v215 = vpack.c.b16 %v191, %v189
  %v216 = vpack.c.b16 %v194, %v192
  %v217 = vpack.c.b16 %v195, %v193
  %v218 = vpack.c.b16 %v198, %v196
  %v219 = vpack.c.b16 %v199, %v197
  %v220 = vpack.c.b16 %v202, %v200
  %v221 = vpack.c.b16 %v203, %v201
  %v222 = vpack.c.b16 %v206, %v204
  %v223 = vpack.c.b16 %v207, %v205
  %240 = vmatprep.subr.bf16.mxu0 %v223
  %241 = vmatpush1.bf16.msra.mxu0 %v222
  %242 = vmatprep.subr.bf16.mxu0 %v221
  %243 = vmatpush1.bf16.msra.mxu0 %v220
  %244 = vmatprep.subr.bf16.mxu0 %v219
  %245 = vmatpush1.bf16.msra.mxu0 %v218
  %246 = vmatprep.subr.bf16.mxu0 %v217
  %247 = vmatpush1.bf16.msra.mxu0 %v216
  %248 = vmatprep.subr.bf16.mxu0 %v215
  %249 = vmatpush1.bf16.msra.mxu0 %v214
  %250 = vmatprep.subr.bf16.mxu0 %v213
  %251 = vmatpush1.bf16.msra.mxu0 %v212
  %252 = vmatprep.subr.bf16.mxu0 %v211
  %253 = vmatpush1.bf16.msra.mxu0 %v210
  %254 = vmatprep.subr.bf16.mxu0 %v209
  %255 = vmatpush1.bf16.msra.mxu0 %v208
  %256 = vmatprep.subr.bf16.mxu0 0
  %257 = vmatpush2.bf16.msra.mxu0 0
  %258 = vmatprep.subr.bf16.mxu0 0
  %259 = vmatpush2.bf16.msra.mxu0 0
  %260 = vmatprep.subr.bf16.mxu0 0
  %261 = vmatpush2.bf16.msra.mxu0 0
  %262 = vmatprep.subr.bf16.mxu0 0
  %263 = vmatpush2.bf16.msra.mxu0 0
  %264 = vmatprep.subr.bf16.mxu0 0
  %265 = vmatpush2.bf16.msra.mxu0 0
  %266 = vmatprep.subr.bf16.mxu0 0
  %267 = vmatpush2.bf16.msra.mxu0 0
  %268 = vmatprep.subr.bf16.mxu0 0
  %269 = vmatpush2.bf16.msra.mxu0 0
  %270 = vmatprep.subr.bf16.mxu0 0
  %271 = vmatpush2.bf16.msra.mxu0 0
  %272 = vmatprep.mubr.bf16.mxu0 0
  %273 = vmatmul.mubr.bf16.gmra.mxu0 %v144
  %v274 = vpop.f32.mrf.mxu0
  %v275 = vadd.f32 0.0, %v274
  %v276 = vpop.f32.mrf.mxu0
  %v277 = vadd.f32 0.0, %v276
  %v278 = vpop.f32.mrf.mxu0
  %v279 = vadd.f32 0.0, %v278
  %v280 = vpop.f32.mrf.mxu0
  %v281 = vadd.f32 0.0, %v280
  %282 = vmatprep.mubr.bf16.mxu0 0
  %283 = vmatmul.mubr.bf16.gmra.mxu0 %v145
  %v284 = vpop.f32.mrf.mxu0
  %v285 = vadd.f32 0.0, %v284
  %v286 = vpop.f32.mrf.mxu0
  %v287 = vadd.f32 0.0, %v286
  %v288 = vpop.f32.mrf.mxu0
  %v289 = vadd.f32 0.0, %v288
  %v290 = vpop.f32.mrf.mxu0
  %v291 = vadd.f32 0.0, %v290
  %292 = vmatprep.mubr.bf16.mxu0 0
  %293 = vmatmul.mubr.bf16.gmra.mxu0 %v146
  %v294 = vpop.f32.mrf.mxu0
  %v295 = vadd.f32 0.0, %v294
  %v296 = vpop.f32.mrf.mxu0
  %v297 = vadd.f32 0.0, %v296
  %v298 = vpop.f32.mrf.mxu0
  %v299 = vadd.f32 0.0, %v298
  %v300 = vpop.f32.mrf.mxu0
  %v301 = vadd.f32 0.0, %v300
  %302 = vmatprep.mubr.bf16.mxu0 0
  %303 = vmatmul.mubr.bf16.gmra.mxu0 %v147
  %v304 = vpop.f32.mrf.mxu0
  %v305 = vadd.f32 0.0, %v304
  %v306 = vpop.f32.mrf.mxu0
  %v307 = vadd.f32 0.0, %v306
  %v308 = vpop.f32.mrf.mxu0
  %v309 = vadd.f32 0.0, %v308
  %v310 = vpop.f32.mrf.mxu0
  %v311 = vadd.f32 0.0, %v310
  %312 = vmatprep.mubr.bf16.mxu0 0
  %313 = vmatmul.mubr.bf16.gmra.mxu0 %v148
  %v314 = vpop.f32.mrf.mxu0
  %v315 = vadd.f32 0.0, %v314
  %v316 = vpop.f32.mrf.mxu0
  %v317 = vadd.f32 0.0, %v316
  %v318 = vpop.f32.mrf.mxu0
  %v319 = vadd.f32 0.0, %v318
  %v320 = vpop.f32.mrf.mxu0
  %v321 = vadd.f32 0.0, %v320
  %322 = vmatprep.mubr.bf16.mxu0 0
  %323 = vmatmul.mubr.bf16.gmra.mxu0 %v149
  %v324 = vpop.f32.mrf.mxu0
  %v325 = vadd.f32 0.0, %v324
  %v326 = vpop.f32.mrf.mxu0
  %v327 = vadd.f32 0.0, %v326
  %v328 = vpop.f32.mrf.mxu0
  %v329 = vadd.f32 0.0, %v328
  %v330 = vpop.f32.mrf.mxu0
  %v331 = vadd.f32 0.0, %v330
  %332 = vmatprep.mubr.bf16.mxu0 0
  %333 = vmatmul.mubr.bf16.gmra.mxu0 %v150
  %v334 = vpop.f32.mrf.mxu0
  %v335 = vadd.f32 0.0, %v334
  %v336 = vpop.f32.mrf.mxu0
  %v337 = vadd.f32 0.0, %v336
  %v338 = vpop.f32.mrf.mxu0
  %v339 = vadd.f32 0.0, %v338
  %v340 = vpop.f32.mrf.mxu0
  %v341 = vadd.f32 0.0, %v340
  %342 = vmatprep.mubr.bf16.mxu0 0
  %343 = vmatmul.mubr.bf16.gmra.mxu0 %v151
  %v344 = vpop.f32.mrf.mxu0
  %v345 = vadd.f32 0.0, %v344
  %v346 = vpop.f32.mrf.mxu0
  %v347 = vadd.f32 0.0, %v346
  %v348 = vpop.f32.mrf.mxu0
  %v349 = vadd.f32 0.0, %v348
  %v350 = vpop.f32.mrf.mxu0
  %v351 = vadd.f32 0.0, %v350
  %352 = vdwg.mxu0
  %v353 = vadd.f32 %v48, %v275
  %v354 = vadd.f32 %v49, %v277
  %v355 = vadd.f32 %v50, %v279
  %v356 = vadd.f32 %v51, %v281
  %v357 = vadd.f32 %v52, %v285
  %v358 = vadd.f32 %v53, %v287
  %v359 = vadd.f32 %v54, %v289
  %v360 = vadd.f32 %v55, %v291
  %v361 = vadd.f32 %v56, %v295
  %v362 = vadd.f32 %v57, %v297
  %v363 = vadd.f32 %v58, %v299
  %v364 = vadd.f32 %v59, %v301
  %v365 = vadd.f32 %v60, %v305
  %v366 = vadd.f32 %v61, %v307
  %v367 = vadd.f32 %v62, %v309
  %v368 = vadd.f32 %v63, %v311
  %v369 = vadd.f32 %v64, %v315
  %v370 = vadd.f32 %v65, %v317
  %v371 = vadd.f32 %v66, %v319
  %v372 = vadd.f32 %v67, %v321
  %v373 = vadd.f32 %v68, %v325
  %v374 = vadd.f32 %v69, %v327
  %v375 = vadd.f32 %v70, %v329
  %v376 = vadd.f32 %v71, %v331
  %v377 = vadd.f32 %v72, %v335
  %v378 = vadd.f32 %v73, %v337
  %v379 = vadd.f32 %v74, %v339
  %v380 = vadd.f32 %v75, %v341
  %v381 = vadd.f32 %v76, %v345
  %v382 = vadd.f32 %v77, %v347
  %v383 = vadd.f32 %v78, %v349
  %v384 = vadd.f32 %v79, %v351
  %385 = vst [vmem:[#allocation2] sm:$0xff] %v353
  %386 = vst [vmem:[#allocation2 + $0x8] sm:$0xff] %v354
  %387 = vst [vmem:[#allocation2 + $0x10] sm:$0xff] %v355
  %388 = vst [vmem:[#allocation2 + $0x18] sm:$0xff] %v356
  %389 = vst [vmem:[#allocation2 + $0x20] sm:$0xff] %v357
  %390 = vst [vmem:[#allocation2 + $0x28] sm:$0xff] %v358
  %391 = vst [vmem:[#allocation2 + $0x30] sm:$0xff] %v359
  %392 = vst [vmem:[#allocation2 + $0x38] sm:$0xff] %v360
  %393 = vst [vmem:[#allocation2 + $0x40] sm:$0xff] %v361
  %394 = vst [vmem:[#allocation2 + $0x48] sm:$0xff] %v362
  %395 = vst [vmem:[#allocation2 + $0x50] sm:$0xff] %v363
  %396 = vst [vmem:[#allocation2 + $0x58] sm:$0xff] %v364
  %397 = vst [vmem:[#allocation2 + $0x60] sm:$0xff] %v365
  %398 = vst [vmem:[#allocation2 + $0x68] sm:$0xff] %v366
  %399 = vst [vmem:[#allocation2 + $0x70] sm:$0xff] %v367
  %400 = vst [vmem:[#allocation2 + $0x78] sm:$0xff] %v368
  %401 = vst [vmem:[#allocation2 + $0x80] sm:$0xff] %v369
  %402 = vst [vmem:[#allocation2 + $0x88] sm:$0xff] %v370
  %403 = vst [vmem:[#allocation2 + $0x90] sm:$0xff] %v371
  %404 = vst [vmem:[#allocation2 + $0x98] sm:$0xff] %v372
  %405 = vst [vmem:[#allocation2 + $0xa0] sm:$0xff] %v373
  %406 = vst [vmem:[#allocation2 + $0xa8] sm:$0xff] %v374
  %407 = vst [vmem:[#allocation2 + $0xb0] sm:$0xff] %v375
  %408 = vst [vmem:[#allocation2 + $0xb8] sm:$0xff] %v376
  %409 = vst [vmem:[#allocation2 + $0xc0] sm:$0xff] %v377
  %410 = vst [vmem:[#allocation2 + $0xc8] sm:$0xff] %v378
  %411 = vst [vmem:[#allocation2 + $0xd0] sm:$0xff] %v379
  %412 = vst [vmem:[#allocation2 + $0xd8] sm:$0xff] %v380
  %413 = vst [vmem:[#allocation2 + $0xe0] sm:$0xff] %v381
  %414 = vst [vmem:[#allocation2 + $0xe8] sm:$0xff] %v382
  %415 = vst [vmem:[#allocation2 + $0xf0] sm:$0xff] %v383
  %416 = vst [vmem:[#allocation2 + $0xf8] sm:$0xff] %v384
  // Predicated region
  $region14: #{resnet50_features_forward.84} parent=0 // pred_check
    %p417 = pneg %p12
  $region15: #{resnet50_features_forward.84} parent=0 // pred_check_branch
    %419 = sbr.rel (%p417) target = $region17
  $region16: #{resnet50_features_forward.84} parent=0 // pred_region
    %v420 = vld [vmem:[#allocation2] sm:$0xff]
    %v421 = vld [vmem:[#allocation2 + $0x8] sm:$0xff]
    %v422 = vld [vmem:[#allocation2 + $0x10] sm:$0xff]
    %v423 = vld [vmem:[#allocation2 + $0x18] sm:$0xff]
    %v424 = vld [vmem:[#allocation2 + $0x20] sm:$0xff]
    %v425 = vld [vmem:[#allocation2 + $0x28] sm:$0xff]
    %v426 = vld [vmem:[#allocation2 + $0x30] sm:$0xff]
    %v427 = vld [vmem:[#allocation2 + $0x38] sm:$0xff]
    %v428 = vld [vmem:[#allocation2 + $0x40] sm:$0xff]
    %v429 = vld [vmem:[#allocation2 + $0x48] sm:$0xff]
    %v430 = vld [vmem:[#allocation2 + $0x50] sm:$0xff]
    %v431 = vld [vmem:[#allocation2 + $0x58] sm:$0xff]
    %v432 = vld [vmem:[#allocation2 + $0x60] sm:$0xff]
    %v433 = vld [vmem:[#allocation2 + $0x68] sm:$0xff]
    %v434 = vld [vmem:[#allocation2 + $0x70] sm:$0xff]
    %v435 = vld [vmem:[#allocation2 + $0x78] sm:$0xff]
    %v436 = vld [vmem:[#allocation2 + $0x80] sm:$0xff]
    %v437 = vld [vmem:[#allocation2 + $0x88] sm:$0xff]
    %v438 = vld [vmem:[#allocation2 + $0x90] sm:$0xff]
    %v439 = vld [vmem:[#allocation2 + $0x98] sm:$0xff]
    %v440 = vld [vmem:[#allocation2 + $0xa0] sm:$0xff]
    %v441 = vld [vmem:[#allocation2 + $0xa8] sm:$0xff]
    %v442 = vld [vmem:[#allocation2 + $0xb0] sm:$0xff]
    %v443 = vld [vmem:[#allocation2 + $0xb8] sm:$0xff]
    %v444 = vld [vmem:[#allocation2 + $0xc0] sm:$0xff]
    %v445 = vld [vmem:[#allocation2 + $0xc8] sm:$0xff]
    %v446 = vld [vmem:[#allocation2 + $0xd0] sm:$0xff]
    %v447 = vld [vmem:[#allocation2 + $0xd8] sm:$0xff]
    %v448 = vld [vmem:[#allocation2 + $0xe0] sm:$0xff]
    %v449 = vld [vmem:[#allocation2 + $0xe8] sm:$0xff]
    %v450 = vld [vmem:[#allocation2 + $0xf0] sm:$0xff]
    %v451 = vld [vmem:[#allocation2 + $0xf8] sm:$0xff]
    %452 = vst [vmem:[%s2] sm:$0xff] %v420
    %453 = vst [vmem:[%s2 + $0x8] sm:$0xff] %v421
    %454 = vst [vmem:[%s2 + $0x10] sm:$0xff] %v422
    %455 = vst [vmem:[%s2 + $0x18] sm:$0xff] %v423
    %456 = vst [vmem:[%s2 + $0x20] sm:$0xff] %v424
    %457 = vst [vmem:[%s2 + $0x28] sm:$0xff] %v425
    %458 = vst [vmem:[%s2 + $0x30] sm:$0xff] %v426
    %459 = vst [vmem:[%s2 + $0x38] sm:$0xff] %v427
    %460 = vst [vmem:[%s2 + $0x40] sm:$0xff] %v428
    %461 = vst [vmem:[%s2 + $0x48] sm:$0xff] %v429
    %462 = vst [vmem:[%s2 + $0x50] sm:$0xff] %v430
    %463 = vst [vmem:[%s2 + $0x58] sm:$0xff] %v431
    %464 = vst [vmem:[%s2 + $0x60] sm:$0xff] %v432
    %465 = vst [vmem:[%s2 + $0x68] sm:$0xff] %v433
    %466 = vst [vmem:[%s2 + $0x70] sm:$0xff] %v434
    %467 = vst [vmem:[%s2 + $0x78] sm:$0xff] %v435
    %468 = vst [vmem:[%s2 + $0x80] sm:$0xff] %v436
    %469 = vst [vmem:[%s2 + $0x88] sm:$0xff] %v437
    %470 = vst [vmem:[%s2 + $0x90] sm:$0xff] %v438
    %471 = vst [vmem:[%s2 + $0x98] sm:$0xff] %v439
    %472 = vst [vmem:[%s2 + $0xa0] sm:$0xff] %v440
    %473 = vst [vmem:[%s2 + $0xa8] sm:$0xff] %v441
    %474 = vst [vmem:[%s2 + $0xb0] sm:$0xff] %v442
    %475 = vst [vmem:[%s2 + $0xb8] sm:$0xff] %v443
    %476 = vst [vmem:[%s2 + $0xc0] sm:$0xff] %v444
    %477 = vst [vmem:[%s2 + $0xc8] sm:$0xff] %v445
    %478 = vst [vmem:[%s2 + $0xd0] sm:$0xff] %v446
    %479 = vst [vmem:[%s2 + $0xd8] sm:$0xff] %v447
    %480 = vst [vmem:[%s2 + $0xe0] sm:$0xff] %v448
    %481 = vst [vmem:[%s2 + $0xe8] sm:$0xff] %v449
    %482 = vst [vmem:[%s2 + $0xf0] sm:$0xff] %v450
    %483 = vst [vmem:[%s2 + $0xf8] sm:$0xff] %v451
  $region17: #{resnet50_features_forward.84} parent=0 // pred_fallthru
    _
  // Predicated region
  $region18: #{resnet50_features_forward.84} parent=0 // pred_check
    _
  $region19: #{resnet50_features_forward.84} parent=0 // pred_check_branch
    %485 = sbr.rel (0) target = $region21
  $region20: #{resnet50_features_forward.84} parent=0 // pred_region
    _
  $region21: #{resnet50_features_forward.84} parent=0 // pred_fallthru
    _
  // Predicated region
  $region22: #{resnet50_features_forward.84} parent=0 // pred_check
    _
  $region23: #{resnet50_features_forward.84} parent=0 // pred_check_branch
    %487 = sbr.rel (0) target = $region25
  $region24: #{resnet50_features_forward.84} parent=0 // pred_region
    _
  $region25: #{resnet50_features_forward.84} parent=0 // pred_fallthru
    _

// kernel: resnet50_features_forward.78
$region0: #{resnet50_features_forward.78}
  #allocation0 [shape = 'u32[]', space=smem, size = 0x4, offset = 0x4, fixed_abs, tag = 'smem constant byte address 0x4 - core index']
  #allocation1 [shape = 'u32[144,128]{1,0:T(1,128)}', space=vmem, size = 0x12000, scoped, tag = 'internal scratch']
  %s0 = inlined_call_operand.vmem [shape: f32[128,128], index: 0, kind: input, shape index: {}]
  %s1 = inlined_call_operand.vmem [shape: f32[8,128], index: 1, kind: output, shape index: {}]
  %s2 = sld [smem:[#allocation0]]
  $region18: #{resnet50_features_forward.78} parent=0
    _
  %s4 = ssub.s32 1, %s2
  %s5 = scalar_select 0, %s4, %s2
  // Predicated region
  $region2: #{resnet50_features_forward.78} parent=0 // pred_check
    _
  $region3: #{resnet50_features_forward.78} parent=0 // pred_check_branch
    %7 = sbr.rel (0) target = $region5
  $region4: #{resnet50_features_forward.78} parent=0 // pred_region
    _
  $region5: #{resnet50_features_forward.78} parent=0 // pred_fallthru
    _
  %p8 = scmp.eq.s32.totalorder 0, 0
  // Predicated region
  $region6: #{resnet50_features_forward.78} parent=0 // pred_check
    %p9 = pneg %p8
  $region7: #{resnet50_features_forward.78} parent=0 // pred_check_branch
    %11 = sbr.rel (%p9) target = $region9
  $region8: #{resnet50_features_forward.78} parent=0 // pred_region
    %12 = vst [vmem:[%s1] sm:$0xff] 0.0
  $region9: #{resnet50_features_forward.78} parent=0 // pred_fallthru
    _
  %v13 = vld [vmem:[%s0] sm:$0xff]
  %v14 = vld [vmem:[%s0 + $0x8] sm:$0xff]
  %v15 = vld [vmem:[%s0 + $0x10] sm:$0xff]
  %v16 = vld [vmem:[%s0 + $0x18] sm:$0xff]
  %v17 = vld [vmem:[%s0 + $0x20] sm:$0xff]
  %v18 = vld [vmem:[%s0 + $0x28] sm:$0xff]
  %v19 = vld [vmem:[%s0 + $0x30] sm:$0xff]
  %v20 = vld [vmem:[%s0 + $0x38] sm:$0xff]
  %v21 = vld [vmem:[%s0 + $0x40] sm:$0xff]
  %v22 = vld [vmem:[%s0 + $0x48] sm:$0xff]
  %v23 = vld [vmem:[%s0 + $0x50] sm:$0xff]
  %v24 = vld [vmem:[%s0 + $0x58] sm:$0xff]
  %v25 = vld [vmem:[%s0 + $0x60] sm:$0xff]
  %v26 = vld [vmem:[%s0 + $0x68] sm:$0xff]
  %v27 = vld [vmem:[%s0 + $0x70] sm:$0xff]
  %v28 = vld [vmem:[%s0 + $0x78] sm:$0xff]
  %v29 = vld [vmem:[%s1] sm:$0x1]
  %v30 = vadd.f32 %v13, %v14
  %v31 = vadd.f32 %v30, %v15
  %v32 = vadd.f32 %v31, %v16
  %v33 = vadd.f32 %v32, %v17
  %v34 = vadd.f32 %v33, %v18
  %v35 = vadd.f32 %v34, %v19
  %v36 = vadd.f32 %v35, %v20
  %v37 = vadd.f32 %v36, %v21
  %v38 = vadd.f32 %v37, %v22
  %v39 = vadd.f32 %v38, %v23
  %v40 = vadd.f32 %v39, %v24
  %v41 = vadd.f32 %v40, %v25
  %v42 = vadd.f32 %v41, %v26
  %v43 = vadd.f32 %v42, %v27
  %v44 = vadd.f32 %v43, %v28
  %v45 = vrot.slane %v44, 4
  %v46 = vadd.f32 %v44, %v45
  %v47 = vrot.slane %v46, 2
  %v48 = vadd.f32 %v46, %v47
  %v49 = vrot.slane %v48, 1
  %v50 = vadd.f32 %v48, %v49
  %v51 = vadd.f32 %v29, %v50
  %52 = vst [vmem:[%s1] sm:$0x1] %v51
  %v53 = vld [vmem:[%s1 + $0x1] sm:$0x1]
  %v54 = vmul.f32 %v13, %v13
  %v55 = vmul.f32 %v14, %v14
  %v56 = vmul.f32 %v15, %v15
  %v57 = vmul.f32 %v16, %v16
  %v58 = vmul.f32 %v17, %v17
  %v59 = vmul.f32 %v18, %v18
  %v60 = vmul.f32 %v19, %v19
  %v61 = vmul.f32 %v20, %v20
  %v62 = vmul.f32 %v21, %v21
  %v63 = vmul.f32 %v22, %v22
  %v64 = vmul.f32 %v23, %v23
  %v65 = vmul.f32 %v24, %v24
  %v66 = vmul.f32 %v25, %v25
  %v67 = vmul.f32 %v26, %v26
  %v68 = vmul.f32 %v27, %v27
  %v69 = vmul.f32 %v28, %v28
  %v70 = vadd.f32 %v54, %v55
  %v71 = vadd.f32 %v70, %v56
  %v72 = vadd.f32 %v71, %v57
  %v73 = vadd.f32 %v72, %v58
  %v74 = vadd.f32 %v73, %v59
  %v75 = vadd.f32 %v74, %v60
  %v76 = vadd.f32 %v75, %v61
  %v77 = vadd.f32 %v76, %v62
  %v78 = vadd.f32 %v77, %v63
  %v79 = vadd.f32 %v78, %v64
  %v80 = vadd.f32 %v79, %v65
  %v81 = vadd.f32 %v80, %v66
  %v82 = vadd.f32 %v81, %v67
  %v83 = vadd.f32 %v82, %v68
  %v84 = vadd.f32 %v83, %v69
  %v85 = vrot.slane %v84, 4
  %v86 = vadd.f32 %v84, %v85
  %v87 = vrot.slane %v86, 2
  %v88 = vadd.f32 %v86, %v87
  %v89 = vrot.slane %v88, 1
  %v90 = vadd.f32 %v88, %v89
  %v91 = vadd.f32 %v53, %v90
  %92 = vst [vmem:[%s1 + $0x1] sm:$0x1] %v91
  // Predicated region
  $region10: #{resnet50_features_forward.78} parent=0 // pred_check
    _
  $region11: #{resnet50_features_forward.78} parent=0 // pred_check_branch
    %94 = sbr.rel (0) target = $region13
  $region12: #{resnet50_features_forward.78} parent=0 // pred_region
    _
  $region13: #{resnet50_features_forward.78} parent=0 // pred_fallthru
    _
  // Predicated region
  $region14: #{resnet50_features_forward.78} parent=0 // pred_check
    _
  $region15: #{resnet50_features_forward.78} parent=0 // pred_check_branch
    %96 = sbr.rel (0) target = $region17
  $region16: #{resnet50_features_forward.78} parent=0 // pred_region
    _
  $region17: #{resnet50_features_forward.78} parent=0 // pred_fallthru
    _

// kernel: resnet50_features_forward.79
$region0: #{resnet50_features_forward.79}
  #allocation0 [shape = 'u32[]', space=smem, size = 0x4, offset = 0x4, fixed_abs, tag = 'smem constant byte address 0x4 - core index']
  #allocation1 [shape = 'u32[144,128]{1,0:T(1,128)}', space=vmem, size = 0x12000, scoped, tag = 'internal scratch']
  %s0 = inlined_call_operand.vmem [shape: f32[128,128], index: 0, kind: input, shape index: {}]
  %s1 = inlined_call_operand.vmem [shape: f32[8,128], index: 1, kind: input, shape index: {}]
  %s2 = inlined_call_operand.vmem [shape: f32[1,128], index: 2, kind: input, shape index: {}]
  %s3 = inlined_call_operand.vmem [shape: f32[1,128], index: 3, kind: input, shape index: {}]
  %s4 = inlined_call_operand.vmem [shape: f32[128,128], index: 4, kind: output, shape index: {}]
  %s5 = sld [smem:[#allocation0]]
  $region26: #{resnet50_features_forward.79} parent=0
    _
  %s7 = ssub.s32 1, %s5
  %s8 = scalar_select 0, %s7, %s5
  // Predicated region
  $region2: #{resnet50_features_forward.79} parent=0 // pred_check
    _
  $region3: #{resnet50_features_forward.79} parent=0 // pred_check_branch
    %10 = sbr.rel (0) target = $region5
  $region4: #{resnet50_features_forward.79} parent=0 // pred_region
    _
  $region5: #{resnet50_features_forward.79} parent=0 // pred_fallthru
    _
  // Predicated region
  $region6: #{resnet50_features_forward.79} parent=0 // pred_check
    _
  $region7: #{resnet50_features_forward.79} parent=0 // pred_check_branch
    %12 = sbr.rel (0) target = $region9
  $region8: #{resnet50_features_forward.79} parent=0 // pred_region
    _
  $region9: #{resnet50_features_forward.79} parent=0 // pred_fallthru
    _
  // Predicated region
  $region10: #{resnet50_features_forward.79} parent=0 // pred_check
    _
  $region11: #{resnet50_features_forward.79} parent=0 // pred_check_branch
    %14 = sbr.rel (0) target = $region13
  $region12: #{resnet50_features_forward.79} parent=0 // pred_region
    _
  $region13: #{resnet50_features_forward.79} parent=0 // pred_fallthru
    _
  // Predicated region
  $region14: #{resnet50_features_forward.79} parent=0 // pred_check
    _
  $region15: #{resnet50_features_forward.79} parent=0 // pred_check_branch
    %16 = sbr.rel (0) target = $region17
  $region16: #{resnet50_features_forward.79} parent=0 // pred_region
    _
  $region17: #{resnet50_features_forward.79} parent=0 // pred_fallthru
    _
  %v17 = vld [vmem:[%s1] sm:$0x1]
  %v18 = vmul.f32 %v17, 0.0078125
  %v19 = vld [vmem:[%s1 + $0x1] sm:$0x1]
  %v20 = vmul.f32 %v19, 0.0078125
  %v21 = vmul.f32 %v18, %v18
  %v22 = vsub.f32 %v20, %v21
  %v23 = vmax.f32 %v22, 0.0
  %v24 = vld [vmem:[%s2] sm:$0x1]
  %v25 = vadd.f32 %v23, 1e-05
  %v26 = vrsqrt.pop %v25
  %v27 = vmul.f32 %v24, %v26
  %v28 = vld [vmem:[%s3] sm:$0x1]
  %v29 = vmul.f32 %v18, %v27
  %v30 = vsub.f32 %v28, %v29
  %v31 = vld [vmem:[%s0] sm:$0xff]
  %v32 = vld [vmem:[%s0 + $0x8] sm:$0xff]
  %v33 = vld [vmem:[%s0 + $0x10] sm:$0xff]
  %v34 = vld [vmem:[%s0 + $0x18] sm:$0xff]
  %v35 = vld [vmem:[%s0 + $0x20] sm:$0xff]
  %v36 = vld [vmem:[%s0 + $0x28] sm:$0xff]
  %v37 = vld [vmem:[%s0 + $0x30] sm:$0xff]
  %v38 = vld [vmem:[%s0 + $0x38] sm:$0xff]
  %v39 = vld [vmem:[%s0 + $0x40] sm:$0xff]
  %v40 = vld [vmem:[%s0 + $0x48] sm:$0xff]
  %v41 = vld [vmem:[%s0 + $0x50] sm:$0xff]
  %v42 = vld [vmem:[%s0 + $0x58] sm:$0xff]
  %v43 = vld [vmem:[%s0 + $0x60] sm:$0xff]
  %v44 = vld [vmem:[%s0 + $0x68] sm:$0xff]
  %v45 = vld [vmem:[%s0 + $0x70] sm:$0xff]
  %v46 = vld [vmem:[%s0 + $0x78] sm:$0xff]
  %v48 = vlaneseq
  %v49 = vshrl.u32 %v48, 7
  %v50 = vsub.s32 0, %v49
  %v51 = vrot.slane %v27, %v50
  %v53 = vmul.f32 %v31, %v51
  %v54 = vmul.f32 %v32, %v51
  %v55 = vmul.f32 %v33, %v51
  %v56 = vmul.f32 %v34, %v51
  %v57 = vmul.f32 %v35, %v51
  %v58 = vmul.f32 %v36, %v51
  %v59 = vmul.f32 %v37, %v51
  %v60 = vmul.f32 %v38, %v51
  %v61 = vmul.f32 %v39, %v51
  %v62 = vmul.f32 %v40, %v51
  %v63 = vmul.f32 %v41, %v51
  %v64 = vmul.f32 %v42, %v51
  %v65 = vmul.f32 %v43, %v51
  %v66 = vmul.f32 %v44, %v51
  %v67 = vmul.f32 %v45, %v51
  %v68 = vmul.f32 %v46, %v51
  %v70 = vlaneseq
  %v71 = vshrl.u32 %v70, 7
  %v72 = vsub.s32 0, %v71
  %v73 = vrot.slane %v30, %v72
  %v75 = vadd.f32 %v53, %v73
  %v76 = vadd.f32 %v54, %v73
  %v77 = vadd.f32 %v55, %v73
  %v78 = vadd.f32 %v56, %v73
  %v79 = vadd.f32 %v57, %v73
  %v80 = vadd.f32 %v58, %v73
  %v81 = vadd.f32 %v59, %v73
  %v82 = vadd.f32 %v60, %v73
  %v83 = vadd.f32 %v61, %v73
  %v84 = vadd.f32 %v62, %v73
  %v85 = vadd.f32 %v63, %v73
  %v86 = vadd.f32 %v64, %v73
  %v87 = vadd.f32 %v65, %v73
  %v88 = vadd.f32 %v66, %v73
  %v89 = vadd.f32 %v67, %v73
  %v90 = vadd.f32 %v68, %v73
  %v91 = vmax.f32 %v75, 0.0
  %v92 = vmax.f32 %v76, 0.0
  %v93 = vmax.f32 %v77, 0.0
  %v94 = vmax.f32 %v78, 0.0
  %v95 = vmax.f32 %v79, 0.0
  %v96 = vmax.f32 %v80, 0.0
  %v97 = vmax.f32 %v81, 0.0
  %v98 = vmax.f32 %v82, 0.0
  %v99 = vmax.f32 %v83, 0.0
  %v100 = vmax.f32 %v84, 0.0
  %v101 = vmax.f32 %v85, 0.0
  %v102 = vmax.f32 %v86, 0.0
  %v103 = vmax.f32 %v87, 0.0
  %v104 = vmax.f32 %v88, 0.0
  %v105 = vmax.f32 %v89, 0.0
  %v106 = vmax.f32 %v90, 0.0
  %107 = vst [vmem:[%s4] sm:$0xff] %v91
  %108 = vst [vmem:[%s4 + $0x8] sm:$0xff] %v92
  %109 = vst [vmem:[%s4 + $0x10] sm:$0xff] %v93
  %110 = vst [vmem:[%s4 + $0x18] sm:$0xff] %v94
  %111 = vst [vmem:[%s4 + $0x20] sm:$0xff] %v95
  %112 = vst [vmem:[%s4 + $0x28] sm:$0xff] %v96
  %113 = vst [vmem:[%s4 + $0x30] sm:$0xff] %v97
  %114 = vst [vmem:[%s4 + $0x38] sm:$0xff] %v98
  %115 = vst [vmem:[%s4 + $0x40] sm:$0xff] %v99
  %116 = vst [vmem:[%s4 + $0x48] sm:$0xff] %v100
  %117 = vst [vmem:[%s4 + $0x50] sm:$0xff] %v101
  %118 = vst [vmem:[%s4 + $0x58] sm:$0xff] %v102
  %119 = vst [vmem:[%s4 + $0x60] sm:$0xff] %v103
  %120 = vst [vmem:[%s4 + $0x68] sm:$0xff] %v104
  %121 = vst [vmem:[%s4 + $0x70] sm:$0xff] %v105
  %122 = vst [vmem:[%s4 + $0x78] sm:$0xff] %v106
  // Predicated region
  $region18: #{resnet50_features_forward.79} parent=0 // pred_check
    _
  $region19: #{resnet50_features_forward.79} parent=0 // pred_check_branch
    %124 = sbr.rel (0) target = $region21
  $region20: #{resnet50_features_forward.79} parent=0 // pred_region
    _
  $region21: #{resnet50_features_forward.79} parent=0 // pred_fallthru
    _
  // Predicated region
  $region22: #{resnet50_features_forward.79} parent=0 // pred_check
    _
  $region23: #{resnet50_features_forward.79} parent=0 // pred_check_branch
    %126 = sbr.rel (0) target = $region25
  $region24: #{resnet50_features_forward.79} parent=0 // pred_region
    _
  $region25: #{resnet50_features_forward.79} parent=0 // pred_fallthru
    _

// kernel: resnet50_features_forward.77
$region0: #{resnet50_features_forward.77}
  #allocation0 [shape = 'u32[]', space=smem, size = 0x4, offset = 0x4, fixed_abs, tag = 'smem constant byte address 0x4 - core index']
  #allocation1 [shape = 'u32[144,128]{1,0:T(1,128)}', space=vmem, size = 0x12000, scoped, tag = 'internal scratch']
  #allocation2 [shape = 'f32[128,128]{1,0:T(8,128)}', space=vmem, size = 0x10000, scoped, tag = 'scratch operand']
  %s0 = inlined_call_operand.vmem [shape: bf16[128,128], index: 0, kind: input, shape index: {}]
  %s1 = inlined_call_operand.vmem [shape: bf16[128,128], index: 1, kind: input, shape index: {}]
  %s2 = inlined_call_operand.vmem [shape: f32[128,128], index: 2, kind: output, shape index: {}]
  %s3 = sld [smem:[#allocation0]]
  $region26: #{resnet50_features_forward.77} parent=0
    _
  %s5 = ssub.s32 1, %s3
  %s6 = scalar_select 0, %s5, %s3
  // Predicated region
  $region2: #{resnet50_features_forward.77} parent=0 // pred_check
    _
  $region3: #{resnet50_features_forward.77} parent=0 // pred_check_branch
    %8 = sbr.rel (0) target = $region5
  $region4: #{resnet50_features_forward.77} parent=0 // pred_region
    _
  $region5: #{resnet50_features_forward.77} parent=0 // pred_fallthru
    _
  // Predicated region
  $region6: #{resnet50_features_forward.77} parent=0 // pred_check
    _
  $region7: #{resnet50_features_forward.77} parent=0 // pred_check_branch
    %10 = sbr.rel (0) target = $region9
  $region8: #{resnet50_features_forward.77} parent=0 // pred_region
    _
  $region9: #{resnet50_features_forward.77} parent=0 // pred_fallthru
    _
  %p12 = scmp.eq.s32.totalorder 0, 0
  // Predicated region
  $region10: #{resnet50_features_forward.77} parent=0 // pred_check
    %p13 = pneg %p12
  $region11: #{resnet50_features_forward.77} parent=0 // pred_check_branch
    %15 = sbr.rel (%p13) target = $region13
  $region12: #{resnet50_features_forward.77} parent=0 // pred_region
    %16 = vst [vmem:[#allocation2] sm:$0xff] 0.0
    %17 = vst [vmem:[#allocation2 + $0x8] sm:$0xff] 0.0
    %18 = vst [vmem:[#allocation2 + $0x10] sm:$0xff] 0.0
    %19 = vst [vmem:[#allocation2 + $0x18] sm:$0xff] 0.0
    %20 = vst [vmem:[#allocation2 + $0x20] sm:$0xff] 0.0
    %21 = vst [vmem:[#allocation2 + $0x28] sm:$0xff] 0.0
    %22 = vst [vmem:[#allocation2 + $0x30] sm:$0xff] 0.0
    %23 = vst [vmem:[#allocation2 + $0x38] sm:$0xff] 0.0
    %24 = vst [vmem:[#allocation2 + $0x40] sm:$0xff] 0.0
    %25 = vst [vmem:[#allocation2 + $0x48] sm:$0xff] 0.0
    %26 = vst [vmem:[#allocation2 + $0x50] sm:$0xff] 0.0
    %27 = vst [vmem:[#allocation2 + $0x58] sm:$0xff] 0.0
    %28 = vst [vmem:[#allocation2 + $0x60] sm:$0xff] 0.0
    %29 = vst [vmem:[#allocation2 + $0x68] sm:$0xff] 0.0
    %30 = vst [vmem:[#allocation2 + $0x70] sm:$0xff] 0.0
    %31 = vst [vmem:[#allocation2 + $0x78] sm:$0xff] 0.0
  $region13: #{resnet50_features_forward.77} parent=0 // pred_fallthru
    _
  %v32 = vld [vmem:[#allocation2] sm:$0xff]
  %v33 = vld [vmem:[#allocation2 + $0x8] sm:$0xff]
  %v34 = vld [vmem:[#allocation2 + $0x10] sm:$0xff]
  %v35 = vld [vmem:[#allocation2 + $0x18] sm:$0xff]
  %v36 = vld [vmem:[#allocation2 + $0x20] sm:$0xff]
  %v37 = vld [vmem:[#allocation2 + $0x28] sm:$0xff]
  %v38 = vld [vmem:[#allocation2 + $0x30] sm:$0xff]
  %v39 = vld [vmem:[#allocation2 + $0x38] sm:$0xff]
  %v40 = vld [vmem:[#allocation2 + $0x40] sm:$0xff]
  %v41 = vld [vmem:[#allocation2 + $0x48] sm:$0xff]
  %v42 = vld [vmem:[#allocation2 + $0x50] sm:$0xff]
  %v43 = vld [vmem:[#allocation2 + $0x58] sm:$0xff]
  %v44 = vld [vmem:[#allocation2 + $0x60] sm:$0xff]
  %v45 = vld [vmem:[#allocation2 + $0x68] sm:$0xff]
  %v46 = vld [vmem:[#allocation2 + $0x70] sm:$0xff]
  %v47 = vld [vmem:[#allocation2 + $0x78] sm:$0xff]
  %v48 = vld [vmem:[%s0] sm:$0xf]
  %v49 = vld [vmem:[%s0 + $0x4] sm:$0xf]
  %v50 = vld [vmem:[%s0 + $0x8] sm:$0xf]
  %v51 = vld [vmem:[%s0 + $0xc] sm:$0xf]
  %v52 = vld [vmem:[%s0 + $0x10] sm:$0xf]
  %v53 = vld [vmem:[%s0 + $0x14] sm:$0xf]
  %v54 = vld [vmem:[%s0 + $0x18] sm:$0xf]
  %v55 = vld [vmem:[%s0 + $0x1c] sm:$0xf]
  %v56 = vld [vmem:[%s0 + $0x20] sm:$0xf]
  %v57 = vld [vmem:[%s0 + $0x24] sm:$0xf]
  %v58 = vld [vmem:[%s0 + $0x28] sm:$0xf]
  %v59 = vld [vmem:[%s0 + $0x2c] sm:$0xf]
  %v60 = vld [vmem:[%s0 + $0x30] sm:$0xf]
  %v61 = vld [vmem:[%s0 + $0x34] sm:$0xf]
  %v62 = vld [vmem:[%s0 + $0x38] sm:$0xf]
  %v63 = vld [vmem:[%s0 + $0x3c] sm:$0xf]
  %v64 = vld [vmem:[%s1] sm:$0xf]
  %v65 = vld [vmem:[%s1 + $0x4] sm:$0xf]
  %v66 = vld [vmem:[%s1 + $0x8] sm:$0xf]
  %v67 = vld [vmem:[%s1 + $0xc] sm:$0xf]
  %v68 = vld [vmem:[%s1 + $0x10] sm:$0xf]
  %v69 = vld [vmem:[%s1 + $0x14] sm:$0xf]
  %v70 = vld [vmem:[%s1 + $0x18] sm:$0xf]
  %v71 = vld [vmem:[%s1 + $0x1c] sm:$0xf]
  %v72 = vld [vmem:[%s1 + $0x20] sm:$0xf]
  %v73 = vld [vmem:[%s1 + $0x24] sm:$0xf]
  %v74 = vld [vmem:[%s1 + $0x28] sm:$0xf]
  %v75 = vld [vmem:[%s1 + $0x2c] sm:$0xf]
  %v76 = vld [vmem:[%s1 + $0x30] sm:$0xf]
  %v77 = vld [vmem:[%s1 + $0x34] sm:$0xf]
  %v78 = vld [vmem:[%s1 + $0x38] sm:$0xf]
  %v79 = vld [vmem:[%s1 + $0x3c] sm:$0xf]
  %v96 = vunpack.c.l.b16 %v48
  %v97 = vunpack.c.l.b16 %v49
  %v98 = vunpack.c.l.b16 %v50
  %v99 = vunpack.c.l.b16 %v51
  %v100 = vunpack.c.l.b16 %v52
  %v101 = vunpack.c.l.b16 %v53
  %v102 = vunpack.c.l.b16 %v54
  %v103 = vunpack.c.l.b16 %v55
  %v104 = vunpack.c.l.b16 %v56
  %v105 = vunpack.c.l.b16 %v57
  %v106 = vunpack.c.l.b16 %v58
  %v107 = vunpack.c.l.b16 %v59
  %v108 = vunpack.c.l.b16 %v60
  %v109 = vunpack.c.l.b16 %v61
  %v110 = vunpack.c.l.b16 %v62
  %v111 = vunpack.c.l.b16 %v63
  %v112 = vpack.c.b16 %v97, %v96
  %v113 = vpack.c.b16 %v99, %v98
  %v114 = vpack.c.b16 %v101, %v100
  %v115 = vpack.c.b16 %v103, %v102
  %v116 = vpack.c.b16 %v105, %v104
  %v117 = vpack.c.b16 %v107, %v106
  %v118 = vpack.c.b16 %v109, %v108
  %v119 = vpack.c.b16 %v111, %v110
  %v144 = vunpack.c.l.b16 %v64
  %v145 = vunpack.c.l.b16 %v65
  %v146 = vunpack.c.l.b16 %v66
  %v147 = vunpack.c.l.b16 %v67
  %v148 = vunpack.c.l.b16 %v68
  %v149 = vunpack.c.l.b16 %v69
  %v150 = vunpack.c.l.b16 %v70
  %v151 = vunpack.c.l.b16 %v71
  %v152 = vunpack.c.l.b16 %v72
  %v153 = vunpack.c.l.b16 %v73
  %v154 = vunpack.c.l.b16 %v74
  %v155 = vunpack.c.l.b16 %v75
  %v156 = vunpack.c.l.b16 %v76
  %v157 = vunpack.c.l.b16 %v77
  %v158 = vunpack.c.l.b16 %v78
  %v159 = vunpack.c.l.b16 %v79
  %v160 = vpack.c.b16 %v145, %v144
  %v161 = vpack.c.b16 %v147, %v146
  %v162 = vpack.c.b16 %v149, %v148
  %v163 = vpack.c.b16 %v151, %v150
  %v164 = vpack.c.b16 %v153, %v152
  %v165 = vpack.c.b16 %v155, %v154
  %v166 = vpack.c.b16 %v157, %v156
  %v167 = vpack.c.b16 %v159, %v158
  %176 = vmatprep.subr.bf16.mxu0 0
  %177 = vmatpush1.bf16.msra.mxu0 %v167
  %178 = vmatprep.subr.bf16.mxu0 0
  %179 = vmatpush1.bf16.msra.mxu0 %v166
  %180 = vmatprep.subr.bf16.mxu0 0
  %181 = vmatpush1.bf16.msra.mxu0 %v165
  %182 = vmatprep.subr.bf16.mxu0 0
  %183 = vmatpush1.bf16.msra.mxu0 %v164
  %184 = vmatprep.subr.bf16.mxu0 0
  %185 = vmatpush1.bf16.msra.mxu0 %v163
  %186 = vmatprep.subr.bf16.mxu0 0
  %187 = vmatpush1.bf16.msra.mxu0 %v162
  %188 = vmatprep.subr.bf16.mxu0 0
  %189 = vmatpush1.bf16.msra.mxu0 %v161
  %190 = vmatprep.subr.bf16.mxu0 0
  %191 = vmatpush1.bf16.msra.mxu0 %v160
  %192 = vmatprep.subr.bf16.mxu0 0
  %193 = vmatpush2.bf16.msra.mxu0 0
  %194 = vmatprep.subr.bf16.mxu0 0
  %195 = vmatpush2.bf16.msra.mxu0 0
  %196 = vmatprep.subr.bf16.mxu0 0
  %197 = vmatpush2.bf16.msra.mxu0 0
  %198 = vmatprep.subr.bf16.mxu0 0
  %199 = vmatpush2.bf16.msra.mxu0 0
  %200 = vmatprep.subr.bf16.mxu0 0
  %201 = vmatpush2.bf16.msra.mxu0 0
  %202 = vmatprep.subr.bf16.mxu0 0
  %203 = vmatpush2.bf16.msra.mxu0 0
  %204 = vmatprep.subr.bf16.mxu0 0
  %205 = vmatpush2.bf16.msra.mxu0 0
  %206 = vmatprep.subr.bf16.mxu0 0
  %207 = vmatpush2.bf16.msra.mxu0 0
  %208 = vmatprep.mubr.bf16.mxu0 0
  %209 = vmatmul.mubr.bf16.gmra.mxu0 %v112
  %v210 = vpop.f32.mrf.mxu0
  %v211 = vadd.f32 0.0, %v210
  %v212 = vpop.f32.mrf.mxu0
  %v213 = vpop.f32.mrf.mxu0
  %v214 = vadd.f32 0.0, %v213
  %v215 = vpop.f32.mrf.mxu0
  %216 = vmatprep.mubr.bf16.mxu0 0
  %217 = vmatmul.mubr.bf16.gmra.mxu0 %v113
  %v218 = vpop.f32.mrf.mxu0
  %v219 = vadd.f32 0.0, %v218
  %v220 = vpop.f32.mrf.mxu0
  %v221 = vpop.f32.mrf.mxu0
  %v222 = vadd.f32 0.0, %v221
  %v223 = vpop.f32.mrf.mxu0
  %224 = vmatprep.mubr.bf16.mxu0 0
  %225 = vmatmul.mubr.bf16.gmra.mxu0 %v114
  %v226 = vpop.f32.mrf.mxu0
  %v227 = vadd.f32 0.0, %v226
  %v228 = vpop.f32.mrf.mxu0
  %v229 = vpop.f32.mrf.mxu0
  %v230 = vadd.f32 0.0, %v229
  %v231 = vpop.f32.mrf.mxu0
  %232 = vmatprep.mubr.bf16.mxu0 0
  %233 = vmatmul.mubr.bf16.gmra.mxu0 %v115
  %v234 = vpop.f32.mrf.mxu0
  %v235 = vadd.f32 0.0, %v234
  %v236 = vpop.f32.mrf.mxu0
  %v237 = vpop.f32.mrf.mxu0
  %v238 = vadd.f32 0.0, %v237
  %v239 = vpop.f32.mrf.mxu0
  %240 = vmatprep.mubr.bf16.mxu0 0
  %241 = vmatmul.mubr.bf16.gmra.mxu0 %v116
  %v242 = vpop.f32.mrf.mxu0
  %v243 = vadd.f32 0.0, %v242
  %v244 = vpop.f32.mrf.mxu0
  %v245 = vpop.f32.mrf.mxu0
  %v246 = vadd.f32 0.0, %v245
  %v247 = vpop.f32.mrf.mxu0
  %248 = vmatprep.mubr.bf16.mxu0 0
  %249 = vmatmul.mubr.bf16.gmra.mxu0 %v117
  %v250 = vpop.f32.mrf.mxu0
  %v251 = vadd.f32 0.0, %v250
  %v252 = vpop.f32.mrf.mxu0
  %v253 = vpop.f32.mrf.mxu0
  %v254 = vadd.f32 0.0, %v253
  %v255 = vpop.f32.mrf.mxu0
  %256 = vmatprep.mubr.bf16.mxu0 0
  %257 = vmatmul.mubr.bf16.gmra.mxu0 %v118
  %v258 = vpop.f32.mrf.mxu0
  %v259 = vadd.f32 0.0, %v258
  %v260 = vpop.f32.mrf.mxu0
  %v261 = vpop.f32.mrf.mxu0
  %v262 = vadd.f32 0.0, %v261
  %v263 = vpop.f32.mrf.mxu0
  %264 = vmatprep.mubr.bf16.mxu0 0
  %265 = vmatmul.mubr.bf16.gmra.mxu0 %v119
  %v266 = vpop.f32.mrf.mxu0
  %v267 = vadd.f32 0.0, %v266
  %v268 = vpop.f32.mrf.mxu0
  %v269 = vpop.f32.mrf.mxu0
  %v270 = vadd.f32 0.0, %v269
  %v271 = vpop.f32.mrf.mxu0
  %272 = vdwg.mxu0
  %v273 = vadd.f32 %v32, %v211
  %v274 = vadd.f32 %v33, %v214
  %v275 = vadd.f32 %v34, %v219
  %v276 = vadd.f32 %v35, %v222
  %v277 = vadd.f32 %v36, %v227
  %v278 = vadd.f32 %v37, %v230
  %v279 = vadd.f32 %v38, %v235
  %v280 = vadd.f32 %v39, %v238
  %v281 = vadd.f32 %v40, %v243
  %v282 = vadd.f32 %v41, %v246
  %v283 = vadd.f32 %v42, %v251
  %v284 = vadd.f32 %v43, %v254
  %v285 = vadd.f32 %v44, %v259
  %v286 = vadd.f32 %v45, %v262
  %v287 = vadd.f32 %v46, %v267
  %v288 = vadd.f32 %v47, %v270
  %289 = vst [vmem:[#allocation2] sm:$0xff] %v273
  %290 = vst [vmem:[#allocation2 + $0x8] sm:$0xff] %v274
  %291 = vst [vmem:[#allocation2 + $0x10] sm:$0xff] %v275
  %292 = vst [vmem:[#allocation2 + $0x18] sm:$0xff] %v276
  %293 = vst [vmem:[#allocation2 + $0x20] sm:$0xff] %v277
  %294 = vst [vmem:[#allocation2 + $0x28] sm:$0xff] %v278
  %295 = vst [vmem:[#allocation2 + $0x30] sm:$0xff] %v279
  %296 = vst [vmem:[#allocation2 + $0x38] sm:$0xff] %v280
  %297 = vst [vmem:[#allocation2 + $0x40] sm:$0xff] %v281
  %298 = vst [vmem:[#allocation2 + $0x48] sm:$0xff] %v282
  %299 = vst [vmem:[#allocation2 + $0x50] sm:$0xff] %v283
  %300 = vst [vmem:[#allocation2 + $0x58] sm:$0xff] %v284
  %301 = vst [vmem:[#allocation2 + $0x60] sm:$0xff] %v285
  %302 = vst [vmem:[#allocation2 + $0x68] sm:$0xff] %v286
  %303 = vst [vmem:[#allocation2 + $0x70] sm:$0xff] %v287
  %304 = vst [vmem:[#allocation2 + $0x78] sm:$0xff] %v288
  // Predicated region
  $region14: #{resnet50_features_forward.77} parent=0 // pred_check
    %p305 = pneg %p12
  $region15: #{resnet50_features_forward.77} parent=0 // pred_check_branch
    %307 = sbr.rel (%p305) target = $region17
  $region16: #{resnet50_features_forward.77} parent=0 // pred_region
    %v308 = vld [vmem:[#allocation2] sm:$0xff]
    %v309 = vld [vmem:[#allocation2 + $0x8] sm:$0xff]
    %v310 = vld [vmem:[#allocation2 + $0x10] sm:$0xff]
    %v311 = vld [vmem:[#allocation2 + $0x18] sm:$0xff]
    %v312 = vld [vmem:[#allocation2 + $0x20] sm:$0xff]
    %v313 = vld [vmem:[#allocation2 + $0x28] sm:$0xff]
    %v314 = vld [vmem:[#allocation2 + $0x30] sm:$0xff]
    %v315 = vld [vmem:[#allocation2 + $0x38] sm:$0xff]
    %v316 = vld [vmem:[#allocation2 + $0x40] sm:$0xff]
    %v317 = vld [vmem:[#allocation2 + $0x48] sm:$0xff]
    %v318 = vld [vmem:[#allocation2 + $0x50] sm:$0xff]
    %v319 = vld [vmem:[#allocation2 + $0x58] sm:$0xff]
    %v320 = vld [vmem:[#allocation2 + $0x60] sm:$0xff]
    %v321 = vld [vmem:[#allocation2 + $0x68] sm:$0xff]
    %v322 = vld [vmem:[#allocation2 + $0x70] sm:$0xff]
    %v323 = vld [vmem:[#allocation2 + $0x78] sm:$0xff]
    %324 = vst [vmem:[%s2] sm:$0xff] %v308
    %325 = vst [vmem:[%s2 + $0x8] sm:$0xff] %v309
    %326 = vst [vmem:[%s2 + $0x10] sm:$0xff] %v310
    %327 = vst [vmem:[%s2 + $0x18] sm:$0xff] %v311
    %328 = vst [vmem:[%s2 + $0x20] sm:$0xff] %v312
    %329 = vst [vmem:[%s2 + $0x28] sm:$0xff] %v313
    %330 = vst [vmem:[%s2 + $0x30] sm:$0xff] %v314
    %331 = vst [vmem:[%s2 + $0x38] sm:$0xff] %v315
    %332 = vst [vmem:[%s2 + $0x40] sm:$0xff] %v316
    %333 = vst [vmem:[%s2 + $0x48] sm:$0xff] %v317
    %334 = vst [vmem:[%s2 + $0x50] sm:$0xff] %v318
    %335 = vst [vmem:[%s2 + $0x58] sm:$0xff] %v319
    %336 = vst [vmem:[%s2 + $0x60] sm:$0xff] %v320
    %337 = vst [vmem:[%s2 + $0x68] sm:$0xff] %v321
    %338 = vst [vmem:[%s2 + $0x70] sm:$0xff] %v322
    %339 = vst [vmem:[%s2 + $0x78] sm:$0xff] %v323
  $region17: #{resnet50_features_forward.77} parent=0 // pred_fallthru
    _
  // Predicated region
  $region18: #{resnet50_features_forward.77} parent=0 // pred_check
    _
  $region19: #{resnet50_features_forward.77} parent=0 // pred_check_branch
    %341 = sbr.rel (0) target = $region21
  $region20: #{resnet50_features_forward.77} parent=0 // pred_region
    _
  $region21: #{resnet50_features_forward.77} parent=0 // pred_fallthru
    _
  // Predicated region
  $region22: #{resnet50_features_forward.77} parent=0 // pred_check
    _
  $region23: #{resnet50_features_forward.77} parent=0 // pred_check_branch
    %343 = sbr.rel (0) target = $region25
  $region24: #{resnet50_features_forward.77} parent=0 // pred_region
    _
  $region25: #{resnet50_features_forward.77} parent=0 // pred_fallthru
    _

// kernel: resnet50_features_forward.80
$region0: #{resnet50_features_forward.80}
  #allocation0 [shape = 'u32[]', space=smem, size = 0x4, offset = 0x4, fixed_abs, tag = 'smem constant byte address 0x4 - core index']
  #allocation1 [shape = 'u32[144,128]{1,0:T(1,128)}', space=vmem, size = 0x12000, scoped, tag = 'internal scratch']
  #allocation2 [shape = 'f32[128,128]{1,0:T(8,128)}', space=vmem, size = 0x10000, scoped, tag = 'scratch operand']
  %s0 = inlined_call_operand.vmem [shape: bf16[128,768], index: 0, kind: input, shape index: {}]
  %s1 = inlined_call_operand.vmem [shape: bf16[768,128], index: 1, kind: input, shape index: {}]
  %s2 = inlined_call_operand.vmem [shape: f32[128,128], index: 2, kind: output, shape index: {}]
  %s3 = sld [smem:[#allocation0]]
  $region87: #{resnet50_features_forward.80} parent=0
    _
  %s5 = ssub.s32 1, %s3
  %s6 = scalar_select 0, %s5, %s3
  $region1: #{resnet50_features_forward.80} parent=0
    #allocation3 [shape = 'u8[131072]{0}', space=vmem, size = 0x20000, scoped, tag = 'input window, operand 0']
    loop: start=0, step=1, limit=5
    $region2: #{resnet50_features_forward.80} parent=1 // loop_pre_header
      _
    $region3: #{resnet50_features_forward.80} parent=1 // loop_header
      %s8 = sphi 0, %s12
      %p9 = scmp.ge.s32.totalorder %s8, 5
      %s15 = sphi 0, %s34
      %s16 = sphi 0, %s30
      %s17 = sphi 0, %s26
      %s18 = sphi 0, %s15
      %s19 = sphi 0, %s16
      %s20 = sphi 0, %s17
      %s21 = sphi 0, %s18
      %s22 = sphi 0, %s19
      %s23 = sphi 0, %s20
      %s39 = sphi 0, %s41
      %s42 = sphi 0, %s39
      %s43 = sphi 0, %s42
      %s59 = sphi 0, %s43
      %s67 = sphi 0, %s69
      %s70 = sphi 0, %s67
      %s71 = sphi 0, %s70
      %s87 = sphi 0, %s71
      %s95 = sphi 0, %s97
      %s98 = sphi 0, %s95
      %s99 = sphi 0, %s98
      %s115 = sphi 0, %s99
    $region4: #{resnet50_features_forward.80} parent=1 // loop_header_branch
      %11 = sbr.rel (%p9) target = $region8
    $region5: #{resnet50_features_forward.80} parent=1 // loop_body
      %s13 = ssub.s32 %s8, 1
      %s14 = ssub.s32 %s8, 2
      %s24 = sadd.s32 1, %s17
      %p25 = scmp.ge.s32.totalorder %s24, 3
      %s26 = scalar_select %p25, 0, %s24
      %s27 = sadd.s32 1, %s16
      %s28 = scalar_select %p25, %s27, %s16
      %p29 = scmp.ge.s32.totalorder %s28, 1
      %s30 = scalar_select %p29, 0, %s28
      %s31 = sadd.s32 1, %s15
      %s32 = scalar_select %p29, %s31, %s15
      %p33 = scmp.ge.s32.totalorder %s32, 1
      %s34 = scalar_select %p33, 0, %s32
      %s35 = ssub.s32 %s15, %s34
      %s36 = ssub.s32 %s17, %s26
      %s37 = sor.u32 %s35, %s36
      %p38 = scmp.eq.s32.totalorder %s37, 0
      %s40 = sadd.s32 %s39, 1
      %s41 = scalar_select %p38, %s39, %s40
      %p44 = pneg %p38
      %p45 = scmp.eq.s32.totalorder %s8, 2
      %p46 = por %p44, %p45
      %p47 = scmp.ne.s32.totalorder %s39, %s42
      %p48 = scmp.eq.s32.totalorder %s8, 0
      %p49 = por %p47, %p48
      %p50 = scmp.ne.s32.totalorder %s39, %s42
      %p51 = scmp.eq.s32.totalorder %s13, 2
      %p52 = por %p50, %p51
      %p53 = scmp.ne.s32.totalorder %s42, %s43
      %p54 = scmp.eq.s32.totalorder %s13, 0
      %p55 = por %p53, %p54
      %p56 = scmp.ne.s32.totalorder %s42, %s43
      %p57 = scmp.eq.s32.totalorder %s14, 2
      %p58 = por %p56, %p57
      %p60 = scmp.ne.s32.totalorder %s43, %s59
      %p61 = scmp.eq.s32.totalorder %s14, 0
      %p62 = por %p60, %p61
      %s63 = ssub.s32 %s17, %s26
      %s64 = ssub.s32 %s16, %s30
      %s65 = sor.u32 %s63, %s64
      %p66 = scmp.eq.s32.totalorder %s65, 0
      %s68 = sadd.s32 %s67, 1
      %s69 = scalar_select %p66, %s67, %s68
      %p72 = pneg %p66
      %p73 = scmp.eq.s32.totalorder %s8, 2
      %p74 = por %p72, %p73
      %p75 = scmp.ne.s32.totalorder %s67, %s70
      %p76 = scmp.eq.s32.totalorder %s8, 0
      %p77 = por %p75, %p76
      %p78 = scmp.ne.s32.totalorder %s67, %s70
      %p79 = scmp.eq.s32.totalorder %s13, 2
      %p80 = por %p78, %p79
      %p81 = scmp.ne.s32.totalorder %s70, %s71
      %p82 = scmp.eq.s32.totalorder %s13, 0
      %p83 = por %p81, %p82
      %p84 = scmp.ne.s32.totalorder %s70, %s71
      %p85 = scmp.eq.s32.totalorder %s14, 2
      %p86 = por %p84, %p85
      %p88 = scmp.ne.s32.totalorder %s71, %s87
      %p89 = scmp.eq.s32.totalorder %s14, 0
      %p90 = por %p88, %p89
      %s91 = ssub.s32 %s15, %s34
      %s92 = ssub.s32 %s16, %s30
      %s93 = sor.u32 %s91, %s92
      %p94 = scmp.eq.s32.totalorder %s93, 0
      %s96 = sadd.s32 %s95, 1
      %s97 = scalar_select %p94, %s95, %s96
      %p100 = pneg %p94
      %p101 = scmp.eq.s32.totalorder %s8, 2
      %p102 = por %p100, %p101
      %p103 = scmp.ne.s32.totalorder %s95, %s98
      %p104 = scmp.eq.s32.totalorder %s8, 0
      %p105 = por %p103, %p104
      %p106 = scmp.ne.s32.totalorder %s95, %s98
      %p107 = scmp.eq.s32.totalorder %s13, 2
      %p108 = por %p106, %p107
      %p109 = scmp.ne.s32.totalorder %s98, %s99
      %p110 = scmp.eq.s32.totalorder %s13, 0
      %p111 = por %p109, %p110
      %p112 = scmp.ne.s32.totalorder %s98, %s99
      %p113 = scmp.eq.s32.totalorder %s14, 2
      %p114 = por %p112, %p113
      %p116 = scmp.ne.s32.totalorder %s99, %s115
      %p117 = scmp.eq.s32.totalorder %s14, 0
      %p118 = por %p116, %p117
      %p119 = scmp.le.s32.totalorder 1, %s8
      %p120 = scmp.lt.s32.totalorder %s8, 4
      %p121 = pnand %p119, %p120
      %p122 = pneg %p121
      // Predicated region
      $region9: #{resnet50_features_forward.80} parent=5 // pred_check
        _
      $region10: #{resnet50_features_forward.80} parent=5 // pred_check_branch
        %124 = sbr.rel (%p121) target = $region12
      $region11: #{resnet50_features_forward.80} parent=5 // pred_region
        %s125 = ssub.s32 %s8, 1
      $region12: #{resnet50_features_forward.80} parent=5 // pred_fallthru
        _
      %p126 = scmp.lt.s32.totalorder %s8, 3
      // Predicated region
      $region13: #{resnet50_features_forward.80} parent=5 // pred_check
        %p127 = pneg %p126
      $region14: #{resnet50_features_forward.80} parent=5 // pred_check_branch
        %129 = sbr.rel (%p127) target = $region16
      $region15: #{resnet50_features_forward.80} parent=5 // pred_region
        // Predicated region
        $region17: #{resnet50_features_forward.80} parent=15 // pred_check
          %p130 = pneg %p49
        $region18: #{resnet50_features_forward.80} parent=15 // pred_check_branch
          %132 = sbr.rel (%p130) target = $region20
        $region19: #{resnet50_features_forward.80} parent=15 // pred_region
          %s133 = sand.u32 %s39, 1
          %s134 = sand.u32 %s39, 1
          %s135 = smul.addr %s134, 128
          %s136 = scalar_lea.vmem [#allocation3], %s135
          %s137 = smul.u32 16, %s15
          %s138 = smul.u32 2, %s17
          %s139 = smul.addr %s137, 6
          %s140 = sadd.s32 %s138, %s139
          %s141 = smul.addr %s140, 4
          %s142 = scalar_lea.vmem %s0, %s141
          // Predicated region
          $region21: #{resnet50_features_forward.80} parent=19 // pred_check
            _
          $region22: #{resnet50_features_forward.80} parent=19 // pred_check_branch
            %144 = sbr.rel (0) target = $region24
          $region23: #{resnet50_features_forward.80} parent=19 // pred_region
            // Predicated region
            $region25: #{resnet50_features_forward.80} parent=23 // pred_check
              _
            $region26: #{resnet50_features_forward.80} parent=23 // pred_check_branch
              %146 = sbr.rel (0) target = $region28
            $region27: #{resnet50_features_forward.80} parent=23 // pred_region
              // Predicated region
              $region40: #{resnet50_features_forward.80} parent=27 // pred_check
                _
              $region41: #{resnet50_features_forward.80} parent=27 // pred_check_branch
                %192 = sbr.rel (0) target = $region43
              $region42: #{resnet50_features_forward.80} parent=27 // pred_region
                loop: start=0, step=1, limit=1
                $region44: #{resnet50_features_forward.80} parent=42 // loop_pre_header
                  _
                $region45: #{resnet50_features_forward.80} parent=42 // loop_header
                  %s194 = sphi 0, %s198
                  %p195 = scmp.ge.s32.totalorder %s194, 1
                  %s199 = sphi %s142, %s142
                  %s200 = sphi %s136, %s136
                $region46: #{resnet50_features_forward.80} parent=42 // loop_header_branch
                  %197 = sbr.rel (%p195) target = $region50
                $region47: #{resnet50_features_forward.80} parent=42 // loop_body
                  %v201 = vld [vmem:[%s199] sm:$0xff]
                  %202 = vst [vmem:[%s200] sm:$0xff] %v201
                  %v203 = vld [vmem:[%s199 + $0x18] sm:$0xff]
                  %204 = vst [vmem:[%s200 + $0x8] sm:$0xff] %v203
                  %v205 = vld [vmem:[%s199 + $0x30] sm:$0xff]
                  %206 = vst [vmem:[%s200 + $0x10] sm:$0xff] %v205
                  %v207 = vld [vmem:[%s199 + $0x48] sm:$0xff]
                  %208 = vst [vmem:[%s200 + $0x18] sm:$0xff] %v207
                  %v209 = vld [vmem:[%s199 + $0x60] sm:$0xff]
                  %210 = vst [vmem:[%s200 + $0x20] sm:$0xff] %v209
                  %v211 = vld [vmem:[%s199 + $0x78] sm:$0xff]
                  %212 = vst [vmem:[%s200 + $0x28] sm:$0xff] %v211
                  %v213 = vld [vmem:[%s199 + $0x90] sm:$0xff]
                  %214 = vst [vmem:[%s200 + $0x30] sm:$0xff] %v213
                  %v215 = vld [vmem:[%s199 + $0xa8] sm:$0xff]
                  %216 = vst [vmem:[%s200 + $0x38] sm:$0xff] %v215
                  %v217 = vld [vmem:[%s199 + $0xc0] sm:$0xff]
                  %218 = vst [vmem:[%s200 + $0x40] sm:$0xff] %v217
                  %v219 = vld [vmem:[%s199 + $0xd8] sm:$0xff]
                  %220 = vst [vmem:[%s200 + $0x48] sm:$0xff] %v219
                  %v221 = vld [vmem:[%s199 + $0xf0] sm:$0xff]
                  %222 = vst [vmem:[%s200 + $0x50] sm:$0xff] %v221
                  %v223 = vld [vmem:[%s199 + $0x108] sm:$0xff]
                  %224 = vst [vmem:[%s200 + $0x58] sm:$0xff] %v223
                  %v225 = vld [vmem:[%s199 + $0x120] sm:$0xff]
                  %226 = vst [vmem:[%s200 + $0x60] sm:$0xff] %v225
                  %v227 = vld [vmem:[%s199 + $0x138] sm:$0xff]
                  %228 = vst [vmem:[%s200 + $0x68] sm:$0xff] %v227
                  %v229 = vld [vmem:[%s199 + $0x150] sm:$0xff]
                  %230 = vst [vmem:[%s200 + $0x70] sm:$0xff] %v229
                  %v231 = vld [vmem:[%s199 + $0x168] sm:$0xff]
                  %232 = vst [vmem:[%s200 + $0x78] sm:$0xff] %v231
                $region48: #{resnet50_features_forward.80} parent=42 // loop_footer
                  %s198 = sadd.s32 1, %s194
                $region49: #{resnet50_features_forward.80} parent=42 // loop_footer_branch
                  %193 = sbr.rel target = $region45
                $region50: #{resnet50_features_forward.80} parent=42 // loop_exit
                  _
              $region43: #{resnet50_features_forward.80} parent=27 // pred_fallthru
                _
              // Predicated region
              $region51: #{resnet50_features_forward.80} parent=27 // pred_check
                _
              $region52: #{resnet50_features_forward.80} parent=27 // pred_check_branch
                %234 = sbr.rel target = $region54
              $region53: #{resnet50_features_forward.80} parent=27 // pred_region
                _
              $region54: #{resnet50_features_forward.80} parent=27 // pred_fallthru
                _
            $region28: #{resnet50_features_forward.80} parent=23 // pred_fallthru
              _
            // Predicated region
            $region29: #{resnet50_features_forward.80} parent=23 // pred_check
              _
            $region30: #{resnet50_features_forward.80} parent=23 // pred_check_branch
              %148 = sbr.rel target = $region32
            $region31: #{resnet50_features_forward.80} parent=23 // pred_region
              %s150 = ssub.s32 256, 1
              loop: start=0, step=1, limit=1
              $region33: #{resnet50_features_forward.80} parent=31 // loop_pre_header
                _
              $region34: #{resnet50_features_forward.80} parent=31 // loop_header
                %s152 = sphi 0, %s156
                %p153 = scmp.ge.s32.totalorder %s152, 1
                %s157 = sphi %s142, %s142
                %s158 = sphi %s136, %s136
              $region35: #{resnet50_features_forward.80} parent=31 // loop_header_branch
                %155 = sbr.rel (%p153) target = $region39
              $region36: #{resnet50_features_forward.80} parent=31 // loop_body
                %v159 = vld [vmem:[%s157] sm:%s150]
                %160 = vst [vmem:[%s158] sm:%s150] %v159
                %v161 = vld [vmem:[%s157 + $0x18] sm:%s150]
                %162 = vst [vmem:[%s158 + $0x8] sm:%s150] %v161
                %v163 = vld [vmem:[%s157 + $0x30] sm:%s150]
                %164 = vst [vmem:[%s158 + $0x10] sm:%s150] %v163
                %v165 = vld [vmem:[%s157 + $0x48] sm:%s150]
                %166 = vst [vmem:[%s158 + $0x18] sm:%s150] %v165
                %v167 = vld [vmem:[%s157 + $0x60] sm:%s150]
                %168 = vst [vmem:[%s158 + $0x20] sm:%s150] %v167
                %v169 = vld [vmem:[%s157 + $0x78] sm:%s150]
                %170 = vst [vmem:[%s158 + $0x28] sm:%s150] %v169
                %v171 = vld [vmem:[%s157 + $0x90] sm:%s150]
                %172 = vst [vmem:[%s158 + $0x30] sm:%s150] %v171
                %v173 = vld [vmem:[%s157 + $0xa8] sm:%s150]
                %174 = vst [vmem:[%s158 + $0x38] sm:%s150] %v173
                %v175 = vld [vmem:[%s157 + $0xc0] sm:%s150]
                %176 = vst [vmem:[%s158 + $0x40] sm:%s150] %v175
                %v177 = vld [vmem:[%s157 + $0xd8] sm:%s150]
                %178 = vst [vmem:[%s158 + $0x48] sm:%s150] %v177
                %v179 = vld [vmem:[%s157 + $0xf0] sm:%s150]
                %180 = vst [vmem:[%s158 + $0x50] sm:%s150] %v179
                %v181 = vld [vmem:[%s157 + $0x108] sm:%s150]
                %182 = vst [vmem:[%s158 + $0x58] sm:%s150] %v181
                %v183 = vld [vmem:[%s157 + $0x120] sm:%s150]
                %184 = vst [vmem:[%s158 + $0x60] sm:%s150] %v183
                %v185 = vld [vmem:[%s157 + $0x138] sm:%s150]
                %186 = vst [vmem:[%s158 + $0x68] sm:%s150] %v185
                %v187 = vld [vmem:[%s157 + $0x150] sm:%s150]
                %188 = vst [vmem:[%s158 + $0x70] sm:%s150] %v187
                %v189 = vld [vmem:[%s157 + $0x168] sm:%s150]
                %190 = vst [vmem:[%s158 + $0x78] sm:%s150] %v189
              $region37: #{resnet50_features_forward.80} parent=31 // loop_footer
                %s156 = sadd.s32 1, %s152
              $region38: #{resnet50_features_forward.80} parent=31 // loop_footer_branch
                %151 = sbr.rel target = $region34
              $region39: #{resnet50_features_forward.80} parent=31 // loop_exit
                _
            $region32: #{resnet50_features_forward.80} parent=23 // pred_fallthru
              _
          $region24: #{resnet50_features_forward.80} parent=19 // pred_fallthru
            _
          %235 = vnop
        $region20: #{resnet50_features_forward.80} parent=15 // pred_fallthru
          _
        // Predicated region
        $region55: #{resnet50_features_forward.80} parent=15 // pred_check
          %p236 = pneg %p77
        $region56: #{resnet50_features_forward.80} parent=15 // pred_check_branch
          %238 = sbr.rel (%p236) target = $region58
        $region57: #{resnet50_features_forward.80} parent=15 // pred_region
          %s239 = smul.u32 32, %s17
          %p240 = scmp.lt.s32.totalorder %s239, 95
          %s241 = scalar_select %p240, %s239, 95
          %p242 = scmp.lt.s32.totalorder %s16, 0
          %s243 = scalar_select %p242, %s16, 0
          %s244 = sadd.s32 %s243, %s241
          %s245 = smul.addr %s244, 4
          %s246 = scalar_lea.vmem %s1, %s245
          %s247 = smul.u32 32, %s17
        $region58: #{resnet50_features_forward.80} parent=15 // pred_fallthru
          _
      $region16: #{resnet50_features_forward.80} parent=5 // pred_fallthru
        _
      %p248 = scmp.le.s32.totalorder 1, %s8
      %p249 = scmp.lt.s32.totalorder %s8, 4
      %p250 = pnand %p248, %p249
      %p251 = pneg %p250
      // Predicated region
      $region59: #{resnet50_features_forward.80} parent=5 // pred_check
        _
      $region60: #{resnet50_features_forward.80} parent=5 // pred_check_branch
        %253 = sbr.rel (%p250) target = $region62
      $region61: #{resnet50_features_forward.80} parent=5 // pred_region
        %s254 = ssub.s32 %s8, 1
        %s255 = sand.u32 %s42, 1
        %s256 = sand.u32 %s42, 1
        %s257 = smul.addr %s256, 128
        %s258 = scalar_lea.vmem [#allocation3], %s257
        // Predicated region
        $region63: #{resnet50_features_forward.80} parent=61 // pred_check
          %p259 = pneg %p55
        $region64: #{resnet50_features_forward.80} parent=61 // pred_check_branch
          %261 = sbr.rel (%p259) target = $region66
        $region65: #{resnet50_features_forward.80} parent=61 // pred_region
          _
        $region66: #{resnet50_features_forward.80} parent=61 // pred_fallthru
          _
        %s262 = sand.u32 %s42, 1
        %s263 = sand.u32 %s42, 1
        %s264 = smul.addr %s263, 128
        %s265 = scalar_lea.vmem [#allocation3], %s264
        %p266 = pneg %p55
        %p267 = pneg %p52
        %s268 = smul.u32 32, %s20
        %p269 = scmp.lt.s32.totalorder %s268, 95
        %s270 = scalar_select %p269, %s268, 95
        %p271 = scmp.lt.s32.totalorder %s19, 0
        %s272 = scalar_select %p271, %s19, 0
        %s273 = sadd.s32 %s272, %s270
        %s274 = smul.addr %s273, 4
        %s275 = scalar_lea.vmem %s1, %s274
        %p276 = pneg %p83
        %p277 = pneg %p80
        %p278 = pneg %p111
        %p279 = pneg %p108
        %s280 = smul.u32 16, %s18
        %p281 = scmp.lt.s32.totalorder %s280, 15
        %s282 = scalar_select %p281, %s280, 15
        %p283 = scmp.lt.s32.totalorder %s19, 0
        %s284 = scalar_select %p283, %s19, 0
        %s285 = sadd.s32 %s284, %s282
        %s286 = smul.addr %s285, 8
        %s287 = scalar_lea.vmem %s2, %s286
        %s288 = smul.u32 16, %s18
        %s289 = smul.u32 2, %s20
        %s290 = smul.u32 32, %s20
        %p291 = scmp.lt.s32.totalorder %s290, 95
        %s292 = scalar_select %p291, %s290, 95
        %p293 = scmp.lt.s32.totalorder %s19, 0
        %s294 = scalar_select %p293, %s19, 0
        %s295 = sadd.s32 %s294, %s292
        %s296 = smul.addr %s295, 4
        %s297 = scalar_lea.vmem %s1, %s296
        %s298 = smul.u32 32, %s20
        %s299 = smul.u32 16, %s18
        %p300 = scmp.lt.s32.totalorder %s299, 15
        %s301 = scalar_select %p300, %s299, 15
        %p302 = scmp.lt.s32.totalorder %s19, 0
        %s303 = scalar_select %p302, %s19, 0
        %s304 = sadd.s32 %s303, %s301
        %s305 = smul.addr %s304, 8
        %s306 = scalar_lea.vmem %s2, %s305
        %s307 = smul.u32 16, %s18
        %p309 = scmp.eq.s32.totalorder %s20, 0
        // Predicated region
        $region67: #{resnet50_features_forward.80} parent=61 // pred_check
          %p310 = pneg %p309
        $region68: #{resnet50_features_forward.80} parent=61 // pred_check_branch
          %312 = sbr.rel (%p310) target = $region70
        $region69: #{resnet50_features_forward.80} parent=61 // pred_region
          %313 = vst [vmem:[#allocation2] sm:$0xff] 0.0
          %314 = vst [vmem:[#allocation2 + $0x8] sm:$0xff] 0.0
          %315 = vst [vmem:[#allocation2 + $0x10] sm:$0xff] 0.0
          %316 = vst [vmem:[#allocation2 + $0x18] sm:$0xff] 0.0
          %317 = vst [vmem:[#allocation2 + $0x20] sm:$0xff] 0.0
          %318 = vst [vmem:[#allocation2 + $0x28] sm:$0xff] 0.0
          %319 = vst [vmem:[#allocation2 + $0x30] sm:$0xff] 0.0
          %320 = vst [vmem:[#allocation2 + $0x38] sm:$0xff] 0.0
          %321 = vst [vmem:[#allocation2 + $0x40] sm:$0xff] 0.0
          %322 = vst [vmem:[#allocation2 + $0x48] sm:$0xff] 0.0
          %323 = vst [vmem:[#allocation2 + $0x50] sm:$0xff] 0.0
          %324 = vst [vmem:[#allocation2 + $0x58] sm:$0xff] 0.0
          %325 = vst [vmem:[#allocation2 + $0x60] sm:$0xff] 0.0
          %326 = vst [vmem:[#allocation2 + $0x68] sm:$0xff] 0.0
          %327 = vst [vmem:[#allocation2 + $0x70] sm:$0xff] 0.0
          %328 = vst [vmem:[#allocation2 + $0x78] sm:$0xff] 0.0
        $region70: #{resnet50_features_forward.80} parent=61 // pred_fallthru
          _
        %v329 = vld [vmem:[#allocation2] sm:$0xff]
        %v330 = vld [vmem:[#allocation2 + $0x8] sm:$0xff]
        %v331 = vld [vmem:[#allocation2 + $0x10] sm:$0xff]
        %v332 = vld [vmem:[#allocation2 + $0x18] sm:$0xff]
        %v333 = vld [vmem:[#allocation2 + $0x20] sm:$0xff]
        %v334 = vld [vmem:[#allocation2 + $0x28] sm:$0xff]
        %v335 = vld [vmem:[#allocation2 + $0x30] sm:$0xff]
        %v336 = vld [vmem:[#allocation2 + $0x38] sm:$0xff]
        %v337 = vld [vmem:[#allocation2 + $0x40] sm:$0xff]
        %v338 = vld [vmem:[#allocation2 + $0x48] sm:$0xff]
        %v339 = vld [vmem:[#allocation2 + $0x50] sm:$0xff]
        %v340 = vld [vmem:[#allocation2 + $0x58] sm:$0xff]
        %v341 = vld [vmem:[#allocation2 + $0x60] sm:$0xff]
        %v342 = vld [vmem:[#allocation2 + $0x68] sm:$0xff]
        %v343 = vld [vmem:[#allocation2 + $0x70] sm:$0xff]
        %v344 = vld [vmem:[#allocation2 + $0x78] sm:$0xff]
        %v345 = vld [vmem:[%s258] sm:$0xff]
        %v346 = vld [vmem:[%s258 + $0x8] sm:$0xff]
        %v347 = vld [vmem:[%s258 + $0x10] sm:$0xff]
        %v348 = vld [vmem:[%s258 + $0x18] sm:$0xff]
        %v349 = vld [vmem:[%s258 + $0x20] sm:$0xff]
        %v350 = vld [vmem:[%s258 + $0x28] sm:$0xff]
        %v351 = vld [vmem:[%s258 + $0x30] sm:$0xff]
        %v352 = vld [vmem:[%s258 + $0x38] sm:$0xff]
        %v353 = vld [vmem:[%s258 + $0x40] sm:$0xff]
        %v354 = vld [vmem:[%s258 + $0x48] sm:$0xff]
        %v355 = vld [vmem:[%s258 + $0x50] sm:$0xff]
        %v356 = vld [vmem:[%s258 + $0x58] sm:$0xff]
        %v357 = vld [vmem:[%s258 + $0x60] sm:$0xff]
        %v358 = vld [vmem:[%s258 + $0x68] sm:$0xff]
        %v359 = vld [vmem:[%s258 + $0x70] sm:$0xff]
        %v360 = vld [vmem:[%s258 + $0x78] sm:$0xff]
        %v361 = vld [vmem:[%s297] sm:$0xf]
        %v362 = vld [vmem:[%s297 + $0x4] sm:$0xf]
        %v363 = vld [vmem:[%s297 + $0x8] sm:$0xf]
        %v364 = vld [vmem:[%s297 + $0xc] sm:$0xf]
        %v365 = vld [vmem:[%s297 + $0x10] sm:$0xf]
        %v366 = vld [vmem:[%s297 + $0x14] sm:$0xf]
        %v367 = vld [vmem:[%s297 + $0x18] sm:$0xf]
        %v368 = vld [vmem:[%s297 + $0x1c] sm:$0xf]
        %v369 = vld [vmem:[%s297 + $0x20] sm:$0xf]
        %v370 = vld [vmem:[%s297 + $0x24] sm:$0xf]
        %v371 = vld [vmem:[%s297 + $0x28] sm:$0xf]
        %v372 = vld [vmem:[%s297 + $0x2c] sm:$0xf]
        %v373 = vld [vmem:[%s297 + $0x30] sm:$0xf]
        %v374 = vld [vmem:[%s297 + $0x34] sm:$0xf]
        %v375 = vld [vmem:[%s297 + $0x38] sm:$0xf]
        %v376 = vld [vmem:[%s297 + $0x3c] sm:$0xf]
        %v377 = vld [vmem:[%s297 + $0x40] sm:$0xf]
        %v378 = vld [vmem:[%s297 + $0x44] sm:$0xf]
        %v379 = vld [vmem:[%s297 + $0x48] sm:$0xf]
        %v380 = vld [vmem:[%s297 + $0x4c] sm:$0xf]
        %v381 = vld [vmem:[%s297 + $0x50] sm:$0xf]
        %v382 = vld [vmem:[%s297 + $0x54] sm:$0xf]
        %v383 = vld [vmem:[%s297 + $0x58] sm:$0xf]
        %v384 = vld [vmem:[%s297 + $0x5c] sm:$0xf]
        %v385 = vld [vmem:[%s297 + $0x60] sm:$0xf]
        %v386 = vld [vmem:[%s297 + $0x64] sm:$0xf]
        %v387 = vld [vmem:[%s297 + $0x68] sm:$0xf]
        %v388 = vld [vmem:[%s297 + $0x6c] sm:$0xf]
        %v389 = vld [vmem:[%s297 + $0x70] sm:$0xf]
        %v390 = vld [vmem:[%s297 + $0x74] sm:$0xf]
        %v391 = vld [vmem:[%s297 + $0x78] sm:$0xf]
        %v392 = vld [vmem:[%s297 + $0x7c] sm:$0xf]
        %v409 = vunpack.c.l.b16 %v345
        %v410 = vunpack.c.h.b16 %v345
        %v411 = vunpack.c.l.b16 %v346
        %v412 = vunpack.c.h.b16 %v346
        %v413 = vunpack.c.l.b16 %v347
        %v414 = vunpack.c.h.b16 %v347
        %v415 = vunpack.c.l.b16 %v348
        %v416 = vunpack.c.h.b16 %v348
        %v417 = vunpack.c.l.b16 %v349
        %v418 = vunpack.c.h.b16 %v349
        %v419 = vunpack.c.l.b16 %v350
        %v420 = vunpack.c.h.b16 %v350
        %v421 = vunpack.c.l.b16 %v351
        %v422 = vunpack.c.h.b16 %v351
        %v423 = vunpack.c.l.b16 %v352
        %v424 = vunpack.c.h.b16 %v352
        %v425 = vunpack.c.l.b16 %v353
        %v426 = vunpack.c.h.b16 %v353
        %v427 = vunpack.c.l.b16 %v354
        %v428 = vunpack.c.h.b16 %v354
        %v429 = vunpack.c.l.b16 %v355
        %v430 = vunpack.c.h.b16 %v355
        %v431 = vunpack.c.l.b16 %v356
        %v432 = vunpack.c.h.b16 %v356
        %v433 = vunpack.c.l.b16 %v357
        %v434 = vunpack.c.h.b16 %v357
        %v435 = vunpack.c.l.b16 %v358
        %v436 = vunpack.c.h.b16 %v358
        %v437 = vunpack.c.l.b16 %v359
        %v438 = vunpack.c.h.b16 %v359
        %v439 = vunpack.c.l.b16 %v360
        %v440 = vunpack.c.h.b16 %v360
        %v441 = vpack.c.b16 %v411, %v409
        %v442 = vpack.c.b16 %v412, %v410
        %v443 = vpack.c.b16 %v415, %v413
        %v444 = vpack.c.b16 %v416, %v414
        %v445 = vpack.c.b16 %v419, %v417
        %v446 = vpack.c.b16 %v420, %v418
        %v447 = vpack.c.b16 %v423, %v421
        %v448 = vpack.c.b16 %v424, %v422
        %v449 = vpack.c.b16 %v427, %v425
        %v450 = vpack.c.b16 %v428, %v426
        %v451 = vpack.c.b16 %v431, %v429
        %v452 = vpack.c.b16 %v432, %v430
        %v453 = vpack.c.b16 %v435, %v433
        %v454 = vpack.c.b16 %v436, %v434
        %v455 = vpack.c.b16 %v439, %v437
        %v456 = vpack.c.b16 %v440, %v438
        %v505 = vunpack.c.l.b16 %v361
        %v506 = vunpack.c.l.b16 %v362
        %v507 = vunpack.c.l.b16 %v363
        %v508 = vunpack.c.l.b16 %v364
        %v509 = vunpack.c.l.b16 %v365
        %v510 = vunpack.c.l.b16 %v366
        %v511 = vunpack.c.l.b16 %v367
        %v512 = vunpack.c.l.b16 %v368
        %v513 = vunpack.c.l.b16 %v369
        %v514 = vunpack.c.l.b16 %v370
        %v515 = vunpack.c.l.b16 %v371
        %v516 = vunpack.c.l.b16 %v372
        %v517 = vunpack.c.l.b16 %v373
        %v518 = vunpack.c.l.b16 %v374
        %v519 = vunpack.c.l.b16 %v375
        %v520 = vunpack.c.l.b16 %v376
        %v521 = vunpack.c.l.b16 %v377
        %v522 = vunpack.c.l.b16 %v378
        %v523 = vunpack.c.l.b16 %v379
        %v524 = vunpack.c.l.b16 %v380
        %v525 = vunpack.c.l.b16 %v381
        %v526 = vunpack.c.l.b16 %v382
        %v527 = vunpack.c.l.b16 %v383
        %v528 = vunpack.c.l.b16 %v384
        %v529 = vunpack.c.l.b16 %v385
        %v530 = vunpack.c.l.b16 %v386
        %v531 = vunpack.c.l.b16 %v387
        %v532 = vunpack.c.l.b16 %v388
        %v533 = vunpack.c.l.b16 %v389
        %v534 = vunpack.c.l.b16 %v390
        %v535 = vunpack.c.l.b16 %v391
        %v536 = vunpack.c.l.b16 %v392
        %v537 = vpack.c.b16 %v506, %v505
        %v538 = vpack.c.b16 %v508, %v507
        %v539 = vpack.c.b16 %v510, %v509
        %v540 = vpack.c.b16 %v512, %v511
        %v541 = vpack.c.b16 %v514, %v513
        %v542 = vpack.c.b16 %v516, %v515
        %v543 = vpack.c.b16 %v518, %v517
        %v544 = vpack.c.b16 %v520, %v519
        %v545 = vpack.c.b16 %v522, %v521
        %v546 = vpack.c.b16 %v524, %v523
        %v547 = vpack.c.b16 %v526, %v525
        %v548 = vpack.c.b16 %v528, %v527
        %v549 = vpack.c.b16 %v530, %v529
        %v550 = vpack.c.b16 %v532, %v531
        %v551 = vpack.c.b16 %v534, %v533
        %v552 = vpack.c.b16 %v536, %v535
        %569 = vmatprep.subr.bf16.mxu0 0
        %570 = vmatpush1.bf16.msra.mxu0 %v544
        %571 = vmatprep.subr.bf16.mxu0 0
        %572 = vmatpush1.bf16.msra.mxu0 %v543
        %573 = vmatprep.subr.bf16.mxu0 0
        %574 = vmatpush1.bf16.msra.mxu0 %v542
        %575 = vmatprep.subr.bf16.mxu0 0
        %576 = vmatpush1.bf16.msra.mxu0 %v541
        %577 = vmatprep.subr.bf16.mxu0 0
        %578 = vmatpush1.bf16.msra.mxu0 %v540
        %579 = vmatprep.subr.bf16.mxu0 0
        %580 = vmatpush1.bf16.msra.mxu0 %v539
        %581 = vmatprep.subr.bf16.mxu0 0
        %582 = vmatpush1.bf16.msra.mxu0 %v538
        %583 = vmatprep.subr.bf16.mxu0 0
        %584 = vmatpush1.bf16.msra.mxu0 %v537
        %585 = vmatprep.subr.bf16.mxu0 0
        %586 = vmatpush2.bf16.msra.mxu0 %v552
        %587 = vmatprep.subr.bf16.mxu0 0
        %588 = vmatpush2.bf16.msra.mxu0 %v551
        %589 = vmatprep.subr.bf16.mxu0 0
        %590 = vmatpush2.bf16.msra.mxu0 %v550
        %591 = vmatprep.subr.bf16.mxu0 0
        %592 = vmatpush2.bf16.msra.mxu0 %v549
        %593 = vmatprep.subr.bf16.mxu0 0
        %594 = vmatpush2.bf16.msra.mxu0 %v548
        %595 = vmatprep.subr.bf16.mxu0 0
        %596 = vmatpush2.bf16.msra.mxu0 %v547
        %597 = vmatprep.subr.bf16.mxu0 0
        %598 = vmatpush2.bf16.msra.mxu0 %v546
        %599 = vmatprep.subr.bf16.mxu0 0
        %600 = vmatpush2.bf16.msra.mxu0 %v545
        %601 = vmatprep.mubr.bf16.mxu0 %v442
        %602 = vmatmul.mubr.bf16.gmra.mxu0 %v441
        %v603 = vpop.f32.mrf.mxu0
        %v604 = vadd.f32 0.0, %v603
        %v605 = vpop.f32.mrf.mxu0
        %v606 = vpop.f32.mrf.mxu0
        %v607 = vadd.f32 0.0, %v606
        %v608 = vpop.f32.mrf.mxu0
        %609 = vmatprep.mubr.bf16.mxu0 %v444
        %610 = vmatmul.mubr.bf16.gmra.mxu0 %v443
        %v611 = vpop.f32.mrf.mxu0
        %v612 = vadd.f32 0.0, %v611
        %v613 = vpop.f32.mrf.mxu0
        %v614 = vpop.f32.mrf.mxu0
        %v615 = vadd.f32 0.0, %v614
        %v616 = vpop.f32.mrf.mxu0
        %617 = vmatprep.mubr.bf16.mxu0 %v446
        %618 = vmatmul.mubr.bf16.gmra.mxu0 %v445
        %v619 = vpop.f32.mrf.mxu0
        %v620 = vadd.f32 0.0, %v619
        %v621 = vpop.f32.mrf.mxu0
        %v622 = vpop.f32.mrf.mxu0
        %v623 = vadd.f32 0.0, %v622
        %v624 = vpop.f32.mrf.mxu0
        %625 = vmatprep.mubr.bf16.mxu0 %v448
        %626 = vmatmul.mubr.bf16.gmra.mxu0 %v447
        %v627 = vpop.f32.mrf.mxu0
        %v628 = vadd.f32 0.0, %v627
        %v629 = vpop.f32.mrf.mxu0
        %v630 = vpop.f32.mrf.mxu0
        %v631 = vadd.f32 0.0, %v630
        %v632 = vpop.f32.mrf.mxu0
        %633 = vmatprep.mubr.bf16.mxu0 %v450
        %634 = vmatmul.mubr.bf16.gmra.mxu0 %v449
        %v635 = vpop.f32.mrf.mxu0
        %v636 = vadd.f32 0.0, %v635
        %v637 = vpop.f32.mrf.mxu0
        %v638 = vpop.f32.mrf.mxu0
        %v639 = vadd.f32 0.0, %v638
        %v640 = vpop.f32.mrf.mxu0
        %641 = vmatprep.mubr.bf16.mxu0 %v452
        %642 = vmatmul.mubr.bf16.gmra.mxu0 %v451
        %v643 = vpop.f32.mrf.mxu0
        %v644 = vadd.f32 0.0, %v643
        %v645 = vpop.f32.mrf.mxu0
        %v646 = vpop.f32.mrf.mxu0
        %v647 = vadd.f32 0.0, %v646
        %v648 = vpop.f32.mrf.mxu0
        %649 = vmatprep.mubr.bf16.mxu0 %v454
        %650 = vmatmul.mubr.bf16.gmra.mxu0 %v453
        %v651 = vpop.f32.mrf.mxu0
        %v652 = vadd.f32 0.0, %v651
        %v653 = vpop.f32.mrf.mxu0
        %v654 = vpop.f32.mrf.mxu0
        %v655 = vadd.f32 0.0, %v654
        %v656 = vpop.f32.mrf.mxu0
        %657 = vmatprep.mubr.bf16.mxu0 %v456
        %658 = vmatmul.mubr.bf16.gmra.mxu0 %v455
        %v659 = vpop.f32.mrf.mxu0
        %v660 = vadd.f32 0.0, %v659
        %v661 = vpop.f32.mrf.mxu0
        %v662 = vpop.f32.mrf.mxu0
        %v663 = vadd.f32 0.0, %v662
        %v664 = vpop.f32.mrf.mxu0
        %665 = vdwg.mxu0
        %v666 = vadd.f32 %v329, %v604
        %v667 = vadd.f32 %v330, %v607
        %v668 = vadd.f32 %v331, %v612
        %v669 = vadd.f32 %v332, %v615
        %v670 = vadd.f32 %v333, %v620
        %v671 = vadd.f32 %v334, %v623
        %v672 = vadd.f32 %v335, %v628
        %v673 = vadd.f32 %v336, %v631
        %v674 = vadd.f32 %v337, %v636
        %v675 = vadd.f32 %v338, %v639
        %v676 = vadd.f32 %v339, %v644
        %v677 = vadd.f32 %v340, %v647
        %v678 = vadd.f32 %v341, %v652
        %v679 = vadd.f32 %v342, %v655
        %v680 = vadd.f32 %v343, %v660
        %v681 = vadd.f32 %v344, %v663
        %682 = vst [vmem:[#allocation2] sm:$0xff] %v666
        %683 = vst [vmem:[#allocation2 + $0x8] sm:$0xff] %v667
        %684 = vst [vmem:[#allocation2 + $0x10] sm:$0xff] %v668
        %685 = vst [vmem:[#allocation2 + $0x18] sm:$0xff] %v669
        %686 = vst [vmem:[#allocation2 + $0x20] sm:$0xff] %v670
        %687 = vst [vmem:[#allocation2 + $0x28] sm:$0xff] %v671
        %688 = vst [vmem:[#allocation2 + $0x30] sm:$0xff] %v672
        %689 = vst [vmem:[#allocation2 + $0x38] sm:$0xff] %v673
        %690 = vst [vmem:[#allocation2 + $0x40] sm:$0xff] %v674
        %691 = vst [vmem:[#allocation2 + $0x48] sm:$0xff] %v675
        %692 = vst [vmem:[#allocation2 + $0x50] sm:$0xff] %v676
        %693 = vst [vmem:[#allocation2 + $0x58] sm:$0xff] %v677
        %694 = vst [vmem:[#allocation2 + $0x60] sm:$0xff] %v678
        %695 = vst [vmem:[#allocation2 + $0x68] sm:$0xff] %v679
        %696 = vst [vmem:[#allocation2 + $0x70] sm:$0xff] %v680
        %697 = vst [vmem:[#allocation2 + $0x78] sm:$0xff] %v681
        %p698 = scmp.eq.s32.totalorder %s20, 2
        // Predicated region
        $region71: #{resnet50_features_forward.80} parent=61 // pred_check
          %p699 = pneg %p698
        $region72: #{resnet50_features_forward.80} parent=61 // pred_check_branch
          %701 = sbr.rel (%p699) target = $region74
        $region73: #{resnet50_features_forward.80} parent=61 // pred_region
          %v702 = vld [vmem:[#allocation2] sm:$0xff]
          %v703 = vld [vmem:[#allocation2 + $0x8] sm:$0xff]
          %v704 = vld [vmem:[#allocation2 + $0x10] sm:$0xff]
          %v705 = vld [vmem:[#allocation2 + $0x18] sm:$0xff]
          %v706 = vld [vmem:[#allocation2 + $0x20] sm:$0xff]
          %v707 = vld [vmem:[#allocation2 + $0x28] sm:$0xff]
          %v708 = vld [vmem:[#allocation2 + $0x30] sm:$0xff]
          %v709 = vld [vmem:[#allocation2 + $0x38] sm:$0xff]
          %v710 = vld [vmem:[#allocation2 + $0x40] sm:$0xff]
          %v711 = vld [vmem:[#allocation2 + $0x48] sm:$0xff]
          %v712 = vld [vmem:[#allocation2 + $0x50] sm:$0xff]
          %v713 = vld [vmem:[#allocation2 + $0x58] sm:$0xff]
          %v714 = vld [vmem:[#allocation2 + $0x60] sm:$0xff]
          %v715 = vld [vmem:[#allocation2 + $0x68] sm:$0xff]
          %v716 = vld [vmem:[#allocation2 + $0x70] sm:$0xff]
          %v717 = vld [vmem:[#allocation2 + $0x78] sm:$0xff]
          %718 = vst [vmem:[%s306] sm:$0xff] %v702
          %719 = vst [vmem:[%s306 + $0x8] sm:$0xff] %v703
          %720 = vst [vmem:[%s306 + $0x10] sm:$0xff] %v704
          %721 = vst [vmem:[%s306 + $0x18] sm:$0xff] %v705
          %722 = vst [vmem:[%s306 + $0x20] sm:$0xff] %v706
          %723 = vst [vmem:[%s306 + $0x28] sm:$0xff] %v707
          %724 = vst [vmem:[%s306 + $0x30] sm:$0xff] %v708
          %725 = vst [vmem:[%s306 + $0x38] sm:$0xff] %v709
          %726 = vst [vmem:[%s306 + $0x40] sm:$0xff] %v710
          %727 = vst [vmem:[%s306 + $0x48] sm:$0xff] %v711
          %728 = vst [vmem:[%s306 + $0x50] sm:$0xff] %v712
          %729 = vst [vmem:[%s306 + $0x58] sm:$0xff] %v713
          %730 = vst [vmem:[%s306 + $0x60] sm:$0xff] %v714
          %731 = vst [vmem:[%s306 + $0x68] sm:$0xff] %v715
          %732 = vst [vmem:[%s306 + $0x70] sm:$0xff] %v716
          %733 = vst [vmem:[%s306 + $0x78] sm:$0xff] %v717
        $region74: #{resnet50_features_forward.80} parent=61 // pred_fallthru
          _
        %s734 = smul.u32 16, %s18
        %p735 = scmp.lt.s32.totalorder %s734, 15
        %s736 = scalar_select %p735, %s734, 15
        %p737 = scmp.lt.s32.totalorder %s19, 0
        %s738 = scalar_select %p737, %s19, 0
        %s739 = sadd.s32 %s738, %s736
        %s740 = smul.addr %s739, 8
        %s741 = scalar_lea.vmem %s2, %s740
        // Predicated region
        $region75: #{resnet50_features_forward.80} parent=61 // pred_check
          %p742 = pneg %p108
        $region76: #{resnet50_features_forward.80} parent=61 // pred_check_branch
          %744 = sbr.rel (%p742) target = $region78
        $region77: #{resnet50_features_forward.80} parent=61 // pred_region
          %s745 = smul.u32 16, %s18
        $region78: #{resnet50_features_forward.80} parent=61 // pred_fallthru
          _
        // Predicated region
        $region79: #{resnet50_features_forward.80} parent=61 // pred_check
          %p746 = pneg %p108
        $region80: #{resnet50_features_forward.80} parent=61 // pred_check_branch
          %748 = sbr.rel (%p746) target = $region82
        $region81: #{resnet50_features_forward.80} parent=61 // pred_region
          %s749 = smul.u32 16, %s18
          %p750 = scmp.lt.s32.totalorder %s749, 15
          %s751 = scalar_select %p750, %s749, 15
          %p752 = scmp.lt.s32.totalorder %s19, 0
          %s753 = scalar_select %p752, %s19, 0
          %s754 = sadd.s32 %s753, %s751
          %s755 = smul.addr %s754, 8
          %s756 = scalar_lea.vmem %s2, %s755
        $region82: #{resnet50_features_forward.80} parent=61 // pred_fallthru
          _
      $region62: #{resnet50_features_forward.80} parent=5 // pred_fallthru
        _
      %p757 = scmp.le.s32.totalorder 2, %s8
      // Predicated region
      $region83: #{resnet50_features_forward.80} parent=5 // pred_check
        %p758 = pneg %p757
      $region84: #{resnet50_features_forward.80} parent=5 // pred_check_branch
        %760 = sbr.rel (%p758) target = $region86
      $region85: #{resnet50_features_forward.80} parent=5 // pred_region
        %s761 = ssub.s32 %s8, 2
      $region86: #{resnet50_features_forward.80} parent=5 // pred_fallthru
        _
    $region6: #{resnet50_features_forward.80} parent=1 // loop_footer
      %s12 = sadd.s32 1, %s8
    $region7: #{resnet50_features_forward.80} parent=1 // loop_footer_branch
      %7 = sbr.rel target = $region3
    $region8: #{resnet50_features_forward.80} parent=1 // loop_exit
      _

// kernel: resnet50_features_forward.88
$region0: #{resnet50_features_forward.88}
  #allocation0 [shape = 'u32[]', space=smem, size = 0x4, offset = 0x4, fixed_abs, tag = 'smem constant byte address 0x4 - core index']
  #allocation1 [shape = 'u32[144,128]{1,0:T(1,128)}', space=vmem, size = 0x12000, scoped, tag = 'internal scratch']
  %s0 = inlined_call_operand.vmem [shape: f32[128,256], index: 0, kind: input, shape index: {}]
  %s1 = inlined_call_operand.vmem [shape: f32[8,256], index: 1, kind: input, shape index: {}]
  %s2 = inlined_call_operand.vmem [shape: f32[1,256], index: 2, kind: input, shape index: {}]
  %s3 = inlined_call_operand.vmem [shape: f32[1,256], index: 3, kind: input, shape index: {}]
  %s4 = inlined_call_operand.vmem [shape: f32[128,256], index: 4, kind: input, shape index: {}]
  %s5 = inlined_call_operand.vmem [shape: f32[128,256], index: 5, kind: output, shape index: {}]
  %s6 = sld [smem:[#allocation0]]
  $region30: #{resnet50_features_forward.88} parent=0
    _
  %s8 = ssub.s32 1, %s6
  %s9 = scalar_select 0, %s8, %s6
  // Predicated region
  $region2: #{resnet50_features_forward.88} parent=0 // pred_check
    _
  $region3: #{resnet50_features_forward.88} parent=0 // pred_check_branch
    %11 = sbr.rel (0) target = $region5
  $region4: #{resnet50_features_forward.88} parent=0 // pred_region
    _
  $region5: #{resnet50_features_forward.88} parent=0 // pred_fallthru
    _
  // Predicated region
  $region6: #{resnet50_features_forward.88} parent=0 // pred_check
    _
  $region7: #{resnet50_features_forward.88} parent=0 // pred_check_branch
    %13 = sbr.rel (0) target = $region9
  $region8: #{resnet50_features_forward.88} parent=0 // pred_region
    _
  $region9: #{resnet50_features_forward.88} parent=0 // pred_fallthru
    _
  // Predicated region
  $region10: #{resnet50_features_forward.88} parent=0 // pred_check
    _
  $region11: #{resnet50_features_forward.88} parent=0 // pred_check_branch
    %15 = sbr.rel (0) target = $region13
  $region12: #{resnet50_features_forward.88} parent=0 // pred_region
    _
  $region13: #{resnet50_features_forward.88} parent=0 // pred_fallthru
    _
  // Predicated region
  $region14: #{resnet50_features_forward.88} parent=0 // pred_check
    _
  $region15: #{resnet50_features_forward.88} parent=0 // pred_check_branch
    %17 = sbr.rel (0) target = $region17
  $region16: #{resnet50_features_forward.88} parent=0 // pred_region
    _
  $region17: #{resnet50_features_forward.88} parent=0 // pred_fallthru
    _
  // Predicated region
  $region18: #{resnet50_features_forward.88} parent=0 // pred_check
    _
  $region19: #{resnet50_features_forward.88} parent=0 // pred_check_branch
    %19 = sbr.rel (0) target = $region21
  $region20: #{resnet50_features_forward.88} parent=0 // pred_region
    _
  $region21: #{resnet50_features_forward.88} parent=0 // pred_fallthru
    _
  %v20 = vld [vmem:[%s1] ss:$8 sm:$0x3]
  %v21 = vmul.f32 %v20, 0.0078125
  %s22 = scalar_lea.vmem %s1, 1
  %v23 = vld [vmem:[%s22] ss:$8 sm:$0x3]
  %v24 = vmul.f32 %v23, 0.0078125
  %v25 = vmul.f32 %v21, %v21
  %v26 = vsub.f32 %v24, %v25
  %v27 = vmax.f32 %v26, 0.0
  %v28 = vld [vmem:[%s2] sm:$0x3]
  %v29 = vadd.f32 %v27, 1e-05
  %v30 = vrsqrt.pop %v29
  %v31 = vmul.f32 %v28, %v30
  %v32 = vld [vmem:[%s3] sm:$0x3]
  %v33 = vmul.f32 %v21, %v31
  %v34 = vsub.f32 %v32, %v33
  %v35 = vld [vmem:[%s0] sm:$0xff]
  %v36 = vld [vmem:[%s0 + $0x8] sm:$0xff]
  %v37 = vld [vmem:[%s0 + $0x10] sm:$0xff]
  %v38 = vld [vmem:[%s0 + $0x18] sm:$0xff]
  %v39 = vld [vmem:[%s0 + $0x20] sm:$0xff]
  %v40 = vld [vmem:[%s0 + $0x28] sm:$0xff]
  %v41 = vld [vmem:[%s0 + $0x30] sm:$0xff]
  %v42 = vld [vmem:[%s0 + $0x38] sm:$0xff]
  %v43 = vld [vmem:[%s0 + $0x40] sm:$0xff]
  %v44 = vld [vmem:[%s0 + $0x48] sm:$0xff]
  %v45 = vld [vmem:[%s0 + $0x50] sm:$0xff]
  %v46 = vld [vmem:[%s0 + $0x58] sm:$0xff]
  %v47 = vld [vmem:[%s0 + $0x60] sm:$0xff]
  %v48 = vld [vmem:[%s0 + $0x68] sm:$0xff]
  %v49 = vld [vmem:[%s0 + $0x70] sm:$0xff]
  %v50 = vld [vmem:[%s0 + $0x78] sm:$0xff]
  %v51 = vld [vmem:[%s0 + $0x80] sm:$0xff]
  %v52 = vld [vmem:[%s0 + $0x88] sm:$0xff]
  %v53 = vld [vmem:[%s0 + $0x90] sm:$0xff]
  %v54 = vld [vmem:[%s0 + $0x98] sm:$0xff]
  %v55 = vld [vmem:[%s0 + $0xa0] sm:$0xff]
  %v56 = vld [vmem:[%s0 + $0xa8] sm:$0xff]
  %v57 = vld [vmem:[%s0 + $0xb0] sm:$0xff]
  %v58 = vld [vmem:[%s0 + $0xb8] sm:$0xff]
  %v59 = vld [vmem:[%s0 + $0xc0] sm:$0xff]
  %v60 = vld [vmem:[%s0 + $0xc8] sm:$0xff]
  %v61 = vld [vmem:[%s0 + $0xd0] sm:$0xff]
  %v62 = vld [vmem:[%s0 + $0xd8] sm:$0xff]
  %v63 = vld [vmem:[%s0 + $0xe0] sm:$0xff]
  %v64 = vld [vmem:[%s0 + $0xe8] sm:$0xff]
  %v65 = vld [vmem:[%s0 + $0xf0] sm:$0xff]
  %v66 = vld [vmem:[%s0 + $0xf8] sm:$0xff]
  %v68 = vlaneseq
  %v69 = vshrl.u32 %v68, 7
  %v70 = vsub.s32 0, %v69
  %v71 = vrot.slane %v31, %v70
  %v72 = vlaneseq
  %v73 = vshrl.u32 %v72, 7
  %v74 = vsub.s32 1, %v73
  %v75 = vrot.slane %v31, %v74
  %v78 = vmul.f32 %v35, %v71
  %v79 = vmul.f32 %v36, %v75
  %v80 = vmul.f32 %v37, %v71
  %v81 = vmul.f32 %v38, %v75
  %v82 = vmul.f32 %v39, %v71
  %v83 = vmul.f32 %v40, %v75
  %v84 = vmul.f32 %v41, %v71
  %v85 = vmul.f32 %v42, %v75
  %v86 = vmul.f32 %v43, %v71
  %v87 = vmul.f32 %v44, %v75
  %v88 = vmul.f32 %v45, %v71
  %v89 = vmul.f32 %v46, %v75
  %v90 = vmul.f32 %v47, %v71
  %v91 = vmul.f32 %v48, %v75
  %v92 = vmul.f32 %v49, %v71
  %v93 = vmul.f32 %v50, %v75
  %v94 = vmul.f32 %v51, %v71
  %v95 = vmul.f32 %v52, %v75
  %v96 = vmul.f32 %v53, %v71
  %v97 = vmul.f32 %v54, %v75
  %v98 = vmul.f32 %v55, %v71
  %v99 = vmul.f32 %v56, %v75
  %v100 = vmul.f32 %v57, %v71
  %v101 = vmul.f32 %v58, %v75
  %v102 = vmul.f32 %v59, %v71
  %v103 = vmul.f32 %v60, %v75
  %v104 = vmul.f32 %v61, %v71
  %v105 = vmul.f32 %v62, %v75
  %v106 = vmul.f32 %v63, %v71
  %v107 = vmul.f32 %v64, %v75
  %v108 = vmul.f32 %v65, %v71
  %v109 = vmul.f32 %v66, %v75
  %v111 = vlaneseq
  %v112 = vshrl.u32 %v111, 7
  %v113 = vsub.s32 0, %v112
  %v114 = vrot.slane %v34, %v113
  %v115 = vlaneseq
  %v116 = vshrl.u32 %v115, 7
  %v117 = vsub.s32 1, %v116
  %v118 = vrot.slane %v34, %v117
  %v121 = vadd.f32 %v78, %v114
  %v122 = vadd.f32 %v79, %v118
  %v123 = vadd.f32 %v80, %v114
  %v124 = vadd.f32 %v81, %v118
  %v125 = vadd.f32 %v82, %v114
  %v126 = vadd.f32 %v83, %v118
  %v127 = vadd.f32 %v84, %v114
  %v128 = vadd.f32 %v85, %v118
  %v129 = vadd.f32 %v86, %v114
  %v130 = vadd.f32 %v87, %v118
  %v131 = vadd.f32 %v88, %v114
  %v132 = vadd.f32 %v89, %v118
  %v133 = vadd.f32 %v90, %v114
  %v134 = vadd.f32 %v91, %v118
  %v135 = vadd.f32 %v92, %v114
  %v136 = vadd.f32 %v93, %v118
  %v137 = vadd.f32 %v94, %v114
  %v138 = vadd.f32 %v95, %v118
  %v139 = vadd.f32 %v96, %v114
  %v140 = vadd.f32 %v97, %v118
  %v141 = vadd.f32 %v98, %v114
  %v142 = vadd.f32 %v99, %v118
  %v143 = vadd.f32 %v100, %v114
  %v144 = vadd.f32 %v101, %v118
  %v145 = vadd.f32 %v102, %v114
  %v146 = vadd.f32 %v103, %v118
  %v147 = vadd.f32 %v104, %v114
  %v148 = vadd.f32 %v105, %v118
  %v149 = vadd.f32 %v106, %v114
  %v150 = vadd.f32 %v107, %v118
  %v151 = vadd.f32 %v108, %v114
  %v152 = vadd.f32 %v109, %v118
  %v153 = vld [vmem:[%s4] sm:$0xff]
  %v154 = vld [vmem:[%s4 + $0x8] sm:$0xff]
  %v155 = vld [vmem:[%s4 + $0x10] sm:$0xff]
  %v156 = vld [vmem:[%s4 + $0x18] sm:$0xff]
  %v157 = vld [vmem:[%s4 + $0x20] sm:$0xff]
  %v158 = vld [vmem:[%s4 + $0x28] sm:$0xff]
  %v159 = vld [vmem:[%s4 + $0x30] sm:$0xff]
  %v160 = vld [vmem:[%s4 + $0x38] sm:$0xff]
  %v161 = vld [vmem:[%s4 + $0x40] sm:$0xff]
  %v162 = vld [vmem:[%s4 + $0x48] sm:$0xff]
  %v163 = vld [vmem:[%s4 + $0x50] sm:$0xff]
  %v164 = vld [vmem:[%s4 + $0x58] sm:$0xff]
  %v165 = vld [vmem:[%s4 + $0x60] sm:$0xff]
  %v166 = vld [vmem:[%s4 + $0x68] sm:$0xff]
  %v167 = vld [vmem:[%s4 + $0x70] sm:$0xff]
  %v168 = vld [vmem:[%s4 + $0x78] sm:$0xff]
  %v169 = vld [vmem:[%s4 + $0x80] sm:$0xff]
  %v170 = vld [vmem:[%s4 + $0x88] sm:$0xff]
  %v171 = vld [vmem:[%s4 + $0x90] sm:$0xff]
  %v172 = vld [vmem:[%s4 + $0x98] sm:$0xff]
  %v173 = vld [vmem:[%s4 + $0xa0] sm:$0xff]
  %v174 = vld [vmem:[%s4 + $0xa8] sm:$0xff]
  %v175 = vld [vmem:[%s4 + $0xb0] sm:$0xff]
  %v176 = vld [vmem:[%s4 + $0xb8] sm:$0xff]
  %v177 = vld [vmem:[%s4 + $0xc0] sm:$0xff]
  %v178 = vld [vmem:[%s4 + $0xc8] sm:$0xff]
  %v179 = vld [vmem:[%s4 + $0xd0] sm:$0xff]
  %v180 = vld [vmem:[%s4 + $0xd8] sm:$0xff]
  %v181 = vld [vmem:[%s4 + $0xe0] sm:$0xff]
  %v182 = vld [vmem:[%s4 + $0xe8] sm:$0xff]
  %v183 = vld [vmem:[%s4 + $0xf0] sm:$0xff]
  %v184 = vld [vmem:[%s4 + $0xf8] sm:$0xff]
  %v185 = vadd.f32 %v121, %v153
  %v186 = vadd.f32 %v122, %v154
  %v187 = vadd.f32 %v123, %v155
  %v188 = vadd.f32 %v124, %v156
  %v189 = vadd.f32 %v125, %v157
  %v190 = vadd.f32 %v126, %v158
  %v191 = vadd.f32 %v127, %v159
  %v192 = vadd.f32 %v128, %v160
  %v193 = vadd.f32 %v129, %v161
  %v194 = vadd.f32 %v130, %v162
  %v195 = vadd.f32 %v131, %v163
  %v196 = vadd.f32 %v132, %v164
  %v197 = vadd.f32 %v133, %v165
  %v198 = vadd.f32 %v134, %v166
  %v199 = vadd.f32 %v135, %v167
  %v200 = vadd.f32 %v136, %v168
  %v201 = vadd.f32 %v137, %v169
  %v202 = vadd.f32 %v138, %v170
  %v203 = vadd.f32 %v139, %v171
  %v204 = vadd.f32 %v140, %v172
  %v205 = vadd.f32 %v141, %v173
  %v206 = vadd.f32 %v142, %v174
  %v207 = vadd.f32 %v143, %v175
  %v208 = vadd.f32 %v144, %v176
  %v209 = vadd.f32 %v145, %v177
  %v210 = vadd.f32 %v146, %v178
  %v211 = vadd.f32 %v147, %v179
  %v212 = vadd.f32 %v148, %v180
  %v213 = vadd.f32 %v149, %v181
  %v214 = vadd.f32 %v150, %v182
  %v215 = vadd.f32 %v151, %v183
  %v216 = vadd.f32 %v152, %v184
  %v217 = vmax.f32 %v185, 0.0
  %v218 = vmax.f32 %v186, 0.0
  %v219 = vmax.f32 %v187, 0.0
  %v220 = vmax.f32 %v188, 0.0
  %v221 = vmax.f32 %v189, 0.0
  %v222 = vmax.f32 %v190, 0.0
  %v223 = vmax.f32 %v191, 0.0
  %v224 = vmax.f32 %v192, 0.0
  %v225 = vmax.f32 %v193, 0.0
  %v226 = vmax.f32 %v194, 0.0
  %v227 = vmax.f32 %v195, 0.0
  %v228 = vmax.f32 %v196, 0.0
  %v229 = vmax.f32 %v197, 0.0
  %v230 = vmax.f32 %v198, 0.0
  %v231 = vmax.f32 %v199, 0.0
  %v232 = vmax.f32 %v200, 0.0
  %v233 = vmax.f32 %v201, 0.0
  %v234 = vmax.f32 %v202, 0.0
  %v235 = vmax.f32 %v203, 0.0
  %v236 = vmax.f32 %v204, 0.0
  %v237 = vmax.f32 %v205, 0.0
  %v238 = vmax.f32 %v206, 0.0
  %v239 = vmax.f32 %v207, 0.0
  %v240 = vmax.f32 %v208, 0.0
  %v241 = vmax.f32 %v209, 0.0
  %v242 = vmax.f32 %v210, 0.0
  %v243 = vmax.f32 %v211, 0.0
  %v244 = vmax.f32 %v212, 0.0
  %v245 = vmax.f32 %v213, 0.0
  %v246 = vmax.f32 %v214, 0.0
  %v247 = vmax.f32 %v215, 0.0
  %v248 = vmax.f32 %v216, 0.0
  %249 = vst [vmem:[%s5] sm:$0xff] %v217
  %250 = vst [vmem:[%s5 + $0x8] sm:$0xff] %v218
  %251 = vst [vmem:[%s5 + $0x10] sm:$0xff] %v219
  %252 = vst [vmem:[%s5 + $0x18] sm:$0xff] %v220
  %253 = vst [vmem:[%s5 + $0x20] sm:$0xff] %v221
  %254 = vst [vmem:[%s5 + $0x28] sm:$0xff] %v222
  %255 = vst [vmem:[%s5 + $0x30] sm:$0xff] %v223
  %256 = vst [vmem:[%s5 + $0x38] sm:$0xff] %v224
  %257 = vst [vmem:[%s5 + $0x40] sm:$0xff] %v225
  %258 = vst [vmem:[%s5 + $0x48] sm:$0xff] %v226
  %259 = vst [vmem:[%s5 + $0x50] sm:$0xff] %v227
  %260 = vst [vmem:[%s5 + $0x58] sm:$0xff] %v228
  %261 = vst [vmem:[%s5 + $0x60] sm:$0xff] %v229
  %262 = vst [vmem:[%s5 + $0x68] sm:$0xff] %v230
  %263 = vst [vmem:[%s5 + $0x70] sm:$0xff] %v231
  %264 = vst [vmem:[%s5 + $0x78] sm:$0xff] %v232
  %265 = vst [vmem:[%s5 + $0x80] sm:$0xff] %v233
  %266 = vst [vmem:[%s5 + $0x88] sm:$0xff] %v234
  %267 = vst [vmem:[%s5 + $0x90] sm:$0xff] %v235
  %268 = vst [vmem:[%s5 + $0x98] sm:$0xff] %v236
  %269 = vst [vmem:[%s5 + $0xa0] sm:$0xff] %v237
  %270 = vst [vmem:[%s5 + $0xa8] sm:$0xff] %v238
  %271 = vst [vmem:[%s5 + $0xb0] sm:$0xff] %v239
  %272 = vst [vmem:[%s5 + $0xb8] sm:$0xff] %v240
  %273 = vst [vmem:[%s5 + $0xc0] sm:$0xff] %v241
  %274 = vst [vmem:[%s5 + $0xc8] sm:$0xff] %v242
  %275 = vst [vmem:[%s5 + $0xd0] sm:$0xff] %v243
  %276 = vst [vmem:[%s5 + $0xd8] sm:$0xff] %v244
  %277 = vst [vmem:[%s5 + $0xe0] sm:$0xff] %v245
  %278 = vst [vmem:[%s5 + $0xe8] sm:$0xff] %v246
  %279 = vst [vmem:[%s5 + $0xf0] sm:$0xff] %v247
  %280 = vst [vmem:[%s5 + $0xf8] sm:$0xff] %v248
  // Predicated region
  $region22: #{resnet50_features_forward.88} parent=0 // pred_check
    _
  $region23: #{resnet50_features_forward.88} parent=0 // pred_check_branch
    %282 = sbr.rel (0) target = $region25
  $region24: #{resnet50_features_forward.88} parent=0 // pred_region
    _
  $region25: #{resnet50_features_forward.88} parent=0 // pred_fallthru
    _
  // Predicated region
  $region26: #{resnet50_features_forward.88} parent=0 // pred_check
    _
  $region27: #{resnet50_features_forward.88} parent=0 // pred_check_branch
    %284 = sbr.rel (0) target = $region29
  $region28: #{resnet50_features_forward.88} parent=0 // pred_region
    _
  $region29: #{resnet50_features_forward.88} parent=0 // pred_fallthru
    _

// kernel: resnet50_features_forward.89
$region0: #{resnet50_features_forward.89}
  #allocation0 [shape = 'u32[]', space=smem, size = 0x4, offset = 0x4, fixed_abs, tag = 'smem constant byte address 0x4 - core index']
  #allocation1 [shape = 'u32[144,128]{1,0:T(1,128)}', space=vmem, size = 0x12000, scoped, tag = 'internal scratch']
  #allocation2 [shape = 'f32[128,128]{1,0:T(8,128)}', space=vmem, size = 0x10000, scoped, tag = 'scratch operand']
  %s0 = inlined_call_operand.vmem [shape: bf16[128,256], index: 0, kind: input, shape index: {}]
  %s1 = inlined_call_operand.vmem [shape: bf16[256,128], index: 1, kind: input, shape index: {}]
  %s2 = inlined_call_operand.vmem [shape: f32[128,128], index: 2, kind: output, shape index: {}]
  %s3 = sld [smem:[#allocation0]]
  $region26: #{resnet50_features_forward.89} parent=0
    _
  %s5 = ssub.s32 1, %s3
  %s6 = scalar_select 0, %s5, %s3
  // Predicated region
  $region2: #{resnet50_features_forward.89} parent=0 // pred_check
    _
  $region3: #{resnet50_features_forward.89} parent=0 // pred_check_branch
    %8 = sbr.rel (0) target = $region5
  $region4: #{resnet50_features_forward.89} parent=0 // pred_region
    _
  $region5: #{resnet50_features_forward.89} parent=0 // pred_fallthru
    _
  // Predicated region
  $region6: #{resnet50_features_forward.89} parent=0 // pred_check
    _
  $region7: #{resnet50_features_forward.89} parent=0 // pred_check_branch
    %10 = sbr.rel (0) target = $region9
  $region8: #{resnet50_features_forward.89} parent=0 // pred_region
    _
  $region9: #{resnet50_features_forward.89} parent=0 // pred_fallthru
    _
  %p12 = scmp.eq.s32.totalorder 0, 0
  // Predicated region
  $region10: #{resnet50_features_forward.89} parent=0 // pred_check
    %p13 = pneg %p12
  $region11: #{resnet50_features_forward.89} parent=0 // pred_check_branch
    %15 = sbr.rel (%p13) target = $region13
  $region12: #{resnet50_features_forward.89} parent=0 // pred_region
    %16 = vst [vmem:[#allocation2] sm:$0xff] 0.0
    %17 = vst [vmem:[#allocation2 + $0x8] sm:$0xff] 0.0
    %18 = vst [vmem:[#allocation2 + $0x10] sm:$0xff] 0.0
    %19 = vst [vmem:[#allocation2 + $0x18] sm:$0xff] 0.0
    %20 = vst [vmem:[#allocation2 + $0x20] sm:$0xff] 0.0
    %21 = vst [vmem:[#allocation2 + $0x28] sm:$0xff] 0.0
    %22 = vst [vmem:[#allocation2 + $0x30] sm:$0xff] 0.0
    %23 = vst [vmem:[#allocation2 + $0x38] sm:$0xff] 0.0
    %24 = vst [vmem:[#allocation2 + $0x40] sm:$0xff] 0.0
    %25 = vst [vmem:[#allocation2 + $0x48] sm:$0xff] 0.0
    %26 = vst [vmem:[#allocation2 + $0x50] sm:$0xff] 0.0
    %27 = vst [vmem:[#allocation2 + $0x58] sm:$0xff] 0.0
    %28 = vst [vmem:[#allocation2 + $0x60] sm:$0xff] 0.0
    %29 = vst [vmem:[#allocation2 + $0x68] sm:$0xff] 0.0
    %30 = vst [vmem:[#allocation2 + $0x70] sm:$0xff] 0.0
    %31 = vst [vmem:[#allocation2 + $0x78] sm:$0xff] 0.0
  $region13: #{resnet50_features_forward.89} parent=0 // pred_fallthru
    _
  %v32 = vld [vmem:[#allocation2] sm:$0xff]
  %v33 = vld [vmem:[#allocation2 + $0x8] sm:$0xff]
  %v34 = vld [vmem:[#allocation2 + $0x10] sm:$0xff]
  %v35 = vld [vmem:[#allocation2 + $0x18] sm:$0xff]
  %v36 = vld [vmem:[#allocation2 + $0x20] sm:$0xff]
  %v37 = vld [vmem:[#allocation2 + $0x28] sm:$0xff]
  %v38 = vld [vmem:[#allocation2 + $0x30] sm:$0xff]
  %v39 = vld [vmem:[#allocation2 + $0x38] sm:$0xff]
  %v40 = vld [vmem:[#allocation2 + $0x40] sm:$0xff]
  %v41 = vld [vmem:[#allocation2 + $0x48] sm:$0xff]
  %v42 = vld [vmem:[#allocation2 + $0x50] sm:$0xff]
  %v43 = vld [vmem:[#allocation2 + $0x58] sm:$0xff]
  %v44 = vld [vmem:[#allocation2 + $0x60] sm:$0xff]
  %v45 = vld [vmem:[#allocation2 + $0x68] sm:$0xff]
  %v46 = vld [vmem:[#allocation2 + $0x70] sm:$0xff]
  %v47 = vld [vmem:[#allocation2 + $0x78] sm:$0xff]
  %v48 = vld [vmem:[%s0] sm:$0xff]
  %v49 = vld [vmem:[%s0 + $0x8] sm:$0xff]
  %v50 = vld [vmem:[%s0 + $0x10] sm:$0xff]
  %v51 = vld [vmem:[%s0 + $0x18] sm:$0xff]
  %v52 = vld [vmem:[%s0 + $0x20] sm:$0xff]
  %v53 = vld [vmem:[%s0 + $0x28] sm:$0xff]
  %v54 = vld [vmem:[%s0 + $0x30] sm:$0xff]
  %v55 = vld [vmem:[%s0 + $0x38] sm:$0xff]
  %v56 = vld [vmem:[%s0 + $0x40] sm:$0xff]
  %v57 = vld [vmem:[%s0 + $0x48] sm:$0xff]
  %v58 = vld [vmem:[%s0 + $0x50] sm:$0xff]
  %v59 = vld [vmem:[%s0 + $0x58] sm:$0xff]
  %v60 = vld [vmem:[%s0 + $0x60] sm:$0xff]
  %v61 = vld [vmem:[%s0 + $0x68] sm:$0xff]
  %v62 = vld [vmem:[%s0 + $0x70] sm:$0xff]
  %v63 = vld [vmem:[%s0 + $0x78] sm:$0xff]
  %v64 = vld [vmem:[%s1] sm:$0xf]
  %v65 = vld [vmem:[%s1 + $0x4] sm:$0xf]
  %v66 = vld [vmem:[%s1 + $0x8] sm:$0xf]
  %v67 = vld [vmem:[%s1 + $0xc] sm:$0xf]
  %v68 = vld [vmem:[%s1 + $0x10] sm:$0xf]
  %v69 = vld [vmem:[%s1 + $0x14] sm:$0xf]
  %v70 = vld [vmem:[%s1 + $0x18] sm:$0xf]
  %v71 = vld [vmem:[%s1 + $0x1c] sm:$0xf]
  %v72 = vld [vmem:[%s1 + $0x20] sm:$0xf]
  %v73 = vld [vmem:[%s1 + $0x24] sm:$0xf]
  %v74 = vld [vmem:[%s1 + $0x28] sm:$0xf]
  %v75 = vld [vmem:[%s1 + $0x2c] sm:$0xf]
  %v76 = vld [vmem:[%s1 + $0x30] sm:$0xf]
  %v77 = vld [vmem:[%s1 + $0x34] sm:$0xf]
  %v78 = vld [vmem:[%s1 + $0x38] sm:$0xf]
  %v79 = vld [vmem:[%s1 + $0x3c] sm:$0xf]
  %v80 = vld [vmem:[%s1 + $0x40] sm:$0xf]
  %v81 = vld [vmem:[%s1 + $0x44] sm:$0xf]
  %v82 = vld [vmem:[%s1 + $0x48] sm:$0xf]
  %v83 = vld [vmem:[%s1 + $0x4c] sm:$0xf]
  %v84 = vld [vmem:[%s1 + $0x50] sm:$0xf]
  %v85 = vld [vmem:[%s1 + $0x54] sm:$0xf]
  %v86 = vld [vmem:[%s1 + $0x58] sm:$0xf]
  %v87 = vld [vmem:[%s1 + $0x5c] sm:$0xf]
  %v88 = vld [vmem:[%s1 + $0x60] sm:$0xf]
  %v89 = vld [vmem:[%s1 + $0x64] sm:$0xf]
  %v90 = vld [vmem:[%s1 + $0x68] sm:$0xf]
  %v91 = vld [vmem:[%s1 + $0x6c] sm:$0xf]
  %v92 = vld [vmem:[%s1 + $0x70] sm:$0xf]
  %v93 = vld [vmem:[%s1 + $0x74] sm:$0xf]
  %v94 = vld [vmem:[%s1 + $0x78] sm:$0xf]
  %v95 = vld [vmem:[%s1 + $0x7c] sm:$0xf]
  %v112 = vunpack.c.l.b16 %v48
  %v113 = vunpack.c.h.b16 %v48
  %v114 = vunpack.c.l.b16 %v49
  %v115 = vunpack.c.h.b16 %v49
  %v116 = vunpack.c.l.b16 %v50
  %v117 = vunpack.c.h.b16 %v50
  %v118 = vunpack.c.l.b16 %v51
  %v119 = vunpack.c.h.b16 %v51
  %v120 = vunpack.c.l.b16 %v52
  %v121 = vunpack.c.h.b16 %v52
  %v122 = vunpack.c.l.b16 %v53
  %v123 = vunpack.c.h.b16 %v53
  %v124 = vunpack.c.l.b16 %v54
  %v125 = vunpack.c.h.b16 %v54
  %v126 = vunpack.c.l.b16 %v55
  %v127 = vunpack.c.h.b16 %v55
  %v128 = vunpack.c.l.b16 %v56
  %v129 = vunpack.c.h.b16 %v56
  %v130 = vunpack.c.l.b16 %v57
  %v131 = vunpack.c.h.b16 %v57
  %v132 = vunpack.c.l.b16 %v58
  %v133 = vunpack.c.h.b16 %v58
  %v134 = vunpack.c.l.b16 %v59
  %v135 = vunpack.c.h.b16 %v59
  %v136 = vunpack.c.l.b16 %v60
  %v137 = vunpack.c.h.b16 %v60
  %v138 = vunpack.c.l.b16 %v61
  %v139 = vunpack.c.h.b16 %v61
  %v140 = vunpack.c.l.b16 %v62
  %v141 = vunpack.c.h.b16 %v62
  %v142 = vunpack.c.l.b16 %v63
  %v143 = vunpack.c.h.b16 %v63
  %v144 = vpack.c.b16 %v114, %v112
  %v145 = vpack.c.b16 %v115, %v113
  %v146 = vpack.c.b16 %v118, %v116
  %v147 = vpack.c.b16 %v119, %v117
  %v148 = vpack.c.b16 %v122, %v120
  %v149 = vpack.c.b16 %v123, %v121
  %v150 = vpack.c.b16 %v126, %v124
  %v151 = vpack.c.b16 %v127, %v125
  %v152 = vpack.c.b16 %v130, %v128
  %v153 = vpack.c.b16 %v131, %v129
  %v154 = vpack.c.b16 %v134, %v132
  %v155 = vpack.c.b16 %v135, %v133
  %v156 = vpack.c.b16 %v138, %v136
  %v157 = vpack.c.b16 %v139, %v137
  %v158 = vpack.c.b16 %v142, %v140
  %v159 = vpack.c.b16 %v143, %v141
  %v208 = vunpack.c.l.b16 %v64
  %v209 = vunpack.c.l.b16 %v65
  %v210 = vunpack.c.l.b16 %v66
  %v211 = vunpack.c.l.b16 %v67
  %v212 = vunpack.c.l.b16 %v68
  %v213 = vunpack.c.l.b16 %v69
  %v214 = vunpack.c.l.b16 %v70
  %v215 = vunpack.c.l.b16 %v71
  %v216 = vunpack.c.l.b16 %v72
  %v217 = vunpack.c.l.b16 %v73
  %v218 = vunpack.c.l.b16 %v74
  %v219 = vunpack.c.l.b16 %v75
  %v220 = vunpack.c.l.b16 %v76
  %v221 = vunpack.c.l.b16 %v77
  %v222 = vunpack.c.l.b16 %v78
  %v223 = vunpack.c.l.b16 %v79
  %v224 = vunpack.c.l.b16 %v80
  %v225 = vunpack.c.l.b16 %v81
  %v226 = vunpack.c.l.b16 %v82
  %v227 = vunpack.c.l.b16 %v83
  %v228 = vunpack.c.l.b16 %v84
  %v229 = vunpack.c.l.b16 %v85
  %v230 = vunpack.c.l.b16 %v86
  %v231 = vunpack.c.l.b16 %v87
  %v232 = vunpack.c.l.b16 %v88
  %v233 = vunpack.c.l.b16 %v89
  %v234 = vunpack.c.l.b16 %v90
  %v235 = vunpack.c.l.b16 %v91
  %v236 = vunpack.c.l.b16 %v92
  %v237 = vunpack.c.l.b16 %v93
  %v238 = vunpack.c.l.b16 %v94
  %v239 = vunpack.c.l.b16 %v95
  %v240 = vpack.c.b16 %v209, %v208
  %v241 = vpack.c.b16 %v211, %v210
  %v242 = vpack.c.b16 %v213, %v212
  %v243 = vpack.c.b16 %v215, %v214
  %v244 = vpack.c.b16 %v217, %v216
  %v245 = vpack.c.b16 %v219, %v218
  %v246 = vpack.c.b16 %v221, %v220
  %v247 = vpack.c.b16 %v223, %v222
  %v248 = vpack.c.b16 %v225, %v224
  %v249 = vpack.c.b16 %v227, %v226
  %v250 = vpack.c.b16 %v229, %v228
  %v251 = vpack.c.b16 %v231, %v230
  %v252 = vpack.c.b16 %v233, %v232
  %v253 = vpack.c.b16 %v235, %v234
  %v254 = vpack.c.b16 %v237, %v236
  %v255 = vpack.c.b16 %v239, %v238
  %272 = vmatprep.subr.bf16.mxu0 0
  %273 = vmatpush1.bf16.msra.mxu0 %v247
  %274 = vmatprep.subr.bf16.mxu0 0
  %275 = vmatpush1.bf16.msra.mxu0 %v246
  %276 = vmatprep.subr.bf16.mxu0 0
  %277 = vmatpush1.bf16.msra.mxu0 %v245
  %278 = vmatprep.subr.bf16.mxu0 0
  %279 = vmatpush1.bf16.msra.mxu0 %v244
  %280 = vmatprep.subr.bf16.mxu0 0
  %281 = vmatpush1.bf16.msra.mxu0 %v243
  %282 = vmatprep.subr.bf16.mxu0 0
  %283 = vmatpush1.bf16.msra.mxu0 %v242
  %284 = vmatprep.subr.bf16.mxu0 0
  %285 = vmatpush1.bf16.msra.mxu0 %v241
  %286 = vmatprep.subr.bf16.mxu0 0
  %287 = vmatpush1.bf16.msra.mxu0 %v240
  %288 = vmatprep.subr.bf16.mxu0 0
  %289 = vmatpush2.bf16.msra.mxu0 %v255
  %290 = vmatprep.subr.bf16.mxu0 0
  %291 = vmatpush2.bf16.msra.mxu0 %v254
  %292 = vmatprep.subr.bf16.mxu0 0
  %293 = vmatpush2.bf16.msra.mxu0 %v253
  %294 = vmatprep.subr.bf16.mxu0 0
  %295 = vmatpush2.bf16.msra.mxu0 %v252
  %296 = vmatprep.subr.bf16.mxu0 0
  %297 = vmatpush2.bf16.msra.mxu0 %v251
  %298 = vmatprep.subr.bf16.mxu0 0
  %299 = vmatpush2.bf16.msra.mxu0 %v250
  %300 = vmatprep.subr.bf16.mxu0 0
  %301 = vmatpush2.bf16.msra.mxu0 %v249
  %302 = vmatprep.subr.bf16.mxu0 0
  %303 = vmatpush2.bf16.msra.mxu0 %v248
  %304 = vmatprep.mubr.bf16.mxu0 %v145
  %305 = vmatmul.mubr.bf16.gmra.mxu0 %v144
  %v306 = vpop.f32.mrf.mxu0
  %v307 = vadd.f32 0.0, %v306
  %v308 = vpop.f32.mrf.mxu0
  %v309 = vpop.f32.mrf.mxu0
  %v310 = vadd.f32 0.0, %v309
  %v311 = vpop.f32.mrf.mxu0
  %312 = vmatprep.mubr.bf16.mxu0 %v147
  %313 = vmatmul.mubr.bf16.gmra.mxu0 %v146
  %v314 = vpop.f32.mrf.mxu0
  %v315 = vadd.f32 0.0, %v314
  %v316 = vpop.f32.mrf.mxu0
  %v317 = vpop.f32.mrf.mxu0
  %v318 = vadd.f32 0.0, %v317
  %v319 = vpop.f32.mrf.mxu0
  %320 = vmatprep.mubr.bf16.mxu0 %v149
  %321 = vmatmul.mubr.bf16.gmra.mxu0 %v148
  %v322 = vpop.f32.mrf.mxu0
  %v323 = vadd.f32 0.0, %v322
  %v324 = vpop.f32.mrf.mxu0
  %v325 = vpop.f32.mrf.mxu0
  %v326 = vadd.f32 0.0, %v325
  %v327 = vpop.f32.mrf.mxu0
  %328 = vmatprep.mubr.bf16.mxu0 %v151
  %329 = vmatmul.mubr.bf16.gmra.mxu0 %v150
  %v330 = vpop.f32.mrf.mxu0
  %v331 = vadd.f32 0.0, %v330
  %v332 = vpop.f32.mrf.mxu0
  %v333 = vpop.f32.mrf.mxu0
  %v334 = vadd.f32 0.0, %v333
  %v335 = vpop.f32.mrf.mxu0
  %336 = vmatprep.mubr.bf16.mxu0 %v153
  %337 = vmatmul.mubr.bf16.gmra.mxu0 %v152
  %v338 = vpop.f32.mrf.mxu0
  %v339 = vadd.f32 0.0, %v338
  %v340 = vpop.f32.mrf.mxu0
  %v341 = vpop.f32.mrf.mxu0
  %v342 = vadd.f32 0.0, %v341
  %v343 = vpop.f32.mrf.mxu0
  %344 = vmatprep.mubr.bf16.mxu0 %v155
  %345 = vmatmul.mubr.bf16.gmra.mxu0 %v154
  %v346 = vpop.f32.mrf.mxu0
  %v347 = vadd.f32 0.0, %v346
  %v348 = vpop.f32.mrf.mxu0
  %v349 = vpop.f32.mrf.mxu0
  %v350 = vadd.f32 0.0, %v349
  %v351 = vpop.f32.mrf.mxu0
  %352 = vmatprep.mubr.bf16.mxu0 %v157
  %353 = vmatmul.mubr.bf16.gmra.mxu0 %v156
  %v354 = vpop.f32.mrf.mxu0
  %v355 = vadd.f32 0.0, %v354
  %v356 = vpop.f32.mrf.mxu0
  %v357 = vpop.f32.mrf.mxu0
  %v358 = vadd.f32 0.0, %v357
  %v359 = vpop.f32.mrf.mxu0
  %360 = vmatprep.mubr.bf16.mxu0 %v159
  %361 = vmatmul.mubr.bf16.gmra.mxu0 %v158
  %v362 = vpop.f32.mrf.mxu0
  %v363 = vadd.f32 0.0, %v362
  %v364 = vpop.f32.mrf.mxu0
  %v365 = vpop.f32.mrf.mxu0
  %v366 = vadd.f32 0.0, %v365
  %v367 = vpop.f32.mrf.mxu0
  %368 = vdwg.mxu0
  %v369 = vadd.f32 %v32, %v307
  %v370 = vadd.f32 %v33, %v310
  %v371 = vadd.f32 %v34, %v315
  %v372 = vadd.f32 %v35, %v318
  %v373 = vadd.f32 %v36, %v323
  %v374 = vadd.f32 %v37, %v326
  %v375 = vadd.f32 %v38, %v331
  %v376 = vadd.f32 %v39, %v334
  %v377 = vadd.f32 %v40, %v339
  %v378 = vadd.f32 %v41, %v342
  %v379 = vadd.f32 %v42, %v347
  %v380 = vadd.f32 %v43, %v350
  %v381 = vadd.f32 %v44, %v355
  %v382 = vadd.f32 %v45, %v358
  %v383 = vadd.f32 %v46, %v363
  %v384 = vadd.f32 %v47, %v366
  %385 = vst [vmem:[#allocation2] sm:$0xff] %v369
  %386 = vst [vmem:[#allocation2 + $0x8] sm:$0xff] %v370
  %387 = vst [vmem:[#allocation2 + $0x10] sm:$0xff] %v371
  %388 = vst [vmem:[#allocation2 + $0x18] sm:$0xff] %v372
  %389 = vst [vmem:[#allocation2 + $0x20] sm:$0xff] %v373
  %390 = vst [vmem:[#allocation2 + $0x28] sm:$0xff] %v374
  %391 = vst [vmem:[#allocation2 + $0x30] sm:$0xff] %v375
  %392 = vst [vmem:[#allocation2 + $0x38] sm:$0xff] %v376
  %393 = vst [vmem:[#allocation2 + $0x40] sm:$0xff] %v377
  %394 = vst [vmem:[#allocation2 + $0x48] sm:$0xff] %v378
  %395 = vst [vmem:[#allocation2 + $0x50] sm:$0xff] %v379
  %396 = vst [vmem:[#allocation2 + $0x58] sm:$0xff] %v380
  %397 = vst [vmem:[#allocation2 + $0x60] sm:$0xff] %v381
  %398 = vst [vmem:[#allocation2 + $0x68] sm:$0xff] %v382
  %399 = vst [vmem:[#allocation2 + $0x70] sm:$0xff] %v383
  %400 = vst [vmem:[#allocation2 + $0x78] sm:$0xff] %v384
  // Predicated region
  $region14: #{resnet50_features_forward.89} parent=0 // pred_check
    %p401 = pneg %p12
  $region15: #{resnet50_features_forward.89} parent=0 // pred_check_branch
    %403 = sbr.rel (%p401) target = $region17
  $region16: #{resnet50_features_forward.89} parent=0 // pred_region
    %v404 = vld [vmem:[#allocation2] sm:$0xff]
    %v405 = vld [vmem:[#allocation2 + $0x8] sm:$0xff]
    %v406 = vld [vmem:[#allocation2 + $0x10] sm:$0xff]
    %v407 = vld [vmem:[#allocation2 + $0x18] sm:$0xff]
    %v408 = vld [vmem:[#allocation2 + $0x20] sm:$0xff]
    %v409 = vld [vmem:[#allocation2 + $0x28] sm:$0xff]
    %v410 = vld [vmem:[#allocation2 + $0x30] sm:$0xff]
    %v411 = vld [vmem:[#allocation2 + $0x38] sm:$0xff]
    %v412 = vld [vmem:[#allocation2 + $0x40] sm:$0xff]
    %v413 = vld [vmem:[#allocation2 + $0x48] sm:$0xff]
    %v414 = vld [vmem:[#allocation2 + $0x50] sm:$0xff]
    %v415 = vld [vmem:[#allocation2 + $0x58] sm:$0xff]
    %v416 = vld [vmem:[#allocation2 + $0x60] sm:$0xff]
    %v417 = vld [vmem:[#allocation2 + $0x68] sm:$0xff]
    %v418 = vld [vmem:[#allocation2 + $0x70] sm:$0xff]
    %v419 = vld [vmem:[#allocation2 + $0x78] sm:$0xff]
    %420 = vst [vmem:[%s2] sm:$0xff] %v404
    %421 = vst [vmem:[%s2 + $0x8] sm:$0xff] %v405
    %422 = vst [vmem:[%s2 + $0x10] sm:$0xff] %v406
    %423 = vst [vmem:[%s2 + $0x18] sm:$0xff] %v407
    %424 = vst [vmem:[%s2 + $0x20] sm:$0xff] %v408
    %425 = vst [vmem:[%s2 + $0x28] sm:$0xff] %v409
    %426 = vst [vmem:[%s2 + $0x30] sm:$0xff] %v410
    %427 = vst [vmem:[%s2 + $0x38] sm:$0xff] %v411
    %428 = vst [vmem:[%s2 + $0x40] sm:$0xff] %v412
    %429 = vst [vmem:[%s2 + $0x48] sm:$0xff] %v413
    %430 = vst [vmem:[%s2 + $0x50] sm:$0xff] %v414
    %431 = vst [vmem:[%s2 + $0x58] sm:$0xff] %v415
    %432 = vst [vmem:[%s2 + $0x60] sm:$0xff] %v416
    %433 = vst [vmem:[%s2 + $0x68] sm:$0xff] %v417
    %434 = vst [vmem:[%s2 + $0x70] sm:$0xff] %v418
    %435 = vst [vmem:[%s2 + $0x78] sm:$0xff] %v419
  $region17: #{resnet50_features_forward.89} parent=0 // pred_fallthru
    _
  // Predicated region
  $region18: #{resnet50_features_forward.89} parent=0 // pred_check
    _
  $region19: #{resnet50_features_forward.89} parent=0 // pred_check_branch
    %437 = sbr.rel (0) target = $region21
  $region20: #{resnet50_features_forward.89} parent=0 // pred_region
    _
  $region21: #{resnet50_features_forward.89} parent=0 // pred_fallthru
    _
  // Predicated region
  $region22: #{resnet50_features_forward.89} parent=0 // pred_check
    _
  $region23: #{resnet50_features_forward.89} parent=0 // pred_check_branch
    %439 = sbr.rel (0) target = $region25
  $region24: #{resnet50_features_forward.89} parent=0 // pred_region
    _
  $region25: #{resnet50_features_forward.89} parent=0 // pred_fallthru
    _

// kernel: resnet50_features_forward.114
$region0: #{resnet50_features_forward.114}
  #allocation0 [shape = 'u32[]', space=smem, size = 0x4, offset = 0x4, fixed_abs, tag = 'smem constant byte address 0x4 - core index']
  #allocation1 [shape = 'u32[144,128]{1,0:T(1,128)}', space=vmem, size = 0x12000, scoped, tag = 'internal scratch']
  #allocation2 [shape = 'f32[32,256]{1,0:T(8,128)}', space=vmem, size = 0x8000, scoped, tag = 'scratch operand']
  %s0 = inlined_call_operand.vmem [shape: bf16[32,256], index: 0, kind: input, shape index: {}]
  %s1 = inlined_call_operand.vmem [shape: bf16[256,512], index: 1, kind: input, shape index: {}]
  %s2 = inlined_call_operand.vmem [shape: f32[32,512], index: 2, kind: output, shape index: {}]
  %s3 = sld [smem:[#allocation0]]
  $region106: #{resnet50_features_forward.114} parent=0
    _
  %s5 = ssub.s32 1, %s3
  %s6 = scalar_select 0, %s5, %s3
  $region1: #{resnet50_features_forward.114} parent=0
    #allocation3 [shape = 'u8[262144]{0}', space=vmem, size = 0x40000, scoped, tag = 'input window, operand 1']
    #allocation4 [shape = 'u8[65536]{0}', space=vmem, size = 0x10000, scoped, tag = 'output window, operand 0']
    loop: start=0, step=1, limit=4
    $region2: #{resnet50_features_forward.114} parent=1 // loop_pre_header
      _
    $region3: #{resnet50_features_forward.114} parent=1 // loop_header
      %s8 = sphi 0, %s12
      %p9 = scmp.ge.s32.totalorder %s8, 4
      %s15 = sphi 0, %s34
      %s16 = sphi 0, %s30
      %s17 = sphi 0, %s26
      %s18 = sphi 0, %s15
      %s19 = sphi 0, %s16
      %s20 = sphi 0, %s17
      %s21 = sphi 0, %s18
      %s22 = sphi 0, %s19
      %s23 = sphi 0, %s20
      %s39 = sphi 0, %s41
      %s42 = sphi 0, %s39
      %s43 = sphi 0, %s42
      %s59 = sphi 0, %s43
      %s67 = sphi 0, %s69
      %s70 = sphi 0, %s67
      %s71 = sphi 0, %s70
      %s87 = sphi 0, %s71
      %s95 = sphi 0, %s97
      %s98 = sphi 0, %s95
      %s99 = sphi 0, %s98
      %s115 = sphi 0, %s99
    $region4: #{resnet50_features_forward.114} parent=1 // loop_header_branch
      %11 = sbr.rel (%p9) target = $region8
    $region5: #{resnet50_features_forward.114} parent=1 // loop_body
      %s13 = ssub.s32 %s8, 1
      %s14 = ssub.s32 %s8, 2
      %s24 = sadd.s32 1, %s17
      %p25 = scmp.ge.s32.totalorder %s24, 1
      %s26 = scalar_select %p25, 0, %s24
      %s27 = sadd.s32 1, %s16
      %s28 = scalar_select %p25, %s27, %s16
      %p29 = scmp.ge.s32.totalorder %s28, 2
      %s30 = scalar_select %p29, 0, %s28
      %s31 = sadd.s32 1, %s15
      %s32 = scalar_select %p29, %s31, %s15
      %p33 = scmp.ge.s32.totalorder %s32, 1
      %s34 = scalar_select %p33, 0, %s32
      %s35 = ssub.s32 %s15, %s34
      %s36 = ssub.s32 %s17, %s26
      %s37 = sor.u32 %s35, %s36
      %p38 = scmp.eq.s32.totalorder %s37, 0
      %s40 = sadd.s32 %s39, 1
      %s41 = scalar_select %p38, %s39, %s40
      %p44 = pneg %p38
      %p45 = scmp.eq.s32.totalorder %s8, 1
      %p46 = por %p44, %p45
      %p47 = scmp.ne.s32.totalorder %s39, %s42
      %p48 = scmp.eq.s32.totalorder %s8, 0
      %p49 = por %p47, %p48
      %p50 = scmp.ne.s32.totalorder %s39, %s42
      %p51 = scmp.eq.s32.totalorder %s13, 1
      %p52 = por %p50, %p51
      %p53 = scmp.ne.s32.totalorder %s42, %s43
      %p54 = scmp.eq.s32.totalorder %s13, 0
      %p55 = por %p53, %p54
      %p56 = scmp.ne.s32.totalorder %s42, %s43
      %p57 = scmp.eq.s32.totalorder %s14, 1
      %p58 = por %p56, %p57
      %p60 = scmp.ne.s32.totalorder %s43, %s59
      %p61 = scmp.eq.s32.totalorder %s14, 0
      %p62 = por %p60, %p61
      %s63 = ssub.s32 %s17, %s26
      %s64 = ssub.s32 %s16, %s30
      %s65 = sor.u32 %s63, %s64
      %p66 = scmp.eq.s32.totalorder %s65, 0
      %s68 = sadd.s32 %s67, 1
      %s69 = scalar_select %p66, %s67, %s68
      %p72 = pneg %p66
      %p73 = scmp.eq.s32.totalorder %s8, 1
      %p74 = por %p72, %p73
      %p75 = scmp.ne.s32.totalorder %s67, %s70
      %p76 = scmp.eq.s32.totalorder %s8, 0
      %p77 = por %p75, %p76
      %p78 = scmp.ne.s32.totalorder %s67, %s70
      %p79 = scmp.eq.s32.totalorder %s13, 1
      %p80 = por %p78, %p79
      %p81 = scmp.ne.s32.totalorder %s70, %s71
      %p82 = scmp.eq.s32.totalorder %s13, 0
      %p83 = por %p81, %p82
      %p84 = scmp.ne.s32.totalorder %s70, %s71
      %p85 = scmp.eq.s32.totalorder %s14, 1
      %p86 = por %p84, %p85
      %p88 = scmp.ne.s32.totalorder %s71, %s87
      %p89 = scmp.eq.s32.totalorder %s14, 0
      %p90 = por %p88, %p89
      %s91 = ssub.s32 %s15, %s34
      %s92 = ssub.s32 %s16, %s30
      %s93 = sor.u32 %s91, %s92
      %p94 = scmp.eq.s32.totalorder %s93, 0
      %s96 = sadd.s32 %s95, 1
      %s97 = scalar_select %p94, %s95, %s96
      %p100 = pneg %p94
      %p101 = scmp.eq.s32.totalorder %s8, 1
      %p102 = por %p100, %p101
      %p103 = scmp.ne.s32.totalorder %s95, %s98
      %p104 = scmp.eq.s32.totalorder %s8, 0
      %p105 = por %p103, %p104
      %p106 = scmp.ne.s32.totalorder %s95, %s98
      %p107 = scmp.eq.s32.totalorder %s13, 1
      %p108 = por %p106, %p107
      %p109 = scmp.ne.s32.totalorder %s98, %s99
      %p110 = scmp.eq.s32.totalorder %s13, 0
      %p111 = por %p109, %p110
      %p112 = scmp.ne.s32.totalorder %s98, %s99
      %p113 = scmp.eq.s32.totalorder %s14, 1
      %p114 = por %p112, %p113
      %p116 = scmp.ne.s32.totalorder %s99, %s115
      %p117 = scmp.eq.s32.totalorder %s14, 0
      %p118 = por %p116, %p117
      %p119 = scmp.le.s32.totalorder 1, %s8
      %p120 = scmp.lt.s32.totalorder %s8, 3
      %p121 = pnand %p119, %p120
      %p122 = pneg %p121
      // Predicated region
      $region9: #{resnet50_features_forward.114} parent=5 // pred_check
        _
      $region10: #{resnet50_features_forward.114} parent=5 // pred_check_branch
        %124 = sbr.rel (%p121) target = $region12
      $region11: #{resnet50_features_forward.114} parent=5 // pred_region
        %s125 = ssub.s32 %s8, 1
        // Predicated region
        $region13: #{resnet50_features_forward.114} parent=11 // pred_check
          %p126 = pneg %p55
        $region14: #{resnet50_features_forward.114} parent=11 // pred_check_branch
          %128 = sbr.rel (%p126) target = $region16
        $region15: #{resnet50_features_forward.114} parent=11 // pred_region
          %s129 = smul.u32 4, %s18
          %s130 = smul.u32 2, %s20
          %p131 = scmp.lt.s32.totalorder %s129, 3
          %s132 = scalar_select %p131, %s129, 3
          %p133 = scmp.lt.s32.totalorder %s130, 1
          %s134 = scalar_select %p133, %s130, 1
          %s135 = smul.addr %s132, 2
          %s136 = sadd.s32 %s134, %s135
          %s137 = smul.addr %s136, 4
          %s138 = scalar_lea.vmem %s0, %s137
          %s139 = smul.u32 4, %s18
          %s140 = smul.u32 2, %s20
        $region16: #{resnet50_features_forward.114} parent=11 // pred_fallthru
          _
      $region12: #{resnet50_features_forward.114} parent=5 // pred_fallthru
        _
      %p141 = scmp.lt.s32.totalorder %s8, 2
      // Predicated region
      $region17: #{resnet50_features_forward.114} parent=5 // pred_check
        %p142 = pneg %p141
      $region18: #{resnet50_features_forward.114} parent=5 // pred_check_branch
        %144 = sbr.rel (%p142) target = $region20
      $region19: #{resnet50_features_forward.114} parent=5 // pred_region
        // Predicated region
        $region21: #{resnet50_features_forward.114} parent=19 // pred_check
          %p145 = pneg %p77
        $region22: #{resnet50_features_forward.114} parent=19 // pred_check_branch
          %147 = sbr.rel (%p145) target = $region24
        $region23: #{resnet50_features_forward.114} parent=19 // pred_region
          %s148 = sand.u32 %s67, 1
          %s149 = sand.u32 %s67, 1
          %s150 = smul.addr %s149, 256
          %s151 = scalar_lea.vmem [#allocation3], %s150
          %s152 = smul.u32 32, %s17
          %s153 = smul.u32 2, %s16
          %s154 = smul.addr %s152, 4
          %s155 = sadd.s32 %s153, %s154
          %s156 = smul.addr %s155, 4
          %s157 = scalar_lea.vmem %s1, %s156
          // Predicated region
          $region25: #{resnet50_features_forward.114} parent=23 // pred_check
            _
          $region26: #{resnet50_features_forward.114} parent=23 // pred_check_branch
            %159 = sbr.rel (0) target = $region28
          $region27: #{resnet50_features_forward.114} parent=23 // pred_region
            // Predicated region
            $region29: #{resnet50_features_forward.114} parent=27 // pred_check
              _
            $region30: #{resnet50_features_forward.114} parent=27 // pred_check_branch
              %161 = sbr.rel (0) target = $region32
            $region31: #{resnet50_features_forward.114} parent=27 // pred_region
              // Predicated region
              $region44: #{resnet50_features_forward.114} parent=31 // pred_check
                _
              $region45: #{resnet50_features_forward.114} parent=31 // pred_check_branch
                %239 = sbr.rel (0) target = $region47
              $region46: #{resnet50_features_forward.114} parent=31 // pred_region
                loop: start=0, step=1, limit=1
                $region48: #{resnet50_features_forward.114} parent=46 // loop_pre_header
                  _
                $region49: #{resnet50_features_forward.114} parent=46 // loop_header
                  %s241 = sphi 0, %s245
                  %p242 = scmp.ge.s32.totalorder %s241, 1
                  %s246 = sphi %s157, %s157
                  %s247 = sphi %s151, %s151
                $region50: #{resnet50_features_forward.114} parent=46 // loop_header_branch
                  %244 = sbr.rel (%p242) target = $region54
                $region51: #{resnet50_features_forward.114} parent=46 // loop_body
                  %v248 = vld [vmem:[%s246] sm:$0xff]
                  %249 = vst [vmem:[%s247] sm:$0xff] %v248
                  %v250 = vld [vmem:[%s246 + $0x10] sm:$0xff]
                  %251 = vst [vmem:[%s247 + $0x8] sm:$0xff] %v250
                  %v252 = vld [vmem:[%s246 + $0x20] sm:$0xff]
                  %253 = vst [vmem:[%s247 + $0x10] sm:$0xff] %v252
                  %v254 = vld [vmem:[%s246 + $0x30] sm:$0xff]
                  %255 = vst [vmem:[%s247 + $0x18] sm:$0xff] %v254
                  %v256 = vld [vmem:[%s246 + $0x40] sm:$0xff]
                  %257 = vst [vmem:[%s247 + $0x20] sm:$0xff] %v256
                  %v258 = vld [vmem:[%s246 + $0x50] sm:$0xff]
                  %259 = vst [vmem:[%s247 + $0x28] sm:$0xff] %v258
                  %v260 = vld [vmem:[%s246 + $0x60] sm:$0xff]
                  %261 = vst [vmem:[%s247 + $0x30] sm:$0xff] %v260
                  %v262 = vld [vmem:[%s246 + $0x70] sm:$0xff]
                  %263 = vst [vmem:[%s247 + $0x38] sm:$0xff] %v262
                  %v264 = vld [vmem:[%s246 + $0x80] sm:$0xff]
                  %265 = vst [vmem:[%s247 + $0x40] sm:$0xff] %v264
                  %v266 = vld [vmem:[%s246 + $0x90] sm:$0xff]
                  %267 = vst [vmem:[%s247 + $0x48] sm:$0xff] %v266
                  %v268 = vld [vmem:[%s246 + $0xa0] sm:$0xff]
                  %269 = vst [vmem:[%s247 + $0x50] sm:$0xff] %v268
                  %v270 = vld [vmem:[%s246 + $0xb0] sm:$0xff]
                  %271 = vst [vmem:[%s247 + $0x58] sm:$0xff] %v270
                  %v272 = vld [vmem:[%s246 + $0xc0] sm:$0xff]
                  %273 = vst [vmem:[%s247 + $0x60] sm:$0xff] %v272
                  %v274 = vld [vmem:[%s246 + $0xd0] sm:$0xff]
                  %275 = vst [vmem:[%s247 + $0x68] sm:$0xff] %v274
                  %v276 = vld [vmem:[%s246 + $0xe0] sm:$0xff]
                  %277 = vst [vmem:[%s247 + $0x70] sm:$0xff] %v276
                  %v278 = vld [vmem:[%s246 + $0xf0] sm:$0xff]
                  %279 = vst [vmem:[%s247 + $0x78] sm:$0xff] %v278
                  %v280 = vld [vmem:[%s246 + $0x100] sm:$0xff]
                  %281 = vst [vmem:[%s247 + $0x80] sm:$0xff] %v280
                  %v282 = vld [vmem:[%s246 + $0x110] sm:$0xff]
                  %283 = vst [vmem:[%s247 + $0x88] sm:$0xff] %v282
                  %v284 = vld [vmem:[%s246 + $0x120] sm:$0xff]
                  %285 = vst [vmem:[%s247 + $0x90] sm:$0xff] %v284
                  %v286 = vld [vmem:[%s246 + $0x130] sm:$0xff]
                  %287 = vst [vmem:[%s247 + $0x98] sm:$0xff] %v286
                  %v288 = vld [vmem:[%s246 + $0x140] sm:$0xff]
                  %289 = vst [vmem:[%s247 + $0xa0] sm:$0xff] %v288
                  %v290 = vld [vmem:[%s246 + $0x150] sm:$0xff]
                  %291 = vst [vmem:[%s247 + $0xa8] sm:$0xff] %v290
                  %v292 = vld [vmem:[%s246 + $0x160] sm:$0xff]
                  %293 = vst [vmem:[%s247 + $0xb0] sm:$0xff] %v292
                  %v294 = vld [vmem:[%s246 + $0x170] sm:$0xff]
                  %295 = vst [vmem:[%s247 + $0xb8] sm:$0xff] %v294
                  %v296 = vld [vmem:[%s246 + $0x180] sm:$0xff]
                  %297 = vst [vmem:[%s247 + $0xc0] sm:$0xff] %v296
                  %v298 = vld [vmem:[%s246 + $0x190] sm:$0xff]
                  %299 = vst [vmem:[%s247 + $0xc8] sm:$0xff] %v298
                  %v300 = vld [vmem:[%s246 + $0x1a0] sm:$0xff]
                  %301 = vst [vmem:[%s247 + $0xd0] sm:$0xff] %v300
                  %v302 = vld [vmem:[%s246 + $0x1b0] sm:$0xff]
                  %303 = vst [vmem:[%s247 + $0xd8] sm:$0xff] %v302
                  %v304 = vld [vmem:[%s246 + $0x1c0] sm:$0xff]
                  %305 = vst [vmem:[%s247 + $0xe0] sm:$0xff] %v304
                  %v306 = vld [vmem:[%s246 + $0x1d0] sm:$0xff]
                  %307 = vst [vmem:[%s247 + $0xe8] sm:$0xff] %v306
                  %v308 = vld [vmem:[%s246 + $0x1e0] sm:$0xff]
                  %309 = vst [vmem:[%s247 + $0xf0] sm:$0xff] %v308
                  %v310 = vld [vmem:[%s246 + $0x1f0] sm:$0xff]
                  %311 = vst [vmem:[%s247 + $0xf8] sm:$0xff] %v310
                $region52: #{resnet50_features_forward.114} parent=46 // loop_footer
                  %s245 = sadd.s32 1, %s241
                $region53: #{resnet50_features_forward.114} parent=46 // loop_footer_branch
                  %240 = sbr.rel target = $region49
                $region54: #{resnet50_features_forward.114} parent=46 // loop_exit
                  _
              $region47: #{resnet50_features_forward.114} parent=31 // pred_fallthru
                _
              // Predicated region
              $region55: #{resnet50_features_forward.114} parent=31 // pred_check
                _
              $region56: #{resnet50_features_forward.114} parent=31 // pred_check_branch
                %313 = sbr.rel target = $region58
              $region57: #{resnet50_features_forward.114} parent=31 // pred_region
                _
              $region58: #{resnet50_features_forward.114} parent=31 // pred_fallthru
                _
            $region32: #{resnet50_features_forward.114} parent=27 // pred_fallthru
              _
            // Predicated region
            $region33: #{resnet50_features_forward.114} parent=27 // pred_check
              _
            $region34: #{resnet50_features_forward.114} parent=27 // pred_check_branch
              %163 = sbr.rel target = $region36
            $region35: #{resnet50_features_forward.114} parent=27 // pred_region
              %s165 = ssub.s32 256, 1
              loop: start=0, step=1, limit=1
              $region37: #{resnet50_features_forward.114} parent=35 // loop_pre_header
                _
              $region38: #{resnet50_features_forward.114} parent=35 // loop_header
                %s167 = sphi 0, %s171
                %p168 = scmp.ge.s32.totalorder %s167, 1
                %s172 = sphi %s157, %s157
                %s173 = sphi %s151, %s151
              $region39: #{resnet50_features_forward.114} parent=35 // loop_header_branch
                %170 = sbr.rel (%p168) target = $region43
              $region40: #{resnet50_features_forward.114} parent=35 // loop_body
                %v174 = vld [vmem:[%s172] sm:%s165]
                %175 = vst [vmem:[%s173] sm:%s165] %v174
                %v176 = vld [vmem:[%s172 + $0x10] sm:%s165]
                %177 = vst [vmem:[%s173 + $0x8] sm:%s165] %v176
                %v178 = vld [vmem:[%s172 + $0x20] sm:%s165]
                %179 = vst [vmem:[%s173 + $0x10] sm:%s165] %v178
                %v180 = vld [vmem:[%s172 + $0x30] sm:%s165]
                %181 = vst [vmem:[%s173 + $0x18] sm:%s165] %v180
                %v182 = vld [vmem:[%s172 + $0x40] sm:%s165]
                %183 = vst [vmem:[%s173 + $0x20] sm:%s165] %v182
                %v184 = vld [vmem:[%s172 + $0x50] sm:%s165]
                %185 = vst [vmem:[%s173 + $0x28] sm:%s165] %v184
                %v186 = vld [vmem:[%s172 + $0x60] sm:%s165]
                %187 = vst [vmem:[%s173 + $0x30] sm:%s165] %v186
                %v188 = vld [vmem:[%s172 + $0x70] sm:%s165]
                %189 = vst [vmem:[%s173 + $0x38] sm:%s165] %v188
                %v190 = vld [vmem:[%s172 + $0x80] sm:%s165]
                %191 = vst [vmem:[%s173 + $0x40] sm:%s165] %v190
                %v192 = vld [vmem:[%s172 + $0x90] sm:%s165]
                %193 = vst [vmem:[%s173 + $0x48] sm:%s165] %v192
                %v194 = vld [vmem:[%s172 + $0xa0] sm:%s165]
                %195 = vst [vmem:[%s173 + $0x50] sm:%s165] %v194
                %v196 = vld [vmem:[%s172 + $0xb0] sm:%s165]
                %197 = vst [vmem:[%s173 + $0x58] sm:%s165] %v196
                %v198 = vld [vmem:[%s172 + $0xc0] sm:%s165]
                %199 = vst [vmem:[%s173 + $0x60] sm:%s165] %v198
                %v200 = vld [vmem:[%s172 + $0xd0] sm:%s165]
                %201 = vst [vmem:[%s173 + $0x68] sm:%s165] %v200
                %v202 = vld [vmem:[%s172 + $0xe0] sm:%s165]
                %203 = vst [vmem:[%s173 + $0x70] sm:%s165] %v202
                %v204 = vld [vmem:[%s172 + $0xf0] sm:%s165]
                %205 = vst [vmem:[%s173 + $0x78] sm:%s165] %v204
                %v206 = vld [vmem:[%s172 + $0x100] sm:%s165]
                %207 = vst [vmem:[%s173 + $0x80] sm:%s165] %v206
                %v208 = vld [vmem:[%s172 + $0x110] sm:%s165]
                %209 = vst [vmem:[%s173 + $0x88] sm:%s165] %v208
                %v210 = vld [vmem:[%s172 + $0x120] sm:%s165]
                %211 = vst [vmem:[%s173 + $0x90] sm:%s165] %v210
                %v212 = vld [vmem:[%s172 + $0x130] sm:%s165]
                %213 = vst [vmem:[%s173 + $0x98] sm:%s165] %v212
                %v214 = vld [vmem:[%s172 + $0x140] sm:%s165]
                %215 = vst [vmem:[%s173 + $0xa0] sm:%s165] %v214
                %v216 = vld [vmem:[%s172 + $0x150] sm:%s165]
                %217 = vst [vmem:[%s173 + $0xa8] sm:%s165] %v216
                %v218 = vld [vmem:[%s172 + $0x160] sm:%s165]
                %219 = vst [vmem:[%s173 + $0xb0] sm:%s165] %v218
                %v220 = vld [vmem:[%s172 + $0x170] sm:%s165]
                %221 = vst [vmem:[%s173 + $0xb8] sm:%s165] %v220
                %v222 = vld [vmem:[%s172 + $0x180] sm:%s165]
                %223 = vst [vmem:[%s173 + $0xc0] sm:%s165] %v222
                %v224 = vld [vmem:[%s172 + $0x190] sm:%s165]
                %225 = vst [vmem:[%s173 + $0xc8] sm:%s165] %v224
                %v226 = vld [vmem:[%s172 + $0x1a0] sm:%s165]
                %227 = vst [vmem:[%s173 + $0xd0] sm:%s165] %v226
                %v228 = vld [vmem:[%s172 + $0x1b0] sm:%s165]
                %229 = vst [vmem:[%s173 + $0xd8] sm:%s165] %v228
                %v230 = vld [vmem:[%s172 + $0x1c0] sm:%s165]
                %231 = vst [vmem:[%s173 + $0xe0] sm:%s165] %v230
                %v232 = vld [vmem:[%s172 + $0x1d0] sm:%s165]
                %233 = vst [vmem:[%s173 + $0xe8] sm:%s165] %v232
                %v234 = vld [vmem:[%s172 + $0x1e0] sm:%s165]
                %235 = vst [vmem:[%s173 + $0xf0] sm:%s165] %v234
                %v236 = vld [vmem:[%s172 + $0x1f0] sm:%s165]
                %237 = vst [vmem:[%s173 + $0xf8] sm:%s165] %v236
              $region41: #{resnet50_features_forward.114} parent=35 // loop_footer
                %s171 = sadd.s32 1, %s167
              $region42: #{resnet50_features_forward.114} parent=35 // loop_footer_branch
                %166 = sbr.rel target = $region38
              $region43: #{resnet50_features_forward.114} parent=35 // loop_exit
                _
            $region36: #{resnet50_features_forward.114} parent=27 // pred_fallthru
              _
          $region28: #{resnet50_features_forward.114} parent=23 // pred_fallthru
            _
          %314 = vnop
        $region24: #{resnet50_features_forward.114} parent=19 // pred_fallthru
          _
      $region20: #{resnet50_features_forward.114} parent=5 // pred_fallthru
        _
      %p315 = scmp.le.s32.totalorder 1, %s8
      %p316 = scmp.lt.s32.totalorder %s8, 3
      %p317 = pnand %p315, %p316
      %p318 = pneg %p317
      // Predicated region
      $region59: #{resnet50_features_forward.114} parent=5 // pred_check
        _
      $region60: #{resnet50_features_forward.114} parent=5 // pred_check_branch
        %320 = sbr.rel (%p317) target = $region62
      $region61: #{resnet50_features_forward.114} parent=5 // pred_region
        %s321 = ssub.s32 %s8, 1
        %s322 = sand.u32 %s70, 1
        %s323 = sand.u32 %s70, 1
        %s324 = smul.addr %s323, 256
        %s325 = scalar_lea.vmem [#allocation3], %s324
        // Predicated region
        $region63: #{resnet50_features_forward.114} parent=61 // pred_check
          %p326 = pneg %p83
        $region64: #{resnet50_features_forward.114} parent=61 // pred_check_branch
          %328 = sbr.rel (%p326) target = $region66
        $region65: #{resnet50_features_forward.114} parent=61 // pred_region
          _
        $region66: #{resnet50_features_forward.114} parent=61 // pred_fallthru
          _
        %s329 = smul.u32 4, %s18
        %s330 = smul.u32 2, %s20
        %p331 = scmp.lt.s32.totalorder %s329, 3
        %s332 = scalar_select %p331, %s329, 3
        %p333 = scmp.lt.s32.totalorder %s330, 1
        %s334 = scalar_select %p333, %s330, 1
        %s335 = smul.addr %s332, 2
        %s336 = sadd.s32 %s334, %s335
        %s337 = smul.addr %s336, 4
        %s338 = scalar_lea.vmem %s0, %s337
        %p339 = pneg %p55
        %p340 = pneg %p52
        %s341 = sand.u32 %s70, 1
        %s342 = sand.u32 %s70, 1
        %s343 = smul.addr %s342, 256
        %s344 = scalar_lea.vmem [#allocation3], %s343
        %p345 = pneg %p83
        %p346 = pneg %p80
        %p347 = pneg %p111
        %p348 = pneg %p108
        %s349 = sand.u32 %s98, 1
        %s350 = sand.u32 %s98, 1
        %s351 = smul.addr %s350, 64
        %s352 = scalar_lea.vmem [#allocation4], %s351
        %s353 = smul.u32 4, %s18
        %s354 = smul.u32 2, %s20
        %p355 = scmp.lt.s32.totalorder %s353, 3
        %s356 = scalar_select %p355, %s353, 3
        %p357 = scmp.lt.s32.totalorder %s354, 1
        %s358 = scalar_select %p357, %s354, 1
        %s359 = smul.addr %s356, 2
        %s360 = sadd.s32 %s358, %s359
        %s361 = smul.addr %s360, 4
        %s362 = scalar_lea.vmem %s0, %s361
        %s363 = smul.u32 4, %s18
        %s364 = smul.u32 2, %s20
        %s365 = smul.u32 32, %s20
        %s366 = smul.u32 2, %s19
        %s367 = smul.u32 4, %s18
        %s368 = smul.u32 2, %s19
        %p369 = scmp.eq.s32.totalorder %s20, 0
        // Predicated region
        $region67: #{resnet50_features_forward.114} parent=61 // pred_check
          %p370 = pneg %p369
        $region68: #{resnet50_features_forward.114} parent=61 // pred_check_branch
          %372 = sbr.rel (%p370) target = $region70
        $region69: #{resnet50_features_forward.114} parent=61 // pred_region
          %373 = vst [vmem:[#allocation2] sm:$0xff] 0.0
          %374 = vst [vmem:[#allocation2 + $0x8] sm:$0xff] 0.0
          %375 = vst [vmem:[#allocation2 + $0x10] sm:$0xff] 0.0
          %376 = vst [vmem:[#allocation2 + $0x18] sm:$0xff] 0.0
          %377 = vst [vmem:[#allocation2 + $0x20] sm:$0xff] 0.0
          %378 = vst [vmem:[#allocation2 + $0x28] sm:$0xff] 0.0
          %379 = vst [vmem:[#allocation2 + $0x30] sm:$0xff] 0.0
          %380 = vst [vmem:[#allocation2 + $0x38] sm:$0xff] 0.0
        $region70: #{resnet50_features_forward.114} parent=61 // pred_fallthru
          _
        %v381 = vld [vmem:[#allocation2] sm:$0xff]
        %v382 = vld [vmem:[#allocation2 + $0x8] sm:$0xff]
        %v383 = vld [vmem:[#allocation2 + $0x10] sm:$0xff]
        %v384 = vld [vmem:[#allocation2 + $0x18] sm:$0xff]
        %v385 = vld [vmem:[#allocation2 + $0x20] sm:$0xff]
        %v386 = vld [vmem:[#allocation2 + $0x28] sm:$0xff]
        %v387 = vld [vmem:[#allocation2 + $0x30] sm:$0xff]
        %v388 = vld [vmem:[#allocation2 + $0x38] sm:$0xff]
        %v389 = vld [vmem:[%s362] sm:$0xff]
        %v390 = vld [vmem:[%s362 + $0x8] sm:$0xff]
        %v391 = vld [vmem:[%s362 + $0x10] sm:$0xff]
        %v392 = vld [vmem:[%s362 + $0x18] sm:$0xff]
        %v393 = vld [vmem:[%s325] sm:$0xff]
        %v394 = vld [vmem:[%s325 + $0x8] sm:$0xff]
        %v395 = vld [vmem:[%s325 + $0x10] sm:$0xff]
        %v396 = vld [vmem:[%s325 + $0x18] sm:$0xff]
        %v397 = vld [vmem:[%s325 + $0x20] sm:$0xff]
        %v398 = vld [vmem:[%s325 + $0x28] sm:$0xff]
        %v399 = vld [vmem:[%s325 + $0x30] sm:$0xff]
        %v400 = vld [vmem:[%s325 + $0x38] sm:$0xff]
        %v401 = vld [vmem:[%s325 + $0x40] sm:$0xff]
        %v402 = vld [vmem:[%s325 + $0x48] sm:$0xff]
        %v403 = vld [vmem:[%s325 + $0x50] sm:$0xff]
        %v404 = vld [vmem:[%s325 + $0x58] sm:$0xff]
        %v405 = vld [vmem:[%s325 + $0x60] sm:$0xff]
        %v406 = vld [vmem:[%s325 + $0x68] sm:$0xff]
        %v407 = vld [vmem:[%s325 + $0x70] sm:$0xff]
        %v408 = vld [vmem:[%s325 + $0x78] sm:$0xff]
        %v409 = vld [vmem:[%s325 + $0x80] sm:$0xff]
        %v410 = vld [vmem:[%s325 + $0x88] sm:$0xff]
        %v411 = vld [vmem:[%s325 + $0x90] sm:$0xff]
        %v412 = vld [vmem:[%s325 + $0x98] sm:$0xff]
        %v413 = vld [vmem:[%s325 + $0xa0] sm:$0xff]
        %v414 = vld [vmem:[%s325 + $0xa8] sm:$0xff]
        %v415 = vld [vmem:[%s325 + $0xb0] sm:$0xff]
        %v416 = vld [vmem:[%s325 + $0xb8] sm:$0xff]
        %v417 = vld [vmem:[%s325 + $0xc0] sm:$0xff]
        %v418 = vld [vmem:[%s325 + $0xc8] sm:$0xff]
        %v419 = vld [vmem:[%s325 + $0xd0] sm:$0xff]
        %v420 = vld [vmem:[%s325 + $0xd8] sm:$0xff]
        %v421 = vld [vmem:[%s325 + $0xe0] sm:$0xff]
        %v422 = vld [vmem:[%s325 + $0xe8] sm:$0xff]
        %v423 = vld [vmem:[%s325 + $0xf0] sm:$0xff]
        %v424 = vld [vmem:[%s325 + $0xf8] sm:$0xff]
        %v429 = vunpack.c.l.b16 %v389
        %v430 = vunpack.c.h.b16 %v389
        %v431 = vunpack.c.l.b16 %v390
        %v432 = vunpack.c.h.b16 %v390
        %v433 = vunpack.c.l.b16 %v391
        %v434 = vunpack.c.h.b16 %v391
        %v435 = vunpack.c.l.b16 %v392
        %v436 = vunpack.c.h.b16 %v392
        %v437 = vpack.c.b16 %v431, %v429
        %v438 = vpack.c.b16 %v432, %v430
        %v439 = vpack.c.b16 %v435, %v433
        %v440 = vpack.c.b16 %v436, %v434
        %v477 = vunpack.c.l.b16 %v393
        %v478 = vunpack.c.h.b16 %v393
        %v479 = vunpack.c.l.b16 %v394
        %v480 = vunpack.c.h.b16 %v394
        %v481 = vunpack.c.l.b16 %v395
        %v482 = vunpack.c.h.b16 %v395
        %v483 = vunpack.c.l.b16 %v396
        %v484 = vunpack.c.h.b16 %v396
        %v485 = vunpack.c.l.b16 %v397
        %v486 = vunpack.c.h.b16 %v397
        %v487 = vunpack.c.l.b16 %v398
        %v488 = vunpack.c.h.b16 %v398
        %v489 = vunpack.c.l.b16 %v399
        %v490 = vunpack.c.h.b16 %v399
        %v491 = vunpack.c.l.b16 %v400
        %v492 = vunpack.c.h.b16 %v400
        %v493 = vunpack.c.l.b16 %v401
        %v494 = vunpack.c.h.b16 %v401
        %v495 = vunpack.c.l.b16 %v402
        %v496 = vunpack.c.h.b16 %v402
        %v497 = vunpack.c.l.b16 %v403
        %v498 = vunpack.c.h.b16 %v403
        %v499 = vunpack.c.l.b16 %v404
        %v500 = vunpack.c.h.b16 %v404
        %v501 = vunpack.c.l.b16 %v405
        %v502 = vunpack.c.h.b16 %v405
        %v503 = vunpack.c.l.b16 %v406
        %v504 = vunpack.c.h.b16 %v406
        %v505 = vunpack.c.l.b16 %v407
        %v506 = vunpack.c.h.b16 %v407
        %v507 = vunpack.c.l.b16 %v408
        %v508 = vunpack.c.h.b16 %v408
        %v509 = vunpack.c.l.b16 %v409
        %v510 = vunpack.c.h.b16 %v409
        %v511 = vunpack.c.l.b16 %v410
        %v512 = vunpack.c.h.b16 %v410
        %v513 = vunpack.c.l.b16 %v411
        %v514 = vunpack.c.h.b16 %v411
        %v515 = vunpack.c.l.b16 %v412
        %v516 = vunpack.c.h.b16 %v412
        %v517 = vunpack.c.l.b16 %v413
        %v518 = vunpack.c.h.b16 %v413
        %v519 = vunpack.c.l.b16 %v414
        %v520 = vunpack.c.h.b16 %v414
        %v521 = vunpack.c.l.b16 %v415
        %v522 = vunpack.c.h.b16 %v415
        %v523 = vunpack.c.l.b16 %v416
        %v524 = vunpack.c.h.b16 %v416
        %v525 = vunpack.c.l.b16 %v417
        %v526 = vunpack.c.h.b16 %v417
        %v527 = vunpack.c.l.b16 %v418
        %v528 = vunpack.c.h.b16 %v418
        %v529 = vunpack.c.l.b16 %v419
        %v530 = vunpack.c.h.b16 %v419
        %v531 = vunpack.c.l.b16 %v420
        %v532 = vunpack.c.h.b16 %v420
        %v533 = vunpack.c.l.b16 %v421
        %v534 = vunpack.c.h.b16 %v421
        %v535 = vunpack.c.l.b16 %v422
        %v536 = vunpack.c.h.b16 %v422
        %v537 = vunpack.c.l.b16 %v423
        %v538 = vunpack.c.h.b16 %v423
        %v539 = vunpack.c.l.b16 %v424
        %v540 = vunpack.c.h.b16 %v424
        %v541 = vpack.c.b16 %v479, %v477
        %v542 = vpack.c.b16 %v480, %v478
        %v543 = vpack.c.b16 %v483, %v481
        %v544 = vpack.c.b16 %v484, %v482
        %v545 = vpack.c.b16 %v487, %v485
        %v546 = vpack.c.b16 %v488, %v486
        %v547 = vpack.c.b16 %v491, %v489
        %v548 = vpack.c.b16 %v492, %v490
        %v549 = vpack.c.b16 %v495, %v493
        %v550 = vpack.c.b16 %v496, %v494
        %v551 = vpack.c.b16 %v499, %v497
        %v552 = vpack.c.b16 %v500, %v498
        %v553 = vpack.c.b16 %v503, %v501
        %v554 = vpack.c.b16 %v504, %v502
        %v555 = vpack.c.b16 %v507, %v505
        %v556 = vpack.c.b16 %v508, %v506
        %v557 = vpack.c.b16 %v511, %v509
        %v558 = vpack.c.b16 %v512, %v510
        %v559 = vpack.c.b16 %v515, %v513
        %v560 = vpack.c.b16 %v516, %v514
        %v561 = vpack.c.b16 %v519, %v517
        %v562 = vpack.c.b16 %v520, %v518
        %v563 = vpack.c.b16 %v523, %v521
        %v564 = vpack.c.b16 %v524, %v522
        %v565 = vpack.c.b16 %v527, %v525
        %v566 = vpack.c.b16 %v528, %v526
        %v567 = vpack.c.b16 %v531, %v529
        %v568 = vpack.c.b16 %v532, %v530
        %v569 = vpack.c.b16 %v535, %v533
        %v570 = vpack.c.b16 %v536, %v534
        %v571 = vpack.c.b16 %v539, %v537
        %v572 = vpack.c.b16 %v540, %v538
        %605 = vmatprep.subr.bf16.mxu0 %v556
        %606 = vmatpush1.bf16.msra.mxu0 %v555
        %607 = vmatprep.subr.bf16.mxu0 %v554
        %608 = vmatpush1.bf16.msra.mxu0 %v553
        %609 = vmatprep.subr.bf16.mxu0 %v552
        %610 = vmatpush1.bf16.msra.mxu0 %v551
        %611 = vmatprep.subr.bf16.mxu0 %v550
        %612 = vmatpush1.bf16.msra.mxu0 %v549
        %613 = vmatprep.subr.bf16.mxu0 %v548
        %614 = vmatpush1.bf16.msra.mxu0 %v547
        %615 = vmatprep.subr.bf16.mxu0 %v546
        %616 = vmatpush1.bf16.msra.mxu0 %v545
        %617 = vmatprep.subr.bf16.mxu0 %v544
        %618 = vmatpush1.bf16.msra.mxu0 %v543
        %619 = vmatprep.subr.bf16.mxu0 %v542
        %620 = vmatpush1.bf16.msra.mxu0 %v541
        %621 = vmatprep.subr.bf16.mxu0 %v572
        %622 = vmatpush2.bf16.msra.mxu0 %v571
        %623 = vmatprep.subr.bf16.mxu0 %v570
        %624 = vmatpush2.bf16.msra.mxu0 %v569
        %625 = vmatprep.subr.bf16.mxu0 %v568
        %626 = vmatpush2.bf16.msra.mxu0 %v567
        %627 = vmatprep.subr.bf16.mxu0 %v566
        %628 = vmatpush2.bf16.msra.mxu0 %v565
        %629 = vmatprep.subr.bf16.mxu0 %v564
        %630 = vmatpush2.bf16.msra.mxu0 %v563
        %631 = vmatprep.subr.bf16.mxu0 %v562
        %632 = vmatpush2.bf16.msra.mxu0 %v561
        %633 = vmatprep.subr.bf16.mxu0 %v560
        %634 = vmatpush2.bf16.msra.mxu0 %v559
        %635 = vmatprep.subr.bf16.mxu0 %v558
        %636 = vmatpush2.bf16.msra.mxu0 %v557
        %637 = vmatprep.mubr.bf16.mxu0 %v438
        %638 = vmatmul.mubr.bf16.gmra.mxu0 %v437
        %v639 = vpop.f32.mrf.mxu0
        %v640 = vadd.f32 0.0, %v639
        %v641 = vpop.f32.mrf.mxu0
        %v642 = vadd.f32 0.0, %v641
        %v643 = vpop.f32.mrf.mxu0
        %v644 = vadd.f32 0.0, %v643
        %v645 = vpop.f32.mrf.mxu0
        %v646 = vadd.f32 0.0, %v645
        %647 = vmatprep.mubr.bf16.mxu0 %v440
        %648 = vmatmul.mubr.bf16.gmra.mxu0 %v439
        %v649 = vpop.f32.mrf.mxu0
        %v650 = vadd.f32 0.0, %v649
        %v651 = vpop.f32.mrf.mxu0
        %v652 = vadd.f32 0.0, %v651
        %v653 = vpop.f32.mrf.mxu0
        %v654 = vadd.f32 0.0, %v653
        %v655 = vpop.f32.mrf.mxu0
        %v656 = vadd.f32 0.0, %v655
        %657 = vdwg.mxu0
        %v658 = vadd.f32 %v381, %v640
        %v659 = vadd.f32 %v382, %v642
        %v660 = vadd.f32 %v383, %v644
        %v661 = vadd.f32 %v384, %v646
        %v662 = vadd.f32 %v385, %v650
        %v663 = vadd.f32 %v386, %v652
        %v664 = vadd.f32 %v387, %v654
        %v665 = vadd.f32 %v388, %v656
        %666 = vst [vmem:[#allocation2] sm:$0xff] %v658
        %667 = vst [vmem:[#allocation2 + $0x8] sm:$0xff] %v659
        %668 = vst [vmem:[#allocation2 + $0x10] sm:$0xff] %v660
        %669 = vst [vmem:[#allocation2 + $0x18] sm:$0xff] %v661
        %670 = vst [vmem:[#allocation2 + $0x20] sm:$0xff] %v662
        %671 = vst [vmem:[#allocation2 + $0x28] sm:$0xff] %v663
        %672 = vst [vmem:[#allocation2 + $0x30] sm:$0xff] %v664
        %673 = vst [vmem:[#allocation2 + $0x38] sm:$0xff] %v665
        // Predicated region
        $region71: #{resnet50_features_forward.114} parent=61 // pred_check
          %p674 = pneg %p369
        $region72: #{resnet50_features_forward.114} parent=61 // pred_check_branch
          %676 = sbr.rel (%p674) target = $region74
        $region73: #{resnet50_features_forward.114} parent=61 // pred_region
          %v677 = vld [vmem:[#allocation2] sm:$0xff]
          %v678 = vld [vmem:[#allocation2 + $0x8] sm:$0xff]
          %v679 = vld [vmem:[#allocation2 + $0x10] sm:$0xff]
          %v680 = vld [vmem:[#allocation2 + $0x18] sm:$0xff]
          %v681 = vld [vmem:[#allocation2 + $0x20] sm:$0xff]
          %v682 = vld [vmem:[#allocation2 + $0x28] sm:$0xff]
          %v683 = vld [vmem:[#allocation2 + $0x30] sm:$0xff]
          %v684 = vld [vmem:[#allocation2 + $0x38] sm:$0xff]
          %685 = vst [vmem:[%s352] sm:$0xff] %v677
          %686 = vst [vmem:[%s352 + $0x8] sm:$0xff] %v678
          %687 = vst [vmem:[%s352 + $0x10] sm:$0xff] %v679
          %688 = vst [vmem:[%s352 + $0x18] sm:$0xff] %v680
          %689 = vst [vmem:[%s352 + $0x20] sm:$0xff] %v681
          %690 = vst [vmem:[%s352 + $0x28] sm:$0xff] %v682
          %691 = vst [vmem:[%s352 + $0x30] sm:$0xff] %v683
          %692 = vst [vmem:[%s352 + $0x38] sm:$0xff] %v684
        $region74: #{resnet50_features_forward.114} parent=61 // pred_fallthru
          _
        %s693 = sand.u32 %s98, 1
        %s694 = sand.u32 %s98, 1
        %s695 = smul.addr %s694, 64
        %s696 = scalar_lea.vmem [#allocation4], %s695
        // Predicated region
        $region75: #{resnet50_features_forward.114} parent=61 // pred_check
          %p697 = pneg %p108
        $region76: #{resnet50_features_forward.114} parent=61 // pred_check_branch
          %699 = sbr.rel (%p697) target = $region78
        $region77: #{resnet50_features_forward.114} parent=61 // pred_region
          %s700 = smul.u32 4, %s18
          %s701 = smul.u32 2, %s19
          %s702 = smul.addr %s700, 4
          %s703 = sadd.s32 %s701, %s702
          %s704 = smul.addr %s703, 8
          %s705 = scalar_lea.vmem %s2, %s704
          // Predicated region
          $region79: #{resnet50_features_forward.114} parent=77 // pred_check
            _
          $region80: #{resnet50_features_forward.114} parent=77 // pred_check_branch
            %707 = sbr.rel (0) target = $region82
          $region81: #{resnet50_features_forward.114} parent=77 // pred_region
            // Predicated region
            $region83: #{resnet50_features_forward.114} parent=81 // pred_check
              _
            $region84: #{resnet50_features_forward.114} parent=81 // pred_check_branch
              %709 = sbr.rel (0) target = $region86
            $region85: #{resnet50_features_forward.114} parent=81 // pred_region
              loop: start=0, step=1, limit=1
              $region87: #{resnet50_features_forward.114} parent=85 // loop_pre_header
                _
              $region88: #{resnet50_features_forward.114} parent=85 // loop_header
                %s711 = sphi 0, %s715
                %p712 = scmp.ge.s32.totalorder %s711, 1
                %s716 = sphi %s696, %s696
                %s717 = sphi %s705, %s705
              $region89: #{resnet50_features_forward.114} parent=85 // loop_header_branch
                %714 = sbr.rel (%p712) target = $region93
              $region90: #{resnet50_features_forward.114} parent=85 // loop_body
                %v718 = vld [vmem:[%s716] sm:$0xff]
                %719 = vst [vmem:[%s717] sm:$0xff] %v718
                %v720 = vld [vmem:[%s716 + $0x8] sm:$0xff]
                %721 = vst [vmem:[%s717 + $0x8] sm:$0xff] %v720
                %v722 = vld [vmem:[%s716 + $0x10] sm:$0xff]
                %723 = vst [vmem:[%s717 + $0x20] sm:$0xff] %v722
                %v724 = vld [vmem:[%s716 + $0x18] sm:$0xff]
                %725 = vst [vmem:[%s717 + $0x28] sm:$0xff] %v724
                %v726 = vld [vmem:[%s716 + $0x20] sm:$0xff]
                %727 = vst [vmem:[%s717 + $0x40] sm:$0xff] %v726
                %v728 = vld [vmem:[%s716 + $0x28] sm:$0xff]
                %729 = vst [vmem:[%s717 + $0x48] sm:$0xff] %v728
                %v730 = vld [vmem:[%s716 + $0x30] sm:$0xff]
                %731 = vst [vmem:[%s717 + $0x60] sm:$0xff] %v730
                %v732 = vld [vmem:[%s716 + $0x38] sm:$0xff]
                %733 = vst [vmem:[%s717 + $0x68] sm:$0xff] %v732
              $region91: #{resnet50_features_forward.114} parent=85 // loop_footer
                %s715 = sadd.s32 1, %s711
              $region92: #{resnet50_features_forward.114} parent=85 // loop_footer_branch
                %710 = sbr.rel target = $region88
              $region93: #{resnet50_features_forward.114} parent=85 // loop_exit
                _
            $region86: #{resnet50_features_forward.114} parent=81 // pred_fallthru
              _
            // Predicated region
            $region94: #{resnet50_features_forward.114} parent=81 // pred_check
              _
            $region95: #{resnet50_features_forward.114} parent=81 // pred_check_branch
              %735 = sbr.rel target = $region97
            $region96: #{resnet50_features_forward.114} parent=81 // pred_region
              _
            $region97: #{resnet50_features_forward.114} parent=81 // pred_fallthru
              _
          $region82: #{resnet50_features_forward.114} parent=77 // pred_fallthru
            _
          %736 = vnop
        $region78: #{resnet50_features_forward.114} parent=61 // pred_fallthru
          _
      $region62: #{resnet50_features_forward.114} parent=5 // pred_fallthru
        _
      %p737 = scmp.le.s32.totalorder 2, %s8
      // Predicated region
      $region98: #{resnet50_features_forward.114} parent=5 // pred_check
        %p738 = pneg %p737
      $region99: #{resnet50_features_forward.114} parent=5 // pred_check_branch
        %740 = sbr.rel (%p738) target = $region101
      $region100: #{resnet50_features_forward.114} parent=5 // pred_region
        %s741 = ssub.s32 %s8, 2
        // Predicated region
        $region102: #{resnet50_features_forward.114} parent=100 // pred_check
          %p742 = pneg %p114
        $region103: #{resnet50_features_forward.114} parent=100 // pred_check_branch
          %744 = sbr.rel (%p742) target = $region105
        $region104: #{resnet50_features_forward.114} parent=100 // pred_region
          %s745 = sand.u32 %s99, 1
          %s746 = sand.u32 %s99, 1
          %s747 = smul.addr %s746, 64
          %s748 = scalar_lea.vmem [#allocation4], %s747
        $region105: #{resnet50_features_forward.114} parent=100 // pred_fallthru
          _
      $region101: #{resnet50_features_forward.114} parent=5 // pred_fallthru
        _
    $region6: #{resnet50_features_forward.114} parent=1 // loop_footer
      %s12 = sadd.s32 1, %s8
    $region7: #{resnet50_features_forward.114} parent=1 // loop_footer_branch
      %7 = sbr.rel target = $region3
    $region8: #{resnet50_features_forward.114} parent=1 // loop_exit
      _

// kernel: resnet50_features_forward.115
$region0: #{resnet50_features_forward.115}
  #allocation0 [shape = 'u32[]', space=smem, size = 0x4, offset = 0x4, fixed_abs, tag = 'smem constant byte address 0x4 - core index']
  #allocation1 [shape = 'u32[144,128]{1,0:T(1,128)}', space=vmem, size = 0x12000, scoped, tag = 'internal scratch']
  %s0 = inlined_call_operand.vmem [shape: f32[32,512], index: 0, kind: input, shape index: {}]
  %s1 = inlined_call_operand.vmem [shape: f32[8,512], index: 1, kind: output, shape index: {}]
  %s2 = sld [smem:[#allocation0]]
  $region18: #{resnet50_features_forward.115} parent=0
    _
  %s4 = ssub.s32 1, %s2
  %s5 = scalar_select 0, %s4, %s2
  // Predicated region
  $region2: #{resnet50_features_forward.115} parent=0 // pred_check
    _
  $region3: #{resnet50_features_forward.115} parent=0 // pred_check_branch
    %7 = sbr.rel (0) target = $region5
  $region4: #{resnet50_features_forward.115} parent=0 // pred_region
    _
  $region5: #{resnet50_features_forward.115} parent=0 // pred_fallthru
    _
  %p8 = scmp.eq.s32.totalorder 0, 0
  // Predicated region
  $region6: #{resnet50_features_forward.115} parent=0 // pred_check
    %p9 = pneg %p8
  $region7: #{resnet50_features_forward.115} parent=0 // pred_check_branch
    %11 = sbr.rel (%p9) target = $region9
  $region8: #{resnet50_features_forward.115} parent=0 // pred_region
    %12 = vst [vmem:[%s1] sm:$0xff] 0.0
    %13 = vst [vmem:[%s1 + $0x8] sm:$0xff] 0.0
    %14 = vst [vmem:[%s1 + $0x10] sm:$0xff] 0.0
    %15 = vst [vmem:[%s1 + $0x18] sm:$0xff] 0.0
  $region9: #{resnet50_features_forward.115} parent=0 // pred_fallthru
    _
  %v16 = vld [vmem:[%s0] sm:$0xff]
  %v17 = vld [vmem:[%s0 + $0x8] sm:$0xff]
  %v18 = vld [vmem:[%s0 + $0x10] sm:$0xff]
  %v19 = vld [vmem:[%s0 + $0x18] sm:$0xff]
  %v20 = vld [vmem:[%s0 + $0x20] sm:$0xff]
  %v21 = vld [vmem:[%s0 + $0x28] sm:$0xff]
  %v22 = vld [vmem:[%s0 + $0x30] sm:$0xff]
  %v23 = vld [vmem:[%s0 + $0x38] sm:$0xff]
  %v24 = vld [vmem:[%s0 + $0x40] sm:$0xff]
  %v25 = vld [vmem:[%s0 + $0x48] sm:$0xff]
  %v26 = vld [vmem:[%s0 + $0x50] sm:$0xff]
  %v27 = vld [vmem:[%s0 + $0x58] sm:$0xff]
  %v28 = vld [vmem:[%s0 + $0x60] sm:$0xff]
  %v29 = vld [vmem:[%s0 + $0x68] sm:$0xff]
  %v30 = vld [vmem:[%s0 + $0x70] sm:$0xff]
  %v31 = vld [vmem:[%s0 + $0x78] sm:$0xff]
  %v32 = vld [vmem:[%s1] ss:$8 sm:$0xf]
  %v33 = vadd.f32 %v16, %v20
  %v34 = vadd.f32 %v33, %v24
  %v35 = vadd.f32 %v34, %v28
  %v36 = vrot.slane %v35, 4
  %v37 = vadd.f32 %v35, %v36
  %v38 = vrot.slane %v37, 2
  %v39 = vadd.f32 %v37, %v38
  %v40 = vrot.slane %v39, 1
  %v41 = vadd.f32 %v39, %v40
  %v42 = vadd.f32 %v17, %v21
  %v43 = vadd.f32 %v42, %v25
  %v44 = vadd.f32 %v43, %v29
  %v45 = vrot.slane %v44, 4
  %v46 = vadd.f32 %v44, %v45
  %v47 = vrot.slane %v46, 2
  %v48 = vadd.f32 %v46, %v47
  %v49 = vrot.slane %v48, 1
  %v50 = vadd.f32 %v48, %v49
  %v51 = vadd.f32 %v18, %v22
  %v52 = vadd.f32 %v51, %v26
  %v53 = vadd.f32 %v52, %v30
  %v54 = vrot.slane %v53, 4
  %v55 = vadd.f32 %v53, %v54
  %v56 = vrot.slane %v55, 2
  %v57 = vadd.f32 %v55, %v56
  %v58 = vrot.slane %v57, 1
  %v59 = vadd.f32 %v57, %v58
  %v60 = vadd.f32 %v19, %v23
  %v61 = vadd.f32 %v60, %v27
  %v62 = vadd.f32 %v61, %v31
  %v63 = vrot.slane %v62, 4
  %v64 = vadd.f32 %v62, %v63
  %v65 = vrot.slane %v64, 2
  %v66 = vadd.f32 %v64, %v65
  %v67 = vrot.slane %v66, 1
  %v68 = vadd.f32 %v66, %v67
  %v73 = vcombine.low %v41, %v50
  %v74 = vcombine.low %v59, %v68
  %v76 = vunpack.c.l.s4 1966171168
  %v77 = vunpack.c.0.s8 %v76
  %v78 = vlaneseq
  %v79 = vshrl.u32 %v78, 7
  %v80 = vsub.s32 %v77, %v79
  %v81 = vrot.slane %v73, %v80
  %v83 = vunpack.c.l.s4 1966171168
  %v84 = vunpack.c.0.s8 %v83
  %v85 = vlaneseq
  %v86 = vshrl.u32 %v85, 7
  %v87 = vsub.s32 %v84, %v86
  %v88 = vrot.slane %v74, %v87
  %v89 = vcombine.low %v81, %v88
  %v91 = vunpack.c.l.s4 1966171168
  %v92 = vunpack.c.0.s8 %v91
  %v93 = vlaneseq
  %v94 = vshrl.u32 %v93, 7
  %v95 = vsub.s32 %v92, %v94
  %v96 = vrot.slane %v89, %v95
  %v98 = vadd.f32 %v32, %v96
  %v99 = vlaneseq
  %vm100 = vcmp.ge.s32.totalorder %v99, 0
  %vm101 = vcmp.lt.s32.totalorder %v99, 512
  %vm102 = vmand %vm100, %vm101
  %103 = vst.msk [vmem:[%s1] ss:$8 sm:$0xf] %vm102, %v98
  %104 = vst.msk [vmem:[%s1] ss:$8 sm:$0x0] %vm102, %v98
  %s105 = scalar_lea.vmem %s1, 1
  %v106 = vld [vmem:[%s105] ss:$8 sm:$0xf]
  %v107 = vmul.f32 %v16, %v16
  %v108 = vmul.f32 %v17, %v17
  %v109 = vmul.f32 %v18, %v18
  %v110 = vmul.f32 %v19, %v19
  %v111 = vmul.f32 %v20, %v20
  %v112 = vmul.f32 %v21, %v21
  %v113 = vmul.f32 %v22, %v22
  %v114 = vmul.f32 %v23, %v23
  %v115 = vmul.f32 %v24, %v24
  %v116 = vmul.f32 %v25, %v25
  %v117 = vmul.f32 %v26, %v26
  %v118 = vmul.f32 %v27, %v27
  %v119 = vmul.f32 %v28, %v28
  %v120 = vmul.f32 %v29, %v29
  %v121 = vmul.f32 %v30, %v30
  %v122 = vmul.f32 %v31, %v31
  %v123 = vadd.f32 %v107, %v111
  %v124 = vadd.f32 %v123, %v115
  %v125 = vadd.f32 %v124, %v119
  %v126 = vrot.slane %v125, 4
  %v127 = vadd.f32 %v125, %v126
  %v128 = vrot.slane %v127, 2
  %v129 = vadd.f32 %v127, %v128
  %v130 = vrot.slane %v129, 1
  %v131 = vadd.f32 %v129, %v130
  %v132 = vadd.f32 %v108, %v112
  %v133 = vadd.f32 %v132, %v116
  %v134 = vadd.f32 %v133, %v120
  %v135 = vrot.slane %v134, 4
  %v136 = vadd.f32 %v134, %v135
  %v137 = vrot.slane %v136, 2
  %v138 = vadd.f32 %v136, %v137
  %v139 = vrot.slane %v138, 1
  %v140 = vadd.f32 %v138, %v139
  %v141 = vadd.f32 %v109, %v113
  %v142 = vadd.f32 %v141, %v117
  %v143 = vadd.f32 %v142, %v121
  %v144 = vrot.slane %v143, 4
  %v145 = vadd.f32 %v143, %v144
  %v146 = vrot.slane %v145, 2
  %v147 = vadd.f32 %v145, %v146
  %v148 = vrot.slane %v147, 1
  %v149 = vadd.f32 %v147, %v148
  %v150 = vadd.f32 %v110, %v114
  %v151 = vadd.f32 %v150, %v118
  %v152 = vadd.f32 %v151, %v122
  %v153 = vrot.slane %v152, 4
  %v154 = vadd.f32 %v152, %v153
  %v155 = vrot.slane %v154, 2
  %v156 = vadd.f32 %v154, %v155
  %v157 = vrot.slane %v156, 1
  %v158 = vadd.f32 %v156, %v157
  %v163 = vcombine.low %v131, %v140
  %v164 = vcombine.low %v149, %v158
  %v166 = vunpack.c.l.s4 1966171168
  %v167 = vunpack.c.0.s8 %v166
  %v168 = vlaneseq
  %v169 = vshrl.u32 %v168, 7
  %v170 = vsub.s32 %v167, %v169
  %v171 = vrot.slane %v163, %v170
  %v173 = vunpack.c.l.s4 1966171168
  %v174 = vunpack.c.0.s8 %v173
  %v175 = vlaneseq
  %v176 = vshrl.u32 %v175, 7
  %v177 = vsub.s32 %v174, %v176
  %v178 = vrot.slane %v164, %v177
  %v179 = vcombine.low %v171, %v178
  %v181 = vunpack.c.l.s4 1966171168
  %v182 = vunpack.c.0.s8 %v181
  %v183 = vlaneseq
  %v184 = vshrl.u32 %v183, 7
  %v185 = vsub.s32 %v182, %v184
  %v186 = vrot.slane %v179, %v185
  %v188 = vadd.f32 %v106, %v186
  %189 = vst.msk [vmem:[%s105] ss:$8 sm:$0xf] %vm102, %v188
  %190 = vst.msk [vmem:[%s105] ss:$8 sm:$0x0] %vm102, %v188
  // Predicated region
  $region10: #{resnet50_features_forward.115} parent=0 // pred_check
    _
  $region11: #{resnet50_features_forward.115} parent=0 // pred_check_branch
    %192 = sbr.rel (0) target = $region13
  $region12: #{resnet50_features_forward.115} parent=0 // pred_region
    _
  $region13: #{resnet50_features_forward.115} parent=0 // pred_fallthru
    _
  // Predicated region
  $region14: #{resnet50_features_forward.115} parent=0 // pred_check
    _
  $region15: #{resnet50_features_forward.115} parent=0 // pred_check_branch
    %194 = sbr.rel (0) target = $region17
  $region16: #{resnet50_features_forward.115} parent=0 // pred_region
    _
  $region17: #{resnet50_features_forward.115} parent=0 // pred_fallthru
    _

// kernel: resnet50_features_forward.116
$region0: #{resnet50_features_forward.116}
  #allocation0 [shape = 'u32[]', space=smem, size = 0x4, offset = 0x4, fixed_abs, tag = 'smem constant byte address 0x4 - core index']
  #allocation1 [shape = 'u32[144,128]{1,0:T(1,128)}', space=vmem, size = 0x12000, scoped, tag = 'internal scratch']
  %s0 = inlined_call_operand.vmem [shape: f32[32,512], index: 0, kind: input, shape index: {}]
  %s1 = inlined_call_operand.vmem [shape: f32[8,512], index: 1, kind: input, shape index: {}]
  %s2 = inlined_call_operand.vmem [shape: f32[1,512], index: 2, kind: input, shape index: {}]
  %s3 = inlined_call_operand.vmem [shape: f32[1,512], index: 3, kind: input, shape index: {}]
  %s4 = inlined_call_operand.vmem [shape: f32[32,512], index: 4, kind: output, shape index: {}]
  %s5 = sld [smem:[#allocation0]]
  $region26: #{resnet50_features_forward.116} parent=0
    _
  %s7 = ssub.s32 1, %s5
  %s8 = scalar_select 0, %s7, %s5
  // Predicated region
  $region2: #{resnet50_features_forward.116} parent=0 // pred_check
    _
  $region3: #{resnet50_features_forward.116} parent=0 // pred_check_branch
    %10 = sbr.rel (0) target = $region5
  $region4: #{resnet50_features_forward.116} parent=0 // pred_region
    _
  $region5: #{resnet50_features_forward.116} parent=0 // pred_fallthru
    _
  // Predicated region
  $region6: #{resnet50_features_forward.116} parent=0 // pred_check
    _
  $region7: #{resnet50_features_forward.116} parent=0 // pred_check_branch
    %12 = sbr.rel (0) target = $region9
  $region8: #{resnet50_features_forward.116} parent=0 // pred_region
    _
  $region9: #{resnet50_features_forward.116} parent=0 // pred_fallthru
    _
  // Predicated region
  $region10: #{resnet50_features_forward.116} parent=0 // pred_check
    _
  $region11: #{resnet50_features_forward.116} parent=0 // pred_check_branch
    %14 = sbr.rel (0) target = $region13
  $region12: #{resnet50_features_forward.116} parent=0 // pred_region
    _
  $region13: #{resnet50_features_forward.116} parent=0 // pred_fallthru
    _
  // Predicated region
  $region14: #{resnet50_features_forward.116} parent=0 // pred_check
    _
  $region15: #{resnet50_features_forward.116} parent=0 // pred_check_branch
    %16 = sbr.rel (0) target = $region17
  $region16: #{resnet50_features_forward.116} parent=0 // pred_region
    _
  $region17: #{resnet50_features_forward.116} parent=0 // pred_fallthru
    _
  %v17 = vld [vmem:[%s1] ss:$8 sm:$0xf]
  %v18 = vmul.f32 %v17, 0.03125
  %s19 = scalar_lea.vmem %s1, 1
  %v20 = vld [vmem:[%s19] ss:$8 sm:$0xf]
  %v21 = vmul.f32 %v20, 0.03125
  %v22 = vmul.f32 %v18, %v18
  %v23 = vsub.f32 %v21, %v22
  %v24 = vmax.f32 %v23, 0.0
  %v25 = vld [vmem:[%s2] sm:$0xf]
  %v26 = vadd.f32 %v24, 1e-05
  %v27 = vrsqrt.pop %v26
  %v28 = vmul.f32 %v25, %v27
  %v29 = vld [vmem:[%s3] sm:$0xf]
  %v30 = vmul.f32 %v18, %v28
  %v31 = vsub.f32 %v29, %v30
  %v32 = vld [vmem:[%s0] sm:$0xff]
  %v33 = vld [vmem:[%s0 + $0x8] sm:$0xff]
  %v34 = vld [vmem:[%s0 + $0x10] sm:$0xff]
  %v35 = vld [vmem:[%s0 + $0x18] sm:$0xff]
  %v36 = vld [vmem:[%s0 + $0x20] sm:$0xff]
  %v37 = vld [vmem:[%s0 + $0x28] sm:$0xff]
  %v38 = vld [vmem:[%s0 + $0x30] sm:$0xff]
  %v39 = vld [vmem:[%s0 + $0x38] sm:$0xff]
  %v40 = vld [vmem:[%s0 + $0x40] sm:$0xff]
  %v41 = vld [vmem:[%s0 + $0x48] sm:$0xff]
  %v42 = vld [vmem:[%s0 + $0x50] sm:$0xff]
  %v43 = vld [vmem:[%s0 + $0x58] sm:$0xff]
  %v44 = vld [vmem:[%s0 + $0x60] sm:$0xff]
  %v45 = vld [vmem:[%s0 + $0x68] sm:$0xff]
  %v46 = vld [vmem:[%s0 + $0x70] sm:$0xff]
  %v47 = vld [vmem:[%s0 + $0x78] sm:$0xff]
  %v49 = vlaneseq
  %v50 = vshrl.u32 %v49, 7
  %v51 = vsub.s32 0, %v50
  %v52 = vrot.slane %v28, %v51
  %v53 = vlaneseq
  %v54 = vshrl.u32 %v53, 7
  %v55 = vsub.s32 1, %v54
  %v56 = vrot.slane %v28, %v55
  %v57 = vlaneseq
  %v58 = vshrl.u32 %v57, 7
  %v59 = vsub.s32 2, %v58
  %v60 = vrot.slane %v28, %v59
  %v61 = vlaneseq
  %v62 = vshrl.u32 %v61, 7
  %v63 = vsub.s32 3, %v62
  %v64 = vrot.slane %v28, %v63
  %v69 = vmul.f32 %v32, %v52
  %v70 = vmul.f32 %v33, %v56
  %v71 = vmul.f32 %v34, %v60
  %v72 = vmul.f32 %v35, %v64
  %v73 = vmul.f32 %v36, %v52
  %v74 = vmul.f32 %v37, %v56
  %v75 = vmul.f32 %v38, %v60
  %v76 = vmul.f32 %v39, %v64
  %v77 = vmul.f32 %v40, %v52
  %v78 = vmul.f32 %v41, %v56
  %v79 = vmul.f32 %v42, %v60
  %v80 = vmul.f32 %v43, %v64
  %v81 = vmul.f32 %v44, %v52
  %v82 = vmul.f32 %v45, %v56
  %v83 = vmul.f32 %v46, %v60
  %v84 = vmul.f32 %v47, %v64
  %v86 = vlaneseq
  %v87 = vshrl.u32 %v86, 7
  %v88 = vsub.s32 0, %v87
  %v89 = vrot.slane %v31, %v88
  %v90 = vlaneseq
  %v91 = vshrl.u32 %v90, 7
  %v92 = vsub.s32 1, %v91
  %v93 = vrot.slane %v31, %v92
  %v94 = vlaneseq
  %v95 = vshrl.u32 %v94, 7
  %v96 = vsub.s32 2, %v95
  %v97 = vrot.slane %v31, %v96
  %v98 = vlaneseq
  %v99 = vshrl.u32 %v98, 7
  %v100 = vsub.s32 3, %v99
  %v101 = vrot.slane %v31, %v100
  %v106 = vadd.f32 %v69, %v89
  %v107 = vadd.f32 %v70, %v93
  %v108 = vadd.f32 %v71, %v97
  %v109 = vadd.f32 %v72, %v101
  %v110 = vadd.f32 %v73, %v89
  %v111 = vadd.f32 %v74, %v93
  %v112 = vadd.f32 %v75, %v97
  %v113 = vadd.f32 %v76, %v101
  %v114 = vadd.f32 %v77, %v89
  %v115 = vadd.f32 %v78, %v93
  %v116 = vadd.f32 %v79, %v97
  %v117 = vadd.f32 %v80, %v101
  %v118 = vadd.f32 %v81, %v89
  %v119 = vadd.f32 %v82, %v93
  %v120 = vadd.f32 %v83, %v97
  %v121 = vadd.f32 %v84, %v101
  %122 = vst [vmem:[%s4] sm:$0xff] %v106
  %123 = vst [vmem:[%s4 + $0x8] sm:$0xff] %v107
  %124 = vst [vmem:[%s4 + $0x10] sm:$0xff] %v108
  %125 = vst [vmem:[%s4 + $0x18] sm:$0xff] %v109
  %126 = vst [vmem:[%s4 + $0x20] sm:$0xff] %v110
  %127 = vst [vmem:[%s4 + $0x28] sm:$0xff] %v111
  %128 = vst [vmem:[%s4 + $0x30] sm:$0xff] %v112
  %129 = vst [vmem:[%s4 + $0x38] sm:$0xff] %v113
  %130 = vst [vmem:[%s4 + $0x40] sm:$0xff] %v114
  %131 = vst [vmem:[%s4 + $0x48] sm:$0xff] %v115
  %132 = vst [vmem:[%s4 + $0x50] sm:$0xff] %v116
  %133 = vst [vmem:[%s4 + $0x58] sm:$0xff] %v117
  %134 = vst [vmem:[%s4 + $0x60] sm:$0xff] %v118
  %135 = vst [vmem:[%s4 + $0x68] sm:$0xff] %v119
  %136 = vst [vmem:[%s4 + $0x70] sm:$0xff] %v120
  %137 = vst [vmem:[%s4 + $0x78] sm:$0xff] %v121
  // Predicated region
  $region18: #{resnet50_features_forward.116} parent=0 // pred_check
    _
  $region19: #{resnet50_features_forward.116} parent=0 // pred_check_branch
    %139 = sbr.rel (0) target = $region21
  $region20: #{resnet50_features_forward.116} parent=0 // pred_region
    _
  $region21: #{resnet50_features_forward.116} parent=0 // pred_fallthru
    _
  // Predicated region
  $region22: #{resnet50_features_forward.116} parent=0 // pred_check
    _
  $region23: #{resnet50_features_forward.116} parent=0 // pred_check_branch
    %141 = sbr.rel (0) target = $region25
  $region24: #{resnet50_features_forward.116} parent=0 // pred_region
    _
  $region25: #{resnet50_features_forward.116} parent=0 // pred_fallthru
    _

// kernel: resnet50_features_forward.111
$region0: #{resnet50_features_forward.111}
  #allocation0 [shape = 'u32[]', space=smem, size = 0x4, offset = 0x4, fixed_abs, tag = 'smem constant byte address 0x4 - core index']
  #allocation1 [shape = 'u32[144,128]{1,0:T(1,128)}', space=vmem, size = 0x12000, scoped, tag = 'internal scratch']
  %s0 = inlined_call_operand.vmem [shape: f32[32,128], index: 0, kind: input, shape index: {}]
  %s1 = inlined_call_operand.vmem [shape: f32[8,128], index: 1, kind: output, shape index: {}]
  %s2 = sld [smem:[#allocation0]]
  $region18: #{resnet50_features_forward.111} parent=0
    _
  %s4 = ssub.s32 1, %s2
  %s5 = scalar_select 0, %s4, %s2
  // Predicated region
  $region2: #{resnet50_features_forward.111} parent=0 // pred_check
    _
  $region3: #{resnet50_features_forward.111} parent=0 // pred_check_branch
    %7 = sbr.rel (0) target = $region5
  $region4: #{resnet50_features_forward.111} parent=0 // pred_region
    _
  $region5: #{resnet50_features_forward.111} parent=0 // pred_fallthru
    _
  %p8 = scmp.eq.s32.totalorder 0, 0
  // Predicated region
  $region6: #{resnet50_features_forward.111} parent=0 // pred_check
    %p9 = pneg %p8
  $region7: #{resnet50_features_forward.111} parent=0 // pred_check_branch
    %11 = sbr.rel (%p9) target = $region9
  $region8: #{resnet50_features_forward.111} parent=0 // pred_region
    %12 = vst [vmem:[%s1] sm:$0xff] 0.0
  $region9: #{resnet50_features_forward.111} parent=0 // pred_fallthru
    _
  %v13 = vld [vmem:[%s0] sm:$0xff]
  %v14 = vld [vmem:[%s0 + $0x8] sm:$0xff]
  %v15 = vld [vmem:[%s0 + $0x10] sm:$0xff]
  %v16 = vld [vmem:[%s0 + $0x18] sm:$0xff]
  %v17 = vld [vmem:[%s1] sm:$0x1]
  %v18 = vadd.f32 %v13, %v14
  %v19 = vadd.f32 %v18, %v15
  %v20 = vadd.f32 %v19, %v16
  %v21 = vrot.slane %v20, 4
  %v22 = vadd.f32 %v20, %v21
  %v23 = vrot.slane %v22, 2
  %v24 = vadd.f32 %v22, %v23
  %v25 = vrot.slane %v24, 1
  %v26 = vadd.f32 %v24, %v25
  %v27 = vadd.f32 %v17, %v26
  %28 = vst [vmem:[%s1] sm:$0x1] %v27
  %v29 = vld [vmem:[%s1 + $0x1] sm:$0x1]
  %v30 = vmul.f32 %v13, %v13
  %v31 = vmul.f32 %v14, %v14
  %v32 = vmul.f32 %v15, %v15
  %v33 = vmul.f32 %v16, %v16
  %v34 = vadd.f32 %v30, %v31
  %v35 = vadd.f32 %v34, %v32
  %v36 = vadd.f32 %v35, %v33
  %v37 = vrot.slane %v36, 4
  %v38 = vadd.f32 %v36, %v37
  %v39 = vrot.slane %v38, 2
  %v40 = vadd.f32 %v38, %v39
  %v41 = vrot.slane %v40, 1
  %v42 = vadd.f32 %v40, %v41
  %v43 = vadd.f32 %v29, %v42
  %44 = vst [vmem:[%s1 + $0x1] sm:$0x1] %v43
  // Predicated region
  $region10: #{resnet50_features_forward.111} parent=0 // pred_check
    _
  $region11: #{resnet50_features_forward.111} parent=0 // pred_check_branch
    %46 = sbr.rel (0) target = $region13
  $region12: #{resnet50_features_forward.111} parent=0 // pred_region
    _
  $region13: #{resnet50_features_forward.111} parent=0 // pred_fallthru
    _
  // Predicated region
  $region14: #{resnet50_features_forward.111} parent=0 // pred_check
    _
  $region15: #{resnet50_features_forward.111} parent=0 // pred_check_branch
    %48 = sbr.rel (0) target = $region17
  $region16: #{resnet50_features_forward.111} parent=0 // pred_region
    _
  $region17: #{resnet50_features_forward.111} parent=0 // pred_fallthru
    _

// kernel: resnet50_features_forward.110
$region0: #{resnet50_features_forward.110}
  #allocation0 [shape = 'u32[]', space=smem, size = 0x4, offset = 0x4, fixed_abs, tag = 'smem constant byte address 0x4 - core index']
  #allocation1 [shape = 'u32[144,128]{1,0:T(1,128)}', space=vmem, size = 0x12000, scoped, tag = 'internal scratch']
  #allocation2 [shape = 'f32[32,128]{1,0:T(8,128)}', space=vmem, size = 0x4000, scoped, tag = 'scratch operand']
  %s0 = inlined_call_operand.vmem [shape: bf16[32,1280], index: 0, kind: input, shape index: {}]
  %s1 = inlined_call_operand.vmem [shape: bf16[1280,128], index: 1, kind: input, shape index: {}]
  %s2 = inlined_call_operand.vmem [shape: f32[32,128], index: 2, kind: output, shape index: {}]
  %s3 = sld [smem:[#allocation0]]
  $region87: #{resnet50_features_forward.110} parent=0
    _
  %s5 = ssub.s32 1, %s3
  %s6 = scalar_select 0, %s5, %s3
  $region1: #{resnet50_features_forward.110} parent=0
    #allocation3 [shape = 'u8[32768]{0}', space=vmem, size = 0x8000, scoped, tag = 'input window, operand 0']
    loop: start=0, step=1, limit=7
    $region2: #{resnet50_features_forward.110} parent=1 // loop_pre_header
      _
    $region3: #{resnet50_features_forward.110} parent=1 // loop_header
      %s8 = sphi 0, %s12
      %p9 = scmp.ge.s32.totalorder %s8, 7
      %s15 = sphi 0, %s34
      %s16 = sphi 0, %s30
      %s17 = sphi 0, %s26
      %s18 = sphi 0, %s15
      %s19 = sphi 0, %s16
      %s20 = sphi 0, %s17
      %s21 = sphi 0, %s18
      %s22 = sphi 0, %s19
      %s23 = sphi 0, %s20
      %s39 = sphi 0, %s41
      %s42 = sphi 0, %s39
      %s43 = sphi 0, %s42
      %s59 = sphi 0, %s43
      %s67 = sphi 0, %s69
      %s70 = sphi 0, %s67
      %s71 = sphi 0, %s70
      %s87 = sphi 0, %s71
      %s95 = sphi 0, %s97
      %s98 = sphi 0, %s95
      %s99 = sphi 0, %s98
      %s115 = sphi 0, %s99
    $region4: #{resnet50_features_forward.110} parent=1 // loop_header_branch
      %11 = sbr.rel (%p9) target = $region8
    $region5: #{resnet50_features_forward.110} parent=1 // loop_body
      %s13 = ssub.s32 %s8, 1
      %s14 = ssub.s32 %s8, 2
      %s24 = sadd.s32 1, %s17
      %p25 = scmp.ge.s32.totalorder %s24, 5
      %s26 = scalar_select %p25, 0, %s24
      %s27 = sadd.s32 1, %s16
      %s28 = scalar_select %p25, %s27, %s16
      %p29 = scmp.ge.s32.totalorder %s28, 1
      %s30 = scalar_select %p29, 0, %s28
      %s31 = sadd.s32 1, %s15
      %s32 = scalar_select %p29, %s31, %s15
      %p33 = scmp.ge.s32.totalorder %s32, 1
      %s34 = scalar_select %p33, 0, %s32
      %s35 = ssub.s32 %s15, %s34
      %s36 = ssub.s32 %s17, %s26
      %s37 = sor.u32 %s35, %s36
      %p38 = scmp.eq.s32.totalorder %s37, 0
      %s40 = sadd.s32 %s39, 1
      %s41 = scalar_select %p38, %s39, %s40
      %p44 = pneg %p38
      %p45 = scmp.eq.s32.totalorder %s8, 4
      %p46 = por %p44, %p45
      %p47 = scmp.ne.s32.totalorder %s39, %s42
      %p48 = scmp.eq.s32.totalorder %s8, 0
      %p49 = por %p47, %p48
      %p50 = scmp.ne.s32.totalorder %s39, %s42
      %p51 = scmp.eq.s32.totalorder %s13, 4
      %p52 = por %p50, %p51
      %p53 = scmp.ne.s32.totalorder %s42, %s43
      %p54 = scmp.eq.s32.totalorder %s13, 0
      %p55 = por %p53, %p54
      %p56 = scmp.ne.s32.totalorder %s42, %s43
      %p57 = scmp.eq.s32.totalorder %s14, 4
      %p58 = por %p56, %p57
      %p60 = scmp.ne.s32.totalorder %s43, %s59
      %p61 = scmp.eq.s32.totalorder %s14, 0
      %p62 = por %p60, %p61
      %s63 = ssub.s32 %s17, %s26
      %s64 = ssub.s32 %s16, %s30
      %s65 = sor.u32 %s63, %s64
      %p66 = scmp.eq.s32.totalorder %s65, 0
      %s68 = sadd.s32 %s67, 1
      %s69 = scalar_select %p66, %s67, %s68
      %p72 = pneg %p66
      %p73 = scmp.eq.s32.totalorder %s8, 4
      %p74 = por %p72, %p73
      %p75 = scmp.ne.s32.totalorder %s67, %s70
      %p76 = scmp.eq.s32.totalorder %s8, 0
      %p77 = por %p75, %p76
      %p78 = scmp.ne.s32.totalorder %s67, %s70
      %p79 = scmp.eq.s32.totalorder %s13, 4
      %p80 = por %p78, %p79
      %p81 = scmp.ne.s32.totalorder %s70, %s71
      %p82 = scmp.eq.s32.totalorder %s13, 0
      %p83 = por %p81, %p82
      %p84 = scmp.ne.s32.totalorder %s70, %s71
      %p85 = scmp.eq.s32.totalorder %s14, 4
      %p86 = por %p84, %p85
      %p88 = scmp.ne.s32.totalorder %s71, %s87
      %p89 = scmp.eq.s32.totalorder %s14, 0
      %p90 = por %p88, %p89
      %s91 = ssub.s32 %s15, %s34
      %s92 = ssub.s32 %s16, %s30
      %s93 = sor.u32 %s91, %s92
      %p94 = scmp.eq.s32.totalorder %s93, 0
      %s96 = sadd.s32 %s95, 1
      %s97 = scalar_select %p94, %s95, %s96
      %p100 = pneg %p94
      %p101 = scmp.eq.s32.totalorder %s8, 4
      %p102 = por %p100, %p101
      %p103 = scmp.ne.s32.totalorder %s95, %s98
      %p104 = scmp.eq.s32.totalorder %s8, 0
      %p105 = por %p103, %p104
      %p106 = scmp.ne.s32.totalorder %s95, %s98
      %p107 = scmp.eq.s32.totalorder %s13, 4
      %p108 = por %p106, %p107
      %p109 = scmp.ne.s32.totalorder %s98, %s99
      %p110 = scmp.eq.s32.totalorder %s13, 0
      %p111 = por %p109, %p110
      %p112 = scmp.ne.s32.totalorder %s98, %s99
      %p113 = scmp.eq.s32.totalorder %s14, 4
      %p114 = por %p112, %p113
      %p116 = scmp.ne.s32.totalorder %s99, %s115
      %p117 = scmp.eq.s32.totalorder %s14, 0
      %p118 = por %p116, %p117
      %p119 = scmp.le.s32.totalorder 1, %s8
      %p120 = scmp.lt.s32.totalorder %s8, 6
      %p121 = pnand %p119, %p120
      %p122 = pneg %p121
      // Predicated region
      $region9: #{resnet50_features_forward.110} parent=5 // pred_check
        _
      $region10: #{resnet50_features_forward.110} parent=5 // pred_check_branch
        %124 = sbr.rel (%p121) target = $region12
      $region11: #{resnet50_features_forward.110} parent=5 // pred_region
        %s125 = ssub.s32 %s8, 1
      $region12: #{resnet50_features_forward.110} parent=5 // pred_fallthru
        _
      %p126 = scmp.lt.s32.totalorder %s8, 5
      // Predicated region
      $region13: #{resnet50_features_forward.110} parent=5 // pred_check
        %p127 = pneg %p126
      $region14: #{resnet50_features_forward.110} parent=5 // pred_check_branch
        %129 = sbr.rel (%p127) target = $region16
      $region15: #{resnet50_features_forward.110} parent=5 // pred_region
        // Predicated region
        $region17: #{resnet50_features_forward.110} parent=15 // pred_check
          %p130 = pneg %p49
        $region18: #{resnet50_features_forward.110} parent=15 // pred_check_branch
          %132 = sbr.rel (%p130) target = $region20
        $region19: #{resnet50_features_forward.110} parent=15 // pred_region
          %s133 = sand.u32 %s39, 1
          %s134 = sand.u32 %s39, 1
          %s135 = smul.addr %s134, 32
          %s136 = scalar_lea.vmem [#allocation3], %s135
          %s137 = smul.u32 4, %s15
          %s138 = smul.u32 2, %s17
          %s139 = smul.addr %s137, 10
          %s140 = sadd.s32 %s138, %s139
          %s141 = smul.addr %s140, 4
          %s142 = scalar_lea.vmem %s0, %s141
          // Predicated region
          $region21: #{resnet50_features_forward.110} parent=19 // pred_check
            _
          $region22: #{resnet50_features_forward.110} parent=19 // pred_check_branch
            %144 = sbr.rel (0) target = $region24
          $region23: #{resnet50_features_forward.110} parent=19 // pred_region
            // Predicated region
            $region25: #{resnet50_features_forward.110} parent=23 // pred_check
              _
            $region26: #{resnet50_features_forward.110} parent=23 // pred_check_branch
              %146 = sbr.rel (0) target = $region28
            $region27: #{resnet50_features_forward.110} parent=23 // pred_region
              // Predicated region
              $region40: #{resnet50_features_forward.110} parent=27 // pred_check
                _
              $region41: #{resnet50_features_forward.110} parent=27 // pred_check_branch
                %168 = sbr.rel (0) target = $region43
              $region42: #{resnet50_features_forward.110} parent=27 // pred_region
                loop: start=0, step=1, limit=1
                $region44: #{resnet50_features_forward.110} parent=42 // loop_pre_header
                  _
                $region45: #{resnet50_features_forward.110} parent=42 // loop_header
                  %s170 = sphi 0, %s174
                  %p171 = scmp.ge.s32.totalorder %s170, 1
                  %s175 = sphi %s142, %s142
                  %s176 = sphi %s136, %s136
                $region46: #{resnet50_features_forward.110} parent=42 // loop_header_branch
                  %173 = sbr.rel (%p171) target = $region50
                $region47: #{resnet50_features_forward.110} parent=42 // loop_body
                  %v177 = vld [vmem:[%s175] sm:$0xff]
                  %178 = vst [vmem:[%s176] sm:$0xff] %v177
                  %v179 = vld [vmem:[%s175 + $0x28] sm:$0xff]
                  %180 = vst [vmem:[%s176 + $0x8] sm:$0xff] %v179
                  %v181 = vld [vmem:[%s175 + $0x50] sm:$0xff]
                  %182 = vst [vmem:[%s176 + $0x10] sm:$0xff] %v181
                  %v183 = vld [vmem:[%s175 + $0x78] sm:$0xff]
                  %184 = vst [vmem:[%s176 + $0x18] sm:$0xff] %v183
                $region48: #{resnet50_features_forward.110} parent=42 // loop_footer
                  %s174 = sadd.s32 1, %s170
                $region49: #{resnet50_features_forward.110} parent=42 // loop_footer_branch
                  %169 = sbr.rel target = $region45
                $region50: #{resnet50_features_forward.110} parent=42 // loop_exit
                  _
              $region43: #{resnet50_features_forward.110} parent=27 // pred_fallthru
                _
              // Predicated region
              $region51: #{resnet50_features_forward.110} parent=27 // pred_check
                _
              $region52: #{resnet50_features_forward.110} parent=27 // pred_check_branch
                %186 = sbr.rel target = $region54
              $region53: #{resnet50_features_forward.110} parent=27 // pred_region
                _
              $region54: #{resnet50_features_forward.110} parent=27 // pred_fallthru
                _
            $region28: #{resnet50_features_forward.110} parent=23 // pred_fallthru
              _
            // Predicated region
            $region29: #{resnet50_features_forward.110} parent=23 // pred_check
              _
            $region30: #{resnet50_features_forward.110} parent=23 // pred_check_branch
              %148 = sbr.rel target = $region32
            $region31: #{resnet50_features_forward.110} parent=23 // pred_region
              %s150 = ssub.s32 256, 1
              loop: start=0, step=1, limit=1
              $region33: #{resnet50_features_forward.110} parent=31 // loop_pre_header
                _
              $region34: #{resnet50_features_forward.110} parent=31 // loop_header
                %s152 = sphi 0, %s156
                %p153 = scmp.ge.s32.totalorder %s152, 1
                %s157 = sphi %s142, %s142
                %s158 = sphi %s136, %s136
              $region35: #{resnet50_features_forward.110} parent=31 // loop_header_branch
                %155 = sbr.rel (%p153) target = $region39
              $region36: #{resnet50_features_forward.110} parent=31 // loop_body
                %v159 = vld [vmem:[%s157] sm:%s150]
                %160 = vst [vmem:[%s158] sm:%s150] %v159
                %v161 = vld [vmem:[%s157 + $0x28] sm:%s150]
                %162 = vst [vmem:[%s158 + $0x8] sm:%s150] %v161
                %v163 = vld [vmem:[%s157 + $0x50] sm:%s150]
                %164 = vst [vmem:[%s158 + $0x10] sm:%s150] %v163
                %v165 = vld [vmem:[%s157 + $0x78] sm:%s150]
                %166 = vst [vmem:[%s158 + $0x18] sm:%s150] %v165
              $region37: #{resnet50_features_forward.110} parent=31 // loop_footer
                %s156 = sadd.s32 1, %s152
              $region38: #{resnet50_features_forward.110} parent=31 // loop_footer_branch
                %151 = sbr.rel target = $region34
              $region39: #{resnet50_features_forward.110} parent=31 // loop_exit
                _
            $region32: #{resnet50_features_forward.110} parent=23 // pred_fallthru
              _
          $region24: #{resnet50_features_forward.110} parent=19 // pred_fallthru
            _
          %187 = vnop
        $region20: #{resnet50_features_forward.110} parent=15 // pred_fallthru
          _
        // Predicated region
        $region55: #{resnet50_features_forward.110} parent=15 // pred_check
          %p188 = pneg %p77
        $region56: #{resnet50_features_forward.110} parent=15 // pred_check_branch
          %190 = sbr.rel (%p188) target = $region58
        $region57: #{resnet50_features_forward.110} parent=15 // pred_region
          %s191 = smul.u32 32, %s17
          %p192 = scmp.lt.s32.totalorder %s191, 159
          %s193 = scalar_select %p192, %s191, 159
          %p194 = scmp.lt.s32.totalorder %s16, 0
          %s195 = scalar_select %p194, %s16, 0
          %s196 = sadd.s32 %s195, %s193
          %s197 = smul.addr %s196, 4
          %s198 = scalar_lea.vmem %s1, %s197
          %s199 = smul.u32 32, %s17
        $region58: #{resnet50_features_forward.110} parent=15 // pred_fallthru
          _
      $region16: #{resnet50_features_forward.110} parent=5 // pred_fallthru
        _
      %p200 = scmp.le.s32.totalorder 1, %s8
      %p201 = scmp.lt.s32.totalorder %s8, 6
      %p202 = pnand %p200, %p201
      %p203 = pneg %p202
      // Predicated region
      $region59: #{resnet50_features_forward.110} parent=5 // pred_check
        _
      $region60: #{resnet50_features_forward.110} parent=5 // pred_check_branch
        %205 = sbr.rel (%p202) target = $region62
      $region61: #{resnet50_features_forward.110} parent=5 // pred_region
        %s206 = ssub.s32 %s8, 1
        %s207 = sand.u32 %s42, 1
        %s208 = sand.u32 %s42, 1
        %s209 = smul.addr %s208, 32
        %s210 = scalar_lea.vmem [#allocation3], %s209
        // Predicated region
        $region63: #{resnet50_features_forward.110} parent=61 // pred_check
          %p211 = pneg %p55
        $region64: #{resnet50_features_forward.110} parent=61 // pred_check_branch
          %213 = sbr.rel (%p211) target = $region66
        $region65: #{resnet50_features_forward.110} parent=61 // pred_region
          _
        $region66: #{resnet50_features_forward.110} parent=61 // pred_fallthru
          _
        %s214 = sand.u32 %s42, 1
        %s215 = sand.u32 %s42, 1
        %s216 = smul.addr %s215, 32
        %s217 = scalar_lea.vmem [#allocation3], %s216
        %p218 = pneg %p55
        %p219 = pneg %p52
        %s220 = smul.u32 32, %s20
        %p221 = scmp.lt.s32.totalorder %s220, 159
        %s222 = scalar_select %p221, %s220, 159
        %p223 = scmp.lt.s32.totalorder %s19, 0
        %s224 = scalar_select %p223, %s19, 0
        %s225 = sadd.s32 %s224, %s222
        %s226 = smul.addr %s225, 4
        %s227 = scalar_lea.vmem %s1, %s226
        %p228 = pneg %p83
        %p229 = pneg %p80
        %p230 = pneg %p111
        %p231 = pneg %p108
        %s232 = smul.u32 4, %s18
        %p233 = scmp.lt.s32.totalorder %s232, 3
        %s234 = scalar_select %p233, %s232, 3
        %p235 = scmp.lt.s32.totalorder %s19, 0
        %s236 = scalar_select %p235, %s19, 0
        %s237 = sadd.s32 %s236, %s234
        %s238 = smul.addr %s237, 8
        %s239 = scalar_lea.vmem %s2, %s238
        %s240 = smul.u32 4, %s18
        %s241 = smul.u32 2, %s20
        %s242 = smul.u32 32, %s20
        %p243 = scmp.lt.s32.totalorder %s242, 159
        %s244 = scalar_select %p243, %s242, 159
        %p245 = scmp.lt.s32.totalorder %s19, 0
        %s246 = scalar_select %p245, %s19, 0
        %s247 = sadd.s32 %s246, %s244
        %s248 = smul.addr %s247, 4
        %s249 = scalar_lea.vmem %s1, %s248
        %s250 = smul.u32 32, %s20
        %s251 = smul.u32 4, %s18
        %p252 = scmp.lt.s32.totalorder %s251, 3
        %s253 = scalar_select %p252, %s251, 3
        %p254 = scmp.lt.s32.totalorder %s19, 0
        %s255 = scalar_select %p254, %s19, 0
        %s256 = sadd.s32 %s255, %s253
        %s257 = smul.addr %s256, 8
        %s258 = scalar_lea.vmem %s2, %s257
        %s259 = smul.u32 4, %s18
        %p261 = scmp.eq.s32.totalorder %s20, 0
        // Predicated region
        $region67: #{resnet50_features_forward.110} parent=61 // pred_check
          %p262 = pneg %p261
        $region68: #{resnet50_features_forward.110} parent=61 // pred_check_branch
          %264 = sbr.rel (%p262) target = $region70
        $region69: #{resnet50_features_forward.110} parent=61 // pred_region
          %265 = vst [vmem:[#allocation2] sm:$0xff] 0.0
          %266 = vst [vmem:[#allocation2 + $0x8] sm:$0xff] 0.0
          %267 = vst [vmem:[#allocation2 + $0x10] sm:$0xff] 0.0
          %268 = vst [vmem:[#allocation2 + $0x18] sm:$0xff] 0.0
        $region70: #{resnet50_features_forward.110} parent=61 // pred_fallthru
          _
        %v269 = vld [vmem:[#allocation2] sm:$0xff]
        %v270 = vld [vmem:[#allocation2 + $0x8] sm:$0xff]
        %v271 = vld [vmem:[#allocation2 + $0x10] sm:$0xff]
        %v272 = vld [vmem:[#allocation2 + $0x18] sm:$0xff]
        %v273 = vld [vmem:[%s210] sm:$0xff]
        %v274 = vld [vmem:[%s210 + $0x8] sm:$0xff]
        %v275 = vld [vmem:[%s210 + $0x10] sm:$0xff]
        %v276 = vld [vmem:[%s210 + $0x18] sm:$0xff]
        %v277 = vld [vmem:[%s249] sm:$0xf]
        %v278 = vld [vmem:[%s249 + $0x4] sm:$0xf]
        %v279 = vld [vmem:[%s249 + $0x8] sm:$0xf]
        %v280 = vld [vmem:[%s249 + $0xc] sm:$0xf]
        %v281 = vld [vmem:[%s249 + $0x10] sm:$0xf]
        %v282 = vld [vmem:[%s249 + $0x14] sm:$0xf]
        %v283 = vld [vmem:[%s249 + $0x18] sm:$0xf]
        %v284 = vld [vmem:[%s249 + $0x1c] sm:$0xf]
        %v285 = vld [vmem:[%s249 + $0x20] sm:$0xf]
        %v286 = vld [vmem:[%s249 + $0x24] sm:$0xf]
        %v287 = vld [vmem:[%s249 + $0x28] sm:$0xf]
        %v288 = vld [vmem:[%s249 + $0x2c] sm:$0xf]
        %v289 = vld [vmem:[%s249 + $0x30] sm:$0xf]
        %v290 = vld [vmem:[%s249 + $0x34] sm:$0xf]
        %v291 = vld [vmem:[%s249 + $0x38] sm:$0xf]
        %v292 = vld [vmem:[%s249 + $0x3c] sm:$0xf]
        %v293 = vld [vmem:[%s249 + $0x40] sm:$0xf]
        %v294 = vld [vmem:[%s249 + $0x44] sm:$0xf]
        %v295 = vld [vmem:[%s249 + $0x48] sm:$0xf]
        %v296 = vld [vmem:[%s249 + $0x4c] sm:$0xf]
        %v297 = vld [vmem:[%s249 + $0x50] sm:$0xf]
        %v298 = vld [vmem:[%s249 + $0x54] sm:$0xf]
        %v299 = vld [vmem:[%s249 + $0x58] sm:$0xf]
        %v300 = vld [vmem:[%s249 + $0x5c] sm:$0xf]
        %v301 = vld [vmem:[%s249 + $0x60] sm:$0xf]
        %v302 = vld [vmem:[%s249 + $0x64] sm:$0xf]
        %v303 = vld [vmem:[%s249 + $0x68] sm:$0xf]
        %v304 = vld [vmem:[%s249 + $0x6c] sm:$0xf]
        %v305 = vld [vmem:[%s249 + $0x70] sm:$0xf]
        %v306 = vld [vmem:[%s249 + $0x74] sm:$0xf]
        %v307 = vld [vmem:[%s249 + $0x78] sm:$0xf]
        %v308 = vld [vmem:[%s249 + $0x7c] sm:$0xf]
        %v313 = vunpack.c.l.b16 %v273
        %v314 = vunpack.c.h.b16 %v273
        %v315 = vunpack.c.l.b16 %v274
        %v316 = vunpack.c.h.b16 %v274
        %v317 = vunpack.c.l.b16 %v275
        %v318 = vunpack.c.h.b16 %v275
        %v319 = vunpack.c.l.b16 %v276
        %v320 = vunpack.c.h.b16 %v276
        %v321 = vpack.c.b16 %v315, %v313
        %v322 = vpack.c.b16 %v316, %v314
        %v323 = vpack.c.b16 %v319, %v317
        %v324 = vpack.c.b16 %v320, %v318
        %v361 = vunpack.c.l.b16 %v277
        %v362 = vunpack.c.l.b16 %v278
        %v363 = vunpack.c.l.b16 %v279
        %v364 = vunpack.c.l.b16 %v280
        %v365 = vunpack.c.l.b16 %v281
        %v366 = vunpack.c.l.b16 %v282
        %v367 = vunpack.c.l.b16 %v283
        %v368 = vunpack.c.l.b16 %v284
        %v369 = vunpack.c.l.b16 %v285
        %v370 = vunpack.c.l.b16 %v286
        %v371 = vunpack.c.l.b16 %v287
        %v372 = vunpack.c.l.b16 %v288
        %v373 = vunpack.c.l.b16 %v289
        %v374 = vunpack.c.l.b16 %v290
        %v375 = vunpack.c.l.b16 %v291
        %v376 = vunpack.c.l.b16 %v292
        %v377 = vunpack.c.l.b16 %v293
        %v378 = vunpack.c.l.b16 %v294
        %v379 = vunpack.c.l.b16 %v295
        %v380 = vunpack.c.l.b16 %v296
        %v381 = vunpack.c.l.b16 %v297
        %v382 = vunpack.c.l.b16 %v298
        %v383 = vunpack.c.l.b16 %v299
        %v384 = vunpack.c.l.b16 %v300
        %v385 = vunpack.c.l.b16 %v301
        %v386 = vunpack.c.l.b16 %v302
        %v387 = vunpack.c.l.b16 %v303
        %v388 = vunpack.c.l.b16 %v304
        %v389 = vunpack.c.l.b16 %v305
        %v390 = vunpack.c.l.b16 %v306
        %v391 = vunpack.c.l.b16 %v307
        %v392 = vunpack.c.l.b16 %v308
        %v393 = vpack.c.b16 %v362, %v361
        %v394 = vpack.c.b16 %v364, %v363
        %v395 = vpack.c.b16 %v366, %v365
        %v396 = vpack.c.b16 %v368, %v367
        %v397 = vpack.c.b16 %v370, %v369
        %v398 = vpack.c.b16 %v372, %v371
        %v399 = vpack.c.b16 %v374, %v373
        %v400 = vpack.c.b16 %v376, %v375
        %v401 = vpack.c.b16 %v378, %v377
        %v402 = vpack.c.b16 %v380, %v379
        %v403 = vpack.c.b16 %v382, %v381
        %v404 = vpack.c.b16 %v384, %v383
        %v405 = vpack.c.b16 %v386, %v385
        %v406 = vpack.c.b16 %v388, %v387
        %v407 = vpack.c.b16 %v390, %v389
        %v408 = vpack.c.b16 %v392, %v391
        %425 = vmatprep.subr.bf16.mxu0 0
        %426 = vmatpush1.bf16.msra.mxu0 %v400
        %427 = vmatprep.subr.bf16.mxu0 0
        %428 = vmatpush1.bf16.msra.mxu0 %v399
        %429 = vmatprep.subr.bf16.mxu0 0
        %430 = vmatpush1.bf16.msra.mxu0 %v398
        %431 = vmatprep.subr.bf16.mxu0 0
        %432 = vmatpush1.bf16.msra.mxu0 %v397
        %433 = vmatprep.subr.bf16.mxu0 0
        %434 = vmatpush1.bf16.msra.mxu0 %v396
        %435 = vmatprep.subr.bf16.mxu0 0
        %436 = vmatpush1.bf16.msra.mxu0 %v395
        %437 = vmatprep.subr.bf16.mxu0 0
        %438 = vmatpush1.bf16.msra.mxu0 %v394
        %439 = vmatprep.subr.bf16.mxu0 0
        %440 = vmatpush1.bf16.msra.mxu0 %v393
        %441 = vmatprep.subr.bf16.mxu0 0
        %442 = vmatpush2.bf16.msra.mxu0 %v408
        %443 = vmatprep.subr.bf16.mxu0 0
        %444 = vmatpush2.bf16.msra.mxu0 %v407
        %445 = vmatprep.subr.bf16.mxu0 0
        %446 = vmatpush2.bf16.msra.mxu0 %v406
        %447 = vmatprep.subr.bf16.mxu0 0
        %448 = vmatpush2.bf16.msra.mxu0 %v405
        %449 = vmatprep.subr.bf16.mxu0 0
        %450 = vmatpush2.bf16.msra.mxu0 %v404
        %451 = vmatprep.subr.bf16.mxu0 0
        %452 = vmatpush2.bf16.msra.mxu0 %v403
        %453 = vmatprep.subr.bf16.mxu0 0
        %454 = vmatpush2.bf16.msra.mxu0 %v402
        %455 = vmatprep.subr.bf16.mxu0 0
        %456 = vmatpush2.bf16.msra.mxu0 %v401
        %457 = vmatprep.mubr.bf16.mxu0 %v322
        %458 = vmatmul.mubr.bf16.gmra.mxu0 %v321
        %v459 = vpop.f32.mrf.mxu0
        %v460 = vadd.f32 0.0, %v459
        %v461 = vpop.f32.mrf.mxu0
        %v462 = vpop.f32.mrf.mxu0
        %v463 = vadd.f32 0.0, %v462
        %v464 = vpop.f32.mrf.mxu0
        %465 = vmatprep.mubr.bf16.mxu0 %v324
        %466 = vmatmul.mubr.bf16.gmra.mxu0 %v323
        %v467 = vpop.f32.mrf.mxu0
        %v468 = vadd.f32 0.0, %v467
        %v469 = vpop.f32.mrf.mxu0
        %v470 = vpop.f32.mrf.mxu0
        %v471 = vadd.f32 0.0, %v470
        %v472 = vpop.f32.mrf.mxu0
        %473 = vdwg.mxu0
        %v474 = vadd.f32 %v269, %v460
        %v475 = vadd.f32 %v270, %v463
        %v476 = vadd.f32 %v271, %v468
        %v477 = vadd.f32 %v272, %v471
        %478 = vst [vmem:[#allocation2] sm:$0xff] %v474
        %479 = vst [vmem:[#allocation2 + $0x8] sm:$0xff] %v475
        %480 = vst [vmem:[#allocation2 + $0x10] sm:$0xff] %v476
        %481 = vst [vmem:[#allocation2 + $0x18] sm:$0xff] %v477
        %p482 = scmp.eq.s32.totalorder %s20, 4
        // Predicated region
        $region71: #{resnet50_features_forward.110} parent=61 // pred_check
          %p483 = pneg %p482
        $region72: #{resnet50_features_forward.110} parent=61 // pred_check_branch
          %485 = sbr.rel (%p483) target = $region74
        $region73: #{resnet50_features_forward.110} parent=61 // pred_region
          %v486 = vld [vmem:[#allocation2] sm:$0xff]
          %v487 = vld [vmem:[#allocation2 + $0x8] sm:$0xff]
          %v488 = vld [vmem:[#allocation2 + $0x10] sm:$0xff]
          %v489 = vld [vmem:[#allocation2 + $0x18] sm:$0xff]
          %490 = vst [vmem:[%s258] sm:$0xff] %v486
          %491 = vst [vmem:[%s258 + $0x8] sm:$0xff] %v487
          %492 = vst [vmem:[%s258 + $0x10] sm:$0xff] %v488
          %493 = vst [vmem:[%s258 + $0x18] sm:$0xff] %v489
        $region74: #{resnet50_features_forward.110} parent=61 // pred_fallthru
          _
        %s494 = smul.u32 4, %s18
        %p495 = scmp.lt.s32.totalorder %s494, 3
        %s496 = scalar_select %p495, %s494, 3
        %p497 = scmp.lt.s32.totalorder %s19, 0
        %s498 = scalar_select %p497, %s19, 0
        %s499 = sadd.s32 %s498, %s496
        %s500 = smul.addr %s499, 8
        %s501 = scalar_lea.vmem %s2, %s500
        // Predicated region
        $region75: #{resnet50_features_forward.110} parent=61 // pred_check
          %p502 = pneg %p108
        $region76: #{resnet50_features_forward.110} parent=61 // pred_check_branch
          %504 = sbr.rel (%p502) target = $region78
        $region77: #{resnet50_features_forward.110} parent=61 // pred_region
          %s505 = smul.u32 4, %s18
        $region78: #{resnet50_features_forward.110} parent=61 // pred_fallthru
          _
        // Predicated region
        $region79: #{resnet50_features_forward.110} parent=61 // pred_check
          %p506 = pneg %p108
        $region80: #{resnet50_features_forward.110} parent=61 // pred_check_branch
          %508 = sbr.rel (%p506) target = $region82
        $region81: #{resnet50_features_forward.110} parent=61 // pred_region
          %s509 = smul.u32 4, %s18
          %p510 = scmp.lt.s32.totalorder %s509, 3
          %s511 = scalar_select %p510, %s509, 3
          %p512 = scmp.lt.s32.totalorder %s19, 0
          %s513 = scalar_select %p512, %s19, 0
          %s514 = sadd.s32 %s513, %s511
          %s515 = smul.addr %s514, 8
          %s516 = scalar_lea.vmem %s2, %s515
        $region82: #{resnet50_features_forward.110} parent=61 // pred_fallthru
          _
      $region62: #{resnet50_features_forward.110} parent=5 // pred_fallthru
        _
      %p517 = scmp.le.s32.totalorder 2, %s8
      // Predicated region
      $region83: #{resnet50_features_forward.110} parent=5 // pred_check
        %p518 = pneg %p517
      $region84: #{resnet50_features_forward.110} parent=5 // pred_check_branch
        %520 = sbr.rel (%p518) target = $region86
      $region85: #{resnet50_features_forward.110} parent=5 // pred_region
        %s521 = ssub.s32 %s8, 2
      $region86: #{resnet50_features_forward.110} parent=5 // pred_fallthru
        _
    $region6: #{resnet50_features_forward.110} parent=1 // loop_footer
      %s12 = sadd.s32 1, %s8
    $region7: #{resnet50_features_forward.110} parent=1 // loop_footer_branch
      %7 = sbr.rel target = $region3
    $region8: #{resnet50_features_forward.110} parent=1 // loop_exit
      _

// kernel: resnet50_features_forward.112
$region0: #{resnet50_features_forward.112}
  #allocation0 [shape = 'u32[]', space=smem, size = 0x4, offset = 0x4, fixed_abs, tag = 'smem constant byte address 0x4 - core index']
  #allocation1 [shape = 'u32[144,128]{1,0:T(1,128)}', space=vmem, size = 0x12000, scoped, tag = 'internal scratch']
  %s0 = inlined_call_operand.vmem [shape: f32[32,128], index: 0, kind: input, shape index: {}]
  %s1 = inlined_call_operand.vmem [shape: f32[8,128], index: 1, kind: input, shape index: {}]
  %s2 = inlined_call_operand.vmem [shape: f32[1,128], index: 2, kind: input, shape index: {}]
  %s3 = inlined_call_operand.vmem [shape: f32[1,128], index: 3, kind: input, shape index: {}]
  %s4 = inlined_call_operand.vmem [shape: f32[32,128], index: 4, kind: output, shape index: {}]
  %s5 = sld [smem:[#allocation0]]
  $region26: #{resnet50_features_forward.112} parent=0
    _
  %s7 = ssub.s32 1, %s5
  %s8 = scalar_select 0, %s7, %s5
  // Predicated region
  $region2: #{resnet50_features_forward.112} parent=0 // pred_check
    _
  $region3: #{resnet50_features_forward.112} parent=0 // pred_check_branch
    %10 = sbr.rel (0) target = $region5
  $region4: #{resnet50_features_forward.112} parent=0 // pred_region
    _
  $region5: #{resnet50_features_forward.112} parent=0 // pred_fallthru
    _
  // Predicated region
  $region6: #{resnet50_features_forward.112} parent=0 // pred_check
    _
  $region7: #{resnet50_features_forward.112} parent=0 // pred_check_branch
    %12 = sbr.rel (0) target = $region9
  $region8: #{resnet50_features_forward.112} parent=0 // pred_region
    _
  $region9: #{resnet50_features_forward.112} parent=0 // pred_fallthru
    _
  // Predicated region
  $region10: #{resnet50_features_forward.112} parent=0 // pred_check
    _
  $region11: #{resnet50_features_forward.112} parent=0 // pred_check_branch
    %14 = sbr.rel (0) target = $region13
  $region12: #{resnet50_features_forward.112} parent=0 // pred_region
    _
  $region13: #{resnet50_features_forward.112} parent=0 // pred_fallthru
    _
  // Predicated region
  $region14: #{resnet50_features_forward.112} parent=0 // pred_check
    _
  $region15: #{resnet50_features_forward.112} parent=0 // pred_check_branch
    %16 = sbr.rel (0) target = $region17
  $region16: #{resnet50_features_forward.112} parent=0 // pred_region
    _
  $region17: #{resnet50_features_forward.112} parent=0 // pred_fallthru
    _
  %v17 = vld [vmem:[%s1] sm:$0x1]
  %v18 = vmul.f32 %v17, 0.03125
  %v19 = vld [vmem:[%s1 + $0x1] sm:$0x1]
  %v20 = vmul.f32 %v19, 0.03125
  %v21 = vmul.f32 %v18, %v18
  %v22 = vsub.f32 %v20, %v21
  %v23 = vmax.f32 %v22, 0.0
  %v24 = vld [vmem:[%s2] sm:$0x1]
  %v25 = vadd.f32 %v23, 1e-05
  %v26 = vrsqrt.pop %v25
  %v27 = vmul.f32 %v24, %v26
  %v28 = vld [vmem:[%s3] sm:$0x1]
  %v29 = vmul.f32 %v18, %v27
  %v30 = vsub.f32 %v28, %v29
  %v31 = vld [vmem:[%s0] sm:$0xff]
  %v32 = vld [vmem:[%s0 + $0x8] sm:$0xff]
  %v33 = vld [vmem:[%s0 + $0x10] sm:$0xff]
  %v34 = vld [vmem:[%s0 + $0x18] sm:$0xff]
  %v36 = vlaneseq
  %v37 = vshrl.u32 %v36, 7
  %v38 = vsub.s32 0, %v37
  %v39 = vrot.slane %v27, %v38
  %v41 = vmul.f32 %v31, %v39
  %v42 = vmul.f32 %v32, %v39
  %v43 = vmul.f32 %v33, %v39
  %v44 = vmul.f32 %v34, %v39
  %v46 = vlaneseq
  %v47 = vshrl.u32 %v46, 7
  %v48 = vsub.s32 0, %v47
  %v49 = vrot.slane %v30, %v48
  %v51 = vadd.f32 %v41, %v49
  %v52 = vadd.f32 %v42, %v49
  %v53 = vadd.f32 %v43, %v49
  %v54 = vadd.f32 %v44, %v49
  %v55 = vmax.f32 %v51, 0.0
  %v56 = vmax.f32 %v52, 0.0
  %v57 = vmax.f32 %v53, 0.0
  %v58 = vmax.f32 %v54, 0.0
  %59 = vst [vmem:[%s4] sm:$0xff] %v55
  %60 = vst [vmem:[%s4 + $0x8] sm:$0xff] %v56
  %61 = vst [vmem:[%s4 + $0x10] sm:$0xff] %v57
  %62 = vst [vmem:[%s4 + $0x18] sm:$0xff] %v58
  // Predicated region
  $region18: #{resnet50_features_forward.112} parent=0 // pred_check
    _
  $region19: #{resnet50_features_forward.112} parent=0 // pred_check_branch
    %64 = sbr.rel (0) target = $region21
  $region20: #{resnet50_features_forward.112} parent=0 // pred_region
    _
  $region21: #{resnet50_features_forward.112} parent=0 // pred_fallthru
    _
  // Predicated region
  $region22: #{resnet50_features_forward.112} parent=0 // pred_check
    _
  $region23: #{resnet50_features_forward.112} parent=0 // pred_check_branch
    %66 = sbr.rel (0) target = $region25
  $region24: #{resnet50_features_forward.112} parent=0 // pred_region
    _
  $region25: #{resnet50_features_forward.112} parent=0 // pred_fallthru
    _

// kernel: resnet50_features_forward.113
$region0: #{resnet50_features_forward.113}
  #allocation0 [shape = 'u32[]', space=smem, size = 0x4, offset = 0x4, fixed_abs, tag = 'smem constant byte address 0x4 - core index']
  #allocation1 [shape = 'u32[144,128]{1,0:T(1,128)}', space=vmem, size = 0x12000, scoped, tag = 'internal scratch']
  #allocation2 [shape = 'f32[32,256]{1,0:T(8,128)}', space=vmem, size = 0x8000, scoped, tag = 'scratch operand']
  %s0 = inlined_call_operand.vmem [shape: bf16[32,128], index: 0, kind: input, shape index: {}]
  %s1 = inlined_call_operand.vmem [shape: bf16[128,512], index: 1, kind: input, shape index: {}]
  %s2 = inlined_call_operand.vmem [shape: f32[32,512], index: 2, kind: output, shape index: {}]
  %s3 = sld [smem:[#allocation0]]
  $region106: #{resnet50_features_forward.113} parent=0
    _
  %s5 = ssub.s32 1, %s3
  %s6 = scalar_select 0, %s5, %s3
  $region1: #{resnet50_features_forward.113} parent=0
    #allocation3 [shape = 'u8[131072]{0}', space=vmem, size = 0x20000, scoped, tag = 'input window, operand 1']
    #allocation4 [shape = 'u8[65536]{0}', space=vmem, size = 0x10000, scoped, tag = 'output window, operand 0']
    loop: start=0, step=1, limit=4
    $region2: #{resnet50_features_forward.113} parent=1 // loop_pre_header
      _
    $region3: #{resnet50_features_forward.113} parent=1 // loop_header
      %s8 = sphi 0, %s12
      %p9 = scmp.ge.s32.totalorder %s8, 4
      %s15 = sphi 0, %s34
      %s16 = sphi 0, %s30
      %s17 = sphi 0, %s26
      %s18 = sphi 0, %s15
      %s19 = sphi 0, %s16
      %s20 = sphi 0, %s17
      %s21 = sphi 0, %s18
      %s22 = sphi 0, %s19
      %s23 = sphi 0, %s20
      %s39 = sphi 0, %s41
      %s42 = sphi 0, %s39
      %s43 = sphi 0, %s42
      %s59 = sphi 0, %s43
      %s67 = sphi 0, %s69
      %s70 = sphi 0, %s67
      %s71 = sphi 0, %s70
      %s87 = sphi 0, %s71
      %s95 = sphi 0, %s97
      %s98 = sphi 0, %s95
      %s99 = sphi 0, %s98
      %s115 = sphi 0, %s99
    $region4: #{resnet50_features_forward.113} parent=1 // loop_header_branch
      %11 = sbr.rel (%p9) target = $region8
    $region5: #{resnet50_features_forward.113} parent=1 // loop_body
      %s13 = ssub.s32 %s8, 1
      %s14 = ssub.s32 %s8, 2
      %s24 = sadd.s32 1, %s17
      %p25 = scmp.ge.s32.totalorder %s24, 1
      %s26 = scalar_select %p25, 0, %s24
      %s27 = sadd.s32 1, %s16
      %s28 = scalar_select %p25, %s27, %s16
      %p29 = scmp.ge.s32.totalorder %s28, 2
      %s30 = scalar_select %p29, 0, %s28
      %s31 = sadd.s32 1, %s15
      %s32 = scalar_select %p29, %s31, %s15
      %p33 = scmp.ge.s32.totalorder %s32, 1
      %s34 = scalar_select %p33, 0, %s32
      %s35 = ssub.s32 %s15, %s34
      %s36 = ssub.s32 %s17, %s26
      %s37 = sor.u32 %s35, %s36
      %p38 = scmp.eq.s32.totalorder %s37, 0
      %s40 = sadd.s32 %s39, 1
      %s41 = scalar_select %p38, %s39, %s40
      %p44 = pneg %p38
      %p45 = scmp.eq.s32.totalorder %s8, 1
      %p46 = por %p44, %p45
      %p47 = scmp.ne.s32.totalorder %s39, %s42
      %p48 = scmp.eq.s32.totalorder %s8, 0
      %p49 = por %p47, %p48
      %p50 = scmp.ne.s32.totalorder %s39, %s42
      %p51 = scmp.eq.s32.totalorder %s13, 1
      %p52 = por %p50, %p51
      %p53 = scmp.ne.s32.totalorder %s42, %s43
      %p54 = scmp.eq.s32.totalorder %s13, 0
      %p55 = por %p53, %p54
      %p56 = scmp.ne.s32.totalorder %s42, %s43
      %p57 = scmp.eq.s32.totalorder %s14, 1
      %p58 = por %p56, %p57
      %p60 = scmp.ne.s32.totalorder %s43, %s59
      %p61 = scmp.eq.s32.totalorder %s14, 0
      %p62 = por %p60, %p61
      %s63 = ssub.s32 %s17, %s26
      %s64 = ssub.s32 %s16, %s30
      %s65 = sor.u32 %s63, %s64
      %p66 = scmp.eq.s32.totalorder %s65, 0
      %s68 = sadd.s32 %s67, 1
      %s69 = scalar_select %p66, %s67, %s68
      %p72 = pneg %p66
      %p73 = scmp.eq.s32.totalorder %s8, 1
      %p74 = por %p72, %p73
      %p75 = scmp.ne.s32.totalorder %s67, %s70
      %p76 = scmp.eq.s32.totalorder %s8, 0
      %p77 = por %p75, %p76
      %p78 = scmp.ne.s32.totalorder %s67, %s70
      %p79 = scmp.eq.s32.totalorder %s13, 1
      %p80 = por %p78, %p79
      %p81 = scmp.ne.s32.totalorder %s70, %s71
      %p82 = scmp.eq.s32.totalorder %s13, 0
      %p83 = por %p81, %p82
      %p84 = scmp.ne.s32.totalorder %s70, %s71
      %p85 = scmp.eq.s32.totalorder %s14, 1
      %p86 = por %p84, %p85
      %p88 = scmp.ne.s32.totalorder %s71, %s87
      %p89 = scmp.eq.s32.totalorder %s14, 0
      %p90 = por %p88, %p89
      %s91 = ssub.s32 %s15, %s34
      %s92 = ssub.s32 %s16, %s30
      %s93 = sor.u32 %s91, %s92
      %p94 = scmp.eq.s32.totalorder %s93, 0
      %s96 = sadd.s32 %s95, 1
      %s97 = scalar_select %p94, %s95, %s96
      %p100 = pneg %p94
      %p101 = scmp.eq.s32.totalorder %s8, 1
      %p102 = por %p100, %p101
      %p103 = scmp.ne.s32.totalorder %s95, %s98
      %p104 = scmp.eq.s32.totalorder %s8, 0
      %p105 = por %p103, %p104
      %p106 = scmp.ne.s32.totalorder %s95, %s98
      %p107 = scmp.eq.s32.totalorder %s13, 1
      %p108 = por %p106, %p107
      %p109 = scmp.ne.s32.totalorder %s98, %s99
      %p110 = scmp.eq.s32.totalorder %s13, 0
      %p111 = por %p109, %p110
      %p112 = scmp.ne.s32.totalorder %s98, %s99
      %p113 = scmp.eq.s32.totalorder %s14, 1
      %p114 = por %p112, %p113
      %p116 = scmp.ne.s32.totalorder %s99, %s115
      %p117 = scmp.eq.s32.totalorder %s14, 0
      %p118 = por %p116, %p117
      %p119 = scmp.le.s32.totalorder 1, %s8
      %p120 = scmp.lt.s32.totalorder %s8, 3
      %p121 = pnand %p119, %p120
      %p122 = pneg %p121
      // Predicated region
      $region9: #{resnet50_features_forward.113} parent=5 // pred_check
        _
      $region10: #{resnet50_features_forward.113} parent=5 // pred_check_branch
        %124 = sbr.rel (%p121) target = $region12
      $region11: #{resnet50_features_forward.113} parent=5 // pred_region
        %s125 = ssub.s32 %s8, 1
        // Predicated region
        $region13: #{resnet50_features_forward.113} parent=11 // pred_check
          %p126 = pneg %p55
        $region14: #{resnet50_features_forward.113} parent=11 // pred_check_branch
          %128 = sbr.rel (%p126) target = $region16
        $region15: #{resnet50_features_forward.113} parent=11 // pred_region
          %s129 = smul.u32 4, %s18
          %p130 = scmp.lt.s32.totalorder %s129, 3
          %s131 = scalar_select %p130, %s129, 3
          %p132 = scmp.lt.s32.totalorder %s20, 0
          %s133 = scalar_select %p132, %s20, 0
          %s134 = sadd.s32 %s133, %s131
          %s135 = smul.addr %s134, 4
          %s136 = scalar_lea.vmem %s0, %s135
          %s137 = smul.u32 4, %s18
        $region16: #{resnet50_features_forward.113} parent=11 // pred_fallthru
          _
      $region12: #{resnet50_features_forward.113} parent=5 // pred_fallthru
        _
      %p138 = scmp.lt.s32.totalorder %s8, 2
      // Predicated region
      $region17: #{resnet50_features_forward.113} parent=5 // pred_check
        %p139 = pneg %p138
      $region18: #{resnet50_features_forward.113} parent=5 // pred_check_branch
        %141 = sbr.rel (%p139) target = $region20
      $region19: #{resnet50_features_forward.113} parent=5 // pred_region
        // Predicated region
        $region21: #{resnet50_features_forward.113} parent=19 // pred_check
          %p142 = pneg %p77
        $region22: #{resnet50_features_forward.113} parent=19 // pred_check_branch
          %144 = sbr.rel (%p142) target = $region24
        $region23: #{resnet50_features_forward.113} parent=19 // pred_region
          %s145 = sand.u32 %s67, 1
          %s146 = sand.u32 %s67, 1
          %s147 = smul.addr %s146, 128
          %s148 = scalar_lea.vmem [#allocation3], %s147
          %s149 = smul.u32 16, %s17
          %s150 = smul.u32 2, %s16
          %s151 = smul.addr %s149, 4
          %s152 = sadd.s32 %s150, %s151
          %s153 = smul.addr %s152, 4
          %s154 = scalar_lea.vmem %s1, %s153
          // Predicated region
          $region25: #{resnet50_features_forward.113} parent=23 // pred_check
            _
          $region26: #{resnet50_features_forward.113} parent=23 // pred_check_branch
            %156 = sbr.rel (0) target = $region28
          $region27: #{resnet50_features_forward.113} parent=23 // pred_region
            // Predicated region
            $region29: #{resnet50_features_forward.113} parent=27 // pred_check
              _
            $region30: #{resnet50_features_forward.113} parent=27 // pred_check_branch
              %158 = sbr.rel (0) target = $region32
            $region31: #{resnet50_features_forward.113} parent=27 // pred_region
              // Predicated region
              $region44: #{resnet50_features_forward.113} parent=31 // pred_check
                _
              $region45: #{resnet50_features_forward.113} parent=31 // pred_check_branch
                %204 = sbr.rel (0) target = $region47
              $region46: #{resnet50_features_forward.113} parent=31 // pred_region
                loop: start=0, step=1, limit=1
                $region48: #{resnet50_features_forward.113} parent=46 // loop_pre_header
                  _
                $region49: #{resnet50_features_forward.113} parent=46 // loop_header
                  %s206 = sphi 0, %s210
                  %p207 = scmp.ge.s32.totalorder %s206, 1
                  %s211 = sphi %s154, %s154
                  %s212 = sphi %s148, %s148
                $region50: #{resnet50_features_forward.113} parent=46 // loop_header_branch
                  %209 = sbr.rel (%p207) target = $region54
                $region51: #{resnet50_features_forward.113} parent=46 // loop_body
                  %v213 = vld [vmem:[%s211] sm:$0xff]
                  %214 = vst [vmem:[%s212] sm:$0xff] %v213
                  %v215 = vld [vmem:[%s211 + $0x10] sm:$0xff]
                  %216 = vst [vmem:[%s212 + $0x8] sm:$0xff] %v215
                  %v217 = vld [vmem:[%s211 + $0x20] sm:$0xff]
                  %218 = vst [vmem:[%s212 + $0x10] sm:$0xff] %v217
                  %v219 = vld [vmem:[%s211 + $0x30] sm:$0xff]
                  %220 = vst [vmem:[%s212 + $0x18] sm:$0xff] %v219
                  %v221 = vld [vmem:[%s211 + $0x40] sm:$0xff]
                  %222 = vst [vmem:[%s212 + $0x20] sm:$0xff] %v221
                  %v223 = vld [vmem:[%s211 + $0x50] sm:$0xff]
                  %224 = vst [vmem:[%s212 + $0x28] sm:$0xff] %v223
                  %v225 = vld [vmem:[%s211 + $0x60] sm:$0xff]
                  %226 = vst [vmem:[%s212 + $0x30] sm:$0xff] %v225
                  %v227 = vld [vmem:[%s211 + $0x70] sm:$0xff]
                  %228 = vst [vmem:[%s212 + $0x38] sm:$0xff] %v227
                  %v229 = vld [vmem:[%s211 + $0x80] sm:$0xff]
                  %230 = vst [vmem:[%s212 + $0x40] sm:$0xff] %v229
                  %v231 = vld [vmem:[%s211 + $0x90] sm:$0xff]
                  %232 = vst [vmem:[%s212 + $0x48] sm:$0xff] %v231
                  %v233 = vld [vmem:[%s211 + $0xa0] sm:$0xff]
                  %234 = vst [vmem:[%s212 + $0x50] sm:$0xff] %v233
                  %v235 = vld [vmem:[%s211 + $0xb0] sm:$0xff]
                  %236 = vst [vmem:[%s212 + $0x58] sm:$0xff] %v235
                  %v237 = vld [vmem:[%s211 + $0xc0] sm:$0xff]
                  %238 = vst [vmem:[%s212 + $0x60] sm:$0xff] %v237
                  %v239 = vld [vmem:[%s211 + $0xd0] sm:$0xff]
                  %240 = vst [vmem:[%s212 + $0x68] sm:$0xff] %v239
                  %v241 = vld [vmem:[%s211 + $0xe0] sm:$0xff]
                  %242 = vst [vmem:[%s212 + $0x70] sm:$0xff] %v241
                  %v243 = vld [vmem:[%s211 + $0xf0] sm:$0xff]
                  %244 = vst [vmem:[%s212 + $0x78] sm:$0xff] %v243
                $region52: #{resnet50_features_forward.113} parent=46 // loop_footer
                  %s210 = sadd.s32 1, %s206
                $region53: #{resnet50_features_forward.113} parent=46 // loop_footer_branch
                  %205 = sbr.rel target = $region49
                $region54: #{resnet50_features_forward.113} parent=46 // loop_exit
                  _
              $region47: #{resnet50_features_forward.113} parent=31 // pred_fallthru
                _
              // Predicated region
              $region55: #{resnet50_features_forward.113} parent=31 // pred_check
                _
              $region56: #{resnet50_features_forward.113} parent=31 // pred_check_branch
                %246 = sbr.rel target = $region58
              $region57: #{resnet50_features_forward.113} parent=31 // pred_region
                _
              $region58: #{resnet50_features_forward.113} parent=31 // pred_fallthru
                _
            $region32: #{resnet50_features_forward.113} parent=27 // pred_fallthru
              _
            // Predicated region
            $region33: #{resnet50_features_forward.113} parent=27 // pred_check
              _
            $region34: #{resnet50_features_forward.113} parent=27 // pred_check_branch
              %160 = sbr.rel target = $region36
            $region35: #{resnet50_features_forward.113} parent=27 // pred_region
              %s162 = ssub.s32 256, 1
              loop: start=0, step=1, limit=1
              $region37: #{resnet50_features_forward.113} parent=35 // loop_pre_header
                _
              $region38: #{resnet50_features_forward.113} parent=35 // loop_header
                %s164 = sphi 0, %s168
                %p165 = scmp.ge.s32.totalorder %s164, 1
                %s169 = sphi %s154, %s154
                %s170 = sphi %s148, %s148
              $region39: #{resnet50_features_forward.113} parent=35 // loop_header_branch
                %167 = sbr.rel (%p165) target = $region43
              $region40: #{resnet50_features_forward.113} parent=35 // loop_body
                %v171 = vld [vmem:[%s169] sm:%s162]
                %172 = vst [vmem:[%s170] sm:%s162] %v171
                %v173 = vld [vmem:[%s169 + $0x10] sm:%s162]
                %174 = vst [vmem:[%s170 + $0x8] sm:%s162] %v173
                %v175 = vld [vmem:[%s169 + $0x20] sm:%s162]
                %176 = vst [vmem:[%s170 + $0x10] sm:%s162] %v175
                %v177 = vld [vmem:[%s169 + $0x30] sm:%s162]
                %178 = vst [vmem:[%s170 + $0x18] sm:%s162] %v177
                %v179 = vld [vmem:[%s169 + $0x40] sm:%s162]
                %180 = vst [vmem:[%s170 + $0x20] sm:%s162] %v179
                %v181 = vld [vmem:[%s169 + $0x50] sm:%s162]
                %182 = vst [vmem:[%s170 + $0x28] sm:%s162] %v181
                %v183 = vld [vmem:[%s169 + $0x60] sm:%s162]
                %184 = vst [vmem:[%s170 + $0x30] sm:%s162] %v183
                %v185 = vld [vmem:[%s169 + $0x70] sm:%s162]
                %186 = vst [vmem:[%s170 + $0x38] sm:%s162] %v185
                %v187 = vld [vmem:[%s169 + $0x80] sm:%s162]
                %188 = vst [vmem:[%s170 + $0x40] sm:%s162] %v187
                %v189 = vld [vmem:[%s169 + $0x90] sm:%s162]
                %190 = vst [vmem:[%s170 + $0x48] sm:%s162] %v189
                %v191 = vld [vmem:[%s169 + $0xa0] sm:%s162]
                %192 = vst [vmem:[%s170 + $0x50] sm:%s162] %v191
                %v193 = vld [vmem:[%s169 + $0xb0] sm:%s162]
                %194 = vst [vmem:[%s170 + $0x58] sm:%s162] %v193
                %v195 = vld [vmem:[%s169 + $0xc0] sm:%s162]
                %196 = vst [vmem:[%s170 + $0x60] sm:%s162] %v195
                %v197 = vld [vmem:[%s169 + $0xd0] sm:%s162]
                %198 = vst [vmem:[%s170 + $0x68] sm:%s162] %v197
                %v199 = vld [vmem:[%s169 + $0xe0] sm:%s162]
                %200 = vst [vmem:[%s170 + $0x70] sm:%s162] %v199
                %v201 = vld [vmem:[%s169 + $0xf0] sm:%s162]
                %202 = vst [vmem:[%s170 + $0x78] sm:%s162] %v201
              $region41: #{resnet50_features_forward.113} parent=35 // loop_footer
                %s168 = sadd.s32 1, %s164
              $region42: #{resnet50_features_forward.113} parent=35 // loop_footer_branch
                %163 = sbr.rel target = $region38
              $region43: #{resnet50_features_forward.113} parent=35 // loop_exit
                _
            $region36: #{resnet50_features_forward.113} parent=27 // pred_fallthru
              _
          $region28: #{resnet50_features_forward.113} parent=23 // pred_fallthru
            _
          %247 = vnop
        $region24: #{resnet50_features_forward.113} parent=19 // pred_fallthru
          _
      $region20: #{resnet50_features_forward.113} parent=5 // pred_fallthru
        _
      %p248 = scmp.le.s32.totalorder 1, %s8
      %p249 = scmp.lt.s32.totalorder %s8, 3
      %p250 = pnand %p248, %p249
      %p251 = pneg %p250
      // Predicated region
      $region59: #{resnet50_features_forward.113} parent=5 // pred_check
        _
      $region60: #{resnet50_features_forward.113} parent=5 // pred_check_branch
        %253 = sbr.rel (%p250) target = $region62
      $region61: #{resnet50_features_forward.113} parent=5 // pred_region
        %s254 = ssub.s32 %s8, 1
        %s255 = sand.u32 %s70, 1
        %s256 = sand.u32 %s70, 1
        %s257 = smul.addr %s256, 128
        %s258 = scalar_lea.vmem [#allocation3], %s257
        // Predicated region
        $region63: #{resnet50_features_forward.113} parent=61 // pred_check
          %p259 = pneg %p83
        $region64: #{resnet50_features_forward.113} parent=61 // pred_check_branch
          %261 = sbr.rel (%p259) target = $region66
        $region65: #{resnet50_features_forward.113} parent=61 // pred_region
          _
        $region66: #{resnet50_features_forward.113} parent=61 // pred_fallthru
          _
        %s262 = smul.u32 4, %s18
        %p263 = scmp.lt.s32.totalorder %s262, 3
        %s264 = scalar_select %p263, %s262, 3
        %p265 = scmp.lt.s32.totalorder %s20, 0
        %s266 = scalar_select %p265, %s20, 0
        %s267 = sadd.s32 %s266, %s264
        %s268 = smul.addr %s267, 4
        %s269 = scalar_lea.vmem %s0, %s268
        %p270 = pneg %p55
        %p271 = pneg %p52
        %s272 = sand.u32 %s70, 1
        %s273 = sand.u32 %s70, 1
        %s274 = smul.addr %s273, 128
        %s275 = scalar_lea.vmem [#allocation3], %s274
        %p276 = pneg %p83
        %p277 = pneg %p80
        %p278 = pneg %p111
        %p279 = pneg %p108
        %s280 = sand.u32 %s98, 1
        %s281 = sand.u32 %s98, 1
        %s282 = smul.addr %s281, 64
        %s283 = scalar_lea.vmem [#allocation4], %s282
        %s284 = smul.u32 4, %s18
        %p285 = scmp.lt.s32.totalorder %s284, 3
        %s286 = scalar_select %p285, %s284, 3
        %p287 = scmp.lt.s32.totalorder %s20, 0
        %s288 = scalar_select %p287, %s20, 0
        %s289 = sadd.s32 %s288, %s286
        %s290 = smul.addr %s289, 4
        %s291 = scalar_lea.vmem %s0, %s290
        %s292 = smul.u32 4, %s18
        %s293 = smul.u32 16, %s20
        %s294 = smul.u32 2, %s19
        %s295 = smul.u32 4, %s18
        %s296 = smul.u32 2, %s19
        %p298 = scmp.eq.s32.totalorder %s20, 0
        // Predicated region
        $region67: #{resnet50_features_forward.113} parent=61 // pred_check
          %p299 = pneg %p298
        $region68: #{resnet50_features_forward.113} parent=61 // pred_check_branch
          %301 = sbr.rel (%p299) target = $region70
        $region69: #{resnet50_features_forward.113} parent=61 // pred_region
          %302 = vst [vmem:[#allocation2] sm:$0xff] 0.0
          %303 = vst [vmem:[#allocation2 + $0x8] sm:$0xff] 0.0
          %304 = vst [vmem:[#allocation2 + $0x10] sm:$0xff] 0.0
          %305 = vst [vmem:[#allocation2 + $0x18] sm:$0xff] 0.0
          %306 = vst [vmem:[#allocation2 + $0x20] sm:$0xff] 0.0
          %307 = vst [vmem:[#allocation2 + $0x28] sm:$0xff] 0.0
          %308 = vst [vmem:[#allocation2 + $0x30] sm:$0xff] 0.0
          %309 = vst [vmem:[#allocation2 + $0x38] sm:$0xff] 0.0
        $region70: #{resnet50_features_forward.113} parent=61 // pred_fallthru
          _
        %v310 = vld [vmem:[#allocation2] sm:$0xff]
        %v311 = vld [vmem:[#allocation2 + $0x8] sm:$0xff]
        %v312 = vld [vmem:[#allocation2 + $0x10] sm:$0xff]
        %v313 = vld [vmem:[#allocation2 + $0x18] sm:$0xff]
        %v314 = vld [vmem:[#allocation2 + $0x20] sm:$0xff]
        %v315 = vld [vmem:[#allocation2 + $0x28] sm:$0xff]
        %v316 = vld [vmem:[#allocation2 + $0x30] sm:$0xff]
        %v317 = vld [vmem:[#allocation2 + $0x38] sm:$0xff]
        %v318 = vld [vmem:[%s291] sm:$0xf]
        %v319 = vld [vmem:[%s291 + $0x4] sm:$0xf]
        %v320 = vld [vmem:[%s291 + $0x8] sm:$0xf]
        %v321 = vld [vmem:[%s291 + $0xc] sm:$0xf]
        %v322 = vld [vmem:[%s258] sm:$0xff]
        %v323 = vld [vmem:[%s258 + $0x8] sm:$0xff]
        %v324 = vld [vmem:[%s258 + $0x10] sm:$0xff]
        %v325 = vld [vmem:[%s258 + $0x18] sm:$0xff]
        %v326 = vld [vmem:[%s258 + $0x20] sm:$0xff]
        %v327 = vld [vmem:[%s258 + $0x28] sm:$0xff]
        %v328 = vld [vmem:[%s258 + $0x30] sm:$0xff]
        %v329 = vld [vmem:[%s258 + $0x38] sm:$0xff]
        %v330 = vld [vmem:[%s258 + $0x40] sm:$0xff]
        %v331 = vld [vmem:[%s258 + $0x48] sm:$0xff]
        %v332 = vld [vmem:[%s258 + $0x50] sm:$0xff]
        %v333 = vld [vmem:[%s258 + $0x58] sm:$0xff]
        %v334 = vld [vmem:[%s258 + $0x60] sm:$0xff]
        %v335 = vld [vmem:[%s258 + $0x68] sm:$0xff]
        %v336 = vld [vmem:[%s258 + $0x70] sm:$0xff]
        %v337 = vld [vmem:[%s258 + $0x78] sm:$0xff]
        %v342 = vunpack.c.l.b16 %v318
        %v343 = vunpack.c.l.b16 %v319
        %v344 = vunpack.c.l.b16 %v320
        %v345 = vunpack.c.l.b16 %v321
        %v346 = vpack.c.b16 %v343, %v342
        %v347 = vpack.c.b16 %v345, %v344
        %v366 = vunpack.c.l.b16 %v322
        %v367 = vunpack.c.h.b16 %v322
        %v368 = vunpack.c.l.b16 %v323
        %v369 = vunpack.c.h.b16 %v323
        %v370 = vunpack.c.l.b16 %v324
        %v371 = vunpack.c.h.b16 %v324
        %v372 = vunpack.c.l.b16 %v325
        %v373 = vunpack.c.h.b16 %v325
        %v374 = vunpack.c.l.b16 %v326
        %v375 = vunpack.c.h.b16 %v326
        %v376 = vunpack.c.l.b16 %v327
        %v377 = vunpack.c.h.b16 %v327
        %v378 = vunpack.c.l.b16 %v328
        %v379 = vunpack.c.h.b16 %v328
        %v380 = vunpack.c.l.b16 %v329
        %v381 = vunpack.c.h.b16 %v329
        %v382 = vunpack.c.l.b16 %v330
        %v383 = vunpack.c.h.b16 %v330
        %v384 = vunpack.c.l.b16 %v331
        %v385 = vunpack.c.h.b16 %v331
        %v386 = vunpack.c.l.b16 %v332
        %v387 = vunpack.c.h.b16 %v332
        %v388 = vunpack.c.l.b16 %v333
        %v389 = vunpack.c.h.b16 %v333
        %v390 = vunpack.c.l.b16 %v334
        %v391 = vunpack.c.h.b16 %v334
        %v392 = vunpack.c.l.b16 %v335
        %v393 = vunpack.c.h.b16 %v335
        %v394 = vunpack.c.l.b16 %v336
        %v395 = vunpack.c.h.b16 %v336
        %v396 = vunpack.c.l.b16 %v337
        %v397 = vunpack.c.h.b16 %v337
        %v398 = vpack.c.b16 %v368, %v366
        %v399 = vpack.c.b16 %v369, %v367
        %v400 = vpack.c.b16 %v372, %v370
        %v401 = vpack.c.b16 %v373, %v371
        %v402 = vpack.c.b16 %v376, %v374
        %v403 = vpack.c.b16 %v377, %v375
        %v404 = vpack.c.b16 %v380, %v378
        %v405 = vpack.c.b16 %v381, %v379
        %v406 = vpack.c.b16 %v384, %v382
        %v407 = vpack.c.b16 %v385, %v383
        %v408 = vpack.c.b16 %v388, %v386
        %v409 = vpack.c.b16 %v389, %v387
        %v410 = vpack.c.b16 %v392, %v390
        %v411 = vpack.c.b16 %v393, %v391
        %v412 = vpack.c.b16 %v396, %v394
        %v413 = vpack.c.b16 %v397, %v395
        %430 = vmatprep.subr.bf16.mxu0 %v413
        %431 = vmatpush1.bf16.msra.mxu0 %v412
        %432 = vmatprep.subr.bf16.mxu0 %v411
        %433 = vmatpush1.bf16.msra.mxu0 %v410
        %434 = vmatprep.subr.bf16.mxu0 %v409
        %435 = vmatpush1.bf16.msra.mxu0 %v408
        %436 = vmatprep.subr.bf16.mxu0 %v407
        %437 = vmatpush1.bf16.msra.mxu0 %v406
        %438 = vmatprep.subr.bf16.mxu0 %v405
        %439 = vmatpush1.bf16.msra.mxu0 %v404
        %440 = vmatprep.subr.bf16.mxu0 %v403
        %441 = vmatpush1.bf16.msra.mxu0 %v402
        %442 = vmatprep.subr.bf16.mxu0 %v401
        %443 = vmatpush1.bf16.msra.mxu0 %v400
        %444 = vmatprep.subr.bf16.mxu0 %v399
        %445 = vmatpush1.bf16.msra.mxu0 %v398
        %446 = vmatprep.subr.bf16.mxu0 0
        %447 = vmatpush2.bf16.msra.mxu0 0
        %448 = vmatprep.subr.bf16.mxu0 0
        %449 = vmatpush2.bf16.msra.mxu0 0
        %450 = vmatprep.subr.bf16.mxu0 0
        %451 = vmatpush2.bf16.msra.mxu0 0
        %452 = vmatprep.subr.bf16.mxu0 0
        %453 = vmatpush2.bf16.msra.mxu0 0
        %454 = vmatprep.subr.bf16.mxu0 0
        %455 = vmatpush2.bf16.msra.mxu0 0
        %456 = vmatprep.subr.bf16.mxu0 0
        %457 = vmatpush2.bf16.msra.mxu0 0
        %458 = vmatprep.subr.bf16.mxu0 0
        %459 = vmatpush2.bf16.msra.mxu0 0
        %460 = vmatprep.subr.bf16.mxu0 0
        %461 = vmatpush2.bf16.msra.mxu0 0
        %462 = vmatprep.mubr.bf16.mxu0 0
        %463 = vmatmul.mubr.bf16.gmra.mxu0 %v346
        %v464 = vpop.f32.mrf.mxu0
        %v465 = vadd.f32 0.0, %v464
        %v466 = vpop.f32.mrf.mxu0
        %v467 = vadd.f32 0.0, %v466
        %v468 = vpop.f32.mrf.mxu0
        %v469 = vadd.f32 0.0, %v468
        %v470 = vpop.f32.mrf.mxu0
        %v471 = vadd.f32 0.0, %v470
        %472 = vmatprep.mubr.bf16.mxu0 0
        %473 = vmatmul.mubr.bf16.gmra.mxu0 %v347
        %v474 = vpop.f32.mrf.mxu0
        %v475 = vadd.f32 0.0, %v474
        %v476 = vpop.f32.mrf.mxu0
        %v477 = vadd.f32 0.0, %v476
        %v478 = vpop.f32.mrf.mxu0
        %v479 = vadd.f32 0.0, %v478
        %v480 = vpop.f32.mrf.mxu0
        %v481 = vadd.f32 0.0, %v480
        %482 = vdwg.mxu0
        %v483 = vadd.f32 %v310, %v465
        %v484 = vadd.f32 %v311, %v467
        %v485 = vadd.f32 %v312, %v469
        %v486 = vadd.f32 %v313, %v471
        %v487 = vadd.f32 %v314, %v475
        %v488 = vadd.f32 %v315, %v477
        %v489 = vadd.f32 %v316, %v479
        %v490 = vadd.f32 %v317, %v481
        %491 = vst [vmem:[#allocation2] sm:$0xff] %v483
        %492 = vst [vmem:[#allocation2 + $0x8] sm:$0xff] %v484
        %493 = vst [vmem:[#allocation2 + $0x10] sm:$0xff] %v485
        %494 = vst [vmem:[#allocation2 + $0x18] sm:$0xff] %v486
        %495 = vst [vmem:[#allocation2 + $0x20] sm:$0xff] %v487
        %496 = vst [vmem:[#allocation2 + $0x28] sm:$0xff] %v488
        %497 = vst [vmem:[#allocation2 + $0x30] sm:$0xff] %v489
        %498 = vst [vmem:[#allocation2 + $0x38] sm:$0xff] %v490
        // Predicated region
        $region71: #{resnet50_features_forward.113} parent=61 // pred_check
          %p499 = pneg %p298
        $region72: #{resnet50_features_forward.113} parent=61 // pred_check_branch
          %501 = sbr.rel (%p499) target = $region74
        $region73: #{resnet50_features_forward.113} parent=61 // pred_region
          %v502 = vld [vmem:[#allocation2] sm:$0xff]
          %v503 = vld [vmem:[#allocation2 + $0x8] sm:$0xff]
          %v504 = vld [vmem:[#allocation2 + $0x10] sm:$0xff]
          %v505 = vld [vmem:[#allocation2 + $0x18] sm:$0xff]
          %v506 = vld [vmem:[#allocation2 + $0x20] sm:$0xff]
          %v507 = vld [vmem:[#allocation2 + $0x28] sm:$0xff]
          %v508 = vld [vmem:[#allocation2 + $0x30] sm:$0xff]
          %v509 = vld [vmem:[#allocation2 + $0x38] sm:$0xff]
          %510 = vst [vmem:[%s283] sm:$0xff] %v502
          %511 = vst [vmem:[%s283 + $0x8] sm:$0xff] %v503
          %512 = vst [vmem:[%s283 + $0x10] sm:$0xff] %v504
          %513 = vst [vmem:[%s283 + $0x18] sm:$0xff] %v505
          %514 = vst [vmem:[%s283 + $0x20] sm:$0xff] %v506
          %515 = vst [vmem:[%s283 + $0x28] sm:$0xff] %v507
          %516 = vst [vmem:[%s283 + $0x30] sm:$0xff] %v508
          %517 = vst [vmem:[%s283 + $0x38] sm:$0xff] %v509
        $region74: #{resnet50_features_forward.113} parent=61 // pred_fallthru
          _
        %s518 = sand.u32 %s98, 1
        %s519 = sand.u32 %s98, 1
        %s520 = smul.addr %s519, 64
        %s521 = scalar_lea.vmem [#allocation4], %s520
        // Predicated region
        $region75: #{resnet50_features_forward.113} parent=61 // pred_check
          %p522 = pneg %p108
        $region76: #{resnet50_features_forward.113} parent=61 // pred_check_branch
          %524 = sbr.rel (%p522) target = $region78
        $region77: #{resnet50_features_forward.113} parent=61 // pred_region
          %s525 = smul.u32 4, %s18
          %s526 = smul.u32 2, %s19
          %s527 = smul.addr %s525, 4
          %s528 = sadd.s32 %s526, %s527
          %s529 = smul.addr %s528, 8
          %s530 = scalar_lea.vmem %s2, %s529
          // Predicated region
          $region79: #{resnet50_features_forward.113} parent=77 // pred_check
            _
          $region80: #{resnet50_features_forward.113} parent=77 // pred_check_branch
            %532 = sbr.rel (0) target = $region82
          $region81: #{resnet50_features_forward.113} parent=77 // pred_region
            // Predicated region
            $region83: #{resnet50_features_forward.113} parent=81 // pred_check
              _
            $region84: #{resnet50_features_forward.113} parent=81 // pred_check_branch
              %534 = sbr.rel (0) target = $region86
            $region85: #{resnet50_features_forward.113} parent=81 // pred_region
              loop: start=0, step=1, limit=1
              $region87: #{resnet50_features_forward.113} parent=85 // loop_pre_header
                _
              $region88: #{resnet50_features_forward.113} parent=85 // loop_header
                %s536 = sphi 0, %s540
                %p537 = scmp.ge.s32.totalorder %s536, 1
                %s541 = sphi %s521, %s521
                %s542 = sphi %s530, %s530
              $region89: #{resnet50_features_forward.113} parent=85 // loop_header_branch
                %539 = sbr.rel (%p537) target = $region93
              $region90: #{resnet50_features_forward.113} parent=85 // loop_body
                %v543 = vld [vmem:[%s541] sm:$0xff]
                %544 = vst [vmem:[%s542] sm:$0xff] %v543
                %v545 = vld [vmem:[%s541 + $0x8] sm:$0xff]
                %546 = vst [vmem:[%s542 + $0x8] sm:$0xff] %v545
                %v547 = vld [vmem:[%s541 + $0x10] sm:$0xff]
                %548 = vst [vmem:[%s542 + $0x20] sm:$0xff] %v547
                %v549 = vld [vmem:[%s541 + $0x18] sm:$0xff]
                %550 = vst [vmem:[%s542 + $0x28] sm:$0xff] %v549
                %v551 = vld [vmem:[%s541 + $0x20] sm:$0xff]
                %552 = vst [vmem:[%s542 + $0x40] sm:$0xff] %v551
                %v553 = vld [vmem:[%s541 + $0x28] sm:$0xff]
                %554 = vst [vmem:[%s542 + $0x48] sm:$0xff] %v553
                %v555 = vld [vmem:[%s541 + $0x30] sm:$0xff]
                %556 = vst [vmem:[%s542 + $0x60] sm:$0xff] %v555
                %v557 = vld [vmem:[%s541 + $0x38] sm:$0xff]
                %558 = vst [vmem:[%s542 + $0x68] sm:$0xff] %v557
              $region91: #{resnet50_features_forward.113} parent=85 // loop_footer
                %s540 = sadd.s32 1, %s536
              $region92: #{resnet50_features_forward.113} parent=85 // loop_footer_branch
                %535 = sbr.rel target = $region88
              $region93: #{resnet50_features_forward.113} parent=85 // loop_exit
                _
            $region86: #{resnet50_features_forward.113} parent=81 // pred_fallthru
              _
            // Predicated region
            $region94: #{resnet50_features_forward.113} parent=81 // pred_check
              _
            $region95: #{resnet50_features_forward.113} parent=81 // pred_check_branch
              %560 = sbr.rel target = $region97
            $region96: #{resnet50_features_forward.113} parent=81 // pred_region
              _
            $region97: #{resnet50_features_forward.113} parent=81 // pred_fallthru
              _
          $region82: #{resnet50_features_forward.113} parent=77 // pred_fallthru
            _
          %561 = vnop
        $region78: #{resnet50_features_forward.113} parent=61 // pred_fallthru
          _
      $region62: #{resnet50_features_forward.113} parent=5 // pred_fallthru
        _
      %p562 = scmp.le.s32.totalorder 2, %s8
      // Predicated region
      $region98: #{resnet50_features_forward.113} parent=5 // pred_check
        %p563 = pneg %p562
      $region99: #{resnet50_features_forward.113} parent=5 // pred_check_branch
        %565 = sbr.rel (%p563) target = $region101
      $region100: #{resnet50_features_forward.113} parent=5 // pred_region
        %s566 = ssub.s32 %s8, 2
        // Predicated region
        $region102: #{resnet50_features_forward.113} parent=100 // pred_check
          %p567 = pneg %p114
        $region103: #{resnet50_features_forward.113} parent=100 // pred_check_branch
          %569 = sbr.rel (%p567) target = $region105
        $region104: #{resnet50_features_forward.113} parent=100 // pred_region
          %s570 = sand.u32 %s99, 1
          %s571 = sand.u32 %s99, 1
          %s572 = smul.addr %s571, 64
          %s573 = scalar_lea.vmem [#allocation4], %s572
        $region105: #{resnet50_features_forward.113} parent=100 // pred_fallthru
          _
      $region101: #{resnet50_features_forward.113} parent=5 // pred_fallthru
        _
    $region6: #{resnet50_features_forward.113} parent=1 // loop_footer
      %s12 = sadd.s32 1, %s8
    $region7: #{resnet50_features_forward.113} parent=1 // loop_footer_branch
      %7 = sbr.rel target = $region3
    $region8: #{resnet50_features_forward.113} parent=1 // loop_exit
      _

// kernel: resnet50_features_forward.118
$region0: #{resnet50_features_forward.118}
  #allocation0 [shape = 'u32[]', space=smem, size = 0x4, offset = 0x4, fixed_abs, tag = 'smem constant byte address 0x4 - core index']
  #allocation1 [shape = 'u32[144,128]{1,0:T(1,128)}', space=vmem, size = 0x12000, scoped, tag = 'internal scratch']
  %s0 = inlined_call_operand.vmem [shape: f32[32,512], index: 0, kind: input, shape index: {}]
  %s1 = inlined_call_operand.vmem [shape: f32[8,512], index: 1, kind: input, shape index: {}]
  %s2 = inlined_call_operand.vmem [shape: f32[1,512], index: 2, kind: input, shape index: {}]
  %s3 = inlined_call_operand.vmem [shape: f32[1,512], index: 3, kind: input, shape index: {}]
  %s4 = inlined_call_operand.vmem [shape: f32[32,512], index: 4, kind: input, shape index: {}]
  %s5 = inlined_call_operand.vmem [shape: f32[32,512], index: 5, kind: output, shape index: {}]
  %s6 = sld [smem:[#allocation0]]
  $region30: #{resnet50_features_forward.118} parent=0
    _
  %s8 = ssub.s32 1, %s6
  %s9 = scalar_select 0, %s8, %s6
  // Predicated region
  $region2: #{resnet50_features_forward.118} parent=0 // pred_check
    _
  $region3: #{resnet50_features_forward.118} parent=0 // pred_check_branch
    %11 = sbr.rel (0) target = $region5
  $region4: #{resnet50_features_forward.118} parent=0 // pred_region
    _
  $region5: #{resnet50_features_forward.118} parent=0 // pred_fallthru
    _
  // Predicated region
  $region6: #{resnet50_features_forward.118} parent=0 // pred_check
    _
  $region7: #{resnet50_features_forward.118} parent=0 // pred_check_branch
    %13 = sbr.rel (0) target = $region9
  $region8: #{resnet50_features_forward.118} parent=0 // pred_region
    _
  $region9: #{resnet50_features_forward.118} parent=0 // pred_fallthru
    _
  // Predicated region
  $region10: #{resnet50_features_forward.118} parent=0 // pred_check
    _
  $region11: #{resnet50_features_forward.118} parent=0 // pred_check_branch
    %15 = sbr.rel (0) target = $region13
  $region12: #{resnet50_features_forward.118} parent=0 // pred_region
    _
  $region13: #{resnet50_features_forward.118} parent=0 // pred_fallthru
    _
  // Predicated region
  $region14: #{resnet50_features_forward.118} parent=0 // pred_check
    _
  $region15: #{resnet50_features_forward.118} parent=0 // pred_check_branch
    %17 = sbr.rel (0) target = $region17
  $region16: #{resnet50_features_forward.118} parent=0 // pred_region
    _
  $region17: #{resnet50_features_forward.118} parent=0 // pred_fallthru
    _
  // Predicated region
  $region18: #{resnet50_features_forward.118} parent=0 // pred_check
    _
  $region19: #{resnet50_features_forward.118} parent=0 // pred_check_branch
    %19 = sbr.rel (0) target = $region21
  $region20: #{resnet50_features_forward.118} parent=0 // pred_region
    _
  $region21: #{resnet50_features_forward.118} parent=0 // pred_fallthru
    _
  %v20 = vld [vmem:[%s1] ss:$8 sm:$0xf]
  %v21 = vmul.f32 %v20, 0.03125
  %s22 = scalar_lea.vmem %s1, 1
  %v23 = vld [vmem:[%s22] ss:$8 sm:$0xf]
  %v24 = vmul.f32 %v23, 0.03125
  %v25 = vmul.f32 %v21, %v21
  %v26 = vsub.f32 %v24, %v25
  %v27 = vmax.f32 %v26, 0.0
  %v28 = vld [vmem:[%s2] sm:$0xf]
  %v29 = vadd.f32 %v27, 1e-05
  %v30 = vrsqrt.pop %v29
  %v31 = vmul.f32 %v28, %v30
  %v32 = vld [vmem:[%s3] sm:$0xf]
  %v33 = vmul.f32 %v21, %v31
  %v34 = vsub.f32 %v32, %v33
  %v35 = vld [vmem:[%s0] sm:$0xff]
  %v36 = vld [vmem:[%s0 + $0x8] sm:$0xff]
  %v37 = vld [vmem:[%s0 + $0x10] sm:$0xff]
  %v38 = vld [vmem:[%s0 + $0x18] sm:$0xff]
  %v39 = vld [vmem:[%s0 + $0x20] sm:$0xff]
  %v40 = vld [vmem:[%s0 + $0x28] sm:$0xff]
  %v41 = vld [vmem:[%s0 + $0x30] sm:$0xff]
  %v42 = vld [vmem:[%s0 + $0x38] sm:$0xff]
  %v43 = vld [vmem:[%s0 + $0x40] sm:$0xff]
  %v44 = vld [vmem:[%s0 + $0x48] sm:$0xff]
  %v45 = vld [vmem:[%s0 + $0x50] sm:$0xff]
  %v46 = vld [vmem:[%s0 + $0x58] sm:$0xff]
  %v47 = vld [vmem:[%s0 + $0x60] sm:$0xff]
  %v48 = vld [vmem:[%s0 + $0x68] sm:$0xff]
  %v49 = vld [vmem:[%s0 + $0x70] sm:$0xff]
  %v50 = vld [vmem:[%s0 + $0x78] sm:$0xff]
  %v52 = vlaneseq
  %v53 = vshrl.u32 %v52, 7
  %v54 = vsub.s32 0, %v53
  %v55 = vrot.slane %v31, %v54
  %v56 = vlaneseq
  %v57 = vshrl.u32 %v56, 7
  %v58 = vsub.s32 1, %v57
  %v59 = vrot.slane %v31, %v58
  %v60 = vlaneseq
  %v61 = vshrl.u32 %v60, 7
  %v62 = vsub.s32 2, %v61
  %v63 = vrot.slane %v31, %v62
  %v64 = vlaneseq
  %v65 = vshrl.u32 %v64, 7
  %v66 = vsub.s32 3, %v65
  %v67 = vrot.slane %v31, %v66
  %v72 = vmul.f32 %v35, %v55
  %v73 = vmul.f32 %v36, %v59
  %v74 = vmul.f32 %v37, %v63
  %v75 = vmul.f32 %v38, %v67
  %v76 = vmul.f32 %v39, %v55
  %v77 = vmul.f32 %v40, %v59
  %v78 = vmul.f32 %v41, %v63
  %v79 = vmul.f32 %v42, %v67
  %v80 = vmul.f32 %v43, %v55
  %v81 = vmul.f32 %v44, %v59
  %v82 = vmul.f32 %v45, %v63
  %v83 = vmul.f32 %v46, %v67
  %v84 = vmul.f32 %v47, %v55
  %v85 = vmul.f32 %v48, %v59
  %v86 = vmul.f32 %v49, %v63
  %v87 = vmul.f32 %v50, %v67
  %v89 = vlaneseq
  %v90 = vshrl.u32 %v89, 7
  %v91 = vsub.s32 0, %v90
  %v92 = vrot.slane %v34, %v91
  %v93 = vlaneseq
  %v94 = vshrl.u32 %v93, 7
  %v95 = vsub.s32 1, %v94
  %v96 = vrot.slane %v34, %v95
  %v97 = vlaneseq
  %v98 = vshrl.u32 %v97, 7
  %v99 = vsub.s32 2, %v98
  %v100 = vrot.slane %v34, %v99
  %v101 = vlaneseq
  %v102 = vshrl.u32 %v101, 7
  %v103 = vsub.s32 3, %v102
  %v104 = vrot.slane %v34, %v103
  %v109 = vadd.f32 %v72, %v92
  %v110 = vadd.f32 %v73, %v96
  %v111 = vadd.f32 %v74, %v100
  %v112 = vadd.f32 %v75, %v104
  %v113 = vadd.f32 %v76, %v92
  %v114 = vadd.f32 %v77, %v96
  %v115 = vadd.f32 %v78, %v100
  %v116 = vadd.f32 %v79, %v104
  %v117 = vadd.f32 %v80, %v92
  %v118 = vadd.f32 %v81, %v96
  %v119 = vadd.f32 %v82, %v100
  %v120 = vadd.f32 %v83, %v104
  %v121 = vadd.f32 %v84, %v92
  %v122 = vadd.f32 %v85, %v96
  %v123 = vadd.f32 %v86, %v100
  %v124 = vadd.f32 %v87, %v104
  %v125 = vld [vmem:[%s4] sm:$0xff]
  %v126 = vld [vmem:[%s4 + $0x8] sm:$0xff]
  %v127 = vld [vmem:[%s4 + $0x10] sm:$0xff]
  %v128 = vld [vmem:[%s4 + $0x18] sm:$0xff]
  %v129 = vld [vmem:[%s4 + $0x20] sm:$0xff]
  %v130 = vld [vmem:[%s4 + $0x28] sm:$0xff]
  %v131 = vld [vmem:[%s4 + $0x30] sm:$0xff]
  %v132 = vld [vmem:[%s4 + $0x38] sm:$0xff]
  %v133 = vld [vmem:[%s4 + $0x40] sm:$0xff]
  %v134 = vld [vmem:[%s4 + $0x48] sm:$0xff]
  %v135 = vld [vmem:[%s4 + $0x50] sm:$0xff]
  %v136 = vld [vmem:[%s4 + $0x58] sm:$0xff]
  %v137 = vld [vmem:[%s4 + $0x60] sm:$0xff]
  %v138 = vld [vmem:[%s4 + $0x68] sm:$0xff]
  %v139 = vld [vmem:[%s4 + $0x70] sm:$0xff]
  %v140 = vld [vmem:[%s4 + $0x78] sm:$0xff]
  %v141 = vadd.f32 %v109, %v125
  %v142 = vadd.f32 %v110, %v126
  %v143 = vadd.f32 %v111, %v127
  %v144 = vadd.f32 %v112, %v128
  %v145 = vadd.f32 %v113, %v129
  %v146 = vadd.f32 %v114, %v130
  %v147 = vadd.f32 %v115, %v131
  %v148 = vadd.f32 %v116, %v132
  %v149 = vadd.f32 %v117, %v133
  %v150 = vadd.f32 %v118, %v134
  %v151 = vadd.f32 %v119, %v135
  %v152 = vadd.f32 %v120, %v136
  %v153 = vadd.f32 %v121, %v137
  %v154 = vadd.f32 %v122, %v138
  %v155 = vadd.f32 %v123, %v139
  %v156 = vadd.f32 %v124, %v140
  %v157 = vmax.f32 %v141, 0.0
  %v158 = vmax.f32 %v142, 0.0
  %v159 = vmax.f32 %v143, 0.0
  %v160 = vmax.f32 %v144, 0.0
  %v161 = vmax.f32 %v145, 0.0
  %v162 = vmax.f32 %v146, 0.0
  %v163 = vmax.f32 %v147, 0.0
  %v164 = vmax.f32 %v148, 0.0
  %v165 = vmax.f32 %v149, 0.0
  %v166 = vmax.f32 %v150, 0.0
  %v167 = vmax.f32 %v151, 0.0
  %v168 = vmax.f32 %v152, 0.0
  %v169 = vmax.f32 %v153, 0.0
  %v170 = vmax.f32 %v154, 0.0
  %v171 = vmax.f32 %v155, 0.0
  %v172 = vmax.f32 %v156, 0.0
  %173 = vst [vmem:[%s5] sm:$0xff] %v157
  %174 = vst [vmem:[%s5 + $0x8] sm:$0xff] %v158
  %175 = vst [vmem:[%s5 + $0x10] sm:$0xff] %v159
  %176 = vst [vmem:[%s5 + $0x18] sm:$0xff] %v160
  %177 = vst [vmem:[%s5 + $0x20] sm:$0xff] %v161
  %178 = vst [vmem:[%s5 + $0x28] sm:$0xff] %v162
  %179 = vst [vmem:[%s5 + $0x30] sm:$0xff] %v163
  %180 = vst [vmem:[%s5 + $0x38] sm:$0xff] %v164
  %181 = vst [vmem:[%s5 + $0x40] sm:$0xff] %v165
  %182 = vst [vmem:[%s5 + $0x48] sm:$0xff] %v166
  %183 = vst [vmem:[%s5 + $0x50] sm:$0xff] %v167
  %184 = vst [vmem:[%s5 + $0x58] sm:$0xff] %v168
  %185 = vst [vmem:[%s5 + $0x60] sm:$0xff] %v169
  %186 = vst [vmem:[%s5 + $0x68] sm:$0xff] %v170
  %187 = vst [vmem:[%s5 + $0x70] sm:$0xff] %v171
  %188 = vst [vmem:[%s5 + $0x78] sm:$0xff] %v172
  // Predicated region
  $region22: #{resnet50_features_forward.118} parent=0 // pred_check
    _
  $region23: #{resnet50_features_forward.118} parent=0 // pred_check_branch
    %190 = sbr.rel (0) target = $region25
  $region24: #{resnet50_features_forward.118} parent=0 // pred_region
    _
  $region25: #{resnet50_features_forward.118} parent=0 // pred_fallthru
    _
  // Predicated region
  $region26: #{resnet50_features_forward.118} parent=0 // pred_check
    _
  $region27: #{resnet50_features_forward.118} parent=0 // pred_check_branch
    %192 = sbr.rel (0) target = $region29
  $region28: #{resnet50_features_forward.118} parent=0 // pred_region
    _
  $region29: #{resnet50_features_forward.118} parent=0 // pred_fallthru
    _

// kernel: resnet50_features_forward.119
$region0: #{resnet50_features_forward.119}
  #allocation0 [shape = 'u32[]', space=smem, size = 0x4, offset = 0x4, fixed_abs, tag = 'smem constant byte address 0x4 - core index']
  #allocation1 [shape = 'u32[144,128]{1,0:T(1,128)}', space=vmem, size = 0x12000, scoped, tag = 'internal scratch']
  #allocation2 [shape = 'f32[32,128]{1,0:T(8,128)}', space=vmem, size = 0x4000, scoped, tag = 'scratch operand']
  %s0 = inlined_call_operand.vmem [shape: bf16[32,512], index: 0, kind: input, shape index: {}]
  %s1 = inlined_call_operand.vmem [shape: bf16[512,128], index: 1, kind: input, shape index: {}]
  %s2 = inlined_call_operand.vmem [shape: f32[32,128], index: 2, kind: output, shape index: {}]
  %s3 = sld [smem:[#allocation0]]
  $region87: #{resnet50_features_forward.119} parent=0
    _
  %s5 = ssub.s32 1, %s3
  %s6 = scalar_select 0, %s5, %s3
  $region1: #{resnet50_features_forward.119} parent=0
    #allocation3 [shape = 'u8[32768]{0}', space=vmem, size = 0x8000, scoped, tag = 'input window, operand 0']
    loop: start=0, step=1, limit=4
    $region2: #{resnet50_features_forward.119} parent=1 // loop_pre_header
      _
    $region3: #{resnet50_features_forward.119} parent=1 // loop_header
      %s8 = sphi 0, %s12
      %p9 = scmp.ge.s32.totalorder %s8, 4
      %s15 = sphi 0, %s34
      %s16 = sphi 0, %s30
      %s17 = sphi 0, %s26
      %s18 = sphi 0, %s15
      %s19 = sphi 0, %s16
      %s20 = sphi 0, %s17
      %s21 = sphi 0, %s18
      %s22 = sphi 0, %s19
      %s23 = sphi 0, %s20
      %s39 = sphi 0, %s41
      %s42 = sphi 0, %s39
      %s43 = sphi 0, %s42
      %s59 = sphi 0, %s43
      %s67 = sphi 0, %s69
      %s70 = sphi 0, %s67
      %s71 = sphi 0, %s70
      %s87 = sphi 0, %s71
      %s95 = sphi 0, %s97
      %s98 = sphi 0, %s95
      %s99 = sphi 0, %s98
      %s115 = sphi 0, %s99
    $region4: #{resnet50_features_forward.119} parent=1 // loop_header_branch
      %11 = sbr.rel (%p9) target = $region8
    $region5: #{resnet50_features_forward.119} parent=1 // loop_body
      %s13 = ssub.s32 %s8, 1
      %s14 = ssub.s32 %s8, 2
      %s24 = sadd.s32 1, %s17
      %p25 = scmp.ge.s32.totalorder %s24, 2
      %s26 = scalar_select %p25, 0, %s24
      %s27 = sadd.s32 1, %s16
      %s28 = scalar_select %p25, %s27, %s16
      %p29 = scmp.ge.s32.totalorder %s28, 1
      %s30 = scalar_select %p29, 0, %s28
      %s31 = sadd.s32 1, %s15
      %s32 = scalar_select %p29, %s31, %s15
      %p33 = scmp.ge.s32.totalorder %s32, 1
      %s34 = scalar_select %p33, 0, %s32
      %s35 = ssub.s32 %s15, %s34
      %s36 = ssub.s32 %s17, %s26
      %s37 = sor.u32 %s35, %s36
      %p38 = scmp.eq.s32.totalorder %s37, 0
      %s40 = sadd.s32 %s39, 1
      %s41 = scalar_select %p38, %s39, %s40
      %p44 = pneg %p38
      %p45 = scmp.eq.s32.totalorder %s8, 1
      %p46 = por %p44, %p45
      %p47 = scmp.ne.s32.totalorder %s39, %s42
      %p48 = scmp.eq.s32.totalorder %s8, 0
      %p49 = por %p47, %p48
      %p50 = scmp.ne.s32.totalorder %s39, %s42
      %p51 = scmp.eq.s32.totalorder %s13, 1
      %p52 = por %p50, %p51
      %p53 = scmp.ne.s32.totalorder %s42, %s43
      %p54 = scmp.eq.s32.totalorder %s13, 0
      %p55 = por %p53, %p54
      %p56 = scmp.ne.s32.totalorder %s42, %s43
      %p57 = scmp.eq.s32.totalorder %s14, 1
      %p58 = por %p56, %p57
      %p60 = scmp.ne.s32.totalorder %s43, %s59
      %p61 = scmp.eq.s32.totalorder %s14, 0
      %p62 = por %p60, %p61
      %s63 = ssub.s32 %s17, %s26
      %s64 = ssub.s32 %s16, %s30
      %s65 = sor.u32 %s63, %s64
      %p66 = scmp.eq.s32.totalorder %s65, 0
      %s68 = sadd.s32 %s67, 1
      %s69 = scalar_select %p66, %s67, %s68
      %p72 = pneg %p66
      %p73 = scmp.eq.s32.totalorder %s8, 1
      %p74 = por %p72, %p73
      %p75 = scmp.ne.s32.totalorder %s67, %s70
      %p76 = scmp.eq.s32.totalorder %s8, 0
      %p77 = por %p75, %p76
      %p78 = scmp.ne.s32.totalorder %s67, %s70
      %p79 = scmp.eq.s32.totalorder %s13, 1
      %p80 = por %p78, %p79
      %p81 = scmp.ne.s32.totalorder %s70, %s71
      %p82 = scmp.eq.s32.totalorder %s13, 0
      %p83 = por %p81, %p82
      %p84 = scmp.ne.s32.totalorder %s70, %s71
      %p85 = scmp.eq.s32.totalorder %s14, 1
      %p86 = por %p84, %p85
      %p88 = scmp.ne.s32.totalorder %s71, %s87
      %p89 = scmp.eq.s32.totalorder %s14, 0
      %p90 = por %p88, %p89
      %s91 = ssub.s32 %s15, %s34
      %s92 = ssub.s32 %s16, %s30
      %s93 = sor.u32 %s91, %s92
      %p94 = scmp.eq.s32.totalorder %s93, 0
      %s96 = sadd.s32 %s95, 1
      %s97 = scalar_select %p94, %s95, %s96
      %p100 = pneg %p94
      %p101 = scmp.eq.s32.totalorder %s8, 1
      %p102 = por %p100, %p101
      %p103 = scmp.ne.s32.totalorder %s95, %s98
      %p104 = scmp.eq.s32.totalorder %s8, 0
      %p105 = por %p103, %p104
      %p106 = scmp.ne.s32.totalorder %s95, %s98
      %p107 = scmp.eq.s32.totalorder %s13, 1
      %p108 = por %p106, %p107
      %p109 = scmp.ne.s32.totalorder %s98, %s99
      %p110 = scmp.eq.s32.totalorder %s13, 0
      %p111 = por %p109, %p110
      %p112 = scmp.ne.s32.totalorder %s98, %s99
      %p113 = scmp.eq.s32.totalorder %s14, 1
      %p114 = por %p112, %p113
      %p116 = scmp.ne.s32.totalorder %s99, %s115
      %p117 = scmp.eq.s32.totalorder %s14, 0
      %p118 = por %p116, %p117
      %p119 = scmp.le.s32.totalorder 1, %s8
      %p120 = scmp.lt.s32.totalorder %s8, 3
      %p121 = pnand %p119, %p120
      %p122 = pneg %p121
      // Predicated region
      $region9: #{resnet50_features_forward.119} parent=5 // pred_check
        _
      $region10: #{resnet50_features_forward.119} parent=5 // pred_check_branch
        %124 = sbr.rel (%p121) target = $region12
      $region11: #{resnet50_features_forward.119} parent=5 // pred_region
        %s125 = ssub.s32 %s8, 1
      $region12: #{resnet50_features_forward.119} parent=5 // pred_fallthru
        _
      %p126 = scmp.lt.s32.totalorder %s8, 2
      // Predicated region
      $region13: #{resnet50_features_forward.119} parent=5 // pred_check
        %p127 = pneg %p126
      $region14: #{resnet50_features_forward.119} parent=5 // pred_check_branch
        %129 = sbr.rel (%p127) target = $region16
      $region15: #{resnet50_features_forward.119} parent=5 // pred_region
        // Predicated region
        $region17: #{resnet50_features_forward.119} parent=15 // pred_check
          %p130 = pneg %p49
        $region18: #{resnet50_features_forward.119} parent=15 // pred_check_branch
          %132 = sbr.rel (%p130) target = $region20
        $region19: #{resnet50_features_forward.119} parent=15 // pred_region
          %s133 = sand.u32 %s39, 1
          %s134 = sand.u32 %s39, 1
          %s135 = smul.addr %s134, 32
          %s136 = scalar_lea.vmem [#allocation3], %s135
          %s137 = smul.u32 4, %s15
          %s138 = smul.u32 2, %s17
          %s139 = smul.addr %s137, 4
          %s140 = sadd.s32 %s138, %s139
          %s141 = smul.addr %s140, 4
          %s142 = scalar_lea.vmem %s0, %s141
          // Predicated region
          $region21: #{resnet50_features_forward.119} parent=19 // pred_check
            _
          $region22: #{resnet50_features_forward.119} parent=19 // pred_check_branch
            %144 = sbr.rel (0) target = $region24
          $region23: #{resnet50_features_forward.119} parent=19 // pred_region
            // Predicated region
            $region25: #{resnet50_features_forward.119} parent=23 // pred_check
              _
            $region26: #{resnet50_features_forward.119} parent=23 // pred_check_branch
              %146 = sbr.rel (0) target = $region28
            $region27: #{resnet50_features_forward.119} parent=23 // pred_region
              // Predicated region
              $region40: #{resnet50_features_forward.119} parent=27 // pred_check
                _
              $region41: #{resnet50_features_forward.119} parent=27 // pred_check_branch
                %168 = sbr.rel (0) target = $region43
              $region42: #{resnet50_features_forward.119} parent=27 // pred_region
                loop: start=0, step=1, limit=1
                $region44: #{resnet50_features_forward.119} parent=42 // loop_pre_header
                  _
                $region45: #{resnet50_features_forward.119} parent=42 // loop_header
                  %s170 = sphi 0, %s174
                  %p171 = scmp.ge.s32.totalorder %s170, 1
                  %s175 = sphi %s142, %s142
                  %s176 = sphi %s136, %s136
                $region46: #{resnet50_features_forward.119} parent=42 // loop_header_branch
                  %173 = sbr.rel (%p171) target = $region50
                $region47: #{resnet50_features_forward.119} parent=42 // loop_body
                  %v177 = vld [vmem:[%s175] sm:$0xff]
                  %178 = vst [vmem:[%s176] sm:$0xff] %v177
                  %v179 = vld [vmem:[%s175 + $0x10] sm:$0xff]
                  %180 = vst [vmem:[%s176 + $0x8] sm:$0xff] %v179
                  %v181 = vld [vmem:[%s175 + $0x20] sm:$0xff]
                  %182 = vst [vmem:[%s176 + $0x10] sm:$0xff] %v181
                  %v183 = vld [vmem:[%s175 + $0x30] sm:$0xff]
                  %184 = vst [vmem:[%s176 + $0x18] sm:$0xff] %v183
                $region48: #{resnet50_features_forward.119} parent=42 // loop_footer
                  %s174 = sadd.s32 1, %s170
                $region49: #{resnet50_features_forward.119} parent=42 // loop_footer_branch
                  %169 = sbr.rel target = $region45
                $region50: #{resnet50_features_forward.119} parent=42 // loop_exit
                  _
              $region43: #{resnet50_features_forward.119} parent=27 // pred_fallthru
                _
              // Predicated region
              $region51: #{resnet50_features_forward.119} parent=27 // pred_check
                _
              $region52: #{resnet50_features_forward.119} parent=27 // pred_check_branch
                %186 = sbr.rel target = $region54
              $region53: #{resnet50_features_forward.119} parent=27 // pred_region
                _
              $region54: #{resnet50_features_forward.119} parent=27 // pred_fallthru
                _
            $region28: #{resnet50_features_forward.119} parent=23 // pred_fallthru
              _
            // Predicated region
            $region29: #{resnet50_features_forward.119} parent=23 // pred_check
              _
            $region30: #{resnet50_features_forward.119} parent=23 // pred_check_branch
              %148 = sbr.rel target = $region32
            $region31: #{resnet50_features_forward.119} parent=23 // pred_region
              %s150 = ssub.s32 256, 1
              loop: start=0, step=1, limit=1
              $region33: #{resnet50_features_forward.119} parent=31 // loop_pre_header
                _
              $region34: #{resnet50_features_forward.119} parent=31 // loop_header
                %s152 = sphi 0, %s156
                %p153 = scmp.ge.s32.totalorder %s152, 1
                %s157 = sphi %s142, %s142
                %s158 = sphi %s136, %s136
              $region35: #{resnet50_features_forward.119} parent=31 // loop_header_branch
                %155 = sbr.rel (%p153) target = $region39
              $region36: #{resnet50_features_forward.119} parent=31 // loop_body
                %v159 = vld [vmem:[%s157] sm:%s150]
                %160 = vst [vmem:[%s158] sm:%s150] %v159
                %v161 = vld [vmem:[%s157 + $0x10] sm:%s150]
                %162 = vst [vmem:[%s158 + $0x8] sm:%s150] %v161
                %v163 = vld [vmem:[%s157 + $0x20] sm:%s150]
                %164 = vst [vmem:[%s158 + $0x10] sm:%s150] %v163
                %v165 = vld [vmem:[%s157 + $0x30] sm:%s150]
                %166 = vst [vmem:[%s158 + $0x18] sm:%s150] %v165
              $region37: #{resnet50_features_forward.119} parent=31 // loop_footer
                %s156 = sadd.s32 1, %s152
              $region38: #{resnet50_features_forward.119} parent=31 // loop_footer_branch
                %151 = sbr.rel target = $region34
              $region39: #{resnet50_features_forward.119} parent=31 // loop_exit
                _
            $region32: #{resnet50_features_forward.119} parent=23 // pred_fallthru
              _
          $region24: #{resnet50_features_forward.119} parent=19 // pred_fallthru
            _
          %187 = vnop
        $region20: #{resnet50_features_forward.119} parent=15 // pred_fallthru
          _
        // Predicated region
        $region55: #{resnet50_features_forward.119} parent=15 // pred_check
          %p188 = pneg %p77
        $region56: #{resnet50_features_forward.119} parent=15 // pred_check_branch
          %190 = sbr.rel (%p188) target = $region58
        $region57: #{resnet50_features_forward.119} parent=15 // pred_region
          %s191 = smul.u32 32, %s17
          %p192 = scmp.lt.s32.totalorder %s191, 63
          %s193 = scalar_select %p192, %s191, 63
          %p194 = scmp.lt.s32.totalorder %s16, 0
          %s195 = scalar_select %p194, %s16, 0
          %s196 = sadd.s32 %s195, %s193
          %s197 = smul.addr %s196, 4
          %s198 = scalar_lea.vmem %s1, %s197
          %s199 = smul.u32 32, %s17
        $region58: #{resnet50_features_forward.119} parent=15 // pred_fallthru
          _
      $region16: #{resnet50_features_forward.119} parent=5 // pred_fallthru
        _
      %p200 = scmp.le.s32.totalorder 1, %s8
      %p201 = scmp.lt.s32.totalorder %s8, 3
      %p202 = pnand %p200, %p201
      %p203 = pneg %p202
      // Predicated region
      $region59: #{resnet50_features_forward.119} parent=5 // pred_check
        _
      $region60: #{resnet50_features_forward.119} parent=5 // pred_check_branch
        %205 = sbr.rel (%p202) target = $region62
      $region61: #{resnet50_features_forward.119} parent=5 // pred_region
        %s206 = ssub.s32 %s8, 1
        %s207 = sand.u32 %s42, 1
        %s208 = sand.u32 %s42, 1
        %s209 = smul.addr %s208, 32
        %s210 = scalar_lea.vmem [#allocation3], %s209
        // Predicated region
        $region63: #{resnet50_features_forward.119} parent=61 // pred_check
          %p211 = pneg %p55
        $region64: #{resnet50_features_forward.119} parent=61 // pred_check_branch
          %213 = sbr.rel (%p211) target = $region66
        $region65: #{resnet50_features_forward.119} parent=61 // pred_region
          _
        $region66: #{resnet50_features_forward.119} parent=61 // pred_fallthru
          _
        %s214 = sand.u32 %s42, 1
        %s215 = sand.u32 %s42, 1
        %s216 = smul.addr %s215, 32
        %s217 = scalar_lea.vmem [#allocation3], %s216
        %p218 = pneg %p55
        %p219 = pneg %p52
        %s220 = smul.u32 32, %s20
        %p221 = scmp.lt.s32.totalorder %s220, 63
        %s222 = scalar_select %p221, %s220, 63
        %p223 = scmp.lt.s32.totalorder %s19, 0
        %s224 = scalar_select %p223, %s19, 0
        %s225 = sadd.s32 %s224, %s222
        %s226 = smul.addr %s225, 4
        %s227 = scalar_lea.vmem %s1, %s226
        %p228 = pneg %p83
        %p229 = pneg %p80
        %p230 = pneg %p111
        %p231 = pneg %p108
        %s232 = smul.u32 4, %s18
        %p233 = scmp.lt.s32.totalorder %s232, 3
        %s234 = scalar_select %p233, %s232, 3
        %p235 = scmp.lt.s32.totalorder %s19, 0
        %s236 = scalar_select %p235, %s19, 0
        %s237 = sadd.s32 %s236, %s234
        %s238 = smul.addr %s237, 8
        %s239 = scalar_lea.vmem %s2, %s238
        %s240 = smul.u32 4, %s18
        %s241 = smul.u32 2, %s20
        %s242 = smul.u32 32, %s20
        %p243 = scmp.lt.s32.totalorder %s242, 63
        %s244 = scalar_select %p243, %s242, 63
        %p245 = scmp.lt.s32.totalorder %s19, 0
        %s246 = scalar_select %p245, %s19, 0
        %s247 = sadd.s32 %s246, %s244
        %s248 = smul.addr %s247, 4
        %s249 = scalar_lea.vmem %s1, %s248
        %s250 = smul.u32 32, %s20
        %s251 = smul.u32 4, %s18
        %p252 = scmp.lt.s32.totalorder %s251, 3
        %s253 = scalar_select %p252, %s251, 3
        %p254 = scmp.lt.s32.totalorder %s19, 0
        %s255 = scalar_select %p254, %s19, 0
        %s256 = sadd.s32 %s255, %s253
        %s257 = smul.addr %s256, 8
        %s258 = scalar_lea.vmem %s2, %s257
        %s259 = smul.u32 4, %s18
        %p261 = scmp.eq.s32.totalorder %s20, 0
        // Predicated region
        $region67: #{resnet50_features_forward.119} parent=61 // pred_check
          %p262 = pneg %p261
        $region68: #{resnet50_features_forward.119} parent=61 // pred_check_branch
          %264 = sbr.rel (%p262) target = $region70
        $region69: #{resnet50_features_forward.119} parent=61 // pred_region
          %265 = vst [vmem:[#allocation2] sm:$0xff] 0.0
          %266 = vst [vmem:[#allocation2 + $0x8] sm:$0xff] 0.0
          %267 = vst [vmem:[#allocation2 + $0x10] sm:$0xff] 0.0
          %268 = vst [vmem:[#allocation2 + $0x18] sm:$0xff] 0.0
        $region70: #{resnet50_features_forward.119} parent=61 // pred_fallthru
          _
        %v269 = vld [vmem:[#allocation2] sm:$0xff]
        %v270 = vld [vmem:[#allocation2 + $0x8] sm:$0xff]
        %v271 = vld [vmem:[#allocation2 + $0x10] sm:$0xff]
        %v272 = vld [vmem:[#allocation2 + $0x18] sm:$0xff]
        %v273 = vld [vmem:[%s210] sm:$0xff]
        %v274 = vld [vmem:[%s210 + $0x8] sm:$0xff]
        %v275 = vld [vmem:[%s210 + $0x10] sm:$0xff]
        %v276 = vld [vmem:[%s210 + $0x18] sm:$0xff]
        %v277 = vld [vmem:[%s249] sm:$0xf]
        %v278 = vld [vmem:[%s249 + $0x4] sm:$0xf]
        %v279 = vld [vmem:[%s249 + $0x8] sm:$0xf]
        %v280 = vld [vmem:[%s249 + $0xc] sm:$0xf]
        %v281 = vld [vmem:[%s249 + $0x10] sm:$0xf]
        %v282 = vld [vmem:[%s249 + $0x14] sm:$0xf]
        %v283 = vld [vmem:[%s249 + $0x18] sm:$0xf]
        %v284 = vld [vmem:[%s249 + $0x1c] sm:$0xf]
        %v285 = vld [vmem:[%s249 + $0x20] sm:$0xf]
        %v286 = vld [vmem:[%s249 + $0x24] sm:$0xf]
        %v287 = vld [vmem:[%s249 + $0x28] sm:$0xf]
        %v288 = vld [vmem:[%s249 + $0x2c] sm:$0xf]
        %v289 = vld [vmem:[%s249 + $0x30] sm:$0xf]
        %v290 = vld [vmem:[%s249 + $0x34] sm:$0xf]
        %v291 = vld [vmem:[%s249 + $0x38] sm:$0xf]
        %v292 = vld [vmem:[%s249 + $0x3c] sm:$0xf]
        %v293 = vld [vmem:[%s249 + $0x40] sm:$0xf]
        %v294 = vld [vmem:[%s249 + $0x44] sm:$0xf]
        %v295 = vld [vmem:[%s249 + $0x48] sm:$0xf]
        %v296 = vld [vmem:[%s249 + $0x4c] sm:$0xf]
        %v297 = vld [vmem:[%s249 + $0x50] sm:$0xf]
        %v298 = vld [vmem:[%s249 + $0x54] sm:$0xf]
        %v299 = vld [vmem:[%s249 + $0x58] sm:$0xf]
        %v300 = vld [vmem:[%s249 + $0x5c] sm:$0xf]
        %v301 = vld [vmem:[%s249 + $0x60] sm:$0xf]
        %v302 = vld [vmem:[%s249 + $0x64] sm:$0xf]
        %v303 = vld [vmem:[%s249 + $0x68] sm:$0xf]
        %v304 = vld [vmem:[%s249 + $0x6c] sm:$0xf]
        %v305 = vld [vmem:[%s249 + $0x70] sm:$0xf]
        %v306 = vld [vmem:[%s249 + $0x74] sm:$0xf]
        %v307 = vld [vmem:[%s249 + $0x78] sm:$0xf]
        %v308 = vld [vmem:[%s249 + $0x7c] sm:$0xf]
        %v313 = vunpack.c.l.b16 %v273
        %v314 = vunpack.c.h.b16 %v273
        %v315 = vunpack.c.l.b16 %v274
        %v316 = vunpack.c.h.b16 %v274
        %v317 = vunpack.c.l.b16 %v275
        %v318 = vunpack.c.h.b16 %v275
        %v319 = vunpack.c.l.b16 %v276
        %v320 = vunpack.c.h.b16 %v276
        %v321 = vpack.c.b16 %v315, %v313
        %v322 = vpack.c.b16 %v316, %v314
        %v323 = vpack.c.b16 %v319, %v317
        %v324 = vpack.c.b16 %v320, %v318
        %v361 = vunpack.c.l.b16 %v277
        %v362 = vunpack.c.l.b16 %v278
        %v363 = vunpack.c.l.b16 %v279
        %v364 = vunpack.c.l.b16 %v280
        %v365 = vunpack.c.l.b16 %v281
        %v366 = vunpack.c.l.b16 %v282
        %v367 = vunpack.c.l.b16 %v283
        %v368 = vunpack.c.l.b16 %v284
        %v369 = vunpack.c.l.b16 %v285
        %v370 = vunpack.c.l.b16 %v286
        %v371 = vunpack.c.l.b16 %v287
        %v372 = vunpack.c.l.b16 %v288
        %v373 = vunpack.c.l.b16 %v289
        %v374 = vunpack.c.l.b16 %v290
        %v375 = vunpack.c.l.b16 %v291
        %v376 = vunpack.c.l.b16 %v292
        %v377 = vunpack.c.l.b16 %v293
        %v378 = vunpack.c.l.b16 %v294
        %v379 = vunpack.c.l.b16 %v295
        %v380 = vunpack.c.l.b16 %v296
        %v381 = vunpack.c.l.b16 %v297
        %v382 = vunpack.c.l.b16 %v298
        %v383 = vunpack.c.l.b16 %v299
        %v384 = vunpack.c.l.b16 %v300
        %v385 = vunpack.c.l.b16 %v301
        %v386 = vunpack.c.l.b16 %v302
        %v387 = vunpack.c.l.b16 %v303
        %v388 = vunpack.c.l.b16 %v304
        %v389 = vunpack.c.l.b16 %v305
        %v390 = vunpack.c.l.b16 %v306
        %v391 = vunpack.c.l.b16 %v307
        %v392 = vunpack.c.l.b16 %v308
        %v393 = vpack.c.b16 %v362, %v361
        %v394 = vpack.c.b16 %v364, %v363
        %v395 = vpack.c.b16 %v366, %v365
        %v396 = vpack.c.b16 %v368, %v367
        %v397 = vpack.c.b16 %v370, %v369
        %v398 = vpack.c.b16 %v372, %v371
        %v399 = vpack.c.b16 %v374, %v373
        %v400 = vpack.c.b16 %v376, %v375
        %v401 = vpack.c.b16 %v378, %v377
        %v402 = vpack.c.b16 %v380, %v379
        %v403 = vpack.c.b16 %v382, %v381
        %v404 = vpack.c.b16 %v384, %v383
        %v405 = vpack.c.b16 %v386, %v385
        %v406 = vpack.c.b16 %v388, %v387
        %v407 = vpack.c.b16 %v390, %v389
        %v408 = vpack.c.b16 %v392, %v391
        %425 = vmatprep.subr.bf16.mxu0 0
        %426 = vmatpush1.bf16.msra.mxu0 %v400
        %427 = vmatprep.subr.bf16.mxu0 0
        %428 = vmatpush1.bf16.msra.mxu0 %v399
        %429 = vmatprep.subr.bf16.mxu0 0
        %430 = vmatpush1.bf16.msra.mxu0 %v398
        %431 = vmatprep.subr.bf16.mxu0 0
        %432 = vmatpush1.bf16.msra.mxu0 %v397
        %433 = vmatprep.subr.bf16.mxu0 0
        %434 = vmatpush1.bf16.msra.mxu0 %v396
        %435 = vmatprep.subr.bf16.mxu0 0
        %436 = vmatpush1.bf16.msra.mxu0 %v395
        %437 = vmatprep.subr.bf16.mxu0 0
        %438 = vmatpush1.bf16.msra.mxu0 %v394
        %439 = vmatprep.subr.bf16.mxu0 0
        %440 = vmatpush1.bf16.msra.mxu0 %v393
        %441 = vmatprep.subr.bf16.mxu0 0
        %442 = vmatpush2.bf16.msra.mxu0 %v408
        %443 = vmatprep.subr.bf16.mxu0 0
        %444 = vmatpush2.bf16.msra.mxu0 %v407
        %445 = vmatprep.subr.bf16.mxu0 0
        %446 = vmatpush2.bf16.msra.mxu0 %v406
        %447 = vmatprep.subr.bf16.mxu0 0
        %448 = vmatpush2.bf16.msra.mxu0 %v405
        %449 = vmatprep.subr.bf16.mxu0 0
        %450 = vmatpush2.bf16.msra.mxu0 %v404
        %451 = vmatprep.subr.bf16.mxu0 0
        %452 = vmatpush2.bf16.msra.mxu0 %v403
        %453 = vmatprep.subr.bf16.mxu0 0
        %454 = vmatpush2.bf16.msra.mxu0 %v402
        %455 = vmatprep.subr.bf16.mxu0 0
        %456 = vmatpush2.bf16.msra.mxu0 %v401
        %457 = vmatprep.mubr.bf16.mxu0 %v322
        %458 = vmatmul.mubr.bf16.gmra.mxu0 %v321
        %v459 = vpop.f32.mrf.mxu0
        %v460 = vadd.f32 0.0, %v459
        %v461 = vpop.f32.mrf.mxu0
        %v462 = vpop.f32.mrf.mxu0
        %v463 = vadd.f32 0.0, %v462
        %v464 = vpop.f32.mrf.mxu0
        %465 = vmatprep.mubr.bf16.mxu0 %v324
        %466 = vmatmul.mubr.bf16.gmra.mxu0 %v323
        %v467 = vpop.f32.mrf.mxu0
        %v468 = vadd.f32 0.0, %v467
        %v469 = vpop.f32.mrf.mxu0
        %v470 = vpop.f32.mrf.mxu0
        %v471 = vadd.f32 0.0, %v470
        %v472 = vpop.f32.mrf.mxu0
        %473 = vdwg.mxu0
        %v474 = vadd.f32 %v269, %v460
        %v475 = vadd.f32 %v270, %v463
        %v476 = vadd.f32 %v271, %v468
        %v477 = vadd.f32 %v272, %v471
        %478 = vst [vmem:[#allocation2] sm:$0xff] %v474
        %479 = vst [vmem:[#allocation2 + $0x8] sm:$0xff] %v475
        %480 = vst [vmem:[#allocation2 + $0x10] sm:$0xff] %v476
        %481 = vst [vmem:[#allocation2 + $0x18] sm:$0xff] %v477
        %p482 = scmp.eq.s32.totalorder %s20, 1
        // Predicated region
        $region71: #{resnet50_features_forward.119} parent=61 // pred_check
          %p483 = pneg %p482
        $region72: #{resnet50_features_forward.119} parent=61 // pred_check_branch
          %485 = sbr.rel (%p483) target = $region74
        $region73: #{resnet50_features_forward.119} parent=61 // pred_region
          %v486 = vld [vmem:[#allocation2] sm:$0xff]
          %v487 = vld [vmem:[#allocation2 + $0x8] sm:$0xff]
          %v488 = vld [vmem:[#allocation2 + $0x10] sm:$0xff]
          %v489 = vld [vmem:[#allocation2 + $0x18] sm:$0xff]
          %490 = vst [vmem:[%s258] sm:$0xff] %v486
          %491 = vst [vmem:[%s258 + $0x8] sm:$0xff] %v487
          %492 = vst [vmem:[%s258 + $0x10] sm:$0xff] %v488
          %493 = vst [vmem:[%s258 + $0x18] sm:$0xff] %v489
        $region74: #{resnet50_features_forward.119} parent=61 // pred_fallthru
          _
        %s494 = smul.u32 4, %s18
        %p495 = scmp.lt.s32.totalorder %s494, 3
        %s496 = scalar_select %p495, %s494, 3
        %p497 = scmp.lt.s32.totalorder %s19, 0
        %s498 = scalar_select %p497, %s19, 0
        %s499 = sadd.s32 %s498, %s496
        %s500 = smul.addr %s499, 8
        %s501 = scalar_lea.vmem %s2, %s500
        // Predicated region
        $region75: #{resnet50_features_forward.119} parent=61 // pred_check
          %p502 = pneg %p108
        $region76: #{resnet50_features_forward.119} parent=61 // pred_check_branch
          %504 = sbr.rel (%p502) target = $region78
        $region77: #{resnet50_features_forward.119} parent=61 // pred_region
          %s505 = smul.u32 4, %s18
        $region78: #{resnet50_features_forward.119} parent=61 // pred_fallthru
          _
        // Predicated region
        $region79: #{resnet50_features_forward.119} parent=61 // pred_check
          %p506 = pneg %p108
        $region80: #{resnet50_features_forward.119} parent=61 // pred_check_branch
          %508 = sbr.rel (%p506) target = $region82
        $region81: #{resnet50_features_forward.119} parent=61 // pred_region
          %s509 = smul.u32 4, %s18
          %p510 = scmp.lt.s32.totalorder %s509, 3
          %s511 = scalar_select %p510, %s509, 3
          %p512 = scmp.lt.s32.totalorder %s19, 0
          %s513 = scalar_select %p512, %s19, 0
          %s514 = sadd.s32 %s513, %s511
          %s515 = smul.addr %s514, 8
          %s516 = scalar_lea.vmem %s2, %s515
        $region82: #{resnet50_features_forward.119} parent=61 // pred_fallthru
          _
      $region62: #{resnet50_features_forward.119} parent=5 // pred_fallthru
        _
      %p517 = scmp.le.s32.totalorder 2, %s8
      // Predicated region
      $region83: #{resnet50_features_forward.119} parent=5 // pred_check
        %p518 = pneg %p517
      $region84: #{resnet50_features_forward.119} parent=5 // pred_check_branch
        %520 = sbr.rel (%p518) target = $region86
      $region85: #{resnet50_features_forward.119} parent=5 // pred_region
        %s521 = ssub.s32 %s8, 2
      $region86: #{resnet50_features_forward.119} parent=5 // pred_fallthru
        _
    $region6: #{resnet50_features_forward.119} parent=1 // loop_footer
      %s12 = sadd.s32 1, %s8
    $region7: #{resnet50_features_forward.119} parent=1 // loop_footer_branch
      %7 = sbr.rel target = $region3
    $region8: #{resnet50_features_forward.119} parent=1 // loop_exit
      _

</llo_original>
